<compile_context>
chip_gen: v7x
topology: tpu7x:2x2x1
jax: 0.10.0
libtpu: 0.0.40
codegen_flags: <defaults>
</compile_context>

<pallas_src>
import math

import jax
import jax.numpy as jnp
from jax.experimental import pallas as pl
from jax.experimental.pallas import tpu as pltpu

NEG_SLOPE = 0.2   # LeakyReLU(0.2)
B_BLOCK = 8       # images per grid step (sublane-aligned for f32 reshapes)


# ------------------------------ fused kernel ------------------------------- #

def _make_fused_kernel(metas, b_block, n_layers):
    """conv stack -> global avg pool -> MLP head, for one block of images.

    refs layout:
      refs[0]                        x_ref   (H0p, W0p, B, C0p) bf16 (pipelined)
      refs[1 : 1+2L]                 (w_l, shift_l) per conv layer (VMEM-resident)
      refs[1+2L : 5+2L]              mw1, mb1, mw2, mb2            (VMEM-resident)
      refs[5+2L]                     o_ref   (B, 1) f32
      refs[6+2L : 6+3L]              im2col scratch (M_l, 9*Cin_l) f32
      refs[6+3L : ]                  padded-activation scratch for layers 1..L-1
    """

    def kernel(*refs):
        x_ref = refs[0]
        conv_refs = refs[1:1 + 2 * n_layers]
        mw1_ref, mb1_ref, mw2_ref, mb2_ref = refs[1 + 2 * n_layers:5 + 2 * n_layers]
        o_ref = refs[5 + 2 * n_layers]
        col_refs = refs[6 + 2 * n_layers:6 + 3 * n_layers]
        pad_refs = refs[6 + 3 * n_layers:]

        src_ref = x_ref                                   # layer-0 padded input
        y = None
        for l in range(n_layers):
            meta = metas[l]
            s, ho, wo = meta["stride"], meta["h_out"], meta["w_out"]
            w_ref, sh_ref = conv_refs[2 * l], conv_refs[2 * l + 1]
            col_ref = col_refs[l]
            cin = src_ref.shape[-1]
            m = ho * wo * b_block

            # im2col gather on the load/VPU path (MXU-free): each tap is a
            # static outer-dim slice of the zero-padded activation; stride-2 is
            # an outer-dim reshape + select.  Result lands in columns
            # [t*Cin, (t+1)*Cin) of the im2col scratch.
            for dh in range(3):
                for dw in range(3):
                    if s == 1:
                        g = src_ref[dh:dh + ho, dw:dw + wo]
                    else:
                        g = src_ref[dh:dh + s * ho, dw:dw + s * wo]
                        g = g.reshape(ho, s, s * wo, b_block, cin)[:, 0]
                        g = g.reshape(ho, wo, s, b_block, cin)[:, :, 0]
                    g = g.astype(jnp.float32).reshape(m, cin)
                    t = dh * 3 + dw
                    col_ref[:, t * cin:(t + 1) * cin] = g

            # ONE consolidated matmul per layer: (M, 9*Cin) @ (9*Cin, Cout),
            # bf16 operands / f32 accumulation.  BN scale is pre-folded into W.
            patches = col_ref[...].astype(jnp.bfloat16)
            y = jnp.dot(patches, w_ref[...], preferred_element_type=jnp.float32)
            y = y + sh_ref[...]                            # bias / folded BN shift
            y = jnp.where(y > 0.0, y, NEG_SLOPE * y)       # LeakyReLU(0.2)

            if l + 1 < n_layers:
                # Spatially zero-pad into the next layer's padded-input scratch.
                nxt = pad_refs[l]
                nxt[...] = jnp.zeros(nxt.shape, nxt.dtype)
                nxt[1:1 + ho, 1:1 + wo] = y.reshape(ho, wo, b_block, y.shape[-1])
                src_ref = nxt

        # AdaptiveAvgPool2d(1): mean over spatial positions per image.
        hw = metas[-1]["h_out"] * metas[-1]["w_out"]
        c_last = y.shape[-1]
        pooled = jnp.mean(y.reshape(hw, b_block, c_last), axis=0)   # (B, C)

        # MLP head: Linear -> GELU -> Linear(hidden -> 1).
        h = jnp.dot(pooled.astype(jnp.bfloat16), mw1_ref[...],
                    preferred_element_type=jnp.float32) + mb1_ref[...]
        # TODO(synk): PyTorch nn.GELU defaults to the exact erf form; tanh
        #             approximation used here (diff ~1e-3).
        c0 = 0.7978845608028654  # sqrt(2/pi)
        h = 0.5 * h * (1.0 + jnp.tanh(c0 * (h + 0.044715 * h * h * h)))
        # 256 -> 1 head as a VPU multiply + lane reduction (no N=1 MXU pass).
        scores = jnp.sum(h * mw2_ref[...], axis=-1, keepdims=True) + mb2_ref[...]
        o_ref[...] = scores                                # (B, 1)

    return kernel


# ------------------------------- parameters -------------------------------- #

def build_discriminator_params(key, input_nc=4, ndf=64, n_layers=3,
                               mlp_hidden_dim=256):
    """Mirrors Discriminator2DConv.__init__ (use_actnorm=False -> BatchNorm2d,
    hence use_bias=False for every conv after the first).  Note the reference
    module caps the final width with min(2**n_layers, 4) -> hidden_dim = 256."""
    kw_ = 3
    layers = [(input_nc, ndf, 2, True, False)]          # (cin, cout, stride, bias, bn)
    nf_mult = 1
    for n in range(1, n_layers):
        nf_mult_prev = nf_mult
        nf_mult = min(2 ** n, 8)
        layers.append((ndf * nf_mult_prev, ndf * nf_mult, 2, False, True))
    nf_mult_prev = nf_mult
    nf_mult = min(2 ** n_layers, 4)
    layers.append((ndf * nf_mult_prev, ndf * nf_mult, 1, False, True))
    hidden_dim = ndf * nf_mult

    params = {"convs": [], "strides": []}
    eps = 1e-5
    for (cin, cout, stride, has_bias, has_bn) in layers:
        key, k1, k2 = jax.random.split(key, 3)
        fan_in = cin * kw_ * kw_
        bound = 1.0 / math.sqrt(fan_in)
        w = jax.random.uniform(k1, (kw_, kw_, cin, cout), jnp.float32,
                               -bound, bound)            # HWIO
        b = (jax.random.uniform(k2, (cout,), jnp.float32, -bound, bound)
             if has_bias else jnp.zeros((cout,), jnp.float32))
        if has_bn:  # fold eval-mode BatchNorm into per-channel scale/shift
            gamma = jnp.ones((cout,), jnp.float32)
            beta = jnp.zeros((cout,), jnp.float32)
            rmean = jnp.zeros((cout,), jnp.float32)
            rvar = jnp.ones((cout,), jnp.float32)
            scale = gamma / jnp.sqrt(rvar + eps)
            shift = beta + (b - rmean) * scale
        else:
            scale = jnp.ones((cout,), jnp.float32)
            shift = b
        params["convs"].append({"w": w, "scale": scale, "shift": shift})
        params["strides"].append(stride)

    key, k1, k2, k3, k4 = jax.random.split(key, 5)
    bound1 = 1.0 / math.sqrt(hidden_dim)
    bound2 = 1.0 / math.sqrt(mlp_hidden_dim)
    params["mlp"] = {
        "w1": jax.random.uniform(k1, (hidden_dim, mlp_hidden_dim), jnp.float32,
                                 -bound1, bound1),
        "b1": jax.random.uniform(k2, (mlp_hidden_dim,), jnp.float32,
                                 -bound1, bound1),
        "w2": jax.random.uniform(k3, (mlp_hidden_dim, 1), jnp.float32,
                                 -bound2, bound2),
        "b2": jax.random.uniform(k4, (1,), jnp.float32, -bound2, bound2),
    }
    return params


# --------------------------------- wrapper ---------------------------------- #

def discriminator_forward(params, x_nchw, b_block=B_BLOCK):
    """x_nchw: (N, C, H, W) float32  ->  score: (N,) float32."""
    assert b_block % 8 == 0, "b_block must be sublane-aligned (multiple of 8)"
    n, cin, h, w = x_nchw.shape
    n_layers = len(params["convs"])
    cin_pad = max(8, ((cin + 7) // 8) * 8)               # sublane/lane-friendly

    # Static per-layer geometry (3x3 conv, padding=1).  h_pad/w_pad is the
    # zero-padded extent the kernel slices from (1 ring of zeros + an extra
    # zero row/col when needed so the stride-2 tap slices stay in bounds).
    metas = []
    h_cur, w_cur = h, w
    for stride in params["strides"]:
        h_out = (h_cur + 2 - 3) // stride + 1
        w_out = (w_cur + 2 - 3) // stride + 1
        slice_h = stride * h_out if stride > 1 else h_out
        slice_w = stride * w_out if stride > 1 else w_out
        metas.append(dict(stride=stride, h_in=h_cur, w_in=w_cur,
                          h_out=h_out, w_out=w_out,
                          h_pad=slice_h + 2, w_pad=slice_w + 2))
        h_cur, w_cur = h_out, w_out

    # Batch blocking: pad N up to a multiple of b_block; each grid step runs
    # b_block images stacked along the M rows of every matmul.
    n_pad = ((n + b_block - 1) // b_block) * b_block
    num_steps = n_pad // b_block
    h0p, w0p = metas[0]["h_pad"], metas[0]["w_pad"]

    # NCHW -> (steps*H0p, W0p, B, Cin_pad) bf16, zero-padded, done in XLA so the
    # per-step input DMA streams bf16.
    xt = jnp.transpose(x_nchw, (0, 2, 3, 1))
    xt = jnp.pad(xt, ((0, n_pad - n),
                      (1, h0p - 1 - h), (1, w0p - 1 - w),
                      (0, cin_pad - cin)))
    xt = xt.astype(jnp.bfloat16)
    xt = xt.reshape(num_steps, b_block, h0p, w0p, cin_pad)
    xt = jnp.transpose(xt, (0, 2, 3, 1, 4))              # (steps, Hp, Wp, B, C)
    xt = xt.reshape(num_steps * h0p, w0p, b_block, cin_pad)

    operands = [xt]
    in_specs = [pl.BlockSpec((h0p, w0p, b_block, cin_pad),
                             lambda i: (i, 0, 0, 0))]

    # Grid-invariant operands get a single VMEM-resident copy (no
    # double-buffering, no per-step DMA descriptors).
    vmem_spec = pl.BlockSpec(memory_space=pltpu.MemorySpace.VMEM)

    scratch_shapes = []
    couts = []
    c_cur = cin_pad
    for layer, meta in zip(params["convs"], metas):
        whwio = layer["w"]                               # (3, 3, ci, co) HWIO
        kh, kw_, ci, co = whwio.shape
        if ci < c_cur:                                   # zero-pad input channels
            whwio = jnp.pad(whwio, ((0, 0), (0, 0), (0, c_cur - ci), (0, 0)))
        # fold BN scale into the weights; tap-major (9*Cin, Cout) layout matches
        # the im2col scratch column order.
        wfold = whwio * layer["scale"][None, None, None, :]
        wfold = wfold.reshape(kh * kw_ * c_cur, co).astype(jnp.bfloat16)
        shift = layer["shift"].reshape(1, co).astype(jnp.float32)
        operands += [wfold, shift]
        in_specs += [vmem_spec, vmem_spec]
        scratch_shapes.append(
            pltpu.VMEM((meta["h_out"] * meta["w_out"] * b_block, kh * kw_ * c_cur),
                       jnp.float32))                     # im2col scratch
        couts.append(co)
        c_cur = co

    # Padded-activation scratch for the inputs of layers 1..L-1.
    for l in range(1, n_layers):
        scratch_shapes.append(
            pltpu.VMEM((metas[l]["h_pad"], metas[l]["w_pad"], b_block, couts[l - 1]),
                       jnp.float32))

    mlp = params["mlp"]
    mw1 = mlp["w1"].astype(jnp.bfloat16)                 # (hidden, mlp_hidden)
    mb1 = mlp["b1"].reshape(1, -1).astype(jnp.float32)
    mw2 = mlp["w2"].reshape(1, -1).astype(jnp.float32)   # (1, mlp_hidden) row
    mb2 = mlp["b2"].reshape(1, 1).astype(jnp.float32)
    operands += [mw1, mb1, mw2, mb2]
    in_specs += [vmem_spec] * 4

    kernel = _make_fused_kernel(metas, b_block, n_layers)
    out = pl.pallas_call(
        kernel,
        out_shape=jax.ShapeDtypeStruct((n_pad, 1), jnp.float32),
        grid=(num_steps,),
        in_specs=in_specs,
        out_specs=pl.BlockSpec((b_block, 1), lambda i: (i, 0)),
        scratch_shapes=scratch_shapes,
        compiler_params=pltpu.CompilerParams(
            dimension_semantics=("parallel",),           # batch across TCs on v7x
            vmem_limit_bytes=32 * 1024 * 1024),
    )(*operands)
    # use_sigmoid=False (default) -> no sigmoid; .squeeze() -> (N,)
    return out.reshape(n_pad)[:n]


if __name__ == "__main__":
    key = jax.random.PRNGKey(0)
    pkey, xkey = jax.random.split(key)

    params = build_discriminator_params(pkey, input_nc=4, ndf=64, n_layers=3,
                                        mlp_hidden_dim=256)
    # PyTorch-convention NCHW input: batch=2, channels=4, spatial=16x16
    x = jax.random.normal(xkey, (2, 4, 16, 16), dtype=jnp.float32)

    fwd = jax.jit(lambda inp: discriminator_forward(params, inp))
    out = fwd(x)
    jax.block_until_ready(out)

    assert out.shape == (2,), out.shape
    assert out.dtype == jnp.float32
    assert bool(jnp.all(jnp.isfinite(out)))
    print("KERNEL_OK")
</pallas_src>

<mosaic_0001>
module attributes {stable_mosaic.version = 11 : i64} {
  func.func @kernel(%arg0: i32, %arg1: memref<18x18x8x8xbf16, #tpu.memory_space<vmem>>, %arg2: memref<72x64xbf16, #tpu.memory_space<vmem>>, %arg3: memref<1x64xf32, #tpu.memory_space<vmem>>, %arg4: memref<576x128xbf16, #tpu.memory_space<vmem>>, %arg5: memref<1x128xf32, #tpu.memory_space<vmem>>, %arg6: memref<1152x256xbf16, #tpu.memory_space<vmem>>, %arg7: memref<1x256xf32, #tpu.memory_space<vmem>>, %arg8: memref<2304x256xbf16, #tpu.memory_space<vmem>>, %arg9: memref<1x256xf32, #tpu.memory_space<vmem>>, %arg10: memref<256x256xbf16, #tpu.memory_space<vmem>>, %arg11: memref<1x256xf32, #tpu.memory_space<vmem>>, %arg12: memref<1x256xf32, #tpu.memory_space<vmem>>, %arg13: memref<1x1xf32, #tpu.memory_space<vmem>>, %arg14: memref<8x1xf32, #tpu.memory_space<vmem>>, %arg15: memref<512x72xf32, #tpu.memory_space<vmem>>, %arg16: memref<128x576xf32, #tpu.memory_space<vmem>>, %arg17: memref<32x1152xf32, #tpu.memory_space<vmem>>, %arg18: memref<32x2304xf32, #tpu.memory_space<vmem>>, %arg19: memref<10x10x8x64xf32, #tpu.memory_space<vmem>>, %arg20: memref<6x6x8x128xf32, #tpu.memory_space<vmem>>, %arg21: memref<4x4x8x256xf32, #tpu.memory_space<vmem>>) attributes {dimension_semantics = [#tpu.dimension_semantics<parallel>], iteration_bounds = array<i64: 1>, scalar_prefetch = 0 : i64, scratch_operands = 7 : i64, tpu.core_type = #tpu.core_type<tc>, window_params = [{transform_indices = @transform_0, window_bounds = array<i64: 18, 18, 8, 8>}, {pipeline_mode = #tpu.pipeline_mode<synchronous>, transform_indices = @transform_1, window_bounds = array<i64: 72, 64>}, {pipeline_mode = #tpu.pipeline_mode<synchronous>, transform_indices = @transform_2, window_bounds = array<i64: 1, 64>}, {pipeline_mode = #tpu.pipeline_mode<synchronous>, transform_indices = @transform_3, window_bounds = array<i64: 576, 128>}, {pipeline_mode = #tpu.pipeline_mode<synchronous>, transform_indices = @transform_4, window_bounds = array<i64: 1, 128>}, {pipeline_mode = #tpu.pipeline_mode<synchronous>, transform_indices = @transform_5, window_bounds = array<i64: 1152, 256>}, {pipeline_mode = #tpu.pipeline_mode<synchronous>, transform_indices = @transform_6, window_bounds = array<i64: 1, 256>}, {pipeline_mode = #tpu.pipeline_mode<synchronous>, transform_indices = @transform_7, window_bounds = array<i64: 2304, 256>}, {pipeline_mode = #tpu.pipeline_mode<synchronous>, transform_indices = @transform_8, window_bounds = array<i64: 1, 256>}, {pipeline_mode = #tpu.pipeline_mode<synchronous>, transform_indices = @transform_9, window_bounds = array<i64: 256, 256>}, {pipeline_mode = #tpu.pipeline_mode<synchronous>, transform_indices = @transform_10, window_bounds = array<i64: 1, 256>}, {pipeline_mode = #tpu.pipeline_mode<synchronous>, transform_indices = @transform_11, window_bounds = array<i64: 1, 256>}, {pipeline_mode = #tpu.pipeline_mode<synchronous>, transform_indices = @transform_12, window_bounds = array<i64: 1, 1>}, {transform_indices = @transform_13, window_bounds = array<i64: 8, 1>}]} {
    %c0 = arith.constant 0 : index
    %c0_0 = arith.constant 0 : index
    %c0_1 = arith.constant 0 : index
    %c0_2 = arith.constant 0 : index
    %0 = vector.load %arg1[%c0, %c0_0, %c0_1, %c0_2] : memref<18x18x8x8xbf16, #tpu.memory_space<vmem>>, vector<16x16x8x8xbf16>
    %1 = vector.shape_cast %0 : vector<16x16x8x8xbf16> to vector<8x2x16x8x8xbf16>
    %2 = vector.extract_strided_slice %1 {offsets = [0, 0, 0, 0, 0], sizes = [8, 1, 16, 8, 8], strides = [1, 1, 1, 1, 1]} : vector<8x2x16x8x8xbf16> to vector<8x1x16x8x8xbf16>
    %3 = vector.shape_cast %2 : vector<8x1x16x8x8xbf16> to vector<8x16x8x8xbf16>
    %4 = vector.shape_cast %3 : vector<8x16x8x8xbf16> to vector<8x8x2x8x8xbf16>
    %5 = vector.extract_strided_slice %4 {offsets = [0, 0, 0, 0, 0], sizes = [8, 8, 1, 8, 8], strides = [1, 1, 1, 1, 1]} : vector<8x8x2x8x8xbf16> to vector<8x8x1x8x8xbf16>
    %6 = vector.shape_cast %5 : vector<8x8x1x8x8xbf16> to vector<8x8x8x8xbf16>
    %7 = arith.extf %6 : vector<8x8x8x8xbf16> to vector<8x8x8x8xf32>
    %8 = vector.shape_cast %7 : vector<8x8x8x8xf32> to vector<512x8xf32>
    %c0_3 = arith.constant 0 : index
    %c0_4 = arith.constant 0 : index
    %9 = vector.load %arg15[%c0_3, %c0_4] : memref<512x72xf32, #tpu.memory_space<vmem>>, vector<512x8xf32>
    tpu.vector_store %arg15[%c0_3, %c0_4], %8 {strides = array<i32>} : memref<512x72xf32, #tpu.memory_space<vmem>>, vector<512x8xf32>,
    %c0_5 = arith.constant 0 : index
    %c1 = arith.constant 1 : index
    %c0_6 = arith.constant 0 : index
    %c0_7 = arith.constant 0 : index
    %10 = vector.load %arg1[%c0_5, %c1, %c0_6, %c0_7] : memref<18x18x8x8xbf16, #tpu.memory_space<vmem>>, vector<16x16x8x8xbf16>
    %11 = vector.shape_cast %10 : vector<16x16x8x8xbf16> to vector<8x2x16x8x8xbf16>
    %12 = vector.extract_strided_slice %11 {offsets = [0, 0, 0, 0, 0], sizes = [8, 1, 16, 8, 8], strides = [1, 1, 1, 1, 1]} : vector<8x2x16x8x8xbf16> to vector<8x1x16x8x8xbf16>
    %13 = vector.shape_cast %12 : vector<8x1x16x8x8xbf16> to vector<8x16x8x8xbf16>
    %14 = vector.shape_cast %13 : vector<8x16x8x8xbf16> to vector<8x8x2x8x8xbf16>
    %15 = vector.extract_strided_slice %14 {offsets = [0, 0, 0, 0, 0], sizes = [8, 8, 1, 8, 8], strides = [1, 1, 1, 1, 1]} : vector<8x8x2x8x8xbf16> to vector<8x8x1x8x8xbf16>
    %16 = vector.shape_cast %15 : vector<8x8x1x8x8xbf16> to vector<8x8x8x8xbf16>
    %17 = arith.extf %16 : vector<8x8x8x8xbf16> to vector<8x8x8x8xf32>
    %18 = vector.shape_cast %17 : vector<8x8x8x8xf32> to vector<512x8xf32>
    %c0_8 = arith.constant 0 : index
    %c8 = arith.constant 8 : index
    %19 = vector.load %arg15[%c0_8, %c8] : memref<512x72xf32, #tpu.memory_space<vmem>>, vector<512x8xf32>
    tpu.vector_store %arg15[%c0_8, %c8], %18 {strides = array<i32>} : memref<512x72xf32, #tpu.memory_space<vmem>>, vector<512x8xf32>,
    %c0_9 = arith.constant 0 : index
    %c2 = arith.constant 2 : index
    %c0_10 = arith.constant 0 : index
    %c0_11 = arith.constant 0 : index
    %20 = vector.load %arg1[%c0_9, %c2, %c0_10, %c0_11] : memref<18x18x8x8xbf16, #tpu.memory_space<vmem>>, vector<16x16x8x8xbf16>
    %21 = vector.shape_cast %20 : vector<16x16x8x8xbf16> to vector<8x2x16x8x8xbf16>
    %22 = vector.extract_strided_slice %21 {offsets = [0, 0, 0, 0, 0], sizes = [8, 1, 16, 8, 8], strides = [1, 1, 1, 1, 1]} : vector<8x2x16x8x8xbf16> to vector<8x1x16x8x8xbf16>
    %23 = vector.shape_cast %22 : vector<8x1x16x8x8xbf16> to vector<8x16x8x8xbf16>
    %24 = vector.shape_cast %23 : vector<8x16x8x8xbf16> to vector<8x8x2x8x8xbf16>
    %25 = vector.extract_strided_slice %24 {offsets = [0, 0, 0, 0, 0], sizes = [8, 8, 1, 8, 8], strides = [1, 1, 1, 1, 1]} : vector<8x8x2x8x8xbf16> to vector<8x8x1x8x8xbf16>
    %26 = vector.shape_cast %25 : vector<8x8x1x8x8xbf16> to vector<8x8x8x8xbf16>
    %27 = arith.extf %26 : vector<8x8x8x8xbf16> to vector<8x8x8x8xf32>
    %28 = vector.shape_cast %27 : vector<8x8x8x8xf32> to vector<512x8xf32>
    %c0_12 = arith.constant 0 : index
    %c16 = arith.constant 16 : index
    %29 = vector.load %arg15[%c0_12, %c16] : memref<512x72xf32, #tpu.memory_space<vmem>>, vector<512x8xf32>
    tpu.vector_store %arg15[%c0_12, %c16], %28 {strides = array<i32>} : memref<512x72xf32, #tpu.memory_space<vmem>>, vector<512x8xf32>,
    %c1_13 = arith.constant 1 : index
    %c0_14 = arith.constant 0 : index
    %c0_15 = arith.constant 0 : index
    %c0_16 = arith.constant 0 : index
    %30 = vector.load %arg1[%c1_13, %c0_14, %c0_15, %c0_16] : memref<18x18x8x8xbf16, #tpu.memory_space<vmem>>, vector<16x16x8x8xbf16>
    %31 = vector.shape_cast %30 : vector<16x16x8x8xbf16> to vector<8x2x16x8x8xbf16>
    %32 = vector.extract_strided_slice %31 {offsets = [0, 0, 0, 0, 0], sizes = [8, 1, 16, 8, 8], strides = [1, 1, 1, 1, 1]} : vector<8x2x16x8x8xbf16> to vector<8x1x16x8x8xbf16>
    %33 = vector.shape_cast %32 : vector<8x1x16x8x8xbf16> to vector<8x16x8x8xbf16>
    %34 = vector.shape_cast %33 : vector<8x16x8x8xbf16> to vector<8x8x2x8x8xbf16>
    %35 = vector.extract_strided_slice %34 {offsets = [0, 0, 0, 0, 0], sizes = [8, 8, 1, 8, 8], strides = [1, 1, 1, 1, 1]} : vector<8x8x2x8x8xbf16> to vector<8x8x1x8x8xbf16>
    %36 = vector.shape_cast %35 : vector<8x8x1x8x8xbf16> to vector<8x8x8x8xbf16>
    %37 = arith.extf %36 : vector<8x8x8x8xbf16> to vector<8x8x8x8xf32>
    %38 = vector.shape_cast %37 : vector<8x8x8x8xf32> to vector<512x8xf32>
    %c0_17 = arith.constant 0 : index
    %c24 = arith.constant 24 : index
    %39 = vector.load %arg15[%c0_17, %c24] : memref<512x72xf32, #tpu.memory_space<vmem>>, vector<512x8xf32>
    tpu.vector_store %arg15[%c0_17, %c24], %38 {strides = array<i32>} : memref<512x72xf32, #tpu.memory_space<vmem>>, vector<512x8xf32>,
    %c1_18 = arith.constant 1 : index
    %c1_19 = arith.constant 1 : index
    %c0_20 = arith.constant 0 : index
    %c0_21 = arith.constant 0 : index
    %40 = vector.load %arg1[%c1_18, %c1_19, %c0_20, %c0_21] : memref<18x18x8x8xbf16, #tpu.memory_space<vmem>>, vector<16x16x8x8xbf16>
    %41 = vector.shape_cast %40 : vector<16x16x8x8xbf16> to vector<8x2x16x8x8xbf16>
    %42 = vector.extract_strided_slice %41 {offsets = [0, 0, 0, 0, 0], sizes = [8, 1, 16, 8, 8], strides = [1, 1, 1, 1, 1]} : vector<8x2x16x8x8xbf16> to vector<8x1x16x8x8xbf16>
    %43 = vector.shape_cast %42 : vector<8x1x16x8x8xbf16> to vector<8x16x8x8xbf16>
    %44 = vector.shape_cast %43 : vector<8x16x8x8xbf16> to vector<8x8x2x8x8xbf16>
    %45 = vector.extract_strided_slice %44 {offsets = [0, 0, 0, 0, 0], sizes = [8, 8, 1, 8, 8], strides = [1, 1, 1, 1, 1]} : vector<8x8x2x8x8xbf16> to vector<8x8x1x8x8xbf16>
    %46 = vector.shape_cast %45 : vector<8x8x1x8x8xbf16> to vector<8x8x8x8xbf16>
    %47 = arith.extf %46 : vector<8x8x8x8xbf16> to vector<8x8x8x8xf32>
    %48 = vector.shape_cast %47 : vector<8x8x8x8xf32> to vector<512x8xf32>
    %c0_22 = arith.constant 0 : index
    %c32 = arith.constant 32 : index
    %49 = vector.load %arg15[%c0_22, %c32] : memref<512x72xf32, #tpu.memory_space<vmem>>, vector<512x8xf32>
    tpu.vector_store %arg15[%c0_22, %c32], %48 {strides = array<i32>} : memref<512x72xf32, #tpu.memory_space<vmem>>, vector<512x8xf32>,
    %c1_23 = arith.constant 1 : index
    %c2_24 = arith.constant 2 : index
    %c0_25 = arith.constant 0 : index
    %c0_26 = arith.constant 0 : index
    %50 = vector.load %arg1[%c1_23, %c2_24, %c0_25, %c0_26] : memref<18x18x8x8xbf16, #tpu.memory_space<vmem>>, vector<16x16x8x8xbf16>
    %51 = vector.shape_cast %50 : vector<16x16x8x8xbf16> to vector<8x2x16x8x8xbf16>
    %52 = vector.extract_strided_slice %51 {offsets = [0, 0, 0, 0, 0], sizes = [8, 1, 16, 8, 8], strides = [1, 1, 1, 1, 1]} : vector<8x2x16x8x8xbf16> to vector<8x1x16x8x8xbf16>
    %53 = vector.shape_cast %52 : vector<8x1x16x8x8xbf16> to vector<8x16x8x8xbf16>
    %54 = vector.shape_cast %53 : vector<8x16x8x8xbf16> to vector<8x8x2x8x8xbf16>
    %55 = vector.extract_strided_slice %54 {offsets = [0, 0, 0, 0, 0], sizes = [8, 8, 1, 8, 8], strides = [1, 1, 1, 1, 1]} : vector<8x8x2x8x8xbf16> to vector<8x8x1x8x8xbf16>
    %56 = vector.shape_cast %55 : vector<8x8x1x8x8xbf16> to vector<8x8x8x8xbf16>
    %57 = arith.extf %56 : vector<8x8x8x8xbf16> to vector<8x8x8x8xf32>
    %58 = vector.shape_cast %57 : vector<8x8x8x8xf32> to vector<512x8xf32>
    %c0_27 = arith.constant 0 : index
    %c40 = arith.constant 40 : index
    %59 = vector.load %arg15[%c0_27, %c40] : memref<512x72xf32, #tpu.memory_space<vmem>>, vector<512x8xf32>
    tpu.vector_store %arg15[%c0_27, %c40], %58 {strides = array<i32>} : memref<512x72xf32, #tpu.memory_space<vmem>>, vector<512x8xf32>,
    %c2_28 = arith.constant 2 : index
    %c0_29 = arith.constant 0 : index
    %c0_30 = arith.constant 0 : index
    %c0_31 = arith.constant 0 : index
    %60 = vector.load %arg1[%c2_28, %c0_29, %c0_30, %c0_31] : memref<18x18x8x8xbf16, #tpu.memory_space<vmem>>, vector<16x16x8x8xbf16>
    %61 = vector.shape_cast %60 : vector<16x16x8x8xbf16> to vector<8x2x16x8x8xbf16>
    %62 = vector.extract_strided_slice %61 {offsets = [0, 0, 0, 0, 0], sizes = [8, 1, 16, 8, 8], strides = [1, 1, 1, 1, 1]} : vector<8x2x16x8x8xbf16> to vector<8x1x16x8x8xbf16>
    %63 = vector.shape_cast %62 : vector<8x1x16x8x8xbf16> to vector<8x16x8x8xbf16>
    %64 = vector.shape_cast %63 : vector<8x16x8x8xbf16> to vector<8x8x2x8x8xbf16>
    %65 = vector.extract_strided_slice %64 {offsets = [0, 0, 0, 0, 0], sizes = [8, 8, 1, 8, 8], strides = [1, 1, 1, 1, 1]} : vector<8x8x2x8x8xbf16> to vector<8x8x1x8x8xbf16>
    %66 = vector.shape_cast %65 : vector<8x8x1x8x8xbf16> to vector<8x8x8x8xbf16>
    %67 = arith.extf %66 : vector<8x8x8x8xbf16> to vector<8x8x8x8xf32>
    %68 = vector.shape_cast %67 : vector<8x8x8x8xf32> to vector<512x8xf32>
    %c0_32 = arith.constant 0 : index
    %c48 = arith.constant 48 : index
    %69 = vector.load %arg15[%c0_32, %c48] : memref<512x72xf32, #tpu.memory_space<vmem>>, vector<512x8xf32>
    tpu.vector_store %arg15[%c0_32, %c48], %68 {strides = array<i32>} : memref<512x72xf32, #tpu.memory_space<vmem>>, vector<512x8xf32>,
    %c2_33 = arith.constant 2 : index
    %c1_34 = arith.constant 1 : index
    %c0_35 = arith.constant 0 : index
    %c0_36 = arith.constant 0 : index
    %70 = vector.load %arg1[%c2_33, %c1_34, %c0_35, %c0_36] : memref<18x18x8x8xbf16, #tpu.memory_space<vmem>>, vector<16x16x8x8xbf16>
    %71 = vector.shape_cast %70 : vector<16x16x8x8xbf16> to vector<8x2x16x8x8xbf16>
    %72 = vector.extract_strided_slice %71 {offsets = [0, 0, 0, 0, 0], sizes = [8, 1, 16, 8, 8], strides = [1, 1, 1, 1, 1]} : vector<8x2x16x8x8xbf16> to vector<8x1x16x8x8xbf16>
    %73 = vector.shape_cast %72 : vector<8x1x16x8x8xbf16> to vector<8x16x8x8xbf16>
    %74 = vector.shape_cast %73 : vector<8x16x8x8xbf16> to vector<8x8x2x8x8xbf16>
    %75 = vector.extract_strided_slice %74 {offsets = [0, 0, 0, 0, 0], sizes = [8, 8, 1, 8, 8], strides = [1, 1, 1, 1, 1]} : vector<8x8x2x8x8xbf16> to vector<8x8x1x8x8xbf16>
    %76 = vector.shape_cast %75 : vector<8x8x1x8x8xbf16> to vector<8x8x8x8xbf16>
    %77 = arith.extf %76 : vector<8x8x8x8xbf16> to vector<8x8x8x8xf32>
    %78 = vector.shape_cast %77 : vector<8x8x8x8xf32> to vector<512x8xf32>
    %c0_37 = arith.constant 0 : index
    %c56 = arith.constant 56 : index
    %79 = vector.load %arg15[%c0_37, %c56] : memref<512x72xf32, #tpu.memory_space<vmem>>, vector<512x8xf32>
    tpu.vector_store %arg15[%c0_37, %c56], %78 {strides = array<i32>} : memref<512x72xf32, #tpu.memory_space<vmem>>, vector<512x8xf32>,
    %c2_38 = arith.constant 2 : index
    %c2_39 = arith.constant 2 : index
    %c0_40 = arith.constant 0 : index
    %c0_41 = arith.constant 0 : index
    %80 = vector.load %arg1[%c2_38, %c2_39, %c0_40, %c0_41] : memref<18x18x8x8xbf16, #tpu.memory_space<vmem>>, vector<16x16x8x8xbf16>
    %81 = vector.shape_cast %80 : vector<16x16x8x8xbf16> to vector<8x2x16x8x8xbf16>
    %82 = vector.extract_strided_slice %81 {offsets = [0, 0, 0, 0, 0], sizes = [8, 1, 16, 8, 8], strides = [1, 1, 1, 1, 1]} : vector<8x2x16x8x8xbf16> to vector<8x1x16x8x8xbf16>
    %83 = vector.shape_cast %82 : vector<8x1x16x8x8xbf16> to vector<8x16x8x8xbf16>
    %84 = vector.shape_cast %83 : vector<8x16x8x8xbf16> to vector<8x8x2x8x8xbf16>
    %85 = vector.extract_strided_slice %84 {offsets = [0, 0, 0, 0, 0], sizes = [8, 8, 1, 8, 8], strides = [1, 1, 1, 1, 1]} : vector<8x8x2x8x8xbf16> to vector<8x8x1x8x8xbf16>
    %86 = vector.shape_cast %85 : vector<8x8x1x8x8xbf16> to vector<8x8x8x8xbf16>
    %87 = arith.extf %86 : vector<8x8x8x8xbf16> to vector<8x8x8x8xf32>
    %88 = vector.shape_cast %87 : vector<8x8x8x8xf32> to vector<512x8xf32>
    %c0_42 = arith.constant 0 : index
    %c64 = arith.constant 64 : index
    %89 = vector.load %arg15[%c0_42, %c64] : memref<512x72xf32, #tpu.memory_space<vmem>>, vector<512x8xf32>
    tpu.vector_store %arg15[%c0_42, %c64], %88 {strides = array<i32>} : memref<512x72xf32, #tpu.memory_space<vmem>>, vector<512x8xf32>,
    %c0_43 = arith.constant 0 : index
    %c0_44 = arith.constant 0 : index
    %90 = vector.load %arg15[%c0_43, %c0_44] : memref<512x72xf32, #tpu.memory_space<vmem>>, vector<512x72xf32>
    %91 = arith.truncf %90 : vector<512x72xf32> to vector<512x72xbf16>
    %c0_45 = arith.constant 0 : index
    %c0_46 = arith.constant 0 : index
    %92 = vector.load %arg2[%c0_45, %c0_46] : memref<72x64xbf16, #tpu.memory_space<vmem>>, vector<72x64xbf16>
    %cst = arith.constant dense<0.000000e+00> : vector<512x64xf32>
    %93 = tpu.matmul %91, %92, %cst {dimension_numbers = #tpu.dot_dimension_numbers<[1], [0], [0], [1], [0, 0, 1, 1], [], []>} : vector<512x72xbf16>, vector<72x64xbf16>, vector<512x64xf32> -> vector<512x64xf32>
    %c0_47 = arith.constant 0 : index
    %c0_48 = arith.constant 0 : index
    %94 = vector.load %arg3[%c0_47, %c0_48] : memref<1x64xf32, #tpu.memory_space<vmem>>, vector<1x64xf32>
    %95 = vector.broadcast %94 : vector<1x64xf32> to vector<512x64xf32>
    %96 = arith.addf %93, %95 : vector<512x64xf32>
    %cst_49 = arith.constant 0.000000e+00 : f32
    %97 = vector.broadcast %cst_49 : f32 to vector<512x64xf32>
    %98 = arith.cmpf ogt, %96, %97 : vector<512x64xf32>
    %cst_50 = arith.constant 2.000000e-01 : f32
    %99 = vector.broadcast %cst_50 : f32 to vector<512x64xf32>
    %100 = arith.mulf %99, %96 : vector<512x64xf32>
    %101 = arith.select %98, %96, %100 : vector<512x64xi1>, vector<512x64xf32>
    %cst_51 = arith.constant 0.000000e+00 : f32
    %102 = vector.broadcast %cst_51 : f32 to vector<10x10x8x64xf32>
    %c0_52 = arith.constant 0 : index
    %c0_53 = arith.constant 0 : index
    %c0_54 = arith.constant 0 : index
    %c0_55 = arith.constant 0 : index
    %103 = vector.load %arg19[%c0_52, %c0_53, %c0_54, %c0_55] : memref<10x10x8x64xf32, #tpu.memory_space<vmem>>, vector<10x10x8x64xf32>
    tpu.vector_store %arg19[%c0_52, %c0_53, %c0_54, %c0_55], %102 {strides = array<i32>} : memref<10x10x8x64xf32, #tpu.memory_space<vmem>>, vector<10x10x8x64xf32>,
    %104 = vector.shape_cast %101 : vector<512x64xf32> to vector<8x8x8x64xf32>
    %c1_56 = arith.constant 1 : index
    %c1_57 = arith.constant 1 : index
    %c0_58 = arith.constant 0 : index
    %c0_59 = arith.constant 0 : index
    %105 = vector.load %arg19[%c1_56, %c1_57, %c0_58, %c0_59] : memref<10x10x8x64xf32, #tpu.memory_space<vmem>>, vector<8x8x8x64xf32>
    tpu.vector_store %arg19[%c1_56, %c1_57, %c0_58, %c0_59], %104 {strides = array<i32>} : memref<10x10x8x64xf32, #tpu.memory_space<vmem>>, vector<8x8x8x64xf32>,
    %c0_60 = arith.constant 0 : index
    %c0_61 = arith.constant 0 : index
    %c0_62 = arith.constant 0 : index
    %c0_63 = arith.constant 0 : index
    %106 = vector.load %arg19[%c0_60, %c0_61, %c0_62, %c0_63] : memref<10x10x8x64xf32, #tpu.memory_space<vmem>>, vector<8x8x8x64xf32>
    %107 = vector.shape_cast %106 : vector<8x8x8x64xf32> to vector<4x2x8x8x64xf32>
    %108 = vector.extract_strided_slice %107 {offsets = [0, 0, 0, 0, 0], sizes = [4, 1, 8, 8, 64], strides = [1, 1, 1, 1, 1]} : vector<4x2x8x8x64xf32> to vector<4x1x8x8x64xf32>
    %109 = vector.shape_cast %108 : vector<4x1x8x8x64xf32> to vector<4x8x8x64xf32>
    %110 = vector.shape_cast %109 : vector<4x8x8x64xf32> to vector<4x4x2x8x64xf32>
    %111 = vector.extract_strided_slice %110 {offsets = [0, 0, 0, 0, 0], sizes = [4, 4, 1, 8, 64], strides = [1, 1, 1, 1, 1]} : vector<4x4x2x8x64xf32> to vector<4x4x1x8x64xf32>
    %112 = vector.shape_cast %111 : vector<4x4x1x8x64xf32> to vector<4x4x8x64xf32>
    %113 = vector.shape_cast %112 : vector<4x4x8x64xf32> to vector<128x64xf32>
    %c0_64 = arith.constant 0 : index
    %c0_65 = arith.constant 0 : index
    %114 = vector.load %arg16[%c0_64, %c0_65] : memref<128x576xf32, #tpu.memory_space<vmem>>, vector<128x64xf32>
    tpu.vector_store %arg16[%c0_64, %c0_65], %113 {strides = array<i32>} : memref<128x576xf32, #tpu.memory_space<vmem>>, vector<128x64xf32>,
    %c0_66 = arith.constant 0 : index
    %c1_67 = arith.constant 1 : index
    %c0_68 = arith.constant 0 : index
    %c0_69 = arith.constant 0 : index
    %115 = vector.load %arg19[%c0_66, %c1_67, %c0_68, %c0_69] : memref<10x10x8x64xf32, #tpu.memory_space<vmem>>, vector<8x8x8x64xf32>
    %116 = vector.shape_cast %115 : vector<8x8x8x64xf32> to vector<4x2x8x8x64xf32>
    %117 = vector.extract_strided_slice %116 {offsets = [0, 0, 0, 0, 0], sizes = [4, 1, 8, 8, 64], strides = [1, 1, 1, 1, 1]} : vector<4x2x8x8x64xf32> to vector<4x1x8x8x64xf32>
    %118 = vector.shape_cast %117 : vector<4x1x8x8x64xf32> to vector<4x8x8x64xf32>
    %119 = vector.shape_cast %118 : vector<4x8x8x64xf32> to vector<4x4x2x8x64xf32>
    %120 = vector.extract_strided_slice %119 {offsets = [0, 0, 0, 0, 0], sizes = [4, 4, 1, 8, 64], strides = [1, 1, 1, 1, 1]} : vector<4x4x2x8x64xf32> to vector<4x4x1x8x64xf32>
    %121 = vector.shape_cast %120 : vector<4x4x1x8x64xf32> to vector<4x4x8x64xf32>
    %122 = vector.shape_cast %121 : vector<4x4x8x64xf32> to vector<128x64xf32>
    %c0_70 = arith.constant 0 : index
    %c64_71 = arith.constant 64 : index
    %123 = vector.load %arg16[%c0_70, %c64_71] : memref<128x576xf32, #tpu.memory_space<vmem>>, vector<128x64xf32>
    tpu.vector_store %arg16[%c0_70, %c64_71], %122 {strides = array<i32>} : memref<128x576xf32, #tpu.memory_space<vmem>>, vector<128x64xf32>,
    %c0_72 = arith.constant 0 : index
    %c2_73 = arith.constant 2 : index
    %c0_74 = arith.constant 0 : index
    %c0_75 = arith.constant 0 : index
    %124 = vector.load %arg19[%c0_72, %c2_73, %c0_74, %c0_75] : memref<10x10x8x64xf32, #tpu.memory_space<vmem>>, vector<8x8x8x64xf32>
    %125 = vector.shape_cast %124 : vector<8x8x8x64xf32> to vector<4x2x8x8x64xf32>
    %126 = vector.extract_strided_slice %125 {offsets = [0, 0, 0, 0, 0], sizes = [4, 1, 8, 8, 64], strides = [1, 1, 1, 1, 1]} : vector<4x2x8x8x64xf32> to vector<4x1x8x8x64xf32>
    %127 = vector.shape_cast %126 : vector<4x1x8x8x64xf32> to vector<4x8x8x64xf32>
    %128 = vector.shape_cast %127 : vector<4x8x8x64xf32> to vector<4x4x2x8x64xf32>
    %129 = vector.extract_strided_slice %128 {offsets = [0, 0, 0, 0, 0], sizes = [4, 4, 1, 8, 64], strides = [1, 1, 1, 1, 1]} : vector<4x4x2x8x64xf32> to vector<4x4x1x8x64xf32>
    %130 = vector.shape_cast %129 : vector<4x4x1x8x64xf32> to vector<4x4x8x64xf32>
    %131 = vector.shape_cast %130 : vector<4x4x8x64xf32> to vector<128x64xf32>
    %c0_76 = arith.constant 0 : index
    %c128 = arith.constant 128 : index
    %132 = vector.load %arg16[%c0_76, %c128] : memref<128x576xf32, #tpu.memory_space<vmem>>, vector<128x64xf32>
    tpu.vector_store %arg16[%c0_76, %c128], %131 {strides = array<i32>} : memref<128x576xf32, #tpu.memory_space<vmem>>, vector<128x64xf32>,
    %c1_77 = arith.constant 1 : index
    %c0_78 = arith.constant 0 : index
    %c0_79 = arith.constant 0 : index
    %c0_80 = arith.constant 0 : index
    %133 = vector.load %arg19[%c1_77, %c0_78, %c0_79, %c0_80] : memref<10x10x8x64xf32, #tpu.memory_space<vmem>>, vector<8x8x8x64xf32>
    %134 = vector.shape_cast %133 : vector<8x8x8x64xf32> to vector<4x2x8x8x64xf32>
    %135 = vector.extract_strided_slice %134 {offsets = [0, 0, 0, 0, 0], sizes = [4, 1, 8, 8, 64], strides = [1, 1, 1, 1, 1]} : vector<4x2x8x8x64xf32> to vector<4x1x8x8x64xf32>
    %136 = vector.shape_cast %135 : vector<4x1x8x8x64xf32> to vector<4x8x8x64xf32>
    %137 = vector.shape_cast %136 : vector<4x8x8x64xf32> to vector<4x4x2x8x64xf32>
    %138 = vector.extract_strided_slice %137 {offsets = [0, 0, 0, 0, 0], sizes = [4, 4, 1, 8, 64], strides = [1, 1, 1, 1, 1]} : vector<4x4x2x8x64xf32> to vector<4x4x1x8x64xf32>
    %139 = vector.shape_cast %138 : vector<4x4x1x8x64xf32> to vector<4x4x8x64xf32>
    %140 = vector.shape_cast %139 : vector<4x4x8x64xf32> to vector<128x64xf32>
    %c0_81 = arith.constant 0 : index
    %c192 = arith.constant 192 : index
    %141 = vector.load %arg16[%c0_81, %c192] : memref<128x576xf32, #tpu.memory_space<vmem>>, vector<128x64xf32>
    tpu.vector_store %arg16[%c0_81, %c192], %140 {strides = array<i32>} : memref<128x576xf32, #tpu.memory_space<vmem>>, vector<128x64xf32>,
    %c1_82 = arith.constant 1 : index
    %c1_83 = arith.constant 1 : index
    %c0_84 = arith.constant 0 : index
    %c0_85 = arith.constant 0 : index
    %142 = vector.load %arg19[%c1_82, %c1_83, %c0_84, %c0_85] : memref<10x10x8x64xf32, #tpu.memory_space<vmem>>, vector<8x8x8x64xf32>
    %143 = vector.shape_cast %142 : vector<8x8x8x64xf32> to vector<4x2x8x8x64xf32>
    %144 = vector.extract_strided_slice %143 {offsets = [0, 0, 0, 0, 0], sizes = [4, 1, 8, 8, 64], strides = [1, 1, 1, 1, 1]} : vector<4x2x8x8x64xf32> to vector<4x1x8x8x64xf32>
    %145 = vector.shape_cast %144 : vector<4x1x8x8x64xf32> to vector<4x8x8x64xf32>
    %146 = vector.shape_cast %145 : vector<4x8x8x64xf32> to vector<4x4x2x8x64xf32>
    %147 = vector.extract_strided_slice %146 {offsets = [0, 0, 0, 0, 0], sizes = [4, 4, 1, 8, 64], strides = [1, 1, 1, 1, 1]} : vector<4x4x2x8x64xf32> to vector<4x4x1x8x64xf32>
    %148 = vector.shape_cast %147 : vector<4x4x1x8x64xf32> to vector<4x4x8x64xf32>
    %149 = vector.shape_cast %148 : vector<4x4x8x64xf32> to vector<128x64xf32>
    %c0_86 = arith.constant 0 : index
    %c256 = arith.constant 256 : index
    %150 = vector.load %arg16[%c0_86, %c256] : memref<128x576xf32, #tpu.memory_space<vmem>>, vector<128x64xf32>
    tpu.vector_store %arg16[%c0_86, %c256], %149 {strides = array<i32>} : memref<128x576xf32, #tpu.memory_space<vmem>>, vector<128x64xf32>,
    %c1_87 = arith.constant 1 : index
    %c2_88 = arith.constant 2 : index
    %c0_89 = arith.constant 0 : index
    %c0_90 = arith.constant 0 : index
    %151 = vector.load %arg19[%c1_87, %c2_88, %c0_89, %c0_90] : memref<10x10x8x64xf32, #tpu.memory_space<vmem>>, vector<8x8x8x64xf32>
    %152 = vector.shape_cast %151 : vector<8x8x8x64xf32> to vector<4x2x8x8x64xf32>
    %153 = vector.extract_strided_slice %152 {offsets = [0, 0, 0, 0, 0], sizes = [4, 1, 8, 8, 64], strides = [1, 1, 1, 1, 1]} : vector<4x2x8x8x64xf32> to vector<4x1x8x8x64xf32>
    %154 = vector.shape_cast %153 : vector<4x1x8x8x64xf32> to vector<4x8x8x64xf32>
    %155 = vector.shape_cast %154 : vector<4x8x8x64xf32> to vector<4x4x2x8x64xf32>
    %156 = vector.extract_strided_slice %155 {offsets = [0, 0, 0, 0, 0], sizes = [4, 4, 1, 8, 64], strides = [1, 1, 1, 1, 1]} : vector<4x4x2x8x64xf32> to vector<4x4x1x8x64xf32>
    %157 = vector.shape_cast %156 : vector<4x4x1x8x64xf32> to vector<4x4x8x64xf32>
    %158 = vector.shape_cast %157 : vector<4x4x8x64xf32> to vector<128x64xf32>
    %c0_91 = arith.constant 0 : index
    %c320 = arith.constant 320 : index
    %159 = vector.load %arg16[%c0_91, %c320] : memref<128x576xf32, #tpu.memory_space<vmem>>, vector<128x64xf32>
    tpu.vector_store %arg16[%c0_91, %c320], %158 {strides = array<i32>} : memref<128x576xf32, #tpu.memory_space<vmem>>, vector<128x64xf32>,
    %c2_92 = arith.constant 2 : index
    %c0_93 = arith.constant 0 : index
    %c0_94 = arith.constant 0 : index
    %c0_95 = arith.constant 0 : index
    %160 = vector.load %arg19[%c2_92, %c0_93, %c0_94, %c0_95] : memref<10x10x8x64xf32, #tpu.memory_space<vmem>>, vector<8x8x8x64xf32>
    %161 = vector.shape_cast %160 : vector<8x8x8x64xf32> to vector<4x2x8x8x64xf32>
    %162 = vector.extract_strided_slice %161 {offsets = [0, 0, 0, 0, 0], sizes = [4, 1, 8, 8, 64], strides = [1, 1, 1, 1, 1]} : vector<4x2x8x8x64xf32> to vector<4x1x8x8x64xf32>
    %163 = vector.shape_cast %162 : vector<4x1x8x8x64xf32> to vector<4x8x8x64xf32>
    %164 = vector.shape_cast %163 : vector<4x8x8x64xf32> to vector<4x4x2x8x64xf32>
    %165 = vector.extract_strided_slice %164 {offsets = [0, 0, 0, 0, 0], sizes = [4, 4, 1, 8, 64], strides = [1, 1, 1, 1, 1]} : vector<4x4x2x8x64xf32> to vector<4x4x1x8x64xf32>
    %166 = vector.shape_cast %165 : vector<4x4x1x8x64xf32> to vector<4x4x8x64xf32>
    %167 = vector.shape_cast %166 : vector<4x4x8x64xf32> to vector<128x64xf32>
    %c0_96 = arith.constant 0 : index
    %c384 = arith.constant 384 : index
    %168 = vector.load %arg16[%c0_96, %c384] : memref<128x576xf32, #tpu.memory_space<vmem>>, vector<128x64xf32>
    tpu.vector_store %arg16[%c0_96, %c384], %167 {strides = array<i32>} : memref<128x576xf32, #tpu.memory_space<vmem>>, vector<128x64xf32>,
    %c2_97 = arith.constant 2 : index
    %c1_98 = arith.constant 1 : index
    %c0_99 = arith.constant 0 : index
    %c0_100 = arith.constant 0 : index
    %169 = vector.load %arg19[%c2_97, %c1_98, %c0_99, %c0_100] : memref<10x10x8x64xf32, #tpu.memory_space<vmem>>, vector<8x8x8x64xf32>
    %170 = vector.shape_cast %169 : vector<8x8x8x64xf32> to vector<4x2x8x8x64xf32>
    %171 = vector.extract_strided_slice %170 {offsets = [0, 0, 0, 0, 0], sizes = [4, 1, 8, 8, 64], strides = [1, 1, 1, 1, 1]} : vector<4x2x8x8x64xf32> to vector<4x1x8x8x64xf32>
    %172 = vector.shape_cast %171 : vector<4x1x8x8x64xf32> to vector<4x8x8x64xf32>
    %173 = vector.shape_cast %172 : vector<4x8x8x64xf32> to vector<4x4x2x8x64xf32>
    %174 = vector.extract_strided_slice %173 {offsets = [0, 0, 0, 0, 0], sizes = [4, 4, 1, 8, 64], strides = [1, 1, 1, 1, 1]} : vector<4x4x2x8x64xf32> to vector<4x4x1x8x64xf32>
    %175 = vector.shape_cast %174 : vector<4x4x1x8x64xf32> to vector<4x4x8x64xf32>
    %176 = vector.shape_cast %175 : vector<4x4x8x64xf32> to vector<128x64xf32>
    %c0_101 = arith.constant 0 : index
    %c448 = arith.constant 448 : index
    %177 = vector.load %arg16[%c0_101, %c448] : memref<128x576xf32, #tpu.memory_space<vmem>>, vector<128x64xf32>
    tpu.vector_store %arg16[%c0_101, %c448], %176 {strides = array<i32>} : memref<128x576xf32, #tpu.memory_space<vmem>>, vector<128x64xf32>,
    %c2_102 = arith.constant 2 : index
    %c2_103 = arith.constant 2 : index
    %c0_104 = arith.constant 0 : index
    %c0_105 = arith.constant 0 : index
    %178 = vector.load %arg19[%c2_102, %c2_103, %c0_104, %c0_105] : memref<10x10x8x64xf32, #tpu.memory_space<vmem>>, vector<8x8x8x64xf32>
    %179 = vector.shape_cast %178 : vector<8x8x8x64xf32> to vector<4x2x8x8x64xf32>
    %180 = vector.extract_strided_slice %179 {offsets = [0, 0, 0, 0, 0], sizes = [4, 1, 8, 8, 64], strides = [1, 1, 1, 1, 1]} : vector<4x2x8x8x64xf32> to vector<4x1x8x8x64xf32>
    %181 = vector.shape_cast %180 : vector<4x1x8x8x64xf32> to vector<4x8x8x64xf32>
    %182 = vector.shape_cast %181 : vector<4x8x8x64xf32> to vector<4x4x2x8x64xf32>
    %183 = vector.extract_strided_slice %182 {offsets = [0, 0, 0, 0, 0], sizes = [4, 4, 1, 8, 64], strides = [1, 1, 1, 1, 1]} : vector<4x4x2x8x64xf32> to vector<4x4x1x8x64xf32>
    %184 = vector.shape_cast %183 : vector<4x4x1x8x64xf32> to vector<4x4x8x64xf32>
    %185 = vector.shape_cast %184 : vector<4x4x8x64xf32> to vector<128x64xf32>
    %c0_106 = arith.constant 0 : index
    %c512 = arith.constant 512 : index
    %186 = vector.load %arg16[%c0_106, %c512] : memref<128x576xf32, #tpu.memory_space<vmem>>, vector<128x64xf32>
    tpu.vector_store %arg16[%c0_106, %c512], %185 {strides = array<i32>} : memref<128x576xf32, #tpu.memory_space<vmem>>, vector<128x64xf32>,
    %c0_107 = arith.constant 0 : index
    %c0_108 = arith.constant 0 : index
    %187 = vector.load %arg16[%c0_107, %c0_108] : memref<128x576xf32, #tpu.memory_space<vmem>>, vector<128x576xf32>
    %188 = arith.truncf %187 : vector<128x576xf32> to vector<128x576xbf16>
    %c0_109 = arith.constant 0 : index
    %c0_110 = arith.constant 0 : index
    %189 = vector.load %arg4[%c0_109, %c0_110] : memref<576x128xbf16, #tpu.memory_space<vmem>>, vector<576x128xbf16>
    %cst_111 = arith.constant dense<0.000000e+00> : vector<128x128xf32>
    %190 = tpu.matmul %188, %189, %cst_111 {dimension_numbers = #tpu.dot_dimension_numbers<[1], [0], [0], [1], [0, 0, 1, 1], [], []>} : vector<128x576xbf16>, vector<576x128xbf16>, vector<128x128xf32> -> vector<128x128xf32>
    %c0_112 = arith.constant 0 : index
    %c0_113 = arith.constant 0 : index
    %191 = vector.load %arg5[%c0_112, %c0_113] : memref<1x128xf32, #tpu.memory_space<vmem>>, vector<1x128xf32>
    %192 = vector.broadcast %191 : vector<1x128xf32> to vector<128x128xf32>
    %193 = arith.addf %190, %192 : vector<128x128xf32>
    %cst_114 = arith.constant 0.000000e+00 : f32
    %194 = vector.broadcast %cst_114 : f32 to vector<128x128xf32>
    %195 = arith.cmpf ogt, %193, %194 : vector<128x128xf32>
    %cst_115 = arith.constant 2.000000e-01 : f32
    %196 = vector.broadcast %cst_115 : f32 to vector<128x128xf32>
    %197 = arith.mulf %196, %193 : vector<128x128xf32>
    %198 = arith.select %195, %193, %197 : vector<128x128xi1>, vector<128x128xf32>
    %cst_116 = arith.constant 0.000000e+00 : f32
    %199 = vector.broadcast %cst_116 : f32 to vector<6x6x8x128xf32>
    %c0_117 = arith.constant 0 : index
    %c0_118 = arith.constant 0 : index
    %c0_119 = arith.constant 0 : index
    %c0_120 = arith.constant 0 : index
    %200 = vector.load %arg20[%c0_117, %c0_118, %c0_119, %c0_120] : memref<6x6x8x128xf32, #tpu.memory_space<vmem>>, vector<6x6x8x128xf32>
    tpu.vector_store %arg20[%c0_117, %c0_118, %c0_119, %c0_120], %199 {strides = array<i32>} : memref<6x6x8x128xf32, #tpu.memory_space<vmem>>, vector<6x6x8x128xf32>,
    %201 = vector.shape_cast %198 : vector<128x128xf32> to vector<4x4x8x128xf32>
    %c1_121 = arith.constant 1 : index
    %c1_122 = arith.constant 1 : index
    %c0_123 = arith.constant 0 : index
    %c0_124 = arith.constant 0 : index
    %202 = vector.load %arg20[%c1_121, %c1_122, %c0_123, %c0_124] : memref<6x6x8x128xf32, #tpu.memory_space<vmem>>, vector<4x4x8x128xf32>
    tpu.vector_store %arg20[%c1_121, %c1_122, %c0_123, %c0_124], %201 {strides = array<i32>} : memref<6x6x8x128xf32, #tpu.memory_space<vmem>>, vector<4x4x8x128xf32>,
    %c0_125 = arith.constant 0 : index
    %c0_126 = arith.constant 0 : index
    %c0_127 = arith.constant 0 : index
    %c0_128 = arith.constant 0 : index
    %203 = vector.load %arg20[%c0_125, %c0_126, %c0_127, %c0_128] : memref<6x6x8x128xf32, #tpu.memory_space<vmem>>, vector<4x4x8x128xf32>
    %204 = vector.shape_cast %203 : vector<4x4x8x128xf32> to vector<2x2x4x8x128xf32>
    %205 = vector.extract_strided_slice %204 {offsets = [0, 0, 0, 0, 0], sizes = [2, 1, 4, 8, 128], strides = [1, 1, 1, 1, 1]} : vector<2x2x4x8x128xf32> to vector<2x1x4x8x128xf32>
    %206 = vector.shape_cast %205 : vector<2x1x4x8x128xf32> to vector<2x4x8x128xf32>
    %207 = vector.shape_cast %206 : vector<2x4x8x128xf32> to vector<2x2x2x8x128xf32>
    %208 = vector.extract_strided_slice %207 {offsets = [0, 0, 0, 0, 0], sizes = [2, 2, 1, 8, 128], strides = [1, 1, 1, 1, 1]} : vector<2x2x2x8x128xf32> to vector<2x2x1x8x128xf32>
    %209 = vector.shape_cast %208 : vector<2x2x1x8x128xf32> to vector<2x2x8x128xf32>
    %210 = vector.shape_cast %209 : vector<2x2x8x128xf32> to vector<32x128xf32>
    %c0_129 = arith.constant 0 : index
    %c0_130 = arith.constant 0 : index
    %211 = vector.load %arg17[%c0_129, %c0_130] : memref<32x1152xf32, #tpu.memory_space<vmem>>, vector<32x128xf32>
    tpu.vector_store %arg17[%c0_129, %c0_130], %210 {strides = array<i32>} : memref<32x1152xf32, #tpu.memory_space<vmem>>, vector<32x128xf32>,
    %c0_131 = arith.constant 0 : index
    %c1_132 = arith.constant 1 : index
    %c0_133 = arith.constant 0 : index
    %c0_134 = arith.constant 0 : index
    %212 = vector.load %arg20[%c0_131, %c1_132, %c0_133, %c0_134] : memref<6x6x8x128xf32, #tpu.memory_space<vmem>>, vector<4x4x8x128xf32>
    %213 = vector.shape_cast %212 : vector<4x4x8x128xf32> to vector<2x2x4x8x128xf32>
    %214 = vector.extract_strided_slice %213 {offsets = [0, 0, 0, 0, 0], sizes = [2, 1, 4, 8, 128], strides = [1, 1, 1, 1, 1]} : vector<2x2x4x8x128xf32> to vector<2x1x4x8x128xf32>
    %215 = vector.shape_cast %214 : vector<2x1x4x8x128xf32> to vector<2x4x8x128xf32>
    %216 = vector.shape_cast %215 : vector<2x4x8x128xf32> to vector<2x2x2x8x128xf32>
    %217 = vector.extract_strided_slice %216 {offsets = [0, 0, 0, 0, 0], sizes = [2, 2, 1, 8, 128], strides = [1, 1, 1, 1, 1]} : vector<2x2x2x8x128xf32> to vector<2x2x1x8x128xf32>
    %218 = vector.shape_cast %217 : vector<2x2x1x8x128xf32> to vector<2x2x8x128xf32>
    %219 = vector.shape_cast %218 : vector<2x2x8x128xf32> to vector<32x128xf32>
    %c0_135 = arith.constant 0 : index
    %c128_136 = arith.constant 128 : index
    %220 = vector.load %arg17[%c0_135, %c128_136] : memref<32x1152xf32, #tpu.memory_space<vmem>>, vector<32x128xf32>
    tpu.vector_store %arg17[%c0_135, %c128_136], %219 {strides = array<i32>} : memref<32x1152xf32, #tpu.memory_space<vmem>>, vector<32x128xf32>,
    %c0_137 = arith.constant 0 : index
    %c2_138 = arith.constant 2 : index
    %c0_139 = arith.constant 0 : index
    %c0_140 = arith.constant 0 : index
    %221 = vector.load %arg20[%c0_137, %c2_138, %c0_139, %c0_140] : memref<6x6x8x128xf32, #tpu.memory_space<vmem>>, vector<4x4x8x128xf32>
    %222 = vector.shape_cast %221 : vector<4x4x8x128xf32> to vector<2x2x4x8x128xf32>
    %223 = vector.extract_strided_slice %222 {offsets = [0, 0, 0, 0, 0], sizes = [2, 1, 4, 8, 128], strides = [1, 1, 1, 1, 1]} : vector<2x2x4x8x128xf32> to vector<2x1x4x8x128xf32>
    %224 = vector.shape_cast %223 : vector<2x1x4x8x128xf32> to vector<2x4x8x128xf32>
    %225 = vector.shape_cast %224 : vector<2x4x8x128xf32> to vector<2x2x2x8x128xf32>
    %226 = vector.extract_strided_slice %225 {offsets = [0, 0, 0, 0, 0], sizes = [2, 2, 1, 8, 128], strides = [1, 1, 1, 1, 1]} : vector<2x2x2x8x128xf32> to vector<2x2x1x8x128xf32>
    %227 = vector.shape_cast %226 : vector<2x2x1x8x128xf32> to vector<2x2x8x128xf32>
    %228 = vector.shape_cast %227 : vector<2x2x8x128xf32> to vector<32x128xf32>
    %c0_141 = arith.constant 0 : index
    %c256_142 = arith.constant 256 : index
    %229 = vector.load %arg17[%c0_141, %c256_142] : memref<32x1152xf32, #tpu.memory_space<vmem>>, vector<32x128xf32>
    tpu.vector_store %arg17[%c0_141, %c256_142], %228 {strides = array<i32>} : memref<32x1152xf32, #tpu.memory_space<vmem>>, vector<32x128xf32>,
    %c1_143 = arith.constant 1 : index
    %c0_144 = arith.constant 0 : index
    %c0_145 = arith.constant 0 : index
    %c0_146 = arith.constant 0 : index
    %230 = vector.load %arg20[%c1_143, %c0_144, %c0_145, %c0_146] : memref<6x6x8x128xf32, #tpu.memory_space<vmem>>, vector<4x4x8x128xf32>
    %231 = vector.shape_cast %230 : vector<4x4x8x128xf32> to vector<2x2x4x8x128xf32>
    %232 = vector.extract_strided_slice %231 {offsets = [0, 0, 0, 0, 0], sizes = [2, 1, 4, 8, 128], strides = [1, 1, 1, 1, 1]} : vector<2x2x4x8x128xf32> to vector<2x1x4x8x128xf32>
    %233 = vector.shape_cast %232 : vector<2x1x4x8x128xf32> to vector<2x4x8x128xf32>
    %234 = vector.shape_cast %233 : vector<2x4x8x128xf32> to vector<2x2x2x8x128xf32>
    %235 = vector.extract_strided_slice %234 {offsets = [0, 0, 0, 0, 0], sizes = [2, 2, 1, 8, 128], strides = [1, 1, 1, 1, 1]} : vector<2x2x2x8x128xf32> to vector<2x2x1x8x128xf32>
    %236 = vector.shape_cast %235 : vector<2x2x1x8x128xf32> to vector<2x2x8x128xf32>
    %237 = vector.shape_cast %236 : vector<2x2x8x128xf32> to vector<32x128xf32>
    %c0_147 = arith.constant 0 : index
    %c384_148 = arith.constant 384 : index
    %238 = vector.load %arg17[%c0_147, %c384_148] : memref<32x1152xf32, #tpu.memory_space<vmem>>, vector<32x128xf32>
    tpu.vector_store %arg17[%c0_147, %c384_148], %237 {strides = array<i32>} : memref<32x1152xf32, #tpu.memory_space<vmem>>, vector<32x128xf32>,
    %c1_149 = arith.constant 1 : index
    %c1_150 = arith.constant 1 : index
    %c0_151 = arith.constant 0 : index
    %c0_152 = arith.constant 0 : index
    %239 = vector.load %arg20[%c1_149, %c1_150, %c0_151, %c0_152] : memref<6x6x8x128xf32, #tpu.memory_space<vmem>>, vector<4x4x8x128xf32>
    %240 = vector.shape_cast %239 : vector<4x4x8x128xf32> to vector<2x2x4x8x128xf32>
    %241 = vector.extract_strided_slice %240 {offsets = [0, 0, 0, 0, 0], sizes = [2, 1, 4, 8, 128], strides = [1, 1, 1, 1, 1]} : vector<2x2x4x8x128xf32> to vector<2x1x4x8x128xf32>
    %242 = vector.shape_cast %241 : vector<2x1x4x8x128xf32> to vector<2x4x8x128xf32>
    %243 = vector.shape_cast %242 : vector<2x4x8x128xf32> to vector<2x2x2x8x128xf32>
    %244 = vector.extract_strided_slice %243 {offsets = [0, 0, 0, 0, 0], sizes = [2, 2, 1, 8, 128], strides = [1, 1, 1, 1, 1]} : vector<2x2x2x8x128xf32> to vector<2x2x1x8x128xf32>
    %245 = vector.shape_cast %244 : vector<2x2x1x8x128xf32> to vector<2x2x8x128xf32>
    %246 = vector.shape_cast %245 : vector<2x2x8x128xf32> to vector<32x128xf32>
    %c0_153 = arith.constant 0 : index
    %c512_154 = arith.constant 512 : index
    %247 = vector.load %arg17[%c0_153, %c512_154] : memref<32x1152xf32, #tpu.memory_space<vmem>>, vector<32x128xf32>
    tpu.vector_store %arg17[%c0_153, %c512_154], %246 {strides = array<i32>} : memref<32x1152xf32, #tpu.memory_space<vmem>>, vector<32x128xf32>,
    %c1_155 = arith.constant 1 : index
    %c2_156 = arith.constant 2 : index
    %c0_157 = arith.constant 0 : index
    %c0_158 = arith.constant 0 : index
    %248 = vector.load %arg20[%c1_155, %c2_156, %c0_157, %c0_158] : memref<6x6x8x128xf32, #tpu.memory_space<vmem>>, vector<4x4x8x128xf32>
    %249 = vector.shape_cast %248 : vector<4x4x8x128xf32> to vector<2x2x4x8x128xf32>
    %250 = vector.extract_strided_slice %249 {offsets = [0, 0, 0, 0, 0], sizes = [2, 1, 4, 8, 128], strides = [1, 1, 1, 1, 1]} : vector<2x2x4x8x128xf32> to vector<2x1x4x8x128xf32>
    %251 = vector.shape_cast %250 : vector<2x1x4x8x128xf32> to vector<2x4x8x128xf32>
    %252 = vector.shape_cast %251 : vector<2x4x8x128xf32> to vector<2x2x2x8x128xf32>
    %253 = vector.extract_strided_slice %252 {offsets = [0, 0, 0, 0, 0], sizes = [2, 2, 1, 8, 128], strides = [1, 1, 1, 1, 1]} : vector<2x2x2x8x128xf32> to vector<2x2x1x8x128xf32>
    %254 = vector.shape_cast %253 : vector<2x2x1x8x128xf32> to vector<2x2x8x128xf32>
    %255 = vector.shape_cast %254 : vector<2x2x8x128xf32> to vector<32x128xf32>
    %c0_159 = arith.constant 0 : index
    %c640 = arith.constant 640 : index
    %256 = vector.load %arg17[%c0_159, %c640] : memref<32x1152xf32, #tpu.memory_space<vmem>>, vector<32x128xf32>
    tpu.vector_store %arg17[%c0_159, %c640], %255 {strides = array<i32>} : memref<32x1152xf32, #tpu.memory_space<vmem>>, vector<32x128xf32>,
    %c2_160 = arith.constant 2 : index
    %c0_161 = arith.constant 0 : index
    %c0_162 = arith.constant 0 : index
    %c0_163 = arith.constant 0 : index
    %257 = vector.load %arg20[%c2_160, %c0_161, %c0_162, %c0_163] : memref<6x6x8x128xf32, #tpu.memory_space<vmem>>, vector<4x4x8x128xf32>
    %258 = vector.shape_cast %257 : vector<4x4x8x128xf32> to vector<2x2x4x8x128xf32>
    %259 = vector.extract_strided_slice %258 {offsets = [0, 0, 0, 0, 0], sizes = [2, 1, 4, 8, 128], strides = [1, 1, 1, 1, 1]} : vector<2x2x4x8x128xf32> to vector<2x1x4x8x128xf32>
    %260 = vector.shape_cast %259 : vector<2x1x4x8x128xf32> to vector<2x4x8x128xf32>
    %261 = vector.shape_cast %260 : vector<2x4x8x128xf32> to vector<2x2x2x8x128xf32>
    %262 = vector.extract_strided_slice %261 {offsets = [0, 0, 0, 0, 0], sizes = [2, 2, 1, 8, 128], strides = [1, 1, 1, 1, 1]} : vector<2x2x2x8x128xf32> to vector<2x2x1x8x128xf32>
    %263 = vector.shape_cast %262 : vector<2x2x1x8x128xf32> to vector<2x2x8x128xf32>
    %264 = vector.shape_cast %263 : vector<2x2x8x128xf32> to vector<32x128xf32>
    %c0_164 = arith.constant 0 : index
    %c768 = arith.constant 768 : index
    %265 = vector.load %arg17[%c0_164, %c768] : memref<32x1152xf32, #tpu.memory_space<vmem>>, vector<32x128xf32>
    tpu.vector_store %arg17[%c0_164, %c768], %264 {strides = array<i32>} : memref<32x1152xf32, #tpu.memory_space<vmem>>, vector<32x128xf32>,
    %c2_165 = arith.constant 2 : index
    %c1_166 = arith.constant 1 : index
    %c0_167 = arith.constant 0 : index
    %c0_168 = arith.constant 0 : index
    %266 = vector.load %arg20[%c2_165, %c1_166, %c0_167, %c0_168] : memref<6x6x8x128xf32, #tpu.memory_space<vmem>>, vector<4x4x8x128xf32>
    %267 = vector.shape_cast %266 : vector<4x4x8x128xf32> to vector<2x2x4x8x128xf32>
    %268 = vector.extract_strided_slice %267 {offsets = [0, 0, 0, 0, 0], sizes = [2, 1, 4, 8, 128], strides = [1, 1, 1, 1, 1]} : vector<2x2x4x8x128xf32> to vector<2x1x4x8x128xf32>
    %269 = vector.shape_cast %268 : vector<2x1x4x8x128xf32> to vector<2x4x8x128xf32>
    %270 = vector.shape_cast %269 : vector<2x4x8x128xf32> to vector<2x2x2x8x128xf32>
    %271 = vector.extract_strided_slice %270 {offsets = [0, 0, 0, 0, 0], sizes = [2, 2, 1, 8, 128], strides = [1, 1, 1, 1, 1]} : vector<2x2x2x8x128xf32> to vector<2x2x1x8x128xf32>
    %272 = vector.shape_cast %271 : vector<2x2x1x8x128xf32> to vector<2x2x8x128xf32>
    %273 = vector.shape_cast %272 : vector<2x2x8x128xf32> to vector<32x128xf32>
    %c0_169 = arith.constant 0 : index
    %c896 = arith.constant 896 : index
    %274 = vector.load %arg17[%c0_169, %c896] : memref<32x1152xf32, #tpu.memory_space<vmem>>, vector<32x128xf32>
    tpu.vector_store %arg17[%c0_169, %c896], %273 {strides = array<i32>} : memref<32x1152xf32, #tpu.memory_space<vmem>>, vector<32x128xf32>,
    %c2_170 = arith.constant 2 : index
    %c2_171 = arith.constant 2 : index
    %c0_172 = arith.constant 0 : index
    %c0_173 = arith.constant 0 : index
    %275 = vector.load %arg20[%c2_170, %c2_171, %c0_172, %c0_173] : memref<6x6x8x128xf32, #tpu.memory_space<vmem>>, vector<4x4x8x128xf32>
    %276 = vector.shape_cast %275 : vector<4x4x8x128xf32> to vector<2x2x4x8x128xf32>
    %277 = vector.extract_strided_slice %276 {offsets = [0, 0, 0, 0, 0], sizes = [2, 1, 4, 8, 128], strides = [1, 1, 1, 1, 1]} : vector<2x2x4x8x128xf32> to vector<2x1x4x8x128xf32>
    %278 = vector.shape_cast %277 : vector<2x1x4x8x128xf32> to vector<2x4x8x128xf32>
    %279 = vector.shape_cast %278 : vector<2x4x8x128xf32> to vector<2x2x2x8x128xf32>
    %280 = vector.extract_strided_slice %279 {offsets = [0, 0, 0, 0, 0], sizes = [2, 2, 1, 8, 128], strides = [1, 1, 1, 1, 1]} : vector<2x2x2x8x128xf32> to vector<2x2x1x8x128xf32>
    %281 = vector.shape_cast %280 : vector<2x2x1x8x128xf32> to vector<2x2x8x128xf32>
    %282 = vector.shape_cast %281 : vector<2x2x8x128xf32> to vector<32x128xf32>
    %c0_174 = arith.constant 0 : index
    %c1024 = arith.constant 1024 : index
    %283 = vector.load %arg17[%c0_174, %c1024] : memref<32x1152xf32, #tpu.memory_space<vmem>>, vector<32x128xf32>
    tpu.vector_store %arg17[%c0_174, %c1024], %282 {strides = array<i32>} : memref<32x1152xf32, #tpu.memory_space<vmem>>, vector<32x128xf32>,
    %c0_175 = arith.constant 0 : index
    %c0_176 = arith.constant 0 : index
    %284 = vector.load %arg17[%c0_175, %c0_176] : memref<32x1152xf32, #tpu.memory_space<vmem>>, vector<32x1152xf32>
    %285 = arith.truncf %284 : vector<32x1152xf32> to vector<32x1152xbf16>
    %c0_177 = arith.constant 0 : index
    %c0_178 = arith.constant 0 : index
    %286 = vector.load %arg6[%c0_177, %c0_178] : memref<1152x256xbf16, #tpu.memory_space<vmem>>, vector<1152x256xbf16>
    %cst_179 = arith.constant dense<0.000000e+00> : vector<32x256xf32>
    %287 = tpu.matmul %285, %286, %cst_179 {dimension_numbers = #tpu.dot_dimension_numbers<[1], [0], [0], [1], [0, 0, 1, 1], [], []>} : vector<32x1152xbf16>, vector<1152x256xbf16>, vector<32x256xf32> -> vector<32x256xf32>
    %c0_180 = arith.constant 0 : index
    %c0_181 = arith.constant 0 : index
    %288 = vector.load %arg7[%c0_180, %c0_181] : memref<1x256xf32, #tpu.memory_space<vmem>>, vector<1x256xf32>
    %289 = vector.broadcast %288 : vector<1x256xf32> to vector<32x256xf32>
    %290 = arith.addf %287, %289 : vector<32x256xf32>
    %cst_182 = arith.constant 0.000000e+00 : f32
    %291 = vector.broadcast %cst_182 : f32 to vector<32x256xf32>
    %292 = arith.cmpf ogt, %290, %291 : vector<32x256xf32>
    %cst_183 = arith.constant 2.000000e-01 : f32
    %293 = vector.broadcast %cst_183 : f32 to vector<32x256xf32>
    %294 = arith.mulf %293, %290 : vector<32x256xf32>
    %295 = arith.select %292, %290, %294 : vector<32x256xi1>, vector<32x256xf32>
    %cst_184 = arith.constant 0.000000e+00 : f32
    %296 = vector.broadcast %cst_184 : f32 to vector<4x4x8x256xf32>
    %c0_185 = arith.constant 0 : index
    %c0_186 = arith.constant 0 : index
    %c0_187 = arith.constant 0 : index
    %c0_188 = arith.constant 0 : index
    %297 = vector.load %arg21[%c0_185, %c0_186, %c0_187, %c0_188] : memref<4x4x8x256xf32, #tpu.memory_space<vmem>>, vector<4x4x8x256xf32>
    tpu.vector_store %arg21[%c0_185, %c0_186, %c0_187, %c0_188], %296 {strides = array<i32>} : memref<4x4x8x256xf32, #tpu.memory_space<vmem>>, vector<4x4x8x256xf32>,
    %298 = vector.shape_cast %295 : vector<32x256xf32> to vector<2x2x8x256xf32>
    %c1_189 = arith.constant 1 : index
    %c1_190 = arith.constant 1 : index
    %c0_191 = arith.constant 0 : index
    %c0_192 = arith.constant 0 : index
    %299 = vector.load %arg21[%c1_189, %c1_190, %c0_191, %c0_192] : memref<4x4x8x256xf32, #tpu.memory_space<vmem>>, vector<2x2x8x256xf32>
    tpu.vector_store %arg21[%c1_189, %c1_190, %c0_191, %c0_192], %298 {strides = array<i32>} : memref<4x4x8x256xf32, #tpu.memory_space<vmem>>, vector<2x2x8x256xf32>,
    %c0_193 = arith.constant 0 : index
    %c0_194 = arith.constant 0 : index
    %c0_195 = arith.constant 0 : index
    %c0_196 = arith.constant 0 : index
    %300 = vector.load %arg21[%c0_193, %c0_194, %c0_195, %c0_196] : memref<4x4x8x256xf32, #tpu.memory_space<vmem>>, vector<2x2x8x256xf32>
    %301 = vector.shape_cast %300 : vector<2x2x8x256xf32> to vector<32x256xf32>
    %c0_197 = arith.constant 0 : index
    %c0_198 = arith.constant 0 : index
    %302 = vector.load %arg18[%c0_197, %c0_198] : memref<32x2304xf32, #tpu.memory_space<vmem>>, vector<32x256xf32>
    tpu.vector_store %arg18[%c0_197, %c0_198], %301 {strides = array<i32>} : memref<32x2304xf32, #tpu.memory_space<vmem>>, vector<32x256xf32>,
    %c0_199 = arith.constant 0 : index
    %c1_200 = arith.constant 1 : index
    %c0_201 = arith.constant 0 : index
    %c0_202 = arith.constant 0 : index
    %303 = vector.load %arg21[%c0_199, %c1_200, %c0_201, %c0_202] : memref<4x4x8x256xf32, #tpu.memory_space<vmem>>, vector<2x2x8x256xf32>
    %304 = vector.shape_cast %303 : vector<2x2x8x256xf32> to vector<32x256xf32>
    %c0_203 = arith.constant 0 : index
    %c256_204 = arith.constant 256 : index
    %305 = vector.load %arg18[%c0_203, %c256_204] : memref<32x2304xf32, #tpu.memory_space<vmem>>, vector<32x256xf32>
    tpu.vector_store %arg18[%c0_203, %c256_204], %304 {strides = array<i32>} : memref<32x2304xf32, #tpu.memory_space<vmem>>, vector<32x256xf32>,
    %c0_205 = arith.constant 0 : index
    %c2_206 = arith.constant 2 : index
    %c0_207 = arith.constant 0 : index
    %c0_208 = arith.constant 0 : index
    %306 = vector.load %arg21[%c0_205, %c2_206, %c0_207, %c0_208] : memref<4x4x8x256xf32, #tpu.memory_space<vmem>>, vector<2x2x8x256xf32>
    %307 = vector.shape_cast %306 : vector<2x2x8x256xf32> to vector<32x256xf32>
    %c0_209 = arith.constant 0 : index
    %c512_210 = arith.constant 512 : index
    %308 = vector.load %arg18[%c0_209, %c512_210] : memref<32x2304xf32, #tpu.memory_space<vmem>>, vector<32x256xf32>
    tpu.vector_store %arg18[%c0_209, %c512_210], %307 {strides = array<i32>} : memref<32x2304xf32, #tpu.memory_space<vmem>>, vector<32x256xf32>,
    %c1_211 = arith.constant 1 : index
    %c0_212 = arith.constant 0 : index
    %c0_213 = arith.constant 0 : index
    %c0_214 = arith.constant 0 : index
    %309 = vector.load %arg21[%c1_211, %c0_212, %c0_213, %c0_214] : memref<4x4x8x256xf32, #tpu.memory_space<vmem>>, vector<2x2x8x256xf32>
    %310 = vector.shape_cast %309 : vector<2x2x8x256xf32> to vector<32x256xf32>
    %c0_215 = arith.constant 0 : index
    %c768_216 = arith.constant 768 : index
    %311 = vector.load %arg18[%c0_215, %c768_216] : memref<32x2304xf32, #tpu.memory_space<vmem>>, vector<32x256xf32>
    tpu.vector_store %arg18[%c0_215, %c768_216], %310 {strides = array<i32>} : memref<32x2304xf32, #tpu.memory_space<vmem>>, vector<32x256xf32>,
    %c1_217 = arith.constant 1 : index
    %c1_218 = arith.constant 1 : index
    %c0_219 = arith.constant 0 : index
    %c0_220 = arith.constant 0 : index
    %312 = vector.load %arg21[%c1_217, %c1_218, %c0_219, %c0_220] : memref<4x4x8x256xf32, #tpu.memory_space<vmem>>, vector<2x2x8x256xf32>
    %313 = vector.shape_cast %312 : vector<2x2x8x256xf32> to vector<32x256xf32>
    %c0_221 = arith.constant 0 : index
    %c1024_222 = arith.constant 1024 : index
    %314 = vector.load %arg18[%c0_221, %c1024_222] : memref<32x2304xf32, #tpu.memory_space<vmem>>, vector<32x256xf32>
    tpu.vector_store %arg18[%c0_221, %c1024_222], %313 {strides = array<i32>} : memref<32x2304xf32, #tpu.memory_space<vmem>>, vector<32x256xf32>,
    %c1_223 = arith.constant 1 : index
    %c2_224 = arith.constant 2 : index
    %c0_225 = arith.constant 0 : index
    %c0_226 = arith.constant 0 : index
    %315 = vector.load %arg21[%c1_223, %c2_224, %c0_225, %c0_226] : memref<4x4x8x256xf32, #tpu.memory_space<vmem>>, vector<2x2x8x256xf32>
    %316 = vector.shape_cast %315 : vector<2x2x8x256xf32> to vector<32x256xf32>
    %c0_227 = arith.constant 0 : index
    %c1280 = arith.constant 1280 : index
    %317 = vector.load %arg18[%c0_227, %c1280] : memref<32x2304xf32, #tpu.memory_space<vmem>>, vector<32x256xf32>
    tpu.vector_store %arg18[%c0_227, %c1280], %316 {strides = array<i32>} : memref<32x2304xf32, #tpu.memory_space<vmem>>, vector<32x256xf32>,
    %c2_228 = arith.constant 2 : index
    %c0_229 = arith.constant 0 : index
    %c0_230 = arith.constant 0 : index
    %c0_231 = arith.constant 0 : index
    %318 = vector.load %arg21[%c2_228, %c0_229, %c0_230, %c0_231] : memref<4x4x8x256xf32, #tpu.memory_space<vmem>>, vector<2x2x8x256xf32>
    %319 = vector.shape_cast %318 : vector<2x2x8x256xf32> to vector<32x256xf32>
    %c0_232 = arith.constant 0 : index
    %c1536 = arith.constant 1536 : index
    %320 = vector.load %arg18[%c0_232, %c1536] : memref<32x2304xf32, #tpu.memory_space<vmem>>, vector<32x256xf32>
    tpu.vector_store %arg18[%c0_232, %c1536], %319 {strides = array<i32>} : memref<32x2304xf32, #tpu.memory_space<vmem>>, vector<32x256xf32>,
    %c2_233 = arith.constant 2 : index
    %c1_234 = arith.constant 1 : index
    %c0_235 = arith.constant 0 : index
    %c0_236 = arith.constant 0 : index
    %321 = vector.load %arg21[%c2_233, %c1_234, %c0_235, %c0_236] : memref<4x4x8x256xf32, #tpu.memory_space<vmem>>, vector<2x2x8x256xf32>
    %322 = vector.shape_cast %321 : vector<2x2x8x256xf32> to vector<32x256xf32>
    %c0_237 = arith.constant 0 : index
    %c1792 = arith.constant 1792 : index
    %323 = vector.load %arg18[%c0_237, %c1792] : memref<32x2304xf32, #tpu.memory_space<vmem>>, vector<32x256xf32>
    tpu.vector_store %arg18[%c0_237, %c1792], %322 {strides = array<i32>} : memref<32x2304xf32, #tpu.memory_space<vmem>>, vector<32x256xf32>,
    %c2_238 = arith.constant 2 : index
    %c2_239 = arith.constant 2 : index
    %c0_240 = arith.constant 0 : index
    %c0_241 = arith.constant 0 : index
    %324 = vector.load %arg21[%c2_238, %c2_239, %c0_240, %c0_241] : memref<4x4x8x256xf32, #tpu.memory_space<vmem>>, vector<2x2x8x256xf32>
    %325 = vector.shape_cast %324 : vector<2x2x8x256xf32> to vector<32x256xf32>
    %c0_242 = arith.constant 0 : index
    %c2048 = arith.constant 2048 : index
    %326 = vector.load %arg18[%c0_242, %c2048] : memref<32x2304xf32, #tpu.memory_space<vmem>>, vector<32x256xf32>
    tpu.vector_store %arg18[%c0_242, %c2048], %325 {strides = array<i32>} : memref<32x2304xf32, #tpu.memory_space<vmem>>, vector<32x256xf32>,
    %c0_243 = arith.constant 0 : index
    %c0_244 = arith.constant 0 : index
    %327 = vector.load %arg18[%c0_243, %c0_244] : memref<32x2304xf32, #tpu.memory_space<vmem>>, vector<32x2304xf32>
    %328 = arith.truncf %327 : vector<32x2304xf32> to vector<32x2304xbf16>
    %c0_245 = arith.constant 0 : index
    %c0_246 = arith.constant 0 : index
    %329 = vector.load %arg8[%c0_245, %c0_246] : memref<2304x256xbf16, #tpu.memory_space<vmem>>, vector<2304x256xbf16>
    %cst_247 = arith.constant dense<0.000000e+00> : vector<32x256xf32>
    %330 = tpu.matmul %328, %329, %cst_247 {dimension_numbers = #tpu.dot_dimension_numbers<[1], [0], [0], [1], [0, 0, 1, 1], [], []>} : vector<32x2304xbf16>, vector<2304x256xbf16>, vector<32x256xf32> -> vector<32x256xf32>
    %c0_248 = arith.constant 0 : index
    %c0_249 = arith.constant 0 : index
    %331 = vector.load %arg9[%c0_248, %c0_249] : memref<1x256xf32, #tpu.memory_space<vmem>>, vector<1x256xf32>
    %332 = vector.broadcast %331 : vector<1x256xf32> to vector<32x256xf32>
    %333 = arith.addf %330, %332 : vector<32x256xf32>
    %cst_250 = arith.constant 0.000000e+00 : f32
    %334 = vector.broadcast %cst_250 : f32 to vector<32x256xf32>
    %335 = arith.cmpf ogt, %333, %334 : vector<32x256xf32>
    %cst_251 = arith.constant 2.000000e-01 : f32
    %336 = vector.broadcast %cst_251 : f32 to vector<32x256xf32>
    %337 = arith.mulf %336, %333 : vector<32x256xf32>
    %338 = arith.select %335, %333, %337 : vector<32x256xi1>, vector<32x256xf32>
    %339 = vector.shape_cast %338 : vector<32x256xf32> to vector<4x8x256xf32>
    %cst_252 = arith.constant dense<0.000000e+00> : vector<8x256xf32>
    %340 = vector.multi_reduction <add>, %339, %cst_252 [0] : vector<4x8x256xf32> to vector<8x256xf32>
    %cst_253 = arith.constant 4.000000e+00 : f32
    %341 = vector.broadcast %cst_253 : f32 to vector<8x256xf32>
    %342 = arith.divf %340, %341 : vector<8x256xf32>
    %343 = arith.truncf %342 : vector<8x256xf32> to vector<8x256xbf16>
    %c0_254 = arith.constant 0 : index
    %c0_255 = arith.constant 0 : index
    %344 = vector.load %arg10[%c0_254, %c0_255] : memref<256x256xbf16, #tpu.memory_space<vmem>>, vector<256x256xbf16>
    %cst_256 = arith.constant dense<0.000000e+00> : vector<8x256xf32>
    %345 = tpu.matmul %343, %344, %cst_256 {dimension_numbers = #tpu.dot_dimension_numbers<[1], [0], [0], [1], [0, 0, 1, 1], [], []>} : vector<8x256xbf16>, vector<256x256xbf16>, vector<8x256xf32> -> vector<8x256xf32>
    %c0_257 = arith.constant 0 : index
    %c0_258 = arith.constant 0 : index
    %346 = vector.load %arg11[%c0_257, %c0_258] : memref<1x256xf32, #tpu.memory_space<vmem>>, vector<1x256xf32>
    %347 = vector.broadcast %346 : vector<1x256xf32> to vector<8x256xf32>
    %348 = arith.addf %345, %347 : vector<8x256xf32>
    %cst_259 = arith.constant 5.000000e-01 : f32
    %349 = vector.broadcast %cst_259 : f32 to vector<8x256xf32>
    %350 = arith.mulf %349, %348 : vector<8x256xf32>
    %cst_260 = arith.constant 4.471500e-02 : f32
    %351 = vector.broadcast %cst_260 : f32 to vector<8x256xf32>
    %352 = arith.mulf %351, %348 : vector<8x256xf32>
    %353 = arith.mulf %352, %348 : vector<8x256xf32>
    %354 = arith.mulf %353, %348 : vector<8x256xf32>
    %355 = arith.addf %348, %354 : vector<8x256xf32>
    %cst_261 = arith.constant 0.797884583 : f32
    %356 = vector.broadcast %cst_261 : f32 to vector<8x256xf32>
    %357 = arith.mulf %356, %355 : vector<8x256xf32>
    %358 = math.tanh %357 : vector<8x256xf32>
    %cst_262 = arith.constant 1.000000e+00 : f32
    %359 = vector.broadcast %cst_262 : f32 to vector<8x256xf32>
    %360 = arith.addf %359, %358 : vector<8x256xf32>
    %361 = arith.mulf %350, %360 : vector<8x256xf32>
    %c0_263 = arith.constant 0 : index
    %c0_264 = arith.constant 0 : index
    %362 = vector.load %arg12[%c0_263, %c0_264] : memref<1x256xf32, #tpu.memory_space<vmem>>, vector<1x256xf32>
    %363 = vector.broadcast %362 : vector<1x256xf32> to vector<8x256xf32>
    %364 = arith.mulf %361, %363 : vector<8x256xf32>
    %cst_265 = arith.constant dense<0.000000e+00> : vector<8xf32>
    %365 = vector.multi_reduction <add>, %364, %cst_265 [1] : vector<8x256xf32> to vector<8xf32>
    %366 = vector.shape_cast %365 : vector<8xf32> to vector<8x1xf32>
    %c0_266 = arith.constant 0 : index
    %c0_267 = arith.constant 0 : index
    %367 = vector.load %arg13[%c0_266, %c0_267] : memref<1x1xf32, #tpu.memory_space<vmem>>, vector<1x1xf32>
    %368 = vector.broadcast %367 : vector<1x1xf32> to vector<8x1xf32>
    %369 = arith.addf %366, %368 : vector<8x1xf32>
    %c0_268 = arith.constant 0 : index
    %c0_269 = arith.constant 0 : index
    %370 = vector.load %arg14[%c0_268, %c0_269] : memref<8x1xf32, #tpu.memory_space<vmem>>, vector<8x1xf32>
    tpu.vector_store %arg14[%c0_268, %c0_269], %369 {strides = array<i32>} : memref<8x1xf32, #tpu.memory_space<vmem>>, vector<8x1xf32>,
    return
  }
  func.func @transform_0(%arg0: i32) -> (i32, i32, i32, i32) {
    %c0_i32 = arith.constant 0 : i32
    %c0_i32_0 = arith.constant 0 : i32
    %c0_i32_1 = arith.constant 0 : i32
    %c0_i32_2 = arith.constant 0 : i32
    return %arg0, %c0_i32, %c0_i32_0, %c0_i32_1 : i32, i32, i32, i32
  }
  func.func @transform_1(%arg0: i32) -> (i32, i32) {
    %c0_i32 = arith.constant 0 : i32
    %c0_i32_0 = arith.constant 0 : i32
    %c0_i32_1 = arith.constant 0 : i32
    return %c0_i32, %c0_i32_0 : i32, i32
  }
  func.func @transform_2(%arg0: i32) -> (i32, i32) {
    %c0_i32 = arith.constant 0 : i32
    %c0_i32_0 = arith.constant 0 : i32
    %c0_i32_1 = arith.constant 0 : i32
    return %c0_i32, %c0_i32_0 : i32, i32
  }
  func.func @transform_3(%arg0: i32) -> (i32, i32) {
    %c0_i32 = arith.constant 0 : i32
    %c0_i32_0 = arith.constant 0 : i32
    %c0_i32_1 = arith.constant 0 : i32
    return %c0_i32, %c0_i32_0 : i32, i32
  }
  func.func @transform_4(%arg0: i32) -> (i32, i32) {
    %c0_i32 = arith.constant 0 : i32
    %c0_i32_0 = arith.constant 0 : i32
    %c0_i32_1 = arith.constant 0 : i32
    return %c0_i32, %c0_i32_0 : i32, i32
  }
  func.func @transform_5(%arg0: i32) -> (i32, i32) {
    %c0_i32 = arith.constant 0 : i32
    %c0_i32_0 = arith.constant 0 : i32
    %c0_i32_1 = arith.constant 0 : i32
    return %c0_i32, %c0_i32_0 : i32, i32
  }
  func.func @transform_6(%arg0: i32) -> (i32, i32) {
    %c0_i32 = arith.constant 0 : i32
    %c0_i32_0 = arith.constant 0 : i32
    %c0_i32_1 = arith.constant 0 : i32
    return %c0_i32, %c0_i32_0 : i32, i32
  }
  func.func @transform_7(%arg0: i32) -> (i32, i32) {
    %c0_i32 = arith.constant 0 : i32
    %c0_i32_0 = arith.constant 0 : i32
    %c0_i32_1 = arith.constant 0 : i32
    return %c0_i32, %c0_i32_0 : i32, i32
  }
  func.func @transform_8(%arg0: i32) -> (i32, i32) {
    %c0_i32 = arith.constant 0 : i32
    %c0_i32_0 = arith.constant 0 : i32
    %c0_i32_1 = arith.constant 0 : i32
    return %c0_i32, %c0_i32_0 : i32, i32
  }
  func.func @transform_9(%arg0: i32) -> (i32, i32) {
    %c0_i32 = arith.constant 0 : i32
    %c0_i32_0 = arith.constant 0 : i32
    %c0_i32_1 = arith.constant 0 : i32
    return %c0_i32, %c0_i32_0 : i32, i32
  }
  func.func @transform_10(%arg0: i32) -> (i32, i32) {
    %c0_i32 = arith.constant 0 : i32
    %c0_i32_0 = arith.constant 0 : i32
    %c0_i32_1 = arith.constant 0 : i32
    return %c0_i32, %c0_i32_0 : i32, i32
  }
  func.func @transform_11(%arg0: i32) -> (i32, i32) {
    %c0_i32 = arith.constant 0 : i32
    %c0_i32_0 = arith.constant 0 : i32
    %c0_i32_1 = arith.constant 0 : i32
    return %c0_i32, %c0_i32_0 : i32, i32
  }
  func.func @transform_12(%arg0: i32) -> (i32, i32) {
    %c0_i32 = arith.constant 0 : i32
    %c0_i32_0 = arith.constant 0 : i32
    %c0_i32_1 = arith.constant 0 : i32
    return %c0_i32, %c0_i32_0 : i32, i32
  }
  func.func @transform_13(%arg0: i32) -> (i32, i32) {
    %c0_i32 = arith.constant 0 : i32
    %c0_i32_0 = arith.constant 0 : i32
    return %arg0, %c0_i32 : i32, i32
  }
}

</mosaic_0001>

<llo_original>
// kernel: _lambda_.1
$region0: #{_lambda_.1}
  #allocation0 [shape = 'u32[]', space=smem, size = 0x4, offset = 0x4, fixed_abs, tag = 'smem constant byte address 0x4 - core index']
  #allocation1 [shape = 'u32[144,128]{1,0:T(1,128)}', space=vmem, size = 0x12000, scoped, tag = 'internal scratch']
  #allocation2 [shape = 'f32[512,72]{1,0:T(8,128)}', space=vmem, size = 0x40000, scoped, tag = 'scratch operand']
  #allocation3 [shape = 'f32[128,576]{1,0:T(8,128)}', space=vmem, size = 0x50000, scoped, tag = 'scratch operand']
  #allocation4 [shape = 'f32[32,1152]{1,0:T(8,128)}', space=vmem, size = 0x24000, scoped, tag = 'scratch operand']
  #allocation5 [shape = 'f32[32,2304]{1,0:T(8,128)}', space=vmem, size = 0x48000, scoped, tag = 'scratch operand']
  #allocation6 [shape = 'f32[10,10,8,64]{3,2,1,0:T(8,128)}', space=vmem, size = 0x64000, scoped, tag = 'scratch operand']
  #allocation7 [shape = 'f32[6,6,8,128]{3,2,1,0:T(8,128)}', space=vmem, size = 0x24000, scoped, tag = 'scratch operand']
  #allocation8 [shape = 'f32[4,4,8,256]{3,2,1,0:T(8,128)}', space=vmem, size = 0x20000, scoped, tag = 'scratch operand']
  #allocation9 [shape = 'f32[1,1]{1,0:T(1,128)S(1)}', space=vmem, size = 0x200, scoped, tag = 'scoped memory for _lambda_.1']
  %s0 = inlined_call_operand.vmem [shape: bf16[18,18,8,8], index: 0, kind: input, shape index: {}]
  %s1 = inlined_call_operand.vmem [shape: bf16[72,64], index: 1, kind: input, shape index: {}]
  %s2 = inlined_call_operand.vmem [shape: f32[1,64], index: 2, kind: input, shape index: {}]
  %s3 = inlined_call_operand.vmem [shape: bf16[576,128], index: 3, kind: input, shape index: {}]
  %s4 = inlined_call_operand.vmem [shape: f32[1,128], index: 4, kind: input, shape index: {}]
  %s5 = inlined_call_operand.vmem [shape: bf16[1152,256], index: 5, kind: input, shape index: {}]
  %s6 = inlined_call_operand.vmem [shape: f32[1,256], index: 6, kind: input, shape index: {}, may-alias: {6,8}]
  %s7 = inlined_call_operand.vmem [shape: bf16[2304,256], index: 7, kind: input, shape index: {}]
  %s8 = inlined_call_operand.vmem [shape: f32[1,256], index: 8, kind: input, shape index: {}, may-alias: {6,8}]
  %s9 = inlined_call_operand.vmem [shape: bf16[256,256], index: 9, kind: input, shape index: {}]
  %s10 = inlined_call_operand.vmem [shape: f32[1,256], index: 10, kind: input, shape index: {}]
  %s11 = inlined_call_operand.vmem [shape: f32[1,256], index: 11, kind: input, shape index: {}]
  %s12 = inlined_call_operand.<no memory space> [shape: f32[1,1], index: 12, kind: input, shape index: {}]
  %s13 = inlined_call_operand.vmem [shape: f32[8,1], index: 13, kind: output, shape index: {}]
  %s14 = sld [smem:[#allocation0]]
  $region62: #{_lambda_.1} parent=0
    _
  %s16 = ssub.s32 1, %s14
  %s17 = scalar_select 0, %s16, %s14
  %v18 = vstv %s12
  %19 = vst [vmem:[#allocation9] sm:$0x1] %v18
  // Predicated region
  $region2: #{_lambda_.1} parent=0 // pred_check
    _
  $region3: #{_lambda_.1} parent=0 // pred_check_branch
    %21 = sbr.rel (0) target = $region5
  $region4: #{_lambda_.1} parent=0 // pred_region
    _
  $region5: #{_lambda_.1} parent=0 // pred_fallthru
    _
  // Predicated region
  $region6: #{_lambda_.1} parent=0 // pred_check
    _
  $region7: #{_lambda_.1} parent=0 // pred_check_branch
    %23 = sbr.rel (0) target = $region9
  $region8: #{_lambda_.1} parent=0 // pred_region
    _
  $region9: #{_lambda_.1} parent=0 // pred_fallthru
    _
  // Predicated region
  $region10: #{_lambda_.1} parent=0 // pred_check
    _
  $region11: #{_lambda_.1} parent=0 // pred_check_branch
    %25 = sbr.rel (0) target = $region13
  $region12: #{_lambda_.1} parent=0 // pred_region
    _
  $region13: #{_lambda_.1} parent=0 // pred_fallthru
    _
  // Predicated region
  $region14: #{_lambda_.1} parent=0 // pred_check
    _
  $region15: #{_lambda_.1} parent=0 // pred_check_branch
    %27 = sbr.rel (0) target = $region17
  $region16: #{_lambda_.1} parent=0 // pred_region
    _
  $region17: #{_lambda_.1} parent=0 // pred_fallthru
    _
  // Predicated region
  $region18: #{_lambda_.1} parent=0 // pred_check
    _
  $region19: #{_lambda_.1} parent=0 // pred_check_branch
    %29 = sbr.rel (0) target = $region21
  $region20: #{_lambda_.1} parent=0 // pred_region
    _
  $region21: #{_lambda_.1} parent=0 // pred_fallthru
    _
  // Predicated region
  $region22: #{_lambda_.1} parent=0 // pred_check
    _
  $region23: #{_lambda_.1} parent=0 // pred_check_branch
    %31 = sbr.rel (0) target = $region25
  $region24: #{_lambda_.1} parent=0 // pred_region
    _
  $region25: #{_lambda_.1} parent=0 // pred_fallthru
    _
  // Predicated region
  $region26: #{_lambda_.1} parent=0 // pred_check
    _
  $region27: #{_lambda_.1} parent=0 // pred_check_branch
    %33 = sbr.rel (0) target = $region29
  $region28: #{_lambda_.1} parent=0 // pred_region
    _
  $region29: #{_lambda_.1} parent=0 // pred_fallthru
    _
  // Predicated region
  $region30: #{_lambda_.1} parent=0 // pred_check
    _
  $region31: #{_lambda_.1} parent=0 // pred_check_branch
    %35 = sbr.rel (0) target = $region33
  $region32: #{_lambda_.1} parent=0 // pred_region
    _
  $region33: #{_lambda_.1} parent=0 // pred_fallthru
    _
  // Predicated region
  $region34: #{_lambda_.1} parent=0 // pred_check
    _
  $region35: #{_lambda_.1} parent=0 // pred_check_branch
    %37 = sbr.rel (0) target = $region37
  $region36: #{_lambda_.1} parent=0 // pred_region
    _
  $region37: #{_lambda_.1} parent=0 // pred_fallthru
    _
  // Predicated region
  $region38: #{_lambda_.1} parent=0 // pred_check
    _
  $region39: #{_lambda_.1} parent=0 // pred_check_branch
    %39 = sbr.rel (0) target = $region41
  $region40: #{_lambda_.1} parent=0 // pred_region
    _
  $region41: #{_lambda_.1} parent=0 // pred_fallthru
    _
  // Predicated region
  $region42: #{_lambda_.1} parent=0 // pred_check
    _
  $region43: #{_lambda_.1} parent=0 // pred_check_branch
    %41 = sbr.rel (0) target = $region45
  $region44: #{_lambda_.1} parent=0 // pred_region
    _
  $region45: #{_lambda_.1} parent=0 // pred_fallthru
    _
  // Predicated region
  $region46: #{_lambda_.1} parent=0 // pred_check
    _
  $region47: #{_lambda_.1} parent=0 // pred_check_branch
    %43 = sbr.rel (0) target = $region49
  $region48: #{_lambda_.1} parent=0 // pred_region
    _
  $region49: #{_lambda_.1} parent=0 // pred_fallthru
    _
  // Predicated region
  $region50: #{_lambda_.1} parent=0 // pred_check
    _
  $region51: #{_lambda_.1} parent=0 // pred_check_branch
    %45 = sbr.rel (0) target = $region53
  $region52: #{_lambda_.1} parent=0 // pred_region
    _
  $region53: #{_lambda_.1} parent=0 // pred_fallthru
    _
  %v47 = vld [vmem:[%s0] sm:$0xf]
  %v48 = vld [vmem:[%s0 + $0x8] sm:$0xf]
  %v49 = vld [vmem:[%s0 + $0x10] sm:$0xf]
  %v50 = vld [vmem:[%s0 + $0x18] sm:$0xf]
  %v51 = vld [vmem:[%s0 + $0x20] sm:$0xf]
  %v52 = vld [vmem:[%s0 + $0x28] sm:$0xf]
  %v53 = vld [vmem:[%s0 + $0x30] sm:$0xf]
  %v54 = vld [vmem:[%s0 + $0x38] sm:$0xf]
  %v55 = vld [vmem:[%s0 + $0x90] sm:$0xf]
  %v56 = vld [vmem:[%s0 + $0x98] sm:$0xf]
  %v57 = vld [vmem:[%s0 + $0xa0] sm:$0xf]
  %v58 = vld [vmem:[%s0 + $0xa8] sm:$0xf]
  %v59 = vld [vmem:[%s0 + $0xb0] sm:$0xf]
  %v60 = vld [vmem:[%s0 + $0xb8] sm:$0xf]
  %v61 = vld [vmem:[%s0 + $0xc0] sm:$0xf]
  %v62 = vld [vmem:[%s0 + $0xc8] sm:$0xf]
  %v63 = vld [vmem:[%s0 + $0x120] sm:$0xf]
  %v64 = vld [vmem:[%s0 + $0x128] sm:$0xf]
  %v65 = vld [vmem:[%s0 + $0x130] sm:$0xf]
  %v66 = vld [vmem:[%s0 + $0x138] sm:$0xf]
  %v67 = vld [vmem:[%s0 + $0x140] sm:$0xf]
  %v68 = vld [vmem:[%s0 + $0x148] sm:$0xf]
  %v69 = vld [vmem:[%s0 + $0x150] sm:$0xf]
  %v70 = vld [vmem:[%s0 + $0x158] sm:$0xf]
  %v71 = vld [vmem:[%s0 + $0x1b0] sm:$0xf]
  %v72 = vld [vmem:[%s0 + $0x1b8] sm:$0xf]
  %v73 = vld [vmem:[%s0 + $0x1c0] sm:$0xf]
  %v74 = vld [vmem:[%s0 + $0x1c8] sm:$0xf]
  %v75 = vld [vmem:[%s0 + $0x1d0] sm:$0xf]
  %v76 = vld [vmem:[%s0 + $0x1d8] sm:$0xf]
  %v77 = vld [vmem:[%s0 + $0x1e0] sm:$0xf]
  %v78 = vld [vmem:[%s0 + $0x1e8] sm:$0xf]
  %v79 = vld [vmem:[%s0 + $0x240] sm:$0xf]
  %v80 = vld [vmem:[%s0 + $0x248] sm:$0xf]
  %v81 = vld [vmem:[%s0 + $0x250] sm:$0xf]
  %v82 = vld [vmem:[%s0 + $0x258] sm:$0xf]
  %v83 = vld [vmem:[%s0 + $0x260] sm:$0xf]
  %v84 = vld [vmem:[%s0 + $0x268] sm:$0xf]
  %v85 = vld [vmem:[%s0 + $0x270] sm:$0xf]
  %v86 = vld [vmem:[%s0 + $0x278] sm:$0xf]
  %v87 = vld [vmem:[%s0 + $0x2d0] sm:$0xf]
  %v88 = vld [vmem:[%s0 + $0x2d8] sm:$0xf]
  %v89 = vld [vmem:[%s0 + $0x2e0] sm:$0xf]
  %v90 = vld [vmem:[%s0 + $0x2e8] sm:$0xf]
  %v91 = vld [vmem:[%s0 + $0x2f0] sm:$0xf]
  %v92 = vld [vmem:[%s0 + $0x2f8] sm:$0xf]
  %v93 = vld [vmem:[%s0 + $0x300] sm:$0xf]
  %v94 = vld [vmem:[%s0 + $0x308] sm:$0xf]
  %v95 = vld [vmem:[%s0 + $0x360] sm:$0xf]
  %v96 = vld [vmem:[%s0 + $0x368] sm:$0xf]
  %v97 = vld [vmem:[%s0 + $0x370] sm:$0xf]
  %v98 = vld [vmem:[%s0 + $0x378] sm:$0xf]
  %v99 = vld [vmem:[%s0 + $0x380] sm:$0xf]
  %v100 = vld [vmem:[%s0 + $0x388] sm:$0xf]
  %v101 = vld [vmem:[%s0 + $0x390] sm:$0xf]
  %v102 = vld [vmem:[%s0 + $0x398] sm:$0xf]
  %v103 = vld [vmem:[%s0 + $0x3f0] sm:$0xf]
  %v104 = vld [vmem:[%s0 + $0x3f8] sm:$0xf]
  %v105 = vld [vmem:[%s0 + $0x400] sm:$0xf]
  %v106 = vld [vmem:[%s0 + $0x408] sm:$0xf]
  %v107 = vld [vmem:[%s0 + $0x410] sm:$0xf]
  %v108 = vld [vmem:[%s0 + $0x418] sm:$0xf]
  %v109 = vld [vmem:[%s0 + $0x420] sm:$0xf]
  %v110 = vld [vmem:[%s0 + $0x428] sm:$0xf]
  %v111 = vunpack.c.l.bf16 %v47
  %v112 = vunpack.c.l.bf16 %v48
  %v113 = vunpack.c.l.bf16 %v49
  %v114 = vunpack.c.l.bf16 %v50
  %v115 = vunpack.c.l.bf16 %v51
  %v116 = vunpack.c.l.bf16 %v52
  %v117 = vunpack.c.l.bf16 %v53
  %v118 = vunpack.c.l.bf16 %v54
  %v119 = vunpack.c.l.bf16 %v55
  %v120 = vunpack.c.l.bf16 %v56
  %v121 = vunpack.c.l.bf16 %v57
  %v122 = vunpack.c.l.bf16 %v58
  %v123 = vunpack.c.l.bf16 %v59
  %v124 = vunpack.c.l.bf16 %v60
  %v125 = vunpack.c.l.bf16 %v61
  %v126 = vunpack.c.l.bf16 %v62
  %v127 = vunpack.c.l.bf16 %v63
  %v128 = vunpack.c.l.bf16 %v64
  %v129 = vunpack.c.l.bf16 %v65
  %v130 = vunpack.c.l.bf16 %v66
  %v131 = vunpack.c.l.bf16 %v67
  %v132 = vunpack.c.l.bf16 %v68
  %v133 = vunpack.c.l.bf16 %v69
  %v134 = vunpack.c.l.bf16 %v70
  %v135 = vunpack.c.l.bf16 %v71
  %v136 = vunpack.c.l.bf16 %v72
  %v137 = vunpack.c.l.bf16 %v73
  %v138 = vunpack.c.l.bf16 %v74
  %v139 = vunpack.c.l.bf16 %v75
  %v140 = vunpack.c.l.bf16 %v76
  %v141 = vunpack.c.l.bf16 %v77
  %v142 = vunpack.c.l.bf16 %v78
  %v143 = vunpack.c.l.bf16 %v79
  %v144 = vunpack.c.l.bf16 %v80
  %v145 = vunpack.c.l.bf16 %v81
  %v146 = vunpack.c.l.bf16 %v82
  %v147 = vunpack.c.l.bf16 %v83
  %v148 = vunpack.c.l.bf16 %v84
  %v149 = vunpack.c.l.bf16 %v85
  %v150 = vunpack.c.l.bf16 %v86
  %v151 = vunpack.c.l.bf16 %v87
  %v152 = vunpack.c.l.bf16 %v88
  %v153 = vunpack.c.l.bf16 %v89
  %v154 = vunpack.c.l.bf16 %v90
  %v155 = vunpack.c.l.bf16 %v91
  %v156 = vunpack.c.l.bf16 %v92
  %v157 = vunpack.c.l.bf16 %v93
  %v158 = vunpack.c.l.bf16 %v94
  %v159 = vunpack.c.l.bf16 %v95
  %v160 = vunpack.c.l.bf16 %v96
  %v161 = vunpack.c.l.bf16 %v97
  %v162 = vunpack.c.l.bf16 %v98
  %v163 = vunpack.c.l.bf16 %v99
  %v164 = vunpack.c.l.bf16 %v100
  %v165 = vunpack.c.l.bf16 %v101
  %v166 = vunpack.c.l.bf16 %v102
  %v167 = vunpack.c.l.bf16 %v103
  %v168 = vunpack.c.l.bf16 %v104
  %v169 = vunpack.c.l.bf16 %v105
  %v170 = vunpack.c.l.bf16 %v106
  %v171 = vunpack.c.l.bf16 %v107
  %v172 = vunpack.c.l.bf16 %v108
  %v173 = vunpack.c.l.bf16 %v109
  %v174 = vunpack.c.l.bf16 %v110
  %vm175 = vcmask 64512
  %176 = vst.msk [vmem:[#allocation2] sm:$0xff] %vm175, %v111
  %177 = vst.msk [vmem:[#allocation2 + $0x8] sm:$0xff] %vm175, %v112
  %178 = vst.msk [vmem:[#allocation2 + $0x10] sm:$0xff] %vm175, %v113
  %179 = vst.msk [vmem:[#allocation2 + $0x18] sm:$0xff] %vm175, %v114
  %180 = vst.msk [vmem:[#allocation2 + $0x20] sm:$0xff] %vm175, %v115
  %181 = vst.msk [vmem:[#allocation2 + $0x28] sm:$0xff] %vm175, %v116
  %182 = vst.msk [vmem:[#allocation2 + $0x30] sm:$0xff] %vm175, %v117
  %183 = vst.msk [vmem:[#allocation2 + $0x38] sm:$0xff] %vm175, %v118
  %184 = vst.msk [vmem:[#allocation2 + $0x40] sm:$0xff] %vm175, %v119
  %185 = vst.msk [vmem:[#allocation2 + $0x48] sm:$0xff] %vm175, %v120
  %186 = vst.msk [vmem:[#allocation2 + $0x50] sm:$0xff] %vm175, %v121
  %187 = vst.msk [vmem:[#allocation2 + $0x58] sm:$0xff] %vm175, %v122
  %188 = vst.msk [vmem:[#allocation2 + $0x60] sm:$0xff] %vm175, %v123
  %189 = vst.msk [vmem:[#allocation2 + $0x68] sm:$0xff] %vm175, %v124
  %190 = vst.msk [vmem:[#allocation2 + $0x70] sm:$0xff] %vm175, %v125
  %191 = vst.msk [vmem:[#allocation2 + $0x78] sm:$0xff] %vm175, %v126
  %192 = vst.msk [vmem:[#allocation2 + $0x80] sm:$0xff] %vm175, %v127
  %193 = vst.msk [vmem:[#allocation2 + $0x88] sm:$0xff] %vm175, %v128
  %194 = vst.msk [vmem:[#allocation2 + $0x90] sm:$0xff] %vm175, %v129
  %195 = vst.msk [vmem:[#allocation2 + $0x98] sm:$0xff] %vm175, %v130
  %196 = vst.msk [vmem:[#allocation2 + $0xa0] sm:$0xff] %vm175, %v131
  %197 = vst.msk [vmem:[#allocation2 + $0xa8] sm:$0xff] %vm175, %v132
  %198 = vst.msk [vmem:[#allocation2 + $0xb0] sm:$0xff] %vm175, %v133
  %199 = vst.msk [vmem:[#allocation2 + $0xb8] sm:$0xff] %vm175, %v134
  %200 = vst.msk [vmem:[#allocation2 + $0xc0] sm:$0xff] %vm175, %v135
  %201 = vst.msk [vmem:[#allocation2 + $0xc8] sm:$0xff] %vm175, %v136
  %202 = vst.msk [vmem:[#allocation2 + $0xd0] sm:$0xff] %vm175, %v137
  %203 = vst.msk [vmem:[#allocation2 + $0xd8] sm:$0xff] %vm175, %v138
  %204 = vst.msk [vmem:[#allocation2 + $0xe0] sm:$0xff] %vm175, %v139
  %205 = vst.msk [vmem:[#allocation2 + $0xe8] sm:$0xff] %vm175, %v140
  %206 = vst.msk [vmem:[#allocation2 + $0xf0] sm:$0xff] %vm175, %v141
  %207 = vst.msk [vmem:[#allocation2 + $0xf8] sm:$0xff] %vm175, %v142
  %208 = vst.msk [vmem:[#allocation2 + $0x100] sm:$0xff] %vm175, %v143
  %209 = vst.msk [vmem:[#allocation2 + $0x108] sm:$0xff] %vm175, %v144
  %210 = vst.msk [vmem:[#allocation2 + $0x110] sm:$0xff] %vm175, %v145
  %211 = vst.msk [vmem:[#allocation2 + $0x118] sm:$0xff] %vm175, %v146
  %212 = vst.msk [vmem:[#allocation2 + $0x120] sm:$0xff] %vm175, %v147
  %213 = vst.msk [vmem:[#allocation2 + $0x128] sm:$0xff] %vm175, %v148
  %214 = vst.msk [vmem:[#allocation2 + $0x130] sm:$0xff] %vm175, %v149
  %215 = vst.msk [vmem:[#allocation2 + $0x138] sm:$0xff] %vm175, %v150
  %216 = vst.msk [vmem:[#allocation2 + $0x140] sm:$0xff] %vm175, %v151
  %217 = vst.msk [vmem:[#allocation2 + $0x148] sm:$0xff] %vm175, %v152
  %218 = vst.msk [vmem:[#allocation2 + $0x150] sm:$0xff] %vm175, %v153
  %219 = vst.msk [vmem:[#allocation2 + $0x158] sm:$0xff] %vm175, %v154
  %220 = vst.msk [vmem:[#allocation2 + $0x160] sm:$0xff] %vm175, %v155
  %221 = vst.msk [vmem:[#allocation2 + $0x168] sm:$0xff] %vm175, %v156
  %222 = vst.msk [vmem:[#allocation2 + $0x170] sm:$0xff] %vm175, %v157
  %223 = vst.msk [vmem:[#allocation2 + $0x178] sm:$0xff] %vm175, %v158
  %224 = vst.msk [vmem:[#allocation2 + $0x180] sm:$0xff] %vm175, %v159
  %225 = vst.msk [vmem:[#allocation2 + $0x188] sm:$0xff] %vm175, %v160
  %226 = vst.msk [vmem:[#allocation2 + $0x190] sm:$0xff] %vm175, %v161
  %227 = vst.msk [vmem:[#allocation2 + $0x198] sm:$0xff] %vm175, %v162
  %228 = vst.msk [vmem:[#allocation2 + $0x1a0] sm:$0xff] %vm175, %v163
  %229 = vst.msk [vmem:[#allocation2 + $0x1a8] sm:$0xff] %vm175, %v164
  %230 = vst.msk [vmem:[#allocation2 + $0x1b0] sm:$0xff] %vm175, %v165
  %231 = vst.msk [vmem:[#allocation2 + $0x1b8] sm:$0xff] %vm175, %v166
  %232 = vst.msk [vmem:[#allocation2 + $0x1c0] sm:$0xff] %vm175, %v167
  %233 = vst.msk [vmem:[#allocation2 + $0x1c8] sm:$0xff] %vm175, %v168
  %234 = vst.msk [vmem:[#allocation2 + $0x1d0] sm:$0xff] %vm175, %v169
  %235 = vst.msk [vmem:[#allocation2 + $0x1d8] sm:$0xff] %vm175, %v170
  %236 = vst.msk [vmem:[#allocation2 + $0x1e0] sm:$0xff] %vm175, %v171
  %237 = vst.msk [vmem:[#allocation2 + $0x1e8] sm:$0xff] %vm175, %v172
  %238 = vst.msk [vmem:[#allocation2 + $0x1f0] sm:$0xff] %vm175, %v173
  %239 = vst.msk [vmem:[#allocation2 + $0x1f8] sm:$0xff] %vm175, %v174
  %s240 = scalar_lea.vmem %s0, 4
  %v241 = vld [vmem:[%s240] sm:$0xf]
  %v242 = vld [vmem:[%s240 + $0x8] sm:$0xf]
  %v243 = vld [vmem:[%s240 + $0x10] sm:$0xf]
  %v244 = vld [vmem:[%s240 + $0x18] sm:$0xf]
  %v245 = vld [vmem:[%s240 + $0x20] sm:$0xf]
  %v246 = vld [vmem:[%s240 + $0x28] sm:$0xf]
  %v247 = vld [vmem:[%s240 + $0x30] sm:$0xf]
  %v248 = vld [vmem:[%s240 + $0x38] sm:$0xf]
  %v249 = vld [vmem:[%s240 + $0x90] sm:$0xf]
  %v250 = vld [vmem:[%s240 + $0x98] sm:$0xf]
  %v251 = vld [vmem:[%s240 + $0xa0] sm:$0xf]
  %v252 = vld [vmem:[%s240 + $0xa8] sm:$0xf]
  %v253 = vld [vmem:[%s240 + $0xb0] sm:$0xf]
  %v254 = vld [vmem:[%s240 + $0xb8] sm:$0xf]
  %v255 = vld [vmem:[%s240 + $0xc0] sm:$0xf]
  %v256 = vld [vmem:[%s240 + $0xc8] sm:$0xf]
  %v257 = vld [vmem:[%s240 + $0x120] sm:$0xf]
  %v258 = vld [vmem:[%s240 + $0x128] sm:$0xf]
  %v259 = vld [vmem:[%s240 + $0x130] sm:$0xf]
  %v260 = vld [vmem:[%s240 + $0x138] sm:$0xf]
  %v261 = vld [vmem:[%s240 + $0x140] sm:$0xf]
  %v262 = vld [vmem:[%s240 + $0x148] sm:$0xf]
  %v263 = vld [vmem:[%s240 + $0x150] sm:$0xf]
  %v264 = vld [vmem:[%s240 + $0x158] sm:$0xf]
  %v265 = vld [vmem:[%s240 + $0x1b0] sm:$0xf]
  %v266 = vld [vmem:[%s240 + $0x1b8] sm:$0xf]
  %v267 = vld [vmem:[%s240 + $0x1c0] sm:$0xf]
  %v268 = vld [vmem:[%s240 + $0x1c8] sm:$0xf]
  %v269 = vld [vmem:[%s240 + $0x1d0] sm:$0xf]
  %v270 = vld [vmem:[%s240 + $0x1d8] sm:$0xf]
  %v271 = vld [vmem:[%s240 + $0x1e0] sm:$0xf]
  %v272 = vld [vmem:[%s240 + $0x1e8] sm:$0xf]
  %v273 = vld [vmem:[%s240 + $0x240] sm:$0xf]
  %v274 = vld [vmem:[%s240 + $0x248] sm:$0xf]
  %v275 = vld [vmem:[%s240 + $0x250] sm:$0xf]
  %v276 = vld [vmem:[%s240 + $0x258] sm:$0xf]
  %v277 = vld [vmem:[%s240 + $0x260] sm:$0xf]
  %v278 = vld [vmem:[%s240 + $0x268] sm:$0xf]
  %v279 = vld [vmem:[%s240 + $0x270] sm:$0xf]
  %v280 = vld [vmem:[%s240 + $0x278] sm:$0xf]
  %v281 = vld [vmem:[%s240 + $0x2d0] sm:$0xf]
  %v282 = vld [vmem:[%s240 + $0x2d8] sm:$0xf]
  %v283 = vld [vmem:[%s240 + $0x2e0] sm:$0xf]
  %v284 = vld [vmem:[%s240 + $0x2e8] sm:$0xf]
  %v285 = vld [vmem:[%s240 + $0x2f0] sm:$0xf]
  %v286 = vld [vmem:[%s240 + $0x2f8] sm:$0xf]
  %v287 = vld [vmem:[%s240 + $0x300] sm:$0xf]
  %v288 = vld [vmem:[%s240 + $0x308] sm:$0xf]
  %v289 = vld [vmem:[%s240 + $0x360] sm:$0xf]
  %v290 = vld [vmem:[%s240 + $0x368] sm:$0xf]
  %v291 = vld [vmem:[%s240 + $0x370] sm:$0xf]
  %v292 = vld [vmem:[%s240 + $0x378] sm:$0xf]
  %v293 = vld [vmem:[%s240 + $0x380] sm:$0xf]
  %v294 = vld [vmem:[%s240 + $0x388] sm:$0xf]
  %v295 = vld [vmem:[%s240 + $0x390] sm:$0xf]
  %v296 = vld [vmem:[%s240 + $0x398] sm:$0xf]
  %v297 = vld [vmem:[%s240 + $0x3f0] sm:$0xf]
  %v298 = vld [vmem:[%s240 + $0x3f8] sm:$0xf]
  %v299 = vld [vmem:[%s240 + $0x400] sm:$0xf]
  %v300 = vld [vmem:[%s240 + $0x408] sm:$0xf]
  %v301 = vld [vmem:[%s240 + $0x410] sm:$0xf]
  %v302 = vld [vmem:[%s240 + $0x418] sm:$0xf]
  %v303 = vld [vmem:[%s240 + $0x420] sm:$0xf]
  %v304 = vld [vmem:[%s240 + $0x428] sm:$0xf]
  %v305 = vunpack.c.l.bf16 %v241
  %v306 = vunpack.c.l.bf16 %v242
  %v307 = vunpack.c.l.bf16 %v243
  %v308 = vunpack.c.l.bf16 %v244
  %v309 = vunpack.c.l.bf16 %v245
  %v310 = vunpack.c.l.bf16 %v246
  %v311 = vunpack.c.l.bf16 %v247
  %v312 = vunpack.c.l.bf16 %v248
  %v313 = vunpack.c.l.bf16 %v249
  %v314 = vunpack.c.l.bf16 %v250
  %v315 = vunpack.c.l.bf16 %v251
  %v316 = vunpack.c.l.bf16 %v252
  %v317 = vunpack.c.l.bf16 %v253
  %v318 = vunpack.c.l.bf16 %v254
  %v319 = vunpack.c.l.bf16 %v255
  %v320 = vunpack.c.l.bf16 %v256
  %v321 = vunpack.c.l.bf16 %v257
  %v322 = vunpack.c.l.bf16 %v258
  %v323 = vunpack.c.l.bf16 %v259
  %v324 = vunpack.c.l.bf16 %v260
  %v325 = vunpack.c.l.bf16 %v261
  %v326 = vunpack.c.l.bf16 %v262
  %v327 = vunpack.c.l.bf16 %v263
  %v328 = vunpack.c.l.bf16 %v264
  %v329 = vunpack.c.l.bf16 %v265
  %v330 = vunpack.c.l.bf16 %v266
  %v331 = vunpack.c.l.bf16 %v267
  %v332 = vunpack.c.l.bf16 %v268
  %v333 = vunpack.c.l.bf16 %v269
  %v334 = vunpack.c.l.bf16 %v270
  %v335 = vunpack.c.l.bf16 %v271
  %v336 = vunpack.c.l.bf16 %v272
  %v337 = vunpack.c.l.bf16 %v273
  %v338 = vunpack.c.l.bf16 %v274
  %v339 = vunpack.c.l.bf16 %v275
  %v340 = vunpack.c.l.bf16 %v276
  %v341 = vunpack.c.l.bf16 %v277
  %v342 = vunpack.c.l.bf16 %v278
  %v343 = vunpack.c.l.bf16 %v279
  %v344 = vunpack.c.l.bf16 %v280
  %v345 = vunpack.c.l.bf16 %v281
  %v346 = vunpack.c.l.bf16 %v282
  %v347 = vunpack.c.l.bf16 %v283
  %v348 = vunpack.c.l.bf16 %v284
  %v349 = vunpack.c.l.bf16 %v285
  %v350 = vunpack.c.l.bf16 %v286
  %v351 = vunpack.c.l.bf16 %v287
  %v352 = vunpack.c.l.bf16 %v288
  %v353 = vunpack.c.l.bf16 %v289
  %v354 = vunpack.c.l.bf16 %v290
  %v355 = vunpack.c.l.bf16 %v291
  %v356 = vunpack.c.l.bf16 %v292
  %v357 = vunpack.c.l.bf16 %v293
  %v358 = vunpack.c.l.bf16 %v294
  %v359 = vunpack.c.l.bf16 %v295
  %v360 = vunpack.c.l.bf16 %v296
  %v361 = vunpack.c.l.bf16 %v297
  %v362 = vunpack.c.l.bf16 %v298
  %v363 = vunpack.c.l.bf16 %v299
  %v364 = vunpack.c.l.bf16 %v300
  %v365 = vunpack.c.l.bf16 %v301
  %v366 = vunpack.c.l.bf16 %v302
  %v367 = vunpack.c.l.bf16 %v303
  %v368 = vunpack.c.l.bf16 %v304
  %433 = vrot.lane.b32.xlu0 %v305, 8
  %v434 = vpop.permute.xlu0 %433
  %435 = vrot.lane.b32.xlu0 %v306, 8
  %v436 = vpop.permute.xlu0 %435
  %437 = vrot.lane.b32.xlu0 %v307, 8
  %v438 = vpop.permute.xlu0 %437
  %439 = vrot.lane.b32.xlu0 %v308, 8
  %v440 = vpop.permute.xlu0 %439
  %441 = vrot.lane.b32.xlu0 %v309, 8
  %v442 = vpop.permute.xlu0 %441
  %443 = vrot.lane.b32.xlu0 %v310, 8
  %v444 = vpop.permute.xlu0 %443
  %445 = vrot.lane.b32.xlu0 %v311, 8
  %v446 = vpop.permute.xlu0 %445
  %447 = vrot.lane.b32.xlu0 %v312, 8
  %v448 = vpop.permute.xlu0 %447
  %449 = vrot.lane.b32.xlu0 %v313, 8
  %v450 = vpop.permute.xlu0 %449
  %451 = vrot.lane.b32.xlu0 %v314, 8
  %v452 = vpop.permute.xlu0 %451
  %453 = vrot.lane.b32.xlu0 %v315, 8
  %v454 = vpop.permute.xlu0 %453
  %455 = vrot.lane.b32.xlu0 %v316, 8
  %v456 = vpop.permute.xlu0 %455
  %457 = vrot.lane.b32.xlu0 %v317, 8
  %v458 = vpop.permute.xlu0 %457
  %459 = vrot.lane.b32.xlu0 %v318, 8
  %v460 = vpop.permute.xlu0 %459
  %461 = vrot.lane.b32.xlu0 %v319, 8
  %v462 = vpop.permute.xlu0 %461
  %463 = vrot.lane.b32.xlu0 %v320, 8
  %v464 = vpop.permute.xlu0 %463
  %465 = vrot.lane.b32.xlu0 %v321, 8
  %v466 = vpop.permute.xlu0 %465
  %467 = vrot.lane.b32.xlu0 %v322, 8
  %v468 = vpop.permute.xlu0 %467
  %469 = vrot.lane.b32.xlu0 %v323, 8
  %v470 = vpop.permute.xlu0 %469
  %471 = vrot.lane.b32.xlu0 %v324, 8
  %v472 = vpop.permute.xlu0 %471
  %473 = vrot.lane.b32.xlu0 %v325, 8
  %v474 = vpop.permute.xlu0 %473
  %475 = vrot.lane.b32.xlu0 %v326, 8
  %v476 = vpop.permute.xlu0 %475
  %477 = vrot.lane.b32.xlu0 %v327, 8
  %v478 = vpop.permute.xlu0 %477
  %479 = vrot.lane.b32.xlu0 %v328, 8
  %v480 = vpop.permute.xlu0 %479
  %481 = vrot.lane.b32.xlu0 %v329, 8
  %v482 = vpop.permute.xlu0 %481
  %483 = vrot.lane.b32.xlu0 %v330, 8
  %v484 = vpop.permute.xlu0 %483
  %485 = vrot.lane.b32.xlu0 %v331, 8
  %v486 = vpop.permute.xlu0 %485
  %487 = vrot.lane.b32.xlu0 %v332, 8
  %v488 = vpop.permute.xlu0 %487
  %489 = vrot.lane.b32.xlu0 %v333, 8
  %v490 = vpop.permute.xlu0 %489
  %491 = vrot.lane.b32.xlu0 %v334, 8
  %v492 = vpop.permute.xlu0 %491
  %493 = vrot.lane.b32.xlu0 %v335, 8
  %v494 = vpop.permute.xlu0 %493
  %495 = vrot.lane.b32.xlu0 %v336, 8
  %v496 = vpop.permute.xlu0 %495
  %497 = vrot.lane.b32.xlu0 %v337, 8
  %v498 = vpop.permute.xlu0 %497
  %499 = vrot.lane.b32.xlu0 %v338, 8
  %v500 = vpop.permute.xlu0 %499
  %501 = vrot.lane.b32.xlu0 %v339, 8
  %v502 = vpop.permute.xlu0 %501
  %503 = vrot.lane.b32.xlu0 %v340, 8
  %v504 = vpop.permute.xlu0 %503
  %505 = vrot.lane.b32.xlu0 %v341, 8
  %v506 = vpop.permute.xlu0 %505
  %507 = vrot.lane.b32.xlu0 %v342, 8
  %v508 = vpop.permute.xlu0 %507
  %509 = vrot.lane.b32.xlu0 %v343, 8
  %v510 = vpop.permute.xlu0 %509
  %511 = vrot.lane.b32.xlu0 %v344, 8
  %v512 = vpop.permute.xlu0 %511
  %513 = vrot.lane.b32.xlu0 %v345, 8
  %v514 = vpop.permute.xlu0 %513
  %515 = vrot.lane.b32.xlu0 %v346, 8
  %v516 = vpop.permute.xlu0 %515
  %517 = vrot.lane.b32.xlu0 %v347, 8
  %v518 = vpop.permute.xlu0 %517
  %519 = vrot.lane.b32.xlu0 %v348, 8
  %v520 = vpop.permute.xlu0 %519
  %521 = vrot.lane.b32.xlu0 %v349, 8
  %v522 = vpop.permute.xlu0 %521
  %523 = vrot.lane.b32.xlu0 %v350, 8
  %v524 = vpop.permute.xlu0 %523
  %525 = vrot.lane.b32.xlu0 %v351, 8
  %v526 = vpop.permute.xlu0 %525
  %527 = vrot.lane.b32.xlu0 %v352, 8
  %v528 = vpop.permute.xlu0 %527
  %529 = vrot.lane.b32.xlu0 %v353, 8
  %v530 = vpop.permute.xlu0 %529
  %531 = vrot.lane.b32.xlu0 %v354, 8
  %v532 = vpop.permute.xlu0 %531
  %533 = vrot.lane.b32.xlu0 %v355, 8
  %v534 = vpop.permute.xlu0 %533
  %535 = vrot.lane.b32.xlu0 %v356, 8
  %v536 = vpop.permute.xlu0 %535
  %537 = vrot.lane.b32.xlu0 %v357, 8
  %v538 = vpop.permute.xlu0 %537
  %539 = vrot.lane.b32.xlu0 %v358, 8
  %v540 = vpop.permute.xlu0 %539
  %541 = vrot.lane.b32.xlu0 %v359, 8
  %v542 = vpop.permute.xlu0 %541
  %543 = vrot.lane.b32.xlu0 %v360, 8
  %v544 = vpop.permute.xlu0 %543
  %545 = vrot.lane.b32.xlu0 %v361, 8
  %v546 = vpop.permute.xlu0 %545
  %547 = vrot.lane.b32.xlu0 %v362, 8
  %v548 = vpop.permute.xlu0 %547
  %549 = vrot.lane.b32.xlu0 %v363, 8
  %v550 = vpop.permute.xlu0 %549
  %551 = vrot.lane.b32.xlu0 %v364, 8
  %v552 = vpop.permute.xlu0 %551
  %553 = vrot.lane.b32.xlu0 %v365, 8
  %v554 = vpop.permute.xlu0 %553
  %555 = vrot.lane.b32.xlu0 %v366, 8
  %v556 = vpop.permute.xlu0 %555
  %557 = vrot.lane.b32.xlu0 %v367, 8
  %v558 = vpop.permute.xlu0 %557
  %559 = vrot.lane.b32.xlu0 %v368, 8
  %v560 = vpop.permute.xlu0 %559
  %vm625 = vcmask 130112
  %626 = vst.msk [vmem:[#allocation2] sm:$0xff] %vm625, %v434
  %627 = vst.msk [vmem:[#allocation2 + $0x8] sm:$0xff] %vm625, %v436
  %628 = vst.msk [vmem:[#allocation2 + $0x10] sm:$0xff] %vm625, %v438
  %629 = vst.msk [vmem:[#allocation2 + $0x18] sm:$0xff] %vm625, %v440
  %630 = vst.msk [vmem:[#allocation2 + $0x20] sm:$0xff] %vm625, %v442
  %631 = vst.msk [vmem:[#allocation2 + $0x28] sm:$0xff] %vm625, %v444
  %632 = vst.msk [vmem:[#allocation2 + $0x30] sm:$0xff] %vm625, %v446
  %633 = vst.msk [vmem:[#allocation2 + $0x38] sm:$0xff] %vm625, %v448
  %634 = vst.msk [vmem:[#allocation2 + $0x40] sm:$0xff] %vm625, %v450
  %635 = vst.msk [vmem:[#allocation2 + $0x48] sm:$0xff] %vm625, %v452
  %636 = vst.msk [vmem:[#allocation2 + $0x50] sm:$0xff] %vm625, %v454
  %637 = vst.msk [vmem:[#allocation2 + $0x58] sm:$0xff] %vm625, %v456
  %638 = vst.msk [vmem:[#allocation2 + $0x60] sm:$0xff] %vm625, %v458
  %639 = vst.msk [vmem:[#allocation2 + $0x68] sm:$0xff] %vm625, %v460
  %640 = vst.msk [vmem:[#allocation2 + $0x70] sm:$0xff] %vm625, %v462
  %641 = vst.msk [vmem:[#allocation2 + $0x78] sm:$0xff] %vm625, %v464
  %642 = vst.msk [vmem:[#allocation2 + $0x80] sm:$0xff] %vm625, %v466
  %643 = vst.msk [vmem:[#allocation2 + $0x88] sm:$0xff] %vm625, %v468
  %644 = vst.msk [vmem:[#allocation2 + $0x90] sm:$0xff] %vm625, %v470
  %645 = vst.msk [vmem:[#allocation2 + $0x98] sm:$0xff] %vm625, %v472
  %646 = vst.msk [vmem:[#allocation2 + $0xa0] sm:$0xff] %vm625, %v474
  %647 = vst.msk [vmem:[#allocation2 + $0xa8] sm:$0xff] %vm625, %v476
  %648 = vst.msk [vmem:[#allocation2 + $0xb0] sm:$0xff] %vm625, %v478
  %649 = vst.msk [vmem:[#allocation2 + $0xb8] sm:$0xff] %vm625, %v480
  %650 = vst.msk [vmem:[#allocation2 + $0xc0] sm:$0xff] %vm625, %v482
  %651 = vst.msk [vmem:[#allocation2 + $0xc8] sm:$0xff] %vm625, %v484
  %652 = vst.msk [vmem:[#allocation2 + $0xd0] sm:$0xff] %vm625, %v486
  %653 = vst.msk [vmem:[#allocation2 + $0xd8] sm:$0xff] %vm625, %v488
  %654 = vst.msk [vmem:[#allocation2 + $0xe0] sm:$0xff] %vm625, %v490
  %655 = vst.msk [vmem:[#allocation2 + $0xe8] sm:$0xff] %vm625, %v492
  %656 = vst.msk [vmem:[#allocation2 + $0xf0] sm:$0xff] %vm625, %v494
  %657 = vst.msk [vmem:[#allocation2 + $0xf8] sm:$0xff] %vm625, %v496
  %658 = vst.msk [vmem:[#allocation2 + $0x100] sm:$0xff] %vm625, %v498
  %659 = vst.msk [vmem:[#allocation2 + $0x108] sm:$0xff] %vm625, %v500
  %660 = vst.msk [vmem:[#allocation2 + $0x110] sm:$0xff] %vm625, %v502
  %661 = vst.msk [vmem:[#allocation2 + $0x118] sm:$0xff] %vm625, %v504
  %662 = vst.msk [vmem:[#allocation2 + $0x120] sm:$0xff] %vm625, %v506
  %663 = vst.msk [vmem:[#allocation2 + $0x128] sm:$0xff] %vm625, %v508
  %664 = vst.msk [vmem:[#allocation2 + $0x130] sm:$0xff] %vm625, %v510
  %665 = vst.msk [vmem:[#allocation2 + $0x138] sm:$0xff] %vm625, %v512
  %666 = vst.msk [vmem:[#allocation2 + $0x140] sm:$0xff] %vm625, %v514
  %667 = vst.msk [vmem:[#allocation2 + $0x148] sm:$0xff] %vm625, %v516
  %668 = vst.msk [vmem:[#allocation2 + $0x150] sm:$0xff] %vm625, %v518
  %669 = vst.msk [vmem:[#allocation2 + $0x158] sm:$0xff] %vm625, %v520
  %670 = vst.msk [vmem:[#allocation2 + $0x160] sm:$0xff] %vm625, %v522
  %671 = vst.msk [vmem:[#allocation2 + $0x168] sm:$0xff] %vm625, %v524
  %672 = vst.msk [vmem:[#allocation2 + $0x170] sm:$0xff] %vm625, %v526
  %673 = vst.msk [vmem:[#allocation2 + $0x178] sm:$0xff] %vm625, %v528
  %674 = vst.msk [vmem:[#allocation2 + $0x180] sm:$0xff] %vm625, %v530
  %675 = vst.msk [vmem:[#allocation2 + $0x188] sm:$0xff] %vm625, %v532
  %676 = vst.msk [vmem:[#allocation2 + $0x190] sm:$0xff] %vm625, %v534
  %677 = vst.msk [vmem:[#allocation2 + $0x198] sm:$0xff] %vm625, %v536
  %678 = vst.msk [vmem:[#allocation2 + $0x1a0] sm:$0xff] %vm625, %v538
  %679 = vst.msk [vmem:[#allocation2 + $0x1a8] sm:$0xff] %vm625, %v540
  %680 = vst.msk [vmem:[#allocation2 + $0x1b0] sm:$0xff] %vm625, %v542
  %681 = vst.msk [vmem:[#allocation2 + $0x1b8] sm:$0xff] %vm625, %v544
  %682 = vst.msk [vmem:[#allocation2 + $0x1c0] sm:$0xff] %vm625, %v546
  %683 = vst.msk [vmem:[#allocation2 + $0x1c8] sm:$0xff] %vm625, %v548
  %684 = vst.msk [vmem:[#allocation2 + $0x1d0] sm:$0xff] %vm625, %v550
  %685 = vst.msk [vmem:[#allocation2 + $0x1d8] sm:$0xff] %vm625, %v552
  %686 = vst.msk [vmem:[#allocation2 + $0x1e0] sm:$0xff] %vm625, %v554
  %687 = vst.msk [vmem:[#allocation2 + $0x1e8] sm:$0xff] %vm625, %v556
  %688 = vst.msk [vmem:[#allocation2 + $0x1f0] sm:$0xff] %vm625, %v558
  %689 = vst.msk [vmem:[#allocation2 + $0x1f8] sm:$0xff] %vm625, %v560
  %s690 = scalar_lea.vmem %s0, 8
  %v691 = vld [vmem:[%s690] sm:$0xf]
  %v692 = vld [vmem:[%s690 + $0x8] sm:$0xf]
  %v693 = vld [vmem:[%s690 + $0x10] sm:$0xf]
  %v694 = vld [vmem:[%s690 + $0x18] sm:$0xf]
  %v695 = vld [vmem:[%s690 + $0x20] sm:$0xf]
  %v696 = vld [vmem:[%s690 + $0x28] sm:$0xf]
  %v697 = vld [vmem:[%s690 + $0x30] sm:$0xf]
  %v698 = vld [vmem:[%s690 + $0x38] sm:$0xf]
  %v699 = vld [vmem:[%s690 + $0x90] sm:$0xf]
  %v700 = vld [vmem:[%s690 + $0x98] sm:$0xf]
  %v701 = vld [vmem:[%s690 + $0xa0] sm:$0xf]
  %v702 = vld [vmem:[%s690 + $0xa8] sm:$0xf]
  %v703 = vld [vmem:[%s690 + $0xb0] sm:$0xf]
  %v704 = vld [vmem:[%s690 + $0xb8] sm:$0xf]
  %v705 = vld [vmem:[%s690 + $0xc0] sm:$0xf]
  %v706 = vld [vmem:[%s690 + $0xc8] sm:$0xf]
  %v707 = vld [vmem:[%s690 + $0x120] sm:$0xf]
  %v708 = vld [vmem:[%s690 + $0x128] sm:$0xf]
  %v709 = vld [vmem:[%s690 + $0x130] sm:$0xf]
  %v710 = vld [vmem:[%s690 + $0x138] sm:$0xf]
  %v711 = vld [vmem:[%s690 + $0x140] sm:$0xf]
  %v712 = vld [vmem:[%s690 + $0x148] sm:$0xf]
  %v713 = vld [vmem:[%s690 + $0x150] sm:$0xf]
  %v714 = vld [vmem:[%s690 + $0x158] sm:$0xf]
  %v715 = vld [vmem:[%s690 + $0x1b0] sm:$0xf]
  %v716 = vld [vmem:[%s690 + $0x1b8] sm:$0xf]
  %v717 = vld [vmem:[%s690 + $0x1c0] sm:$0xf]
  %v718 = vld [vmem:[%s690 + $0x1c8] sm:$0xf]
  %v719 = vld [vmem:[%s690 + $0x1d0] sm:$0xf]
  %v720 = vld [vmem:[%s690 + $0x1d8] sm:$0xf]
  %v721 = vld [vmem:[%s690 + $0x1e0] sm:$0xf]
  %v722 = vld [vmem:[%s690 + $0x1e8] sm:$0xf]
  %v723 = vld [vmem:[%s690 + $0x240] sm:$0xf]
  %v724 = vld [vmem:[%s690 + $0x248] sm:$0xf]
  %v725 = vld [vmem:[%s690 + $0x250] sm:$0xf]
  %v726 = vld [vmem:[%s690 + $0x258] sm:$0xf]
  %v727 = vld [vmem:[%s690 + $0x260] sm:$0xf]
  %v728 = vld [vmem:[%s690 + $0x268] sm:$0xf]
  %v729 = vld [vmem:[%s690 + $0x270] sm:$0xf]
  %v730 = vld [vmem:[%s690 + $0x278] sm:$0xf]
  %v731 = vld [vmem:[%s690 + $0x2d0] sm:$0xf]
  %v732 = vld [vmem:[%s690 + $0x2d8] sm:$0xf]
  %v733 = vld [vmem:[%s690 + $0x2e0] sm:$0xf]
  %v734 = vld [vmem:[%s690 + $0x2e8] sm:$0xf]
  %v735 = vld [vmem:[%s690 + $0x2f0] sm:$0xf]
  %v736 = vld [vmem:[%s690 + $0x2f8] sm:$0xf]
  %v737 = vld [vmem:[%s690 + $0x300] sm:$0xf]
  %v738 = vld [vmem:[%s690 + $0x308] sm:$0xf]
  %v739 = vld [vmem:[%s690 + $0x360] sm:$0xf]
  %v740 = vld [vmem:[%s690 + $0x368] sm:$0xf]
  %v741 = vld [vmem:[%s690 + $0x370] sm:$0xf]
  %v742 = vld [vmem:[%s690 + $0x378] sm:$0xf]
  %v743 = vld [vmem:[%s690 + $0x380] sm:$0xf]
  %v744 = vld [vmem:[%s690 + $0x388] sm:$0xf]
  %v745 = vld [vmem:[%s690 + $0x390] sm:$0xf]
  %v746 = vld [vmem:[%s690 + $0x398] sm:$0xf]
  %v747 = vld [vmem:[%s690 + $0x3f0] sm:$0xf]
  %v748 = vld [vmem:[%s690 + $0x3f8] sm:$0xf]
  %v749 = vld [vmem:[%s690 + $0x400] sm:$0xf]
  %v750 = vld [vmem:[%s690 + $0x408] sm:$0xf]
  %v751 = vld [vmem:[%s690 + $0x410] sm:$0xf]
  %v752 = vld [vmem:[%s690 + $0x418] sm:$0xf]
  %v753 = vld [vmem:[%s690 + $0x420] sm:$0xf]
  %v754 = vld [vmem:[%s690 + $0x428] sm:$0xf]
  %v755 = vunpack.c.l.bf16 %v691
  %v756 = vunpack.c.l.bf16 %v692
  %v757 = vunpack.c.l.bf16 %v693
  %v758 = vunpack.c.l.bf16 %v694
  %v759 = vunpack.c.l.bf16 %v695
  %v760 = vunpack.c.l.bf16 %v696
  %v761 = vunpack.c.l.bf16 %v697
  %v762 = vunpack.c.l.bf16 %v698
  %v763 = vunpack.c.l.bf16 %v699
  %v764 = vunpack.c.l.bf16 %v700
  %v765 = vunpack.c.l.bf16 %v701
  %v766 = vunpack.c.l.bf16 %v702
  %v767 = vunpack.c.l.bf16 %v703
  %v768 = vunpack.c.l.bf16 %v704
  %v769 = vunpack.c.l.bf16 %v705
  %v770 = vunpack.c.l.bf16 %v706
  %v771 = vunpack.c.l.bf16 %v707
  %v772 = vunpack.c.l.bf16 %v708
  %v773 = vunpack.c.l.bf16 %v709
  %v774 = vunpack.c.l.bf16 %v710
  %v775 = vunpack.c.l.bf16 %v711
  %v776 = vunpack.c.l.bf16 %v712
  %v777 = vunpack.c.l.bf16 %v713
  %v778 = vunpack.c.l.bf16 %v714
  %v779 = vunpack.c.l.bf16 %v715
  %v780 = vunpack.c.l.bf16 %v716
  %v781 = vunpack.c.l.bf16 %v717
  %v782 = vunpack.c.l.bf16 %v718
  %v783 = vunpack.c.l.bf16 %v719
  %v784 = vunpack.c.l.bf16 %v720
  %v785 = vunpack.c.l.bf16 %v721
  %v786 = vunpack.c.l.bf16 %v722
  %v787 = vunpack.c.l.bf16 %v723
  %v788 = vunpack.c.l.bf16 %v724
  %v789 = vunpack.c.l.bf16 %v725
  %v790 = vunpack.c.l.bf16 %v726
  %v791 = vunpack.c.l.bf16 %v727
  %v792 = vunpack.c.l.bf16 %v728
  %v793 = vunpack.c.l.bf16 %v729
  %v794 = vunpack.c.l.bf16 %v730
  %v795 = vunpack.c.l.bf16 %v731
  %v796 = vunpack.c.l.bf16 %v732
  %v797 = vunpack.c.l.bf16 %v733
  %v798 = vunpack.c.l.bf16 %v734
  %v799 = vunpack.c.l.bf16 %v735
  %v800 = vunpack.c.l.bf16 %v736
  %v801 = vunpack.c.l.bf16 %v737
  %v802 = vunpack.c.l.bf16 %v738
  %v803 = vunpack.c.l.bf16 %v739
  %v804 = vunpack.c.l.bf16 %v740
  %v805 = vunpack.c.l.bf16 %v741
  %v806 = vunpack.c.l.bf16 %v742
  %v807 = vunpack.c.l.bf16 %v743
  %v808 = vunpack.c.l.bf16 %v744
  %v809 = vunpack.c.l.bf16 %v745
  %v810 = vunpack.c.l.bf16 %v746
  %v811 = vunpack.c.l.bf16 %v747
  %v812 = vunpack.c.l.bf16 %v748
  %v813 = vunpack.c.l.bf16 %v749
  %v814 = vunpack.c.l.bf16 %v750
  %v815 = vunpack.c.l.bf16 %v751
  %v816 = vunpack.c.l.bf16 %v752
  %v817 = vunpack.c.l.bf16 %v753
  %v818 = vunpack.c.l.bf16 %v754
  %883 = vrot.lane.b32.xlu0 %v755, 16
  %v884 = vpop.permute.xlu0 %883
  %885 = vrot.lane.b32.xlu0 %v756, 16
  %v886 = vpop.permute.xlu0 %885
  %887 = vrot.lane.b32.xlu0 %v757, 16
  %v888 = vpop.permute.xlu0 %887
  %889 = vrot.lane.b32.xlu0 %v758, 16
  %v890 = vpop.permute.xlu0 %889
  %891 = vrot.lane.b32.xlu0 %v759, 16
  %v892 = vpop.permute.xlu0 %891
  %893 = vrot.lane.b32.xlu0 %v760, 16
  %v894 = vpop.permute.xlu0 %893
  %895 = vrot.lane.b32.xlu0 %v761, 16
  %v896 = vpop.permute.xlu0 %895
  %897 = vrot.lane.b32.xlu0 %v762, 16
  %v898 = vpop.permute.xlu0 %897
  %899 = vrot.lane.b32.xlu0 %v763, 16
  %v900 = vpop.permute.xlu0 %899
  %901 = vrot.lane.b32.xlu0 %v764, 16
  %v902 = vpop.permute.xlu0 %901
  %903 = vrot.lane.b32.xlu0 %v765, 16
  %v904 = vpop.permute.xlu0 %903
  %905 = vrot.lane.b32.xlu0 %v766, 16
  %v906 = vpop.permute.xlu0 %905
  %907 = vrot.lane.b32.xlu0 %v767, 16
  %v908 = vpop.permute.xlu0 %907
  %909 = vrot.lane.b32.xlu0 %v768, 16
  %v910 = vpop.permute.xlu0 %909
  %911 = vrot.lane.b32.xlu0 %v769, 16
  %v912 = vpop.permute.xlu0 %911
  %913 = vrot.lane.b32.xlu0 %v770, 16
  %v914 = vpop.permute.xlu0 %913
  %915 = vrot.lane.b32.xlu0 %v771, 16
  %v916 = vpop.permute.xlu0 %915
  %917 = vrot.lane.b32.xlu0 %v772, 16
  %v918 = vpop.permute.xlu0 %917
  %919 = vrot.lane.b32.xlu0 %v773, 16
  %v920 = vpop.permute.xlu0 %919
  %921 = vrot.lane.b32.xlu0 %v774, 16
  %v922 = vpop.permute.xlu0 %921
  %923 = vrot.lane.b32.xlu0 %v775, 16
  %v924 = vpop.permute.xlu0 %923
  %925 = vrot.lane.b32.xlu0 %v776, 16
  %v926 = vpop.permute.xlu0 %925
  %927 = vrot.lane.b32.xlu0 %v777, 16
  %v928 = vpop.permute.xlu0 %927
  %929 = vrot.lane.b32.xlu0 %v778, 16
  %v930 = vpop.permute.xlu0 %929
  %931 = vrot.lane.b32.xlu0 %v779, 16
  %v932 = vpop.permute.xlu0 %931
  %933 = vrot.lane.b32.xlu0 %v780, 16
  %v934 = vpop.permute.xlu0 %933
  %935 = vrot.lane.b32.xlu0 %v781, 16
  %v936 = vpop.permute.xlu0 %935
  %937 = vrot.lane.b32.xlu0 %v782, 16
  %v938 = vpop.permute.xlu0 %937
  %939 = vrot.lane.b32.xlu0 %v783, 16
  %v940 = vpop.permute.xlu0 %939
  %941 = vrot.lane.b32.xlu0 %v784, 16
  %v942 = vpop.permute.xlu0 %941
  %943 = vrot.lane.b32.xlu0 %v785, 16
  %v944 = vpop.permute.xlu0 %943
  %945 = vrot.lane.b32.xlu0 %v786, 16
  %v946 = vpop.permute.xlu0 %945
  %947 = vrot.lane.b32.xlu0 %v787, 16
  %v948 = vpop.permute.xlu0 %947
  %949 = vrot.lane.b32.xlu0 %v788, 16
  %v950 = vpop.permute.xlu0 %949
  %951 = vrot.lane.b32.xlu0 %v789, 16
  %v952 = vpop.permute.xlu0 %951
  %953 = vrot.lane.b32.xlu0 %v790, 16
  %v954 = vpop.permute.xlu0 %953
  %955 = vrot.lane.b32.xlu0 %v791, 16
  %v956 = vpop.permute.xlu0 %955
  %957 = vrot.lane.b32.xlu0 %v792, 16
  %v958 = vpop.permute.xlu0 %957
  %959 = vrot.lane.b32.xlu0 %v793, 16
  %v960 = vpop.permute.xlu0 %959
  %961 = vrot.lane.b32.xlu0 %v794, 16
  %v962 = vpop.permute.xlu0 %961
  %963 = vrot.lane.b32.xlu0 %v795, 16
  %v964 = vpop.permute.xlu0 %963
  %965 = vrot.lane.b32.xlu0 %v796, 16
  %v966 = vpop.permute.xlu0 %965
  %967 = vrot.lane.b32.xlu0 %v797, 16
  %v968 = vpop.permute.xlu0 %967
  %969 = vrot.lane.b32.xlu0 %v798, 16
  %v970 = vpop.permute.xlu0 %969
  %971 = vrot.lane.b32.xlu0 %v799, 16
  %v972 = vpop.permute.xlu0 %971
  %973 = vrot.lane.b32.xlu0 %v800, 16
  %v974 = vpop.permute.xlu0 %973
  %975 = vrot.lane.b32.xlu0 %v801, 16
  %v976 = vpop.permute.xlu0 %975
  %977 = vrot.lane.b32.xlu0 %v802, 16
  %v978 = vpop.permute.xlu0 %977
  %979 = vrot.lane.b32.xlu0 %v803, 16
  %v980 = vpop.permute.xlu0 %979
  %981 = vrot.lane.b32.xlu0 %v804, 16
  %v982 = vpop.permute.xlu0 %981
  %983 = vrot.lane.b32.xlu0 %v805, 16
  %v984 = vpop.permute.xlu0 %983
  %985 = vrot.lane.b32.xlu0 %v806, 16
  %v986 = vpop.permute.xlu0 %985
  %987 = vrot.lane.b32.xlu0 %v807, 16
  %v988 = vpop.permute.xlu0 %987
  %989 = vrot.lane.b32.xlu0 %v808, 16
  %v990 = vpop.permute.xlu0 %989
  %991 = vrot.lane.b32.xlu0 %v809, 16
  %v992 = vpop.permute.xlu0 %991
  %993 = vrot.lane.b32.xlu0 %v810, 16
  %v994 = vpop.permute.xlu0 %993
  %995 = vrot.lane.b32.xlu0 %v811, 16
  %v996 = vpop.permute.xlu0 %995
  %997 = vrot.lane.b32.xlu0 %v812, 16
  %v998 = vpop.permute.xlu0 %997
  %999 = vrot.lane.b32.xlu0 %v813, 16
  %v1000 = vpop.permute.xlu0 %999
  %1001 = vrot.lane.b32.xlu0 %v814, 16
  %v1002 = vpop.permute.xlu0 %1001
  %1003 = vrot.lane.b32.xlu0 %v815, 16
  %v1004 = vpop.permute.xlu0 %1003
  %1005 = vrot.lane.b32.xlu0 %v816, 16
  %v1006 = vpop.permute.xlu0 %1005
  %1007 = vrot.lane.b32.xlu0 %v817, 16
  %v1008 = vpop.permute.xlu0 %1007
  %1009 = vrot.lane.b32.xlu0 %v818, 16
  %v1010 = vpop.permute.xlu0 %1009
  %vm1075 = vcmask 195712
  %1076 = vst.msk [vmem:[#allocation2] sm:$0xff] %vm1075, %v884
  %1077 = vst.msk [vmem:[#allocation2 + $0x8] sm:$0xff] %vm1075, %v886
  %1078 = vst.msk [vmem:[#allocation2 + $0x10] sm:$0xff] %vm1075, %v888
  %1079 = vst.msk [vmem:[#allocation2 + $0x18] sm:$0xff] %vm1075, %v890
  %1080 = vst.msk [vmem:[#allocation2 + $0x20] sm:$0xff] %vm1075, %v892
  %1081 = vst.msk [vmem:[#allocation2 + $0x28] sm:$0xff] %vm1075, %v894
  %1082 = vst.msk [vmem:[#allocation2 + $0x30] sm:$0xff] %vm1075, %v896
  %1083 = vst.msk [vmem:[#allocation2 + $0x38] sm:$0xff] %vm1075, %v898
  %1084 = vst.msk [vmem:[#allocation2 + $0x40] sm:$0xff] %vm1075, %v900
  %1085 = vst.msk [vmem:[#allocation2 + $0x48] sm:$0xff] %vm1075, %v902
  %1086 = vst.msk [vmem:[#allocation2 + $0x50] sm:$0xff] %vm1075, %v904
  %1087 = vst.msk [vmem:[#allocation2 + $0x58] sm:$0xff] %vm1075, %v906
  %1088 = vst.msk [vmem:[#allocation2 + $0x60] sm:$0xff] %vm1075, %v908
  %1089 = vst.msk [vmem:[#allocation2 + $0x68] sm:$0xff] %vm1075, %v910
  %1090 = vst.msk [vmem:[#allocation2 + $0x70] sm:$0xff] %vm1075, %v912
  %1091 = vst.msk [vmem:[#allocation2 + $0x78] sm:$0xff] %vm1075, %v914
  %1092 = vst.msk [vmem:[#allocation2 + $0x80] sm:$0xff] %vm1075, %v916
  %1093 = vst.msk [vmem:[#allocation2 + $0x88] sm:$0xff] %vm1075, %v918
  %1094 = vst.msk [vmem:[#allocation2 + $0x90] sm:$0xff] %vm1075, %v920
  %1095 = vst.msk [vmem:[#allocation2 + $0x98] sm:$0xff] %vm1075, %v922
  %1096 = vst.msk [vmem:[#allocation2 + $0xa0] sm:$0xff] %vm1075, %v924
  %1097 = vst.msk [vmem:[#allocation2 + $0xa8] sm:$0xff] %vm1075, %v926
  %1098 = vst.msk [vmem:[#allocation2 + $0xb0] sm:$0xff] %vm1075, %v928
  %1099 = vst.msk [vmem:[#allocation2 + $0xb8] sm:$0xff] %vm1075, %v930
  %1100 = vst.msk [vmem:[#allocation2 + $0xc0] sm:$0xff] %vm1075, %v932
  %1101 = vst.msk [vmem:[#allocation2 + $0xc8] sm:$0xff] %vm1075, %v934
  %1102 = vst.msk [vmem:[#allocation2 + $0xd0] sm:$0xff] %vm1075, %v936
  %1103 = vst.msk [vmem:[#allocation2 + $0xd8] sm:$0xff] %vm1075, %v938
  %1104 = vst.msk [vmem:[#allocation2 + $0xe0] sm:$0xff] %vm1075, %v940
  %1105 = vst.msk [vmem:[#allocation2 + $0xe8] sm:$0xff] %vm1075, %v942
  %1106 = vst.msk [vmem:[#allocation2 + $0xf0] sm:$0xff] %vm1075, %v944
  %1107 = vst.msk [vmem:[#allocation2 + $0xf8] sm:$0xff] %vm1075, %v946
  %1108 = vst.msk [vmem:[#allocation2 + $0x100] sm:$0xff] %vm1075, %v948
  %1109 = vst.msk [vmem:[#allocation2 + $0x108] sm:$0xff] %vm1075, %v950
  %1110 = vst.msk [vmem:[#allocation2 + $0x110] sm:$0xff] %vm1075, %v952
  %1111 = vst.msk [vmem:[#allocation2 + $0x118] sm:$0xff] %vm1075, %v954
  %1112 = vst.msk [vmem:[#allocation2 + $0x120] sm:$0xff] %vm1075, %v956
  %1113 = vst.msk [vmem:[#allocation2 + $0x128] sm:$0xff] %vm1075, %v958
  %1114 = vst.msk [vmem:[#allocation2 + $0x130] sm:$0xff] %vm1075, %v960
  %1115 = vst.msk [vmem:[#allocation2 + $0x138] sm:$0xff] %vm1075, %v962
  %1116 = vst.msk [vmem:[#allocation2 + $0x140] sm:$0xff] %vm1075, %v964
  %1117 = vst.msk [vmem:[#allocation2 + $0x148] sm:$0xff] %vm1075, %v966
  %1118 = vst.msk [vmem:[#allocation2 + $0x150] sm:$0xff] %vm1075, %v968
  %1119 = vst.msk [vmem:[#allocation2 + $0x158] sm:$0xff] %vm1075, %v970
  %1120 = vst.msk [vmem:[#allocation2 + $0x160] sm:$0xff] %vm1075, %v972
  %1121 = vst.msk [vmem:[#allocation2 + $0x168] sm:$0xff] %vm1075, %v974
  %1122 = vst.msk [vmem:[#allocation2 + $0x170] sm:$0xff] %vm1075, %v976
  %1123 = vst.msk [vmem:[#allocation2 + $0x178] sm:$0xff] %vm1075, %v978
  %1124 = vst.msk [vmem:[#allocation2 + $0x180] sm:$0xff] %vm1075, %v980
  %1125 = vst.msk [vmem:[#allocation2 + $0x188] sm:$0xff] %vm1075, %v982
  %1126 = vst.msk [vmem:[#allocation2 + $0x190] sm:$0xff] %vm1075, %v984
  %1127 = vst.msk [vmem:[#allocation2 + $0x198] sm:$0xff] %vm1075, %v986
  %1128 = vst.msk [vmem:[#allocation2 + $0x1a0] sm:$0xff] %vm1075, %v988
  %1129 = vst.msk [vmem:[#allocation2 + $0x1a8] sm:$0xff] %vm1075, %v990
  %1130 = vst.msk [vmem:[#allocation2 + $0x1b0] sm:$0xff] %vm1075, %v992
  %1131 = vst.msk [vmem:[#allocation2 + $0x1b8] sm:$0xff] %vm1075, %v994
  %1132 = vst.msk [vmem:[#allocation2 + $0x1c0] sm:$0xff] %vm1075, %v996
  %1133 = vst.msk [vmem:[#allocation2 + $0x1c8] sm:$0xff] %vm1075, %v998
  %1134 = vst.msk [vmem:[#allocation2 + $0x1d0] sm:$0xff] %vm1075, %v1000
  %1135 = vst.msk [vmem:[#allocation2 + $0x1d8] sm:$0xff] %vm1075, %v1002
  %1136 = vst.msk [vmem:[#allocation2 + $0x1e0] sm:$0xff] %vm1075, %v1004
  %1137 = vst.msk [vmem:[#allocation2 + $0x1e8] sm:$0xff] %vm1075, %v1006
  %1138 = vst.msk [vmem:[#allocation2 + $0x1f0] sm:$0xff] %vm1075, %v1008
  %1139 = vst.msk [vmem:[#allocation2 + $0x1f8] sm:$0xff] %vm1075, %v1010
  %s1140 = scalar_lea.vmem %s0, 72
  %v1141 = vld [vmem:[%s1140] sm:$0xf]
  %v1142 = vld [vmem:[%s1140 + $0x8] sm:$0xf]
  %v1143 = vld [vmem:[%s1140 + $0x10] sm:$0xf]
  %v1144 = vld [vmem:[%s1140 + $0x18] sm:$0xf]
  %v1145 = vld [vmem:[%s1140 + $0x20] sm:$0xf]
  %v1146 = vld [vmem:[%s1140 + $0x28] sm:$0xf]
  %v1147 = vld [vmem:[%s1140 + $0x30] sm:$0xf]
  %v1148 = vld [vmem:[%s1140 + $0x38] sm:$0xf]
  %v1149 = vld [vmem:[%s1140 + $0x90] sm:$0xf]
  %v1150 = vld [vmem:[%s1140 + $0x98] sm:$0xf]
  %v1151 = vld [vmem:[%s1140 + $0xa0] sm:$0xf]
  %v1152 = vld [vmem:[%s1140 + $0xa8] sm:$0xf]
  %v1153 = vld [vmem:[%s1140 + $0xb0] sm:$0xf]
  %v1154 = vld [vmem:[%s1140 + $0xb8] sm:$0xf]
  %v1155 = vld [vmem:[%s1140 + $0xc0] sm:$0xf]
  %v1156 = vld [vmem:[%s1140 + $0xc8] sm:$0xf]
  %v1157 = vld [vmem:[%s1140 + $0x120] sm:$0xf]
  %v1158 = vld [vmem:[%s1140 + $0x128] sm:$0xf]
  %v1159 = vld [vmem:[%s1140 + $0x130] sm:$0xf]
  %v1160 = vld [vmem:[%s1140 + $0x138] sm:$0xf]
  %v1161 = vld [vmem:[%s1140 + $0x140] sm:$0xf]
  %v1162 = vld [vmem:[%s1140 + $0x148] sm:$0xf]
  %v1163 = vld [vmem:[%s1140 + $0x150] sm:$0xf]
  %v1164 = vld [vmem:[%s1140 + $0x158] sm:$0xf]
  %v1165 = vld [vmem:[%s1140 + $0x1b0] sm:$0xf]
  %v1166 = vld [vmem:[%s1140 + $0x1b8] sm:$0xf]
  %v1167 = vld [vmem:[%s1140 + $0x1c0] sm:$0xf]
  %v1168 = vld [vmem:[%s1140 + $0x1c8] sm:$0xf]
  %v1169 = vld [vmem:[%s1140 + $0x1d0] sm:$0xf]
  %v1170 = vld [vmem:[%s1140 + $0x1d8] sm:$0xf]
  %v1171 = vld [vmem:[%s1140 + $0x1e0] sm:$0xf]
  %v1172 = vld [vmem:[%s1140 + $0x1e8] sm:$0xf]
  %v1173 = vld [vmem:[%s1140 + $0x240] sm:$0xf]
  %v1174 = vld [vmem:[%s1140 + $0x248] sm:$0xf]
  %v1175 = vld [vmem:[%s1140 + $0x250] sm:$0xf]
  %v1176 = vld [vmem:[%s1140 + $0x258] sm:$0xf]
  %v1177 = vld [vmem:[%s1140 + $0x260] sm:$0xf]
  %v1178 = vld [vmem:[%s1140 + $0x268] sm:$0xf]
  %v1179 = vld [vmem:[%s1140 + $0x270] sm:$0xf]
  %v1180 = vld [vmem:[%s1140 + $0x278] sm:$0xf]
  %v1181 = vld [vmem:[%s1140 + $0x2d0] sm:$0xf]
  %v1182 = vld [vmem:[%s1140 + $0x2d8] sm:$0xf]
  %v1183 = vld [vmem:[%s1140 + $0x2e0] sm:$0xf]
  %v1184 = vld [vmem:[%s1140 + $0x2e8] sm:$0xf]
  %v1185 = vld [vmem:[%s1140 + $0x2f0] sm:$0xf]
  %v1186 = vld [vmem:[%s1140 + $0x2f8] sm:$0xf]
  %v1187 = vld [vmem:[%s1140 + $0x300] sm:$0xf]
  %v1188 = vld [vmem:[%s1140 + $0x308] sm:$0xf]
  %v1189 = vld [vmem:[%s1140 + $0x360] sm:$0xf]
  %v1190 = vld [vmem:[%s1140 + $0x368] sm:$0xf]
  %v1191 = vld [vmem:[%s1140 + $0x370] sm:$0xf]
  %v1192 = vld [vmem:[%s1140 + $0x378] sm:$0xf]
  %v1193 = vld [vmem:[%s1140 + $0x380] sm:$0xf]
  %v1194 = vld [vmem:[%s1140 + $0x388] sm:$0xf]
  %v1195 = vld [vmem:[%s1140 + $0x390] sm:$0xf]
  %v1196 = vld [vmem:[%s1140 + $0x398] sm:$0xf]
  %v1197 = vld [vmem:[%s1140 + $0x3f0] sm:$0xf]
  %v1198 = vld [vmem:[%s1140 + $0x3f8] sm:$0xf]
  %v1199 = vld [vmem:[%s1140 + $0x400] sm:$0xf]
  %v1200 = vld [vmem:[%s1140 + $0x408] sm:$0xf]
  %v1201 = vld [vmem:[%s1140 + $0x410] sm:$0xf]
  %v1202 = vld [vmem:[%s1140 + $0x418] sm:$0xf]
  %v1203 = vld [vmem:[%s1140 + $0x420] sm:$0xf]
  %v1204 = vld [vmem:[%s1140 + $0x428] sm:$0xf]
  %v1205 = vunpack.c.l.bf16 %v1141
  %v1206 = vunpack.c.l.bf16 %v1142
  %v1207 = vunpack.c.l.bf16 %v1143
  %v1208 = vunpack.c.l.bf16 %v1144
  %v1209 = vunpack.c.l.bf16 %v1145
  %v1210 = vunpack.c.l.bf16 %v1146
  %v1211 = vunpack.c.l.bf16 %v1147
  %v1212 = vunpack.c.l.bf16 %v1148
  %v1213 = vunpack.c.l.bf16 %v1149
  %v1214 = vunpack.c.l.bf16 %v1150
  %v1215 = vunpack.c.l.bf16 %v1151
  %v1216 = vunpack.c.l.bf16 %v1152
  %v1217 = vunpack.c.l.bf16 %v1153
  %v1218 = vunpack.c.l.bf16 %v1154
  %v1219 = vunpack.c.l.bf16 %v1155
  %v1220 = vunpack.c.l.bf16 %v1156
  %v1221 = vunpack.c.l.bf16 %v1157
  %v1222 = vunpack.c.l.bf16 %v1158
  %v1223 = vunpack.c.l.bf16 %v1159
  %v1224 = vunpack.c.l.bf16 %v1160
  %v1225 = vunpack.c.l.bf16 %v1161
  %v1226 = vunpack.c.l.bf16 %v1162
  %v1227 = vunpack.c.l.bf16 %v1163
  %v1228 = vunpack.c.l.bf16 %v1164
  %v1229 = vunpack.c.l.bf16 %v1165
  %v1230 = vunpack.c.l.bf16 %v1166
  %v1231 = vunpack.c.l.bf16 %v1167
  %v1232 = vunpack.c.l.bf16 %v1168
  %v1233 = vunpack.c.l.bf16 %v1169
  %v1234 = vunpack.c.l.bf16 %v1170
  %v1235 = vunpack.c.l.bf16 %v1171
  %v1236 = vunpack.c.l.bf16 %v1172
  %v1237 = vunpack.c.l.bf16 %v1173
  %v1238 = vunpack.c.l.bf16 %v1174
  %v1239 = vunpack.c.l.bf16 %v1175
  %v1240 = vunpack.c.l.bf16 %v1176
  %v1241 = vunpack.c.l.bf16 %v1177
  %v1242 = vunpack.c.l.bf16 %v1178
  %v1243 = vunpack.c.l.bf16 %v1179
  %v1244 = vunpack.c.l.bf16 %v1180
  %v1245 = vunpack.c.l.bf16 %v1181
  %v1246 = vunpack.c.l.bf16 %v1182
  %v1247 = vunpack.c.l.bf16 %v1183
  %v1248 = vunpack.c.l.bf16 %v1184
  %v1249 = vunpack.c.l.bf16 %v1185
  %v1250 = vunpack.c.l.bf16 %v1186
  %v1251 = vunpack.c.l.bf16 %v1187
  %v1252 = vunpack.c.l.bf16 %v1188
  %v1253 = vunpack.c.l.bf16 %v1189
  %v1254 = vunpack.c.l.bf16 %v1190
  %v1255 = vunpack.c.l.bf16 %v1191
  %v1256 = vunpack.c.l.bf16 %v1192
  %v1257 = vunpack.c.l.bf16 %v1193
  %v1258 = vunpack.c.l.bf16 %v1194
  %v1259 = vunpack.c.l.bf16 %v1195
  %v1260 = vunpack.c.l.bf16 %v1196
  %v1261 = vunpack.c.l.bf16 %v1197
  %v1262 = vunpack.c.l.bf16 %v1198
  %v1263 = vunpack.c.l.bf16 %v1199
  %v1264 = vunpack.c.l.bf16 %v1200
  %v1265 = vunpack.c.l.bf16 %v1201
  %v1266 = vunpack.c.l.bf16 %v1202
  %v1267 = vunpack.c.l.bf16 %v1203
  %v1268 = vunpack.c.l.bf16 %v1204
  %1333 = vrot.lane.b32.xlu0 %v1205, 24
  %v1334 = vpop.permute.xlu0 %1333
  %1335 = vrot.lane.b32.xlu0 %v1206, 24
  %v1336 = vpop.permute.xlu0 %1335
  %1337 = vrot.lane.b32.xlu0 %v1207, 24
  %v1338 = vpop.permute.xlu0 %1337
  %1339 = vrot.lane.b32.xlu0 %v1208, 24
  %v1340 = vpop.permute.xlu0 %1339
  %1341 = vrot.lane.b32.xlu0 %v1209, 24
  %v1342 = vpop.permute.xlu0 %1341
  %1343 = vrot.lane.b32.xlu0 %v1210, 24
  %v1344 = vpop.permute.xlu0 %1343
  %1345 = vrot.lane.b32.xlu0 %v1211, 24
  %v1346 = vpop.permute.xlu0 %1345
  %1347 = vrot.lane.b32.xlu0 %v1212, 24
  %v1348 = vpop.permute.xlu0 %1347
  %1349 = vrot.lane.b32.xlu0 %v1213, 24
  %v1350 = vpop.permute.xlu0 %1349
  %1351 = vrot.lane.b32.xlu0 %v1214, 24
  %v1352 = vpop.permute.xlu0 %1351
  %1353 = vrot.lane.b32.xlu0 %v1215, 24
  %v1354 = vpop.permute.xlu0 %1353
  %1355 = vrot.lane.b32.xlu0 %v1216, 24
  %v1356 = vpop.permute.xlu0 %1355
  %1357 = vrot.lane.b32.xlu0 %v1217, 24
  %v1358 = vpop.permute.xlu0 %1357
  %1359 = vrot.lane.b32.xlu0 %v1218, 24
  %v1360 = vpop.permute.xlu0 %1359
  %1361 = vrot.lane.b32.xlu0 %v1219, 24
  %v1362 = vpop.permute.xlu0 %1361
  %1363 = vrot.lane.b32.xlu0 %v1220, 24
  %v1364 = vpop.permute.xlu0 %1363
  %1365 = vrot.lane.b32.xlu0 %v1221, 24
  %v1366 = vpop.permute.xlu0 %1365
  %1367 = vrot.lane.b32.xlu0 %v1222, 24
  %v1368 = vpop.permute.xlu0 %1367
  %1369 = vrot.lane.b32.xlu0 %v1223, 24
  %v1370 = vpop.permute.xlu0 %1369
  %1371 = vrot.lane.b32.xlu0 %v1224, 24
  %v1372 = vpop.permute.xlu0 %1371
  %1373 = vrot.lane.b32.xlu0 %v1225, 24
  %v1374 = vpop.permute.xlu0 %1373
  %1375 = vrot.lane.b32.xlu0 %v1226, 24
  %v1376 = vpop.permute.xlu0 %1375
  %1377 = vrot.lane.b32.xlu0 %v1227, 24
  %v1378 = vpop.permute.xlu0 %1377
  %1379 = vrot.lane.b32.xlu0 %v1228, 24
  %v1380 = vpop.permute.xlu0 %1379
  %1381 = vrot.lane.b32.xlu0 %v1229, 24
  %v1382 = vpop.permute.xlu0 %1381
  %1383 = vrot.lane.b32.xlu0 %v1230, 24
  %v1384 = vpop.permute.xlu0 %1383
  %1385 = vrot.lane.b32.xlu0 %v1231, 24
  %v1386 = vpop.permute.xlu0 %1385
  %1387 = vrot.lane.b32.xlu0 %v1232, 24
  %v1388 = vpop.permute.xlu0 %1387
  %1389 = vrot.lane.b32.xlu0 %v1233, 24
  %v1390 = vpop.permute.xlu0 %1389
  %1391 = vrot.lane.b32.xlu0 %v1234, 24
  %v1392 = vpop.permute.xlu0 %1391
  %1393 = vrot.lane.b32.xlu0 %v1235, 24
  %v1394 = vpop.permute.xlu0 %1393
  %1395 = vrot.lane.b32.xlu0 %v1236, 24
  %v1396 = vpop.permute.xlu0 %1395
  %1397 = vrot.lane.b32.xlu0 %v1237, 24
  %v1398 = vpop.permute.xlu0 %1397
  %1399 = vrot.lane.b32.xlu0 %v1238, 24
  %v1400 = vpop.permute.xlu0 %1399
  %1401 = vrot.lane.b32.xlu0 %v1239, 24
  %v1402 = vpop.permute.xlu0 %1401
  %1403 = vrot.lane.b32.xlu0 %v1240, 24
  %v1404 = vpop.permute.xlu0 %1403
  %1405 = vrot.lane.b32.xlu0 %v1241, 24
  %v1406 = vpop.permute.xlu0 %1405
  %1407 = vrot.lane.b32.xlu0 %v1242, 24
  %v1408 = vpop.permute.xlu0 %1407
  %1409 = vrot.lane.b32.xlu0 %v1243, 24
  %v1410 = vpop.permute.xlu0 %1409
  %1411 = vrot.lane.b32.xlu0 %v1244, 24
  %v1412 = vpop.permute.xlu0 %1411
  %1413 = vrot.lane.b32.xlu0 %v1245, 24
  %v1414 = vpop.permute.xlu0 %1413
  %1415 = vrot.lane.b32.xlu0 %v1246, 24
  %v1416 = vpop.permute.xlu0 %1415
  %1417 = vrot.lane.b32.xlu0 %v1247, 24
  %v1418 = vpop.permute.xlu0 %1417
  %1419 = vrot.lane.b32.xlu0 %v1248, 24
  %v1420 = vpop.permute.xlu0 %1419
  %1421 = vrot.lane.b32.xlu0 %v1249, 24
  %v1422 = vpop.permute.xlu0 %1421
  %1423 = vrot.lane.b32.xlu0 %v1250, 24
  %v1424 = vpop.permute.xlu0 %1423
  %1425 = vrot.lane.b32.xlu0 %v1251, 24
  %v1426 = vpop.permute.xlu0 %1425
  %1427 = vrot.lane.b32.xlu0 %v1252, 24
  %v1428 = vpop.permute.xlu0 %1427
  %1429 = vrot.lane.b32.xlu0 %v1253, 24
  %v1430 = vpop.permute.xlu0 %1429
  %1431 = vrot.lane.b32.xlu0 %v1254, 24
  %v1432 = vpop.permute.xlu0 %1431
  %1433 = vrot.lane.b32.xlu0 %v1255, 24
  %v1434 = vpop.permute.xlu0 %1433
  %1435 = vrot.lane.b32.xlu0 %v1256, 24
  %v1436 = vpop.permute.xlu0 %1435
  %1437 = vrot.lane.b32.xlu0 %v1257, 24
  %v1438 = vpop.permute.xlu0 %1437
  %1439 = vrot.lane.b32.xlu0 %v1258, 24
  %v1440 = vpop.permute.xlu0 %1439
  %1441 = vrot.lane.b32.xlu0 %v1259, 24
  %v1442 = vpop.permute.xlu0 %1441
  %1443 = vrot.lane.b32.xlu0 %v1260, 24
  %v1444 = vpop.permute.xlu0 %1443
  %1445 = vrot.lane.b32.xlu0 %v1261, 24
  %v1446 = vpop.permute.xlu0 %1445
  %1447 = vrot.lane.b32.xlu0 %v1262, 24
  %v1448 = vpop.permute.xlu0 %1447
  %1449 = vrot.lane.b32.xlu0 %v1263, 24
  %v1450 = vpop.permute.xlu0 %1449
  %1451 = vrot.lane.b32.xlu0 %v1264, 24
  %v1452 = vpop.permute.xlu0 %1451
  %1453 = vrot.lane.b32.xlu0 %v1265, 24
  %v1454 = vpop.permute.xlu0 %1453
  %1455 = vrot.lane.b32.xlu0 %v1266, 24
  %v1456 = vpop.permute.xlu0 %1455
  %1457 = vrot.lane.b32.xlu0 %v1267, 24
  %v1458 = vpop.permute.xlu0 %1457
  %1459 = vrot.lane.b32.xlu0 %v1268, 24
  %v1460 = vpop.permute.xlu0 %1459
  %vm1525 = vcmask 261312
  %1526 = vst.msk [vmem:[#allocation2] sm:$0xff] %vm1525, %v1334
  %1527 = vst.msk [vmem:[#allocation2 + $0x8] sm:$0xff] %vm1525, %v1336
  %1528 = vst.msk [vmem:[#allocation2 + $0x10] sm:$0xff] %vm1525, %v1338
  %1529 = vst.msk [vmem:[#allocation2 + $0x18] sm:$0xff] %vm1525, %v1340
  %1530 = vst.msk [vmem:[#allocation2 + $0x20] sm:$0xff] %vm1525, %v1342
  %1531 = vst.msk [vmem:[#allocation2 + $0x28] sm:$0xff] %vm1525, %v1344
  %1532 = vst.msk [vmem:[#allocation2 + $0x30] sm:$0xff] %vm1525, %v1346
  %1533 = vst.msk [vmem:[#allocation2 + $0x38] sm:$0xff] %vm1525, %v1348
  %1534 = vst.msk [vmem:[#allocation2 + $0x40] sm:$0xff] %vm1525, %v1350
  %1535 = vst.msk [vmem:[#allocation2 + $0x48] sm:$0xff] %vm1525, %v1352
  %1536 = vst.msk [vmem:[#allocation2 + $0x50] sm:$0xff] %vm1525, %v1354
  %1537 = vst.msk [vmem:[#allocation2 + $0x58] sm:$0xff] %vm1525, %v1356
  %1538 = vst.msk [vmem:[#allocation2 + $0x60] sm:$0xff] %vm1525, %v1358
  %1539 = vst.msk [vmem:[#allocation2 + $0x68] sm:$0xff] %vm1525, %v1360
  %1540 = vst.msk [vmem:[#allocation2 + $0x70] sm:$0xff] %vm1525, %v1362
  %1541 = vst.msk [vmem:[#allocation2 + $0x78] sm:$0xff] %vm1525, %v1364
  %1542 = vst.msk [vmem:[#allocation2 + $0x80] sm:$0xff] %vm1525, %v1366
  %1543 = vst.msk [vmem:[#allocation2 + $0x88] sm:$0xff] %vm1525, %v1368
  %1544 = vst.msk [vmem:[#allocation2 + $0x90] sm:$0xff] %vm1525, %v1370
  %1545 = vst.msk [vmem:[#allocation2 + $0x98] sm:$0xff] %vm1525, %v1372
  %1546 = vst.msk [vmem:[#allocation2 + $0xa0] sm:$0xff] %vm1525, %v1374
  %1547 = vst.msk [vmem:[#allocation2 + $0xa8] sm:$0xff] %vm1525, %v1376
  %1548 = vst.msk [vmem:[#allocation2 + $0xb0] sm:$0xff] %vm1525, %v1378
  %1549 = vst.msk [vmem:[#allocation2 + $0xb8] sm:$0xff] %vm1525, %v1380
  %1550 = vst.msk [vmem:[#allocation2 + $0xc0] sm:$0xff] %vm1525, %v1382
  %1551 = vst.msk [vmem:[#allocation2 + $0xc8] sm:$0xff] %vm1525, %v1384
  %1552 = vst.msk [vmem:[#allocation2 + $0xd0] sm:$0xff] %vm1525, %v1386
  %1553 = vst.msk [vmem:[#allocation2 + $0xd8] sm:$0xff] %vm1525, %v1388
  %1554 = vst.msk [vmem:[#allocation2 + $0xe0] sm:$0xff] %vm1525, %v1390
  %1555 = vst.msk [vmem:[#allocation2 + $0xe8] sm:$0xff] %vm1525, %v1392
  %1556 = vst.msk [vmem:[#allocation2 + $0xf0] sm:$0xff] %vm1525, %v1394
  %1557 = vst.msk [vmem:[#allocation2 + $0xf8] sm:$0xff] %vm1525, %v1396
  %1558 = vst.msk [vmem:[#allocation2 + $0x100] sm:$0xff] %vm1525, %v1398
  %1559 = vst.msk [vmem:[#allocation2 + $0x108] sm:$0xff] %vm1525, %v1400
  %1560 = vst.msk [vmem:[#allocation2 + $0x110] sm:$0xff] %vm1525, %v1402
  %1561 = vst.msk [vmem:[#allocation2 + $0x118] sm:$0xff] %vm1525, %v1404
  %1562 = vst.msk [vmem:[#allocation2 + $0x120] sm:$0xff] %vm1525, %v1406
  %1563 = vst.msk [vmem:[#allocation2 + $0x128] sm:$0xff] %vm1525, %v1408
  %1564 = vst.msk [vmem:[#allocation2 + $0x130] sm:$0xff] %vm1525, %v1410
  %1565 = vst.msk [vmem:[#allocation2 + $0x138] sm:$0xff] %vm1525, %v1412
  %1566 = vst.msk [vmem:[#allocation2 + $0x140] sm:$0xff] %vm1525, %v1414
  %1567 = vst.msk [vmem:[#allocation2 + $0x148] sm:$0xff] %vm1525, %v1416
  %1568 = vst.msk [vmem:[#allocation2 + $0x150] sm:$0xff] %vm1525, %v1418
  %1569 = vst.msk [vmem:[#allocation2 + $0x158] sm:$0xff] %vm1525, %v1420
  %1570 = vst.msk [vmem:[#allocation2 + $0x160] sm:$0xff] %vm1525, %v1422
  %1571 = vst.msk [vmem:[#allocation2 + $0x168] sm:$0xff] %vm1525, %v1424
  %1572 = vst.msk [vmem:[#allocation2 + $0x170] sm:$0xff] %vm1525, %v1426
  %1573 = vst.msk [vmem:[#allocation2 + $0x178] sm:$0xff] %vm1525, %v1428
  %1574 = vst.msk [vmem:[#allocation2 + $0x180] sm:$0xff] %vm1525, %v1430
  %1575 = vst.msk [vmem:[#allocation2 + $0x188] sm:$0xff] %vm1525, %v1432
  %1576 = vst.msk [vmem:[#allocation2 + $0x190] sm:$0xff] %vm1525, %v1434
  %1577 = vst.msk [vmem:[#allocation2 + $0x198] sm:$0xff] %vm1525, %v1436
  %1578 = vst.msk [vmem:[#allocation2 + $0x1a0] sm:$0xff] %vm1525, %v1438
  %1579 = vst.msk [vmem:[#allocation2 + $0x1a8] sm:$0xff] %vm1525, %v1440
  %1580 = vst.msk [vmem:[#allocation2 + $0x1b0] sm:$0xff] %vm1525, %v1442
  %1581 = vst.msk [vmem:[#allocation2 + $0x1b8] sm:$0xff] %vm1525, %v1444
  %1582 = vst.msk [vmem:[#allocation2 + $0x1c0] sm:$0xff] %vm1525, %v1446
  %1583 = vst.msk [vmem:[#allocation2 + $0x1c8] sm:$0xff] %vm1525, %v1448
  %1584 = vst.msk [vmem:[#allocation2 + $0x1d0] sm:$0xff] %vm1525, %v1450
  %1585 = vst.msk [vmem:[#allocation2 + $0x1d8] sm:$0xff] %vm1525, %v1452
  %1586 = vst.msk [vmem:[#allocation2 + $0x1e0] sm:$0xff] %vm1525, %v1454
  %1587 = vst.msk [vmem:[#allocation2 + $0x1e8] sm:$0xff] %vm1525, %v1456
  %1588 = vst.msk [vmem:[#allocation2 + $0x1f0] sm:$0xff] %vm1525, %v1458
  %1589 = vst.msk [vmem:[#allocation2 + $0x1f8] sm:$0xff] %vm1525, %v1460
  %s1590 = scalar_lea.vmem %s0, 76
  %v1591 = vld [vmem:[%s1590] sm:$0xf]
  %v1592 = vld [vmem:[%s1590 + $0x8] sm:$0xf]
  %v1593 = vld [vmem:[%s1590 + $0x10] sm:$0xf]
  %v1594 = vld [vmem:[%s1590 + $0x18] sm:$0xf]
  %v1595 = vld [vmem:[%s1590 + $0x20] sm:$0xf]
  %v1596 = vld [vmem:[%s1590 + $0x28] sm:$0xf]
  %v1597 = vld [vmem:[%s1590 + $0x30] sm:$0xf]
  %v1598 = vld [vmem:[%s1590 + $0x38] sm:$0xf]
  %v1599 = vld [vmem:[%s1590 + $0x90] sm:$0xf]
  %v1600 = vld [vmem:[%s1590 + $0x98] sm:$0xf]
  %v1601 = vld [vmem:[%s1590 + $0xa0] sm:$0xf]
  %v1602 = vld [vmem:[%s1590 + $0xa8] sm:$0xf]
  %v1603 = vld [vmem:[%s1590 + $0xb0] sm:$0xf]
  %v1604 = vld [vmem:[%s1590 + $0xb8] sm:$0xf]
  %v1605 = vld [vmem:[%s1590 + $0xc0] sm:$0xf]
  %v1606 = vld [vmem:[%s1590 + $0xc8] sm:$0xf]
  %v1607 = vld [vmem:[%s1590 + $0x120] sm:$0xf]
  %v1608 = vld [vmem:[%s1590 + $0x128] sm:$0xf]
  %v1609 = vld [vmem:[%s1590 + $0x130] sm:$0xf]
  %v1610 = vld [vmem:[%s1590 + $0x138] sm:$0xf]
  %v1611 = vld [vmem:[%s1590 + $0x140] sm:$0xf]
  %v1612 = vld [vmem:[%s1590 + $0x148] sm:$0xf]
  %v1613 = vld [vmem:[%s1590 + $0x150] sm:$0xf]
  %v1614 = vld [vmem:[%s1590 + $0x158] sm:$0xf]
  %v1615 = vld [vmem:[%s1590 + $0x1b0] sm:$0xf]
  %v1616 = vld [vmem:[%s1590 + $0x1b8] sm:$0xf]
  %v1617 = vld [vmem:[%s1590 + $0x1c0] sm:$0xf]
  %v1618 = vld [vmem:[%s1590 + $0x1c8] sm:$0xf]
  %v1619 = vld [vmem:[%s1590 + $0x1d0] sm:$0xf]
  %v1620 = vld [vmem:[%s1590 + $0x1d8] sm:$0xf]
  %v1621 = vld [vmem:[%s1590 + $0x1e0] sm:$0xf]
  %v1622 = vld [vmem:[%s1590 + $0x1e8] sm:$0xf]
  %v1623 = vld [vmem:[%s1590 + $0x240] sm:$0xf]
  %v1624 = vld [vmem:[%s1590 + $0x248] sm:$0xf]
  %v1625 = vld [vmem:[%s1590 + $0x250] sm:$0xf]
  %v1626 = vld [vmem:[%s1590 + $0x258] sm:$0xf]
  %v1627 = vld [vmem:[%s1590 + $0x260] sm:$0xf]
  %v1628 = vld [vmem:[%s1590 + $0x268] sm:$0xf]
  %v1629 = vld [vmem:[%s1590 + $0x270] sm:$0xf]
  %v1630 = vld [vmem:[%s1590 + $0x278] sm:$0xf]
  %v1631 = vld [vmem:[%s1590 + $0x2d0] sm:$0xf]
  %v1632 = vld [vmem:[%s1590 + $0x2d8] sm:$0xf]
  %v1633 = vld [vmem:[%s1590 + $0x2e0] sm:$0xf]
  %v1634 = vld [vmem:[%s1590 + $0x2e8] sm:$0xf]
  %v1635 = vld [vmem:[%s1590 + $0x2f0] sm:$0xf]
  %v1636 = vld [vmem:[%s1590 + $0x2f8] sm:$0xf]
  %v1637 = vld [vmem:[%s1590 + $0x300] sm:$0xf]
  %v1638 = vld [vmem:[%s1590 + $0x308] sm:$0xf]
  %v1639 = vld [vmem:[%s1590 + $0x360] sm:$0xf]
  %v1640 = vld [vmem:[%s1590 + $0x368] sm:$0xf]
  %v1641 = vld [vmem:[%s1590 + $0x370] sm:$0xf]
  %v1642 = vld [vmem:[%s1590 + $0x378] sm:$0xf]
  %v1643 = vld [vmem:[%s1590 + $0x380] sm:$0xf]
  %v1644 = vld [vmem:[%s1590 + $0x388] sm:$0xf]
  %v1645 = vld [vmem:[%s1590 + $0x390] sm:$0xf]
  %v1646 = vld [vmem:[%s1590 + $0x398] sm:$0xf]
  %v1647 = vld [vmem:[%s1590 + $0x3f0] sm:$0xf]
  %v1648 = vld [vmem:[%s1590 + $0x3f8] sm:$0xf]
  %v1649 = vld [vmem:[%s1590 + $0x400] sm:$0xf]
  %v1650 = vld [vmem:[%s1590 + $0x408] sm:$0xf]
  %v1651 = vld [vmem:[%s1590 + $0x410] sm:$0xf]
  %v1652 = vld [vmem:[%s1590 + $0x418] sm:$0xf]
  %v1653 = vld [vmem:[%s1590 + $0x420] sm:$0xf]
  %v1654 = vld [vmem:[%s1590 + $0x428] sm:$0xf]
  %v1655 = vunpack.c.l.bf16 %v1591
  %v1656 = vunpack.c.l.bf16 %v1592
  %v1657 = vunpack.c.l.bf16 %v1593
  %v1658 = vunpack.c.l.bf16 %v1594
  %v1659 = vunpack.c.l.bf16 %v1595
  %v1660 = vunpack.c.l.bf16 %v1596
  %v1661 = vunpack.c.l.bf16 %v1597
  %v1662 = vunpack.c.l.bf16 %v1598
  %v1663 = vunpack.c.l.bf16 %v1599
  %v1664 = vunpack.c.l.bf16 %v1600
  %v1665 = vunpack.c.l.bf16 %v1601
  %v1666 = vunpack.c.l.bf16 %v1602
  %v1667 = vunpack.c.l.bf16 %v1603
  %v1668 = vunpack.c.l.bf16 %v1604
  %v1669 = vunpack.c.l.bf16 %v1605
  %v1670 = vunpack.c.l.bf16 %v1606
  %v1671 = vunpack.c.l.bf16 %v1607
  %v1672 = vunpack.c.l.bf16 %v1608
  %v1673 = vunpack.c.l.bf16 %v1609
  %v1674 = vunpack.c.l.bf16 %v1610
  %v1675 = vunpack.c.l.bf16 %v1611
  %v1676 = vunpack.c.l.bf16 %v1612
  %v1677 = vunpack.c.l.bf16 %v1613
  %v1678 = vunpack.c.l.bf16 %v1614
  %v1679 = vunpack.c.l.bf16 %v1615
  %v1680 = vunpack.c.l.bf16 %v1616
  %v1681 = vunpack.c.l.bf16 %v1617
  %v1682 = vunpack.c.l.bf16 %v1618
  %v1683 = vunpack.c.l.bf16 %v1619
  %v1684 = vunpack.c.l.bf16 %v1620
  %v1685 = vunpack.c.l.bf16 %v1621
  %v1686 = vunpack.c.l.bf16 %v1622
  %v1687 = vunpack.c.l.bf16 %v1623
  %v1688 = vunpack.c.l.bf16 %v1624
  %v1689 = vunpack.c.l.bf16 %v1625
  %v1690 = vunpack.c.l.bf16 %v1626
  %v1691 = vunpack.c.l.bf16 %v1627
  %v1692 = vunpack.c.l.bf16 %v1628
  %v1693 = vunpack.c.l.bf16 %v1629
  %v1694 = vunpack.c.l.bf16 %v1630
  %v1695 = vunpack.c.l.bf16 %v1631
  %v1696 = vunpack.c.l.bf16 %v1632
  %v1697 = vunpack.c.l.bf16 %v1633
  %v1698 = vunpack.c.l.bf16 %v1634
  %v1699 = vunpack.c.l.bf16 %v1635
  %v1700 = vunpack.c.l.bf16 %v1636
  %v1701 = vunpack.c.l.bf16 %v1637
  %v1702 = vunpack.c.l.bf16 %v1638
  %v1703 = vunpack.c.l.bf16 %v1639
  %v1704 = vunpack.c.l.bf16 %v1640
  %v1705 = vunpack.c.l.bf16 %v1641
  %v1706 = vunpack.c.l.bf16 %v1642
  %v1707 = vunpack.c.l.bf16 %v1643
  %v1708 = vunpack.c.l.bf16 %v1644
  %v1709 = vunpack.c.l.bf16 %v1645
  %v1710 = vunpack.c.l.bf16 %v1646
  %v1711 = vunpack.c.l.bf16 %v1647
  %v1712 = vunpack.c.l.bf16 %v1648
  %v1713 = vunpack.c.l.bf16 %v1649
  %v1714 = vunpack.c.l.bf16 %v1650
  %v1715 = vunpack.c.l.bf16 %v1651
  %v1716 = vunpack.c.l.bf16 %v1652
  %v1717 = vunpack.c.l.bf16 %v1653
  %v1718 = vunpack.c.l.bf16 %v1654
  %1783 = vrot.lane.b32.xlu0 %v1655, 32
  %v1784 = vpop.permute.xlu0 %1783
  %1785 = vrot.lane.b32.xlu0 %v1656, 32
  %v1786 = vpop.permute.xlu0 %1785
  %1787 = vrot.lane.b32.xlu0 %v1657, 32
  %v1788 = vpop.permute.xlu0 %1787
  %1789 = vrot.lane.b32.xlu0 %v1658, 32
  %v1790 = vpop.permute.xlu0 %1789
  %1791 = vrot.lane.b32.xlu0 %v1659, 32
  %v1792 = vpop.permute.xlu0 %1791
  %1793 = vrot.lane.b32.xlu0 %v1660, 32
  %v1794 = vpop.permute.xlu0 %1793
  %1795 = vrot.lane.b32.xlu0 %v1661, 32
  %v1796 = vpop.permute.xlu0 %1795
  %1797 = vrot.lane.b32.xlu0 %v1662, 32
  %v1798 = vpop.permute.xlu0 %1797
  %1799 = vrot.lane.b32.xlu0 %v1663, 32
  %v1800 = vpop.permute.xlu0 %1799
  %1801 = vrot.lane.b32.xlu0 %v1664, 32
  %v1802 = vpop.permute.xlu0 %1801
  %1803 = vrot.lane.b32.xlu0 %v1665, 32
  %v1804 = vpop.permute.xlu0 %1803
  %1805 = vrot.lane.b32.xlu0 %v1666, 32
  %v1806 = vpop.permute.xlu0 %1805
  %1807 = vrot.lane.b32.xlu0 %v1667, 32
  %v1808 = vpop.permute.xlu0 %1807
  %1809 = vrot.lane.b32.xlu0 %v1668, 32
  %v1810 = vpop.permute.xlu0 %1809
  %1811 = vrot.lane.b32.xlu0 %v1669, 32
  %v1812 = vpop.permute.xlu0 %1811
  %1813 = vrot.lane.b32.xlu0 %v1670, 32
  %v1814 = vpop.permute.xlu0 %1813
  %1815 = vrot.lane.b32.xlu0 %v1671, 32
  %v1816 = vpop.permute.xlu0 %1815
  %1817 = vrot.lane.b32.xlu0 %v1672, 32
  %v1818 = vpop.permute.xlu0 %1817
  %1819 = vrot.lane.b32.xlu0 %v1673, 32
  %v1820 = vpop.permute.xlu0 %1819
  %1821 = vrot.lane.b32.xlu0 %v1674, 32
  %v1822 = vpop.permute.xlu0 %1821
  %1823 = vrot.lane.b32.xlu0 %v1675, 32
  %v1824 = vpop.permute.xlu0 %1823
  %1825 = vrot.lane.b32.xlu0 %v1676, 32
  %v1826 = vpop.permute.xlu0 %1825
  %1827 = vrot.lane.b32.xlu0 %v1677, 32
  %v1828 = vpop.permute.xlu0 %1827
  %1829 = vrot.lane.b32.xlu0 %v1678, 32
  %v1830 = vpop.permute.xlu0 %1829
  %1831 = vrot.lane.b32.xlu0 %v1679, 32
  %v1832 = vpop.permute.xlu0 %1831
  %1833 = vrot.lane.b32.xlu0 %v1680, 32
  %v1834 = vpop.permute.xlu0 %1833
  %1835 = vrot.lane.b32.xlu0 %v1681, 32
  %v1836 = vpop.permute.xlu0 %1835
  %1837 = vrot.lane.b32.xlu0 %v1682, 32
  %v1838 = vpop.permute.xlu0 %1837
  %1839 = vrot.lane.b32.xlu0 %v1683, 32
  %v1840 = vpop.permute.xlu0 %1839
  %1841 = vrot.lane.b32.xlu0 %v1684, 32
  %v1842 = vpop.permute.xlu0 %1841
  %1843 = vrot.lane.b32.xlu0 %v1685, 32
  %v1844 = vpop.permute.xlu0 %1843
  %1845 = vrot.lane.b32.xlu0 %v1686, 32
  %v1846 = vpop.permute.xlu0 %1845
  %1847 = vrot.lane.b32.xlu0 %v1687, 32
  %v1848 = vpop.permute.xlu0 %1847
  %1849 = vrot.lane.b32.xlu0 %v1688, 32
  %v1850 = vpop.permute.xlu0 %1849
  %1851 = vrot.lane.b32.xlu0 %v1689, 32
  %v1852 = vpop.permute.xlu0 %1851
  %1853 = vrot.lane.b32.xlu0 %v1690, 32
  %v1854 = vpop.permute.xlu0 %1853
  %1855 = vrot.lane.b32.xlu0 %v1691, 32
  %v1856 = vpop.permute.xlu0 %1855
  %1857 = vrot.lane.b32.xlu0 %v1692, 32
  %v1858 = vpop.permute.xlu0 %1857
  %1859 = vrot.lane.b32.xlu0 %v1693, 32
  %v1860 = vpop.permute.xlu0 %1859
  %1861 = vrot.lane.b32.xlu0 %v1694, 32
  %v1862 = vpop.permute.xlu0 %1861
  %1863 = vrot.lane.b32.xlu0 %v1695, 32
  %v1864 = vpop.permute.xlu0 %1863
  %1865 = vrot.lane.b32.xlu0 %v1696, 32
  %v1866 = vpop.permute.xlu0 %1865
  %1867 = vrot.lane.b32.xlu0 %v1697, 32
  %v1868 = vpop.permute.xlu0 %1867
  %1869 = vrot.lane.b32.xlu0 %v1698, 32
  %v1870 = vpop.permute.xlu0 %1869
  %1871 = vrot.lane.b32.xlu0 %v1699, 32
  %v1872 = vpop.permute.xlu0 %1871
  %1873 = vrot.lane.b32.xlu0 %v1700, 32
  %v1874 = vpop.permute.xlu0 %1873
  %1875 = vrot.lane.b32.xlu0 %v1701, 32
  %v1876 = vpop.permute.xlu0 %1875
  %1877 = vrot.lane.b32.xlu0 %v1702, 32
  %v1878 = vpop.permute.xlu0 %1877
  %1879 = vrot.lane.b32.xlu0 %v1703, 32
  %v1880 = vpop.permute.xlu0 %1879
  %1881 = vrot.lane.b32.xlu0 %v1704, 32
  %v1882 = vpop.permute.xlu0 %1881
  %1883 = vrot.lane.b32.xlu0 %v1705, 32
  %v1884 = vpop.permute.xlu0 %1883
  %1885 = vrot.lane.b32.xlu0 %v1706, 32
  %v1886 = vpop.permute.xlu0 %1885
  %1887 = vrot.lane.b32.xlu0 %v1707, 32
  %v1888 = vpop.permute.xlu0 %1887
  %1889 = vrot.lane.b32.xlu0 %v1708, 32
  %v1890 = vpop.permute.xlu0 %1889
  %1891 = vrot.lane.b32.xlu0 %v1709, 32
  %v1892 = vpop.permute.xlu0 %1891
  %1893 = vrot.lane.b32.xlu0 %v1710, 32
  %v1894 = vpop.permute.xlu0 %1893
  %1895 = vrot.lane.b32.xlu0 %v1711, 32
  %v1896 = vpop.permute.xlu0 %1895
  %1897 = vrot.lane.b32.xlu0 %v1712, 32
  %v1898 = vpop.permute.xlu0 %1897
  %1899 = vrot.lane.b32.xlu0 %v1713, 32
  %v1900 = vpop.permute.xlu0 %1899
  %1901 = vrot.lane.b32.xlu0 %v1714, 32
  %v1902 = vpop.permute.xlu0 %1901
  %1903 = vrot.lane.b32.xlu0 %v1715, 32
  %v1904 = vpop.permute.xlu0 %1903
  %1905 = vrot.lane.b32.xlu0 %v1716, 32
  %v1906 = vpop.permute.xlu0 %1905
  %1907 = vrot.lane.b32.xlu0 %v1717, 32
  %v1908 = vpop.permute.xlu0 %1907
  %1909 = vrot.lane.b32.xlu0 %v1718, 32
  %v1910 = vpop.permute.xlu0 %1909
  %vm1975 = vcmask 326912
  %1976 = vst.msk [vmem:[#allocation2] sm:$0xff] %vm1975, %v1784
  %1977 = vst.msk [vmem:[#allocation2 + $0x8] sm:$0xff] %vm1975, %v1786
  %1978 = vst.msk [vmem:[#allocation2 + $0x10] sm:$0xff] %vm1975, %v1788
  %1979 = vst.msk [vmem:[#allocation2 + $0x18] sm:$0xff] %vm1975, %v1790
  %1980 = vst.msk [vmem:[#allocation2 + $0x20] sm:$0xff] %vm1975, %v1792
  %1981 = vst.msk [vmem:[#allocation2 + $0x28] sm:$0xff] %vm1975, %v1794
  %1982 = vst.msk [vmem:[#allocation2 + $0x30] sm:$0xff] %vm1975, %v1796
  %1983 = vst.msk [vmem:[#allocation2 + $0x38] sm:$0xff] %vm1975, %v1798
  %1984 = vst.msk [vmem:[#allocation2 + $0x40] sm:$0xff] %vm1975, %v1800
  %1985 = vst.msk [vmem:[#allocation2 + $0x48] sm:$0xff] %vm1975, %v1802
  %1986 = vst.msk [vmem:[#allocation2 + $0x50] sm:$0xff] %vm1975, %v1804
  %1987 = vst.msk [vmem:[#allocation2 + $0x58] sm:$0xff] %vm1975, %v1806
  %1988 = vst.msk [vmem:[#allocation2 + $0x60] sm:$0xff] %vm1975, %v1808
  %1989 = vst.msk [vmem:[#allocation2 + $0x68] sm:$0xff] %vm1975, %v1810
  %1990 = vst.msk [vmem:[#allocation2 + $0x70] sm:$0xff] %vm1975, %v1812
  %1991 = vst.msk [vmem:[#allocation2 + $0x78] sm:$0xff] %vm1975, %v1814
  %1992 = vst.msk [vmem:[#allocation2 + $0x80] sm:$0xff] %vm1975, %v1816
  %1993 = vst.msk [vmem:[#allocation2 + $0x88] sm:$0xff] %vm1975, %v1818
  %1994 = vst.msk [vmem:[#allocation2 + $0x90] sm:$0xff] %vm1975, %v1820
  %1995 = vst.msk [vmem:[#allocation2 + $0x98] sm:$0xff] %vm1975, %v1822
  %1996 = vst.msk [vmem:[#allocation2 + $0xa0] sm:$0xff] %vm1975, %v1824
  %1997 = vst.msk [vmem:[#allocation2 + $0xa8] sm:$0xff] %vm1975, %v1826
  %1998 = vst.msk [vmem:[#allocation2 + $0xb0] sm:$0xff] %vm1975, %v1828
  %1999 = vst.msk [vmem:[#allocation2 + $0xb8] sm:$0xff] %vm1975, %v1830
  %2000 = vst.msk [vmem:[#allocation2 + $0xc0] sm:$0xff] %vm1975, %v1832
  %2001 = vst.msk [vmem:[#allocation2 + $0xc8] sm:$0xff] %vm1975, %v1834
  %2002 = vst.msk [vmem:[#allocation2 + $0xd0] sm:$0xff] %vm1975, %v1836
  %2003 = vst.msk [vmem:[#allocation2 + $0xd8] sm:$0xff] %vm1975, %v1838
  %2004 = vst.msk [vmem:[#allocation2 + $0xe0] sm:$0xff] %vm1975, %v1840
  %2005 = vst.msk [vmem:[#allocation2 + $0xe8] sm:$0xff] %vm1975, %v1842
  %2006 = vst.msk [vmem:[#allocation2 + $0xf0] sm:$0xff] %vm1975, %v1844
  %2007 = vst.msk [vmem:[#allocation2 + $0xf8] sm:$0xff] %vm1975, %v1846
  %2008 = vst.msk [vmem:[#allocation2 + $0x100] sm:$0xff] %vm1975, %v1848
  %2009 = vst.msk [vmem:[#allocation2 + $0x108] sm:$0xff] %vm1975, %v1850
  %2010 = vst.msk [vmem:[#allocation2 + $0x110] sm:$0xff] %vm1975, %v1852
  %2011 = vst.msk [vmem:[#allocation2 + $0x118] sm:$0xff] %vm1975, %v1854
  %2012 = vst.msk [vmem:[#allocation2 + $0x120] sm:$0xff] %vm1975, %v1856
  %2013 = vst.msk [vmem:[#allocation2 + $0x128] sm:$0xff] %vm1975, %v1858
  %2014 = vst.msk [vmem:[#allocation2 + $0x130] sm:$0xff] %vm1975, %v1860
  %2015 = vst.msk [vmem:[#allocation2 + $0x138] sm:$0xff] %vm1975, %v1862
  %2016 = vst.msk [vmem:[#allocation2 + $0x140] sm:$0xff] %vm1975, %v1864
  %2017 = vst.msk [vmem:[#allocation2 + $0x148] sm:$0xff] %vm1975, %v1866
  %2018 = vst.msk [vmem:[#allocation2 + $0x150] sm:$0xff] %vm1975, %v1868
  %2019 = vst.msk [vmem:[#allocation2 + $0x158] sm:$0xff] %vm1975, %v1870
  %2020 = vst.msk [vmem:[#allocation2 + $0x160] sm:$0xff] %vm1975, %v1872
  %2021 = vst.msk [vmem:[#allocation2 + $0x168] sm:$0xff] %vm1975, %v1874
  %2022 = vst.msk [vmem:[#allocation2 + $0x170] sm:$0xff] %vm1975, %v1876
  %2023 = vst.msk [vmem:[#allocation2 + $0x178] sm:$0xff] %vm1975, %v1878
  %2024 = vst.msk [vmem:[#allocation2 + $0x180] sm:$0xff] %vm1975, %v1880
  %2025 = vst.msk [vmem:[#allocation2 + $0x188] sm:$0xff] %vm1975, %v1882
  %2026 = vst.msk [vmem:[#allocation2 + $0x190] sm:$0xff] %vm1975, %v1884
  %2027 = vst.msk [vmem:[#allocation2 + $0x198] sm:$0xff] %vm1975, %v1886
  %2028 = vst.msk [vmem:[#allocation2 + $0x1a0] sm:$0xff] %vm1975, %v1888
  %2029 = vst.msk [vmem:[#allocation2 + $0x1a8] sm:$0xff] %vm1975, %v1890
  %2030 = vst.msk [vmem:[#allocation2 + $0x1b0] sm:$0xff] %vm1975, %v1892
  %2031 = vst.msk [vmem:[#allocation2 + $0x1b8] sm:$0xff] %vm1975, %v1894
  %2032 = vst.msk [vmem:[#allocation2 + $0x1c0] sm:$0xff] %vm1975, %v1896
  %2033 = vst.msk [vmem:[#allocation2 + $0x1c8] sm:$0xff] %vm1975, %v1898
  %2034 = vst.msk [vmem:[#allocation2 + $0x1d0] sm:$0xff] %vm1975, %v1900
  %2035 = vst.msk [vmem:[#allocation2 + $0x1d8] sm:$0xff] %vm1975, %v1902
  %2036 = vst.msk [vmem:[#allocation2 + $0x1e0] sm:$0xff] %vm1975, %v1904
  %2037 = vst.msk [vmem:[#allocation2 + $0x1e8] sm:$0xff] %vm1975, %v1906
  %2038 = vst.msk [vmem:[#allocation2 + $0x1f0] sm:$0xff] %vm1975, %v1908
  %2039 = vst.msk [vmem:[#allocation2 + $0x1f8] sm:$0xff] %vm1975, %v1910
  %s2040 = scalar_lea.vmem %s0, 80
  %v2041 = vld [vmem:[%s2040] sm:$0xf]
  %v2042 = vld [vmem:[%s2040 + $0x8] sm:$0xf]
  %v2043 = vld [vmem:[%s2040 + $0x10] sm:$0xf]
  %v2044 = vld [vmem:[%s2040 + $0x18] sm:$0xf]
  %v2045 = vld [vmem:[%s2040 + $0x20] sm:$0xf]
  %v2046 = vld [vmem:[%s2040 + $0x28] sm:$0xf]
  %v2047 = vld [vmem:[%s2040 + $0x30] sm:$0xf]
  %v2048 = vld [vmem:[%s2040 + $0x38] sm:$0xf]
  %v2049 = vld [vmem:[%s2040 + $0x90] sm:$0xf]
  %v2050 = vld [vmem:[%s2040 + $0x98] sm:$0xf]
  %v2051 = vld [vmem:[%s2040 + $0xa0] sm:$0xf]
  %v2052 = vld [vmem:[%s2040 + $0xa8] sm:$0xf]
  %v2053 = vld [vmem:[%s2040 + $0xb0] sm:$0xf]
  %v2054 = vld [vmem:[%s2040 + $0xb8] sm:$0xf]
  %v2055 = vld [vmem:[%s2040 + $0xc0] sm:$0xf]
  %v2056 = vld [vmem:[%s2040 + $0xc8] sm:$0xf]
  %v2057 = vld [vmem:[%s2040 + $0x120] sm:$0xf]
  %v2058 = vld [vmem:[%s2040 + $0x128] sm:$0xf]
  %v2059 = vld [vmem:[%s2040 + $0x130] sm:$0xf]
  %v2060 = vld [vmem:[%s2040 + $0x138] sm:$0xf]
  %v2061 = vld [vmem:[%s2040 + $0x140] sm:$0xf]
  %v2062 = vld [vmem:[%s2040 + $0x148] sm:$0xf]
  %v2063 = vld [vmem:[%s2040 + $0x150] sm:$0xf]
  %v2064 = vld [vmem:[%s2040 + $0x158] sm:$0xf]
  %v2065 = vld [vmem:[%s2040 + $0x1b0] sm:$0xf]
  %v2066 = vld [vmem:[%s2040 + $0x1b8] sm:$0xf]
  %v2067 = vld [vmem:[%s2040 + $0x1c0] sm:$0xf]
  %v2068 = vld [vmem:[%s2040 + $0x1c8] sm:$0xf]
  %v2069 = vld [vmem:[%s2040 + $0x1d0] sm:$0xf]
  %v2070 = vld [vmem:[%s2040 + $0x1d8] sm:$0xf]
  %v2071 = vld [vmem:[%s2040 + $0x1e0] sm:$0xf]
  %v2072 = vld [vmem:[%s2040 + $0x1e8] sm:$0xf]
  %v2073 = vld [vmem:[%s2040 + $0x240] sm:$0xf]
  %v2074 = vld [vmem:[%s2040 + $0x248] sm:$0xf]
  %v2075 = vld [vmem:[%s2040 + $0x250] sm:$0xf]
  %v2076 = vld [vmem:[%s2040 + $0x258] sm:$0xf]
  %v2077 = vld [vmem:[%s2040 + $0x260] sm:$0xf]
  %v2078 = vld [vmem:[%s2040 + $0x268] sm:$0xf]
  %v2079 = vld [vmem:[%s2040 + $0x270] sm:$0xf]
  %v2080 = vld [vmem:[%s2040 + $0x278] sm:$0xf]
  %v2081 = vld [vmem:[%s2040 + $0x2d0] sm:$0xf]
  %v2082 = vld [vmem:[%s2040 + $0x2d8] sm:$0xf]
  %v2083 = vld [vmem:[%s2040 + $0x2e0] sm:$0xf]
  %v2084 = vld [vmem:[%s2040 + $0x2e8] sm:$0xf]
  %v2085 = vld [vmem:[%s2040 + $0x2f0] sm:$0xf]
  %v2086 = vld [vmem:[%s2040 + $0x2f8] sm:$0xf]
  %v2087 = vld [vmem:[%s2040 + $0x300] sm:$0xf]
  %v2088 = vld [vmem:[%s2040 + $0x308] sm:$0xf]
  %v2089 = vld [vmem:[%s2040 + $0x360] sm:$0xf]
  %v2090 = vld [vmem:[%s2040 + $0x368] sm:$0xf]
  %v2091 = vld [vmem:[%s2040 + $0x370] sm:$0xf]
  %v2092 = vld [vmem:[%s2040 + $0x378] sm:$0xf]
  %v2093 = vld [vmem:[%s2040 + $0x380] sm:$0xf]
  %v2094 = vld [vmem:[%s2040 + $0x388] sm:$0xf]
  %v2095 = vld [vmem:[%s2040 + $0x390] sm:$0xf]
  %v2096 = vld [vmem:[%s2040 + $0x398] sm:$0xf]
  %v2097 = vld [vmem:[%s2040 + $0x3f0] sm:$0xf]
  %v2098 = vld [vmem:[%s2040 + $0x3f8] sm:$0xf]
  %v2099 = vld [vmem:[%s2040 + $0x400] sm:$0xf]
  %v2100 = vld [vmem:[%s2040 + $0x408] sm:$0xf]
  %v2101 = vld [vmem:[%s2040 + $0x410] sm:$0xf]
  %v2102 = vld [vmem:[%s2040 + $0x418] sm:$0xf]
  %v2103 = vld [vmem:[%s2040 + $0x420] sm:$0xf]
  %v2104 = vld [vmem:[%s2040 + $0x428] sm:$0xf]
  %v2105 = vunpack.c.l.bf16 %v2041
  %v2106 = vunpack.c.l.bf16 %v2042
  %v2107 = vunpack.c.l.bf16 %v2043
  %v2108 = vunpack.c.l.bf16 %v2044
  %v2109 = vunpack.c.l.bf16 %v2045
  %v2110 = vunpack.c.l.bf16 %v2046
  %v2111 = vunpack.c.l.bf16 %v2047
  %v2112 = vunpack.c.l.bf16 %v2048
  %v2113 = vunpack.c.l.bf16 %v2049
  %v2114 = vunpack.c.l.bf16 %v2050
  %v2115 = vunpack.c.l.bf16 %v2051
  %v2116 = vunpack.c.l.bf16 %v2052
  %v2117 = vunpack.c.l.bf16 %v2053
  %v2118 = vunpack.c.l.bf16 %v2054
  %v2119 = vunpack.c.l.bf16 %v2055
  %v2120 = vunpack.c.l.bf16 %v2056
  %v2121 = vunpack.c.l.bf16 %v2057
  %v2122 = vunpack.c.l.bf16 %v2058
  %v2123 = vunpack.c.l.bf16 %v2059
  %v2124 = vunpack.c.l.bf16 %v2060
  %v2125 = vunpack.c.l.bf16 %v2061
  %v2126 = vunpack.c.l.bf16 %v2062
  %v2127 = vunpack.c.l.bf16 %v2063
  %v2128 = vunpack.c.l.bf16 %v2064
  %v2129 = vunpack.c.l.bf16 %v2065
  %v2130 = vunpack.c.l.bf16 %v2066
  %v2131 = vunpack.c.l.bf16 %v2067
  %v2132 = vunpack.c.l.bf16 %v2068
  %v2133 = vunpack.c.l.bf16 %v2069
  %v2134 = vunpack.c.l.bf16 %v2070
  %v2135 = vunpack.c.l.bf16 %v2071
  %v2136 = vunpack.c.l.bf16 %v2072
  %v2137 = vunpack.c.l.bf16 %v2073
  %v2138 = vunpack.c.l.bf16 %v2074
  %v2139 = vunpack.c.l.bf16 %v2075
  %v2140 = vunpack.c.l.bf16 %v2076
  %v2141 = vunpack.c.l.bf16 %v2077
  %v2142 = vunpack.c.l.bf16 %v2078
  %v2143 = vunpack.c.l.bf16 %v2079
  %v2144 = vunpack.c.l.bf16 %v2080
  %v2145 = vunpack.c.l.bf16 %v2081
  %v2146 = vunpack.c.l.bf16 %v2082
  %v2147 = vunpack.c.l.bf16 %v2083
  %v2148 = vunpack.c.l.bf16 %v2084
  %v2149 = vunpack.c.l.bf16 %v2085
  %v2150 = vunpack.c.l.bf16 %v2086
  %v2151 = vunpack.c.l.bf16 %v2087
  %v2152 = vunpack.c.l.bf16 %v2088
  %v2153 = vunpack.c.l.bf16 %v2089
  %v2154 = vunpack.c.l.bf16 %v2090
  %v2155 = vunpack.c.l.bf16 %v2091
  %v2156 = vunpack.c.l.bf16 %v2092
  %v2157 = vunpack.c.l.bf16 %v2093
  %v2158 = vunpack.c.l.bf16 %v2094
  %v2159 = vunpack.c.l.bf16 %v2095
  %v2160 = vunpack.c.l.bf16 %v2096
  %v2161 = vunpack.c.l.bf16 %v2097
  %v2162 = vunpack.c.l.bf16 %v2098
  %v2163 = vunpack.c.l.bf16 %v2099
  %v2164 = vunpack.c.l.bf16 %v2100
  %v2165 = vunpack.c.l.bf16 %v2101
  %v2166 = vunpack.c.l.bf16 %v2102
  %v2167 = vunpack.c.l.bf16 %v2103
  %v2168 = vunpack.c.l.bf16 %v2104
  %2233 = vrot.lane.b32.xlu0 %v2105, 40
  %v2234 = vpop.permute.xlu0 %2233
  %2235 = vrot.lane.b32.xlu0 %v2106, 40
  %v2236 = vpop.permute.xlu0 %2235
  %2237 = vrot.lane.b32.xlu0 %v2107, 40
  %v2238 = vpop.permute.xlu0 %2237
  %2239 = vrot.lane.b32.xlu0 %v2108, 40
  %v2240 = vpop.permute.xlu0 %2239
  %2241 = vrot.lane.b32.xlu0 %v2109, 40
  %v2242 = vpop.permute.xlu0 %2241
  %2243 = vrot.lane.b32.xlu0 %v2110, 40
  %v2244 = vpop.permute.xlu0 %2243
  %2245 = vrot.lane.b32.xlu0 %v2111, 40
  %v2246 = vpop.permute.xlu0 %2245
  %2247 = vrot.lane.b32.xlu0 %v2112, 40
  %v2248 = vpop.permute.xlu0 %2247
  %2249 = vrot.lane.b32.xlu0 %v2113, 40
  %v2250 = vpop.permute.xlu0 %2249
  %2251 = vrot.lane.b32.xlu0 %v2114, 40
  %v2252 = vpop.permute.xlu0 %2251
  %2253 = vrot.lane.b32.xlu0 %v2115, 40
  %v2254 = vpop.permute.xlu0 %2253
  %2255 = vrot.lane.b32.xlu0 %v2116, 40
  %v2256 = vpop.permute.xlu0 %2255
  %2257 = vrot.lane.b32.xlu0 %v2117, 40
  %v2258 = vpop.permute.xlu0 %2257
  %2259 = vrot.lane.b32.xlu0 %v2118, 40
  %v2260 = vpop.permute.xlu0 %2259
  %2261 = vrot.lane.b32.xlu0 %v2119, 40
  %v2262 = vpop.permute.xlu0 %2261
  %2263 = vrot.lane.b32.xlu0 %v2120, 40
  %v2264 = vpop.permute.xlu0 %2263
  %2265 = vrot.lane.b32.xlu0 %v2121, 40
  %v2266 = vpop.permute.xlu0 %2265
  %2267 = vrot.lane.b32.xlu0 %v2122, 40
  %v2268 = vpop.permute.xlu0 %2267
  %2269 = vrot.lane.b32.xlu0 %v2123, 40
  %v2270 = vpop.permute.xlu0 %2269
  %2271 = vrot.lane.b32.xlu0 %v2124, 40
  %v2272 = vpop.permute.xlu0 %2271
  %2273 = vrot.lane.b32.xlu0 %v2125, 40
  %v2274 = vpop.permute.xlu0 %2273
  %2275 = vrot.lane.b32.xlu0 %v2126, 40
  %v2276 = vpop.permute.xlu0 %2275
  %2277 = vrot.lane.b32.xlu0 %v2127, 40
  %v2278 = vpop.permute.xlu0 %2277
  %2279 = vrot.lane.b32.xlu0 %v2128, 40
  %v2280 = vpop.permute.xlu0 %2279
  %2281 = vrot.lane.b32.xlu0 %v2129, 40
  %v2282 = vpop.permute.xlu0 %2281
  %2283 = vrot.lane.b32.xlu0 %v2130, 40
  %v2284 = vpop.permute.xlu0 %2283
  %2285 = vrot.lane.b32.xlu0 %v2131, 40
  %v2286 = vpop.permute.xlu0 %2285
  %2287 = vrot.lane.b32.xlu0 %v2132, 40
  %v2288 = vpop.permute.xlu0 %2287
  %2289 = vrot.lane.b32.xlu0 %v2133, 40
  %v2290 = vpop.permute.xlu0 %2289
  %2291 = vrot.lane.b32.xlu0 %v2134, 40
  %v2292 = vpop.permute.xlu0 %2291
  %2293 = vrot.lane.b32.xlu0 %v2135, 40
  %v2294 = vpop.permute.xlu0 %2293
  %2295 = vrot.lane.b32.xlu0 %v2136, 40
  %v2296 = vpop.permute.xlu0 %2295
  %2297 = vrot.lane.b32.xlu0 %v2137, 40
  %v2298 = vpop.permute.xlu0 %2297
  %2299 = vrot.lane.b32.xlu0 %v2138, 40
  %v2300 = vpop.permute.xlu0 %2299
  %2301 = vrot.lane.b32.xlu0 %v2139, 40
  %v2302 = vpop.permute.xlu0 %2301
  %2303 = vrot.lane.b32.xlu0 %v2140, 40
  %v2304 = vpop.permute.xlu0 %2303
  %2305 = vrot.lane.b32.xlu0 %v2141, 40
  %v2306 = vpop.permute.xlu0 %2305
  %2307 = vrot.lane.b32.xlu0 %v2142, 40
  %v2308 = vpop.permute.xlu0 %2307
  %2309 = vrot.lane.b32.xlu0 %v2143, 40
  %v2310 = vpop.permute.xlu0 %2309
  %2311 = vrot.lane.b32.xlu0 %v2144, 40
  %v2312 = vpop.permute.xlu0 %2311
  %2313 = vrot.lane.b32.xlu0 %v2145, 40
  %v2314 = vpop.permute.xlu0 %2313
  %2315 = vrot.lane.b32.xlu0 %v2146, 40
  %v2316 = vpop.permute.xlu0 %2315
  %2317 = vrot.lane.b32.xlu0 %v2147, 40
  %v2318 = vpop.permute.xlu0 %2317
  %2319 = vrot.lane.b32.xlu0 %v2148, 40
  %v2320 = vpop.permute.xlu0 %2319
  %2321 = vrot.lane.b32.xlu0 %v2149, 40
  %v2322 = vpop.permute.xlu0 %2321
  %2323 = vrot.lane.b32.xlu0 %v2150, 40
  %v2324 = vpop.permute.xlu0 %2323
  %2325 = vrot.lane.b32.xlu0 %v2151, 40
  %v2326 = vpop.permute.xlu0 %2325
  %2327 = vrot.lane.b32.xlu0 %v2152, 40
  %v2328 = vpop.permute.xlu0 %2327
  %2329 = vrot.lane.b32.xlu0 %v2153, 40
  %v2330 = vpop.permute.xlu0 %2329
  %2331 = vrot.lane.b32.xlu0 %v2154, 40
  %v2332 = vpop.permute.xlu0 %2331
  %2333 = vrot.lane.b32.xlu0 %v2155, 40
  %v2334 = vpop.permute.xlu0 %2333
  %2335 = vrot.lane.b32.xlu0 %v2156, 40
  %v2336 = vpop.permute.xlu0 %2335
  %2337 = vrot.lane.b32.xlu0 %v2157, 40
  %v2338 = vpop.permute.xlu0 %2337
  %2339 = vrot.lane.b32.xlu0 %v2158, 40
  %v2340 = vpop.permute.xlu0 %2339
  %2341 = vrot.lane.b32.xlu0 %v2159, 40
  %v2342 = vpop.permute.xlu0 %2341
  %2343 = vrot.lane.b32.xlu0 %v2160, 40
  %v2344 = vpop.permute.xlu0 %2343
  %2345 = vrot.lane.b32.xlu0 %v2161, 40
  %v2346 = vpop.permute.xlu0 %2345
  %2347 = vrot.lane.b32.xlu0 %v2162, 40
  %v2348 = vpop.permute.xlu0 %2347
  %2349 = vrot.lane.b32.xlu0 %v2163, 40
  %v2350 = vpop.permute.xlu0 %2349
  %2351 = vrot.lane.b32.xlu0 %v2164, 40
  %v2352 = vpop.permute.xlu0 %2351
  %2353 = vrot.lane.b32.xlu0 %v2165, 40
  %v2354 = vpop.permute.xlu0 %2353
  %2355 = vrot.lane.b32.xlu0 %v2166, 40
  %v2356 = vpop.permute.xlu0 %2355
  %2357 = vrot.lane.b32.xlu0 %v2167, 40
  %v2358 = vpop.permute.xlu0 %2357
  %2359 = vrot.lane.b32.xlu0 %v2168, 40
  %v2360 = vpop.permute.xlu0 %2359
  %vm2425 = vcmask 392512
  %2426 = vst.msk [vmem:[#allocation2] sm:$0xff] %vm2425, %v2234
  %2427 = vst.msk [vmem:[#allocation2 + $0x8] sm:$0xff] %vm2425, %v2236
  %2428 = vst.msk [vmem:[#allocation2 + $0x10] sm:$0xff] %vm2425, %v2238
  %2429 = vst.msk [vmem:[#allocation2 + $0x18] sm:$0xff] %vm2425, %v2240
  %2430 = vst.msk [vmem:[#allocation2 + $0x20] sm:$0xff] %vm2425, %v2242
  %2431 = vst.msk [vmem:[#allocation2 + $0x28] sm:$0xff] %vm2425, %v2244
  %2432 = vst.msk [vmem:[#allocation2 + $0x30] sm:$0xff] %vm2425, %v2246
  %2433 = vst.msk [vmem:[#allocation2 + $0x38] sm:$0xff] %vm2425, %v2248
  %2434 = vst.msk [vmem:[#allocation2 + $0x40] sm:$0xff] %vm2425, %v2250
  %2435 = vst.msk [vmem:[#allocation2 + $0x48] sm:$0xff] %vm2425, %v2252
  %2436 = vst.msk [vmem:[#allocation2 + $0x50] sm:$0xff] %vm2425, %v2254
  %2437 = vst.msk [vmem:[#allocation2 + $0x58] sm:$0xff] %vm2425, %v2256
  %2438 = vst.msk [vmem:[#allocation2 + $0x60] sm:$0xff] %vm2425, %v2258
  %2439 = vst.msk [vmem:[#allocation2 + $0x68] sm:$0xff] %vm2425, %v2260
  %2440 = vst.msk [vmem:[#allocation2 + $0x70] sm:$0xff] %vm2425, %v2262
  %2441 = vst.msk [vmem:[#allocation2 + $0x78] sm:$0xff] %vm2425, %v2264
  %2442 = vst.msk [vmem:[#allocation2 + $0x80] sm:$0xff] %vm2425, %v2266
  %2443 = vst.msk [vmem:[#allocation2 + $0x88] sm:$0xff] %vm2425, %v2268
  %2444 = vst.msk [vmem:[#allocation2 + $0x90] sm:$0xff] %vm2425, %v2270
  %2445 = vst.msk [vmem:[#allocation2 + $0x98] sm:$0xff] %vm2425, %v2272
  %2446 = vst.msk [vmem:[#allocation2 + $0xa0] sm:$0xff] %vm2425, %v2274
  %2447 = vst.msk [vmem:[#allocation2 + $0xa8] sm:$0xff] %vm2425, %v2276
  %2448 = vst.msk [vmem:[#allocation2 + $0xb0] sm:$0xff] %vm2425, %v2278
  %2449 = vst.msk [vmem:[#allocation2 + $0xb8] sm:$0xff] %vm2425, %v2280
  %2450 = vst.msk [vmem:[#allocation2 + $0xc0] sm:$0xff] %vm2425, %v2282
  %2451 = vst.msk [vmem:[#allocation2 + $0xc8] sm:$0xff] %vm2425, %v2284
  %2452 = vst.msk [vmem:[#allocation2 + $0xd0] sm:$0xff] %vm2425, %v2286
  %2453 = vst.msk [vmem:[#allocation2 + $0xd8] sm:$0xff] %vm2425, %v2288
  %2454 = vst.msk [vmem:[#allocation2 + $0xe0] sm:$0xff] %vm2425, %v2290
  %2455 = vst.msk [vmem:[#allocation2 + $0xe8] sm:$0xff] %vm2425, %v2292
  %2456 = vst.msk [vmem:[#allocation2 + $0xf0] sm:$0xff] %vm2425, %v2294
  %2457 = vst.msk [vmem:[#allocation2 + $0xf8] sm:$0xff] %vm2425, %v2296
  %2458 = vst.msk [vmem:[#allocation2 + $0x100] sm:$0xff] %vm2425, %v2298
  %2459 = vst.msk [vmem:[#allocation2 + $0x108] sm:$0xff] %vm2425, %v2300
  %2460 = vst.msk [vmem:[#allocation2 + $0x110] sm:$0xff] %vm2425, %v2302
  %2461 = vst.msk [vmem:[#allocation2 + $0x118] sm:$0xff] %vm2425, %v2304
  %2462 = vst.msk [vmem:[#allocation2 + $0x120] sm:$0xff] %vm2425, %v2306
  %2463 = vst.msk [vmem:[#allocation2 + $0x128] sm:$0xff] %vm2425, %v2308
  %2464 = vst.msk [vmem:[#allocation2 + $0x130] sm:$0xff] %vm2425, %v2310
  %2465 = vst.msk [vmem:[#allocation2 + $0x138] sm:$0xff] %vm2425, %v2312
  %2466 = vst.msk [vmem:[#allocation2 + $0x140] sm:$0xff] %vm2425, %v2314
  %2467 = vst.msk [vmem:[#allocation2 + $0x148] sm:$0xff] %vm2425, %v2316
  %2468 = vst.msk [vmem:[#allocation2 + $0x150] sm:$0xff] %vm2425, %v2318
  %2469 = vst.msk [vmem:[#allocation2 + $0x158] sm:$0xff] %vm2425, %v2320
  %2470 = vst.msk [vmem:[#allocation2 + $0x160] sm:$0xff] %vm2425, %v2322
  %2471 = vst.msk [vmem:[#allocation2 + $0x168] sm:$0xff] %vm2425, %v2324
  %2472 = vst.msk [vmem:[#allocation2 + $0x170] sm:$0xff] %vm2425, %v2326
  %2473 = vst.msk [vmem:[#allocation2 + $0x178] sm:$0xff] %vm2425, %v2328
  %2474 = vst.msk [vmem:[#allocation2 + $0x180] sm:$0xff] %vm2425, %v2330
  %2475 = vst.msk [vmem:[#allocation2 + $0x188] sm:$0xff] %vm2425, %v2332
  %2476 = vst.msk [vmem:[#allocation2 + $0x190] sm:$0xff] %vm2425, %v2334
  %2477 = vst.msk [vmem:[#allocation2 + $0x198] sm:$0xff] %vm2425, %v2336
  %2478 = vst.msk [vmem:[#allocation2 + $0x1a0] sm:$0xff] %vm2425, %v2338
  %2479 = vst.msk [vmem:[#allocation2 + $0x1a8] sm:$0xff] %vm2425, %v2340
  %2480 = vst.msk [vmem:[#allocation2 + $0x1b0] sm:$0xff] %vm2425, %v2342
  %2481 = vst.msk [vmem:[#allocation2 + $0x1b8] sm:$0xff] %vm2425, %v2344
  %2482 = vst.msk [vmem:[#allocation2 + $0x1c0] sm:$0xff] %vm2425, %v2346
  %2483 = vst.msk [vmem:[#allocation2 + $0x1c8] sm:$0xff] %vm2425, %v2348
  %2484 = vst.msk [vmem:[#allocation2 + $0x1d0] sm:$0xff] %vm2425, %v2350
  %2485 = vst.msk [vmem:[#allocation2 + $0x1d8] sm:$0xff] %vm2425, %v2352
  %2486 = vst.msk [vmem:[#allocation2 + $0x1e0] sm:$0xff] %vm2425, %v2354
  %2487 = vst.msk [vmem:[#allocation2 + $0x1e8] sm:$0xff] %vm2425, %v2356
  %2488 = vst.msk [vmem:[#allocation2 + $0x1f0] sm:$0xff] %vm2425, %v2358
  %2489 = vst.msk [vmem:[#allocation2 + $0x1f8] sm:$0xff] %vm2425, %v2360
  %s2490 = scalar_lea.vmem %s0, 144
  %v2491 = vld [vmem:[%s2490] sm:$0xf]
  %v2492 = vld [vmem:[%s2490 + $0x8] sm:$0xf]
  %v2493 = vld [vmem:[%s2490 + $0x10] sm:$0xf]
  %v2494 = vld [vmem:[%s2490 + $0x18] sm:$0xf]
  %v2495 = vld [vmem:[%s2490 + $0x20] sm:$0xf]
  %v2496 = vld [vmem:[%s2490 + $0x28] sm:$0xf]
  %v2497 = vld [vmem:[%s2490 + $0x30] sm:$0xf]
  %v2498 = vld [vmem:[%s2490 + $0x38] sm:$0xf]
  %v2499 = vld [vmem:[%s2490 + $0x90] sm:$0xf]
  %v2500 = vld [vmem:[%s2490 + $0x98] sm:$0xf]
  %v2501 = vld [vmem:[%s2490 + $0xa0] sm:$0xf]
  %v2502 = vld [vmem:[%s2490 + $0xa8] sm:$0xf]
  %v2503 = vld [vmem:[%s2490 + $0xb0] sm:$0xf]
  %v2504 = vld [vmem:[%s2490 + $0xb8] sm:$0xf]
  %v2505 = vld [vmem:[%s2490 + $0xc0] sm:$0xf]
  %v2506 = vld [vmem:[%s2490 + $0xc8] sm:$0xf]
  %v2507 = vld [vmem:[%s2490 + $0x120] sm:$0xf]
  %v2508 = vld [vmem:[%s2490 + $0x128] sm:$0xf]
  %v2509 = vld [vmem:[%s2490 + $0x130] sm:$0xf]
  %v2510 = vld [vmem:[%s2490 + $0x138] sm:$0xf]
  %v2511 = vld [vmem:[%s2490 + $0x140] sm:$0xf]
  %v2512 = vld [vmem:[%s2490 + $0x148] sm:$0xf]
  %v2513 = vld [vmem:[%s2490 + $0x150] sm:$0xf]
  %v2514 = vld [vmem:[%s2490 + $0x158] sm:$0xf]
  %v2515 = vld [vmem:[%s2490 + $0x1b0] sm:$0xf]
  %v2516 = vld [vmem:[%s2490 + $0x1b8] sm:$0xf]
  %v2517 = vld [vmem:[%s2490 + $0x1c0] sm:$0xf]
  %v2518 = vld [vmem:[%s2490 + $0x1c8] sm:$0xf]
  %v2519 = vld [vmem:[%s2490 + $0x1d0] sm:$0xf]
  %v2520 = vld [vmem:[%s2490 + $0x1d8] sm:$0xf]
  %v2521 = vld [vmem:[%s2490 + $0x1e0] sm:$0xf]
  %v2522 = vld [vmem:[%s2490 + $0x1e8] sm:$0xf]
  %v2523 = vld [vmem:[%s2490 + $0x240] sm:$0xf]
  %v2524 = vld [vmem:[%s2490 + $0x248] sm:$0xf]
  %v2525 = vld [vmem:[%s2490 + $0x250] sm:$0xf]
  %v2526 = vld [vmem:[%s2490 + $0x258] sm:$0xf]
  %v2527 = vld [vmem:[%s2490 + $0x260] sm:$0xf]
  %v2528 = vld [vmem:[%s2490 + $0x268] sm:$0xf]
  %v2529 = vld [vmem:[%s2490 + $0x270] sm:$0xf]
  %v2530 = vld [vmem:[%s2490 + $0x278] sm:$0xf]
  %v2531 = vld [vmem:[%s2490 + $0x2d0] sm:$0xf]
  %v2532 = vld [vmem:[%s2490 + $0x2d8] sm:$0xf]
  %v2533 = vld [vmem:[%s2490 + $0x2e0] sm:$0xf]
  %v2534 = vld [vmem:[%s2490 + $0x2e8] sm:$0xf]
  %v2535 = vld [vmem:[%s2490 + $0x2f0] sm:$0xf]
  %v2536 = vld [vmem:[%s2490 + $0x2f8] sm:$0xf]
  %v2537 = vld [vmem:[%s2490 + $0x300] sm:$0xf]
  %v2538 = vld [vmem:[%s2490 + $0x308] sm:$0xf]
  %v2539 = vld [vmem:[%s2490 + $0x360] sm:$0xf]
  %v2540 = vld [vmem:[%s2490 + $0x368] sm:$0xf]
  %v2541 = vld [vmem:[%s2490 + $0x370] sm:$0xf]
  %v2542 = vld [vmem:[%s2490 + $0x378] sm:$0xf]
  %v2543 = vld [vmem:[%s2490 + $0x380] sm:$0xf]
  %v2544 = vld [vmem:[%s2490 + $0x388] sm:$0xf]
  %v2545 = vld [vmem:[%s2490 + $0x390] sm:$0xf]
  %v2546 = vld [vmem:[%s2490 + $0x398] sm:$0xf]
  %v2547 = vld [vmem:[%s2490 + $0x3f0] sm:$0xf]
  %v2548 = vld [vmem:[%s2490 + $0x3f8] sm:$0xf]
  %v2549 = vld [vmem:[%s2490 + $0x400] sm:$0xf]
  %v2550 = vld [vmem:[%s2490 + $0x408] sm:$0xf]
  %v2551 = vld [vmem:[%s2490 + $0x410] sm:$0xf]
  %v2552 = vld [vmem:[%s2490 + $0x418] sm:$0xf]
  %v2553 = vld [vmem:[%s2490 + $0x420] sm:$0xf]
  %v2554 = vld [vmem:[%s2490 + $0x428] sm:$0xf]
  %v2555 = vunpack.c.l.bf16 %v2491
  %v2556 = vunpack.c.l.bf16 %v2492
  %v2557 = vunpack.c.l.bf16 %v2493
  %v2558 = vunpack.c.l.bf16 %v2494
  %v2559 = vunpack.c.l.bf16 %v2495
  %v2560 = vunpack.c.l.bf16 %v2496
  %v2561 = vunpack.c.l.bf16 %v2497
  %v2562 = vunpack.c.l.bf16 %v2498
  %v2563 = vunpack.c.l.bf16 %v2499
  %v2564 = vunpack.c.l.bf16 %v2500
  %v2565 = vunpack.c.l.bf16 %v2501
  %v2566 = vunpack.c.l.bf16 %v2502
  %v2567 = vunpack.c.l.bf16 %v2503
  %v2568 = vunpack.c.l.bf16 %v2504
  %v2569 = vunpack.c.l.bf16 %v2505
  %v2570 = vunpack.c.l.bf16 %v2506
  %v2571 = vunpack.c.l.bf16 %v2507
  %v2572 = vunpack.c.l.bf16 %v2508
  %v2573 = vunpack.c.l.bf16 %v2509
  %v2574 = vunpack.c.l.bf16 %v2510
  %v2575 = vunpack.c.l.bf16 %v2511
  %v2576 = vunpack.c.l.bf16 %v2512
  %v2577 = vunpack.c.l.bf16 %v2513
  %v2578 = vunpack.c.l.bf16 %v2514
  %v2579 = vunpack.c.l.bf16 %v2515
  %v2580 = vunpack.c.l.bf16 %v2516
  %v2581 = vunpack.c.l.bf16 %v2517
  %v2582 = vunpack.c.l.bf16 %v2518
  %v2583 = vunpack.c.l.bf16 %v2519
  %v2584 = vunpack.c.l.bf16 %v2520
  %v2585 = vunpack.c.l.bf16 %v2521
  %v2586 = vunpack.c.l.bf16 %v2522
  %v2587 = vunpack.c.l.bf16 %v2523
  %v2588 = vunpack.c.l.bf16 %v2524
  %v2589 = vunpack.c.l.bf16 %v2525
  %v2590 = vunpack.c.l.bf16 %v2526
  %v2591 = vunpack.c.l.bf16 %v2527
  %v2592 = vunpack.c.l.bf16 %v2528
  %v2593 = vunpack.c.l.bf16 %v2529
  %v2594 = vunpack.c.l.bf16 %v2530
  %v2595 = vunpack.c.l.bf16 %v2531
  %v2596 = vunpack.c.l.bf16 %v2532
  %v2597 = vunpack.c.l.bf16 %v2533
  %v2598 = vunpack.c.l.bf16 %v2534
  %v2599 = vunpack.c.l.bf16 %v2535
  %v2600 = vunpack.c.l.bf16 %v2536
  %v2601 = vunpack.c.l.bf16 %v2537
  %v2602 = vunpack.c.l.bf16 %v2538
  %v2603 = vunpack.c.l.bf16 %v2539
  %v2604 = vunpack.c.l.bf16 %v2540
  %v2605 = vunpack.c.l.bf16 %v2541
  %v2606 = vunpack.c.l.bf16 %v2542
  %v2607 = vunpack.c.l.bf16 %v2543
  %v2608 = vunpack.c.l.bf16 %v2544
  %v2609 = vunpack.c.l.bf16 %v2545
  %v2610 = vunpack.c.l.bf16 %v2546
  %v2611 = vunpack.c.l.bf16 %v2547
  %v2612 = vunpack.c.l.bf16 %v2548
  %v2613 = vunpack.c.l.bf16 %v2549
  %v2614 = vunpack.c.l.bf16 %v2550
  %v2615 = vunpack.c.l.bf16 %v2551
  %v2616 = vunpack.c.l.bf16 %v2552
  %v2617 = vunpack.c.l.bf16 %v2553
  %v2618 = vunpack.c.l.bf16 %v2554
  %2683 = vrot.lane.b32.xlu0 %v2555, 48
  %v2684 = vpop.permute.xlu0 %2683
  %2685 = vrot.lane.b32.xlu0 %v2556, 48
  %v2686 = vpop.permute.xlu0 %2685
  %2687 = vrot.lane.b32.xlu0 %v2557, 48
  %v2688 = vpop.permute.xlu0 %2687
  %2689 = vrot.lane.b32.xlu0 %v2558, 48
  %v2690 = vpop.permute.xlu0 %2689
  %2691 = vrot.lane.b32.xlu0 %v2559, 48
  %v2692 = vpop.permute.xlu0 %2691
  %2693 = vrot.lane.b32.xlu0 %v2560, 48
  %v2694 = vpop.permute.xlu0 %2693
  %2695 = vrot.lane.b32.xlu0 %v2561, 48
  %v2696 = vpop.permute.xlu0 %2695
  %2697 = vrot.lane.b32.xlu0 %v2562, 48
  %v2698 = vpop.permute.xlu0 %2697
  %2699 = vrot.lane.b32.xlu0 %v2563, 48
  %v2700 = vpop.permute.xlu0 %2699
  %2701 = vrot.lane.b32.xlu0 %v2564, 48
  %v2702 = vpop.permute.xlu0 %2701
  %2703 = vrot.lane.b32.xlu0 %v2565, 48
  %v2704 = vpop.permute.xlu0 %2703
  %2705 = vrot.lane.b32.xlu0 %v2566, 48
  %v2706 = vpop.permute.xlu0 %2705
  %2707 = vrot.lane.b32.xlu0 %v2567, 48
  %v2708 = vpop.permute.xlu0 %2707
  %2709 = vrot.lane.b32.xlu0 %v2568, 48
  %v2710 = vpop.permute.xlu0 %2709
  %2711 = vrot.lane.b32.xlu0 %v2569, 48
  %v2712 = vpop.permute.xlu0 %2711
  %2713 = vrot.lane.b32.xlu0 %v2570, 48
  %v2714 = vpop.permute.xlu0 %2713
  %2715 = vrot.lane.b32.xlu0 %v2571, 48
  %v2716 = vpop.permute.xlu0 %2715
  %2717 = vrot.lane.b32.xlu0 %v2572, 48
  %v2718 = vpop.permute.xlu0 %2717
  %2719 = vrot.lane.b32.xlu0 %v2573, 48
  %v2720 = vpop.permute.xlu0 %2719
  %2721 = vrot.lane.b32.xlu0 %v2574, 48
  %v2722 = vpop.permute.xlu0 %2721
  %2723 = vrot.lane.b32.xlu0 %v2575, 48
  %v2724 = vpop.permute.xlu0 %2723
  %2725 = vrot.lane.b32.xlu0 %v2576, 48
  %v2726 = vpop.permute.xlu0 %2725
  %2727 = vrot.lane.b32.xlu0 %v2577, 48
  %v2728 = vpop.permute.xlu0 %2727
  %2729 = vrot.lane.b32.xlu0 %v2578, 48
  %v2730 = vpop.permute.xlu0 %2729
  %2731 = vrot.lane.b32.xlu0 %v2579, 48
  %v2732 = vpop.permute.xlu0 %2731
  %2733 = vrot.lane.b32.xlu0 %v2580, 48
  %v2734 = vpop.permute.xlu0 %2733
  %2735 = vrot.lane.b32.xlu0 %v2581, 48
  %v2736 = vpop.permute.xlu0 %2735
  %2737 = vrot.lane.b32.xlu0 %v2582, 48
  %v2738 = vpop.permute.xlu0 %2737
  %2739 = vrot.lane.b32.xlu0 %v2583, 48
  %v2740 = vpop.permute.xlu0 %2739
  %2741 = vrot.lane.b32.xlu0 %v2584, 48
  %v2742 = vpop.permute.xlu0 %2741
  %2743 = vrot.lane.b32.xlu0 %v2585, 48
  %v2744 = vpop.permute.xlu0 %2743
  %2745 = vrot.lane.b32.xlu0 %v2586, 48
  %v2746 = vpop.permute.xlu0 %2745
  %2747 = vrot.lane.b32.xlu0 %v2587, 48
  %v2748 = vpop.permute.xlu0 %2747
  %2749 = vrot.lane.b32.xlu0 %v2588, 48
  %v2750 = vpop.permute.xlu0 %2749
  %2751 = vrot.lane.b32.xlu0 %v2589, 48
  %v2752 = vpop.permute.xlu0 %2751
  %2753 = vrot.lane.b32.xlu0 %v2590, 48
  %v2754 = vpop.permute.xlu0 %2753
  %2755 = vrot.lane.b32.xlu0 %v2591, 48
  %v2756 = vpop.permute.xlu0 %2755
  %2757 = vrot.lane.b32.xlu0 %v2592, 48
  %v2758 = vpop.permute.xlu0 %2757
  %2759 = vrot.lane.b32.xlu0 %v2593, 48
  %v2760 = vpop.permute.xlu0 %2759
  %2761 = vrot.lane.b32.xlu0 %v2594, 48
  %v2762 = vpop.permute.xlu0 %2761
  %2763 = vrot.lane.b32.xlu0 %v2595, 48
  %v2764 = vpop.permute.xlu0 %2763
  %2765 = vrot.lane.b32.xlu0 %v2596, 48
  %v2766 = vpop.permute.xlu0 %2765
  %2767 = vrot.lane.b32.xlu0 %v2597, 48
  %v2768 = vpop.permute.xlu0 %2767
  %2769 = vrot.lane.b32.xlu0 %v2598, 48
  %v2770 = vpop.permute.xlu0 %2769
  %2771 = vrot.lane.b32.xlu0 %v2599, 48
  %v2772 = vpop.permute.xlu0 %2771
  %2773 = vrot.lane.b32.xlu0 %v2600, 48
  %v2774 = vpop.permute.xlu0 %2773
  %2775 = vrot.lane.b32.xlu0 %v2601, 48
  %v2776 = vpop.permute.xlu0 %2775
  %2777 = vrot.lane.b32.xlu0 %v2602, 48
  %v2778 = vpop.permute.xlu0 %2777
  %2779 = vrot.lane.b32.xlu0 %v2603, 48
  %v2780 = vpop.permute.xlu0 %2779
  %2781 = vrot.lane.b32.xlu0 %v2604, 48
  %v2782 = vpop.permute.xlu0 %2781
  %2783 = vrot.lane.b32.xlu0 %v2605, 48
  %v2784 = vpop.permute.xlu0 %2783
  %2785 = vrot.lane.b32.xlu0 %v2606, 48
  %v2786 = vpop.permute.xlu0 %2785
  %2787 = vrot.lane.b32.xlu0 %v2607, 48
  %v2788 = vpop.permute.xlu0 %2787
  %2789 = vrot.lane.b32.xlu0 %v2608, 48
  %v2790 = vpop.permute.xlu0 %2789
  %2791 = vrot.lane.b32.xlu0 %v2609, 48
  %v2792 = vpop.permute.xlu0 %2791
  %2793 = vrot.lane.b32.xlu0 %v2610, 48
  %v2794 = vpop.permute.xlu0 %2793
  %2795 = vrot.lane.b32.xlu0 %v2611, 48
  %v2796 = vpop.permute.xlu0 %2795
  %2797 = vrot.lane.b32.xlu0 %v2612, 48
  %v2798 = vpop.permute.xlu0 %2797
  %2799 = vrot.lane.b32.xlu0 %v2613, 48
  %v2800 = vpop.permute.xlu0 %2799
  %2801 = vrot.lane.b32.xlu0 %v2614, 48
  %v2802 = vpop.permute.xlu0 %2801
  %2803 = vrot.lane.b32.xlu0 %v2615, 48
  %v2804 = vpop.permute.xlu0 %2803
  %2805 = vrot.lane.b32.xlu0 %v2616, 48
  %v2806 = vpop.permute.xlu0 %2805
  %2807 = vrot.lane.b32.xlu0 %v2617, 48
  %v2808 = vpop.permute.xlu0 %2807
  %2809 = vrot.lane.b32.xlu0 %v2618, 48
  %v2810 = vpop.permute.xlu0 %2809
  %vm2875 = vcmask 458112
  %2876 = vst.msk [vmem:[#allocation2] sm:$0xff] %vm2875, %v2684
  %2877 = vst.msk [vmem:[#allocation2 + $0x8] sm:$0xff] %vm2875, %v2686
  %2878 = vst.msk [vmem:[#allocation2 + $0x10] sm:$0xff] %vm2875, %v2688
  %2879 = vst.msk [vmem:[#allocation2 + $0x18] sm:$0xff] %vm2875, %v2690
  %2880 = vst.msk [vmem:[#allocation2 + $0x20] sm:$0xff] %vm2875, %v2692
  %2881 = vst.msk [vmem:[#allocation2 + $0x28] sm:$0xff] %vm2875, %v2694
  %2882 = vst.msk [vmem:[#allocation2 + $0x30] sm:$0xff] %vm2875, %v2696
  %2883 = vst.msk [vmem:[#allocation2 + $0x38] sm:$0xff] %vm2875, %v2698
  %2884 = vst.msk [vmem:[#allocation2 + $0x40] sm:$0xff] %vm2875, %v2700
  %2885 = vst.msk [vmem:[#allocation2 + $0x48] sm:$0xff] %vm2875, %v2702
  %2886 = vst.msk [vmem:[#allocation2 + $0x50] sm:$0xff] %vm2875, %v2704
  %2887 = vst.msk [vmem:[#allocation2 + $0x58] sm:$0xff] %vm2875, %v2706
  %2888 = vst.msk [vmem:[#allocation2 + $0x60] sm:$0xff] %vm2875, %v2708
  %2889 = vst.msk [vmem:[#allocation2 + $0x68] sm:$0xff] %vm2875, %v2710
  %2890 = vst.msk [vmem:[#allocation2 + $0x70] sm:$0xff] %vm2875, %v2712
  %2891 = vst.msk [vmem:[#allocation2 + $0x78] sm:$0xff] %vm2875, %v2714
  %2892 = vst.msk [vmem:[#allocation2 + $0x80] sm:$0xff] %vm2875, %v2716
  %2893 = vst.msk [vmem:[#allocation2 + $0x88] sm:$0xff] %vm2875, %v2718
  %2894 = vst.msk [vmem:[#allocation2 + $0x90] sm:$0xff] %vm2875, %v2720
  %2895 = vst.msk [vmem:[#allocation2 + $0x98] sm:$0xff] %vm2875, %v2722
  %2896 = vst.msk [vmem:[#allocation2 + $0xa0] sm:$0xff] %vm2875, %v2724
  %2897 = vst.msk [vmem:[#allocation2 + $0xa8] sm:$0xff] %vm2875, %v2726
  %2898 = vst.msk [vmem:[#allocation2 + $0xb0] sm:$0xff] %vm2875, %v2728
  %2899 = vst.msk [vmem:[#allocation2 + $0xb8] sm:$0xff] %vm2875, %v2730
  %2900 = vst.msk [vmem:[#allocation2 + $0xc0] sm:$0xff] %vm2875, %v2732
  %2901 = vst.msk [vmem:[#allocation2 + $0xc8] sm:$0xff] %vm2875, %v2734
  %2902 = vst.msk [vmem:[#allocation2 + $0xd0] sm:$0xff] %vm2875, %v2736
  %2903 = vst.msk [vmem:[#allocation2 + $0xd8] sm:$0xff] %vm2875, %v2738
  %2904 = vst.msk [vmem:[#allocation2 + $0xe0] sm:$0xff] %vm2875, %v2740
  %2905 = vst.msk [vmem:[#allocation2 + $0xe8] sm:$0xff] %vm2875, %v2742
  %2906 = vst.msk [vmem:[#allocation2 + $0xf0] sm:$0xff] %vm2875, %v2744
  %2907 = vst.msk [vmem:[#allocation2 + $0xf8] sm:$0xff] %vm2875, %v2746
  %2908 = vst.msk [vmem:[#allocation2 + $0x100] sm:$0xff] %vm2875, %v2748
  %2909 = vst.msk [vmem:[#allocation2 + $0x108] sm:$0xff] %vm2875, %v2750
  %2910 = vst.msk [vmem:[#allocation2 + $0x110] sm:$0xff] %vm2875, %v2752
  %2911 = vst.msk [vmem:[#allocation2 + $0x118] sm:$0xff] %vm2875, %v2754
  %2912 = vst.msk [vmem:[#allocation2 + $0x120] sm:$0xff] %vm2875, %v2756
  %2913 = vst.msk [vmem:[#allocation2 + $0x128] sm:$0xff] %vm2875, %v2758
  %2914 = vst.msk [vmem:[#allocation2 + $0x130] sm:$0xff] %vm2875, %v2760
  %2915 = vst.msk [vmem:[#allocation2 + $0x138] sm:$0xff] %vm2875, %v2762
  %2916 = vst.msk [vmem:[#allocation2 + $0x140] sm:$0xff] %vm2875, %v2764
  %2917 = vst.msk [vmem:[#allocation2 + $0x148] sm:$0xff] %vm2875, %v2766
  %2918 = vst.msk [vmem:[#allocation2 + $0x150] sm:$0xff] %vm2875, %v2768
  %2919 = vst.msk [vmem:[#allocation2 + $0x158] sm:$0xff] %vm2875, %v2770
  %2920 = vst.msk [vmem:[#allocation2 + $0x160] sm:$0xff] %vm2875, %v2772
  %2921 = vst.msk [vmem:[#allocation2 + $0x168] sm:$0xff] %vm2875, %v2774
  %2922 = vst.msk [vmem:[#allocation2 + $0x170] sm:$0xff] %vm2875, %v2776
  %2923 = vst.msk [vmem:[#allocation2 + $0x178] sm:$0xff] %vm2875, %v2778
  %2924 = vst.msk [vmem:[#allocation2 + $0x180] sm:$0xff] %vm2875, %v2780
  %2925 = vst.msk [vmem:[#allocation2 + $0x188] sm:$0xff] %vm2875, %v2782
  %2926 = vst.msk [vmem:[#allocation2 + $0x190] sm:$0xff] %vm2875, %v2784
  %2927 = vst.msk [vmem:[#allocation2 + $0x198] sm:$0xff] %vm2875, %v2786
  %2928 = vst.msk [vmem:[#allocation2 + $0x1a0] sm:$0xff] %vm2875, %v2788
  %2929 = vst.msk [vmem:[#allocation2 + $0x1a8] sm:$0xff] %vm2875, %v2790
  %2930 = vst.msk [vmem:[#allocation2 + $0x1b0] sm:$0xff] %vm2875, %v2792
  %2931 = vst.msk [vmem:[#allocation2 + $0x1b8] sm:$0xff] %vm2875, %v2794
  %2932 = vst.msk [vmem:[#allocation2 + $0x1c0] sm:$0xff] %vm2875, %v2796
  %2933 = vst.msk [vmem:[#allocation2 + $0x1c8] sm:$0xff] %vm2875, %v2798
  %2934 = vst.msk [vmem:[#allocation2 + $0x1d0] sm:$0xff] %vm2875, %v2800
  %2935 = vst.msk [vmem:[#allocation2 + $0x1d8] sm:$0xff] %vm2875, %v2802
  %2936 = vst.msk [vmem:[#allocation2 + $0x1e0] sm:$0xff] %vm2875, %v2804
  %2937 = vst.msk [vmem:[#allocation2 + $0x1e8] sm:$0xff] %vm2875, %v2806
  %2938 = vst.msk [vmem:[#allocation2 + $0x1f0] sm:$0xff] %vm2875, %v2808
  %2939 = vst.msk [vmem:[#allocation2 + $0x1f8] sm:$0xff] %vm2875, %v2810
  %s2940 = scalar_lea.vmem %s0, 148
  %v2941 = vld [vmem:[%s2940] sm:$0xf]
  %v2942 = vld [vmem:[%s2940 + $0x8] sm:$0xf]
  %v2943 = vld [vmem:[%s2940 + $0x10] sm:$0xf]
  %v2944 = vld [vmem:[%s2940 + $0x18] sm:$0xf]
  %v2945 = vld [vmem:[%s2940 + $0x20] sm:$0xf]
  %v2946 = vld [vmem:[%s2940 + $0x28] sm:$0xf]
  %v2947 = vld [vmem:[%s2940 + $0x30] sm:$0xf]
  %v2948 = vld [vmem:[%s2940 + $0x38] sm:$0xf]
  %v2949 = vld [vmem:[%s2940 + $0x90] sm:$0xf]
  %v2950 = vld [vmem:[%s2940 + $0x98] sm:$0xf]
  %v2951 = vld [vmem:[%s2940 + $0xa0] sm:$0xf]
  %v2952 = vld [vmem:[%s2940 + $0xa8] sm:$0xf]
  %v2953 = vld [vmem:[%s2940 + $0xb0] sm:$0xf]
  %v2954 = vld [vmem:[%s2940 + $0xb8] sm:$0xf]
  %v2955 = vld [vmem:[%s2940 + $0xc0] sm:$0xf]
  %v2956 = vld [vmem:[%s2940 + $0xc8] sm:$0xf]
  %v2957 = vld [vmem:[%s2940 + $0x120] sm:$0xf]
  %v2958 = vld [vmem:[%s2940 + $0x128] sm:$0xf]
  %v2959 = vld [vmem:[%s2940 + $0x130] sm:$0xf]
  %v2960 = vld [vmem:[%s2940 + $0x138] sm:$0xf]
  %v2961 = vld [vmem:[%s2940 + $0x140] sm:$0xf]
  %v2962 = vld [vmem:[%s2940 + $0x148] sm:$0xf]
  %v2963 = vld [vmem:[%s2940 + $0x150] sm:$0xf]
  %v2964 = vld [vmem:[%s2940 + $0x158] sm:$0xf]
  %v2965 = vld [vmem:[%s2940 + $0x1b0] sm:$0xf]
  %v2966 = vld [vmem:[%s2940 + $0x1b8] sm:$0xf]
  %v2967 = vld [vmem:[%s2940 + $0x1c0] sm:$0xf]
  %v2968 = vld [vmem:[%s2940 + $0x1c8] sm:$0xf]
  %v2969 = vld [vmem:[%s2940 + $0x1d0] sm:$0xf]
  %v2970 = vld [vmem:[%s2940 + $0x1d8] sm:$0xf]
  %v2971 = vld [vmem:[%s2940 + $0x1e0] sm:$0xf]
  %v2972 = vld [vmem:[%s2940 + $0x1e8] sm:$0xf]
  %v2973 = vld [vmem:[%s2940 + $0x240] sm:$0xf]
  %v2974 = vld [vmem:[%s2940 + $0x248] sm:$0xf]
  %v2975 = vld [vmem:[%s2940 + $0x250] sm:$0xf]
  %v2976 = vld [vmem:[%s2940 + $0x258] sm:$0xf]
  %v2977 = vld [vmem:[%s2940 + $0x260] sm:$0xf]
  %v2978 = vld [vmem:[%s2940 + $0x268] sm:$0xf]
  %v2979 = vld [vmem:[%s2940 + $0x270] sm:$0xf]
  %v2980 = vld [vmem:[%s2940 + $0x278] sm:$0xf]
  %v2981 = vld [vmem:[%s2940 + $0x2d0] sm:$0xf]
  %v2982 = vld [vmem:[%s2940 + $0x2d8] sm:$0xf]
  %v2983 = vld [vmem:[%s2940 + $0x2e0] sm:$0xf]
  %v2984 = vld [vmem:[%s2940 + $0x2e8] sm:$0xf]
  %v2985 = vld [vmem:[%s2940 + $0x2f0] sm:$0xf]
  %v2986 = vld [vmem:[%s2940 + $0x2f8] sm:$0xf]
  %v2987 = vld [vmem:[%s2940 + $0x300] sm:$0xf]
  %v2988 = vld [vmem:[%s2940 + $0x308] sm:$0xf]
  %v2989 = vld [vmem:[%s2940 + $0x360] sm:$0xf]
  %v2990 = vld [vmem:[%s2940 + $0x368] sm:$0xf]
  %v2991 = vld [vmem:[%s2940 + $0x370] sm:$0xf]
  %v2992 = vld [vmem:[%s2940 + $0x378] sm:$0xf]
  %v2993 = vld [vmem:[%s2940 + $0x380] sm:$0xf]
  %v2994 = vld [vmem:[%s2940 + $0x388] sm:$0xf]
  %v2995 = vld [vmem:[%s2940 + $0x390] sm:$0xf]
  %v2996 = vld [vmem:[%s2940 + $0x398] sm:$0xf]
  %v2997 = vld [vmem:[%s2940 + $0x3f0] sm:$0xf]
  %v2998 = vld [vmem:[%s2940 + $0x3f8] sm:$0xf]
  %v2999 = vld [vmem:[%s2940 + $0x400] sm:$0xf]
  %v3000 = vld [vmem:[%s2940 + $0x408] sm:$0xf]
  %v3001 = vld [vmem:[%s2940 + $0x410] sm:$0xf]
  %v3002 = vld [vmem:[%s2940 + $0x418] sm:$0xf]
  %v3003 = vld [vmem:[%s2940 + $0x420] sm:$0xf]
  %v3004 = vld [vmem:[%s2940 + $0x428] sm:$0xf]
  %v3005 = vunpack.c.l.bf16 %v2941
  %v3006 = vunpack.c.l.bf16 %v2942
  %v3007 = vunpack.c.l.bf16 %v2943
  %v3008 = vunpack.c.l.bf16 %v2944
  %v3009 = vunpack.c.l.bf16 %v2945
  %v3010 = vunpack.c.l.bf16 %v2946
  %v3011 = vunpack.c.l.bf16 %v2947
  %v3012 = vunpack.c.l.bf16 %v2948
  %v3013 = vunpack.c.l.bf16 %v2949
  %v3014 = vunpack.c.l.bf16 %v2950
  %v3015 = vunpack.c.l.bf16 %v2951
  %v3016 = vunpack.c.l.bf16 %v2952
  %v3017 = vunpack.c.l.bf16 %v2953
  %v3018 = vunpack.c.l.bf16 %v2954
  %v3019 = vunpack.c.l.bf16 %v2955
  %v3020 = vunpack.c.l.bf16 %v2956
  %v3021 = vunpack.c.l.bf16 %v2957
  %v3022 = vunpack.c.l.bf16 %v2958
  %v3023 = vunpack.c.l.bf16 %v2959
  %v3024 = vunpack.c.l.bf16 %v2960
  %v3025 = vunpack.c.l.bf16 %v2961
  %v3026 = vunpack.c.l.bf16 %v2962
  %v3027 = vunpack.c.l.bf16 %v2963
  %v3028 = vunpack.c.l.bf16 %v2964
  %v3029 = vunpack.c.l.bf16 %v2965
  %v3030 = vunpack.c.l.bf16 %v2966
  %v3031 = vunpack.c.l.bf16 %v2967
  %v3032 = vunpack.c.l.bf16 %v2968
  %v3033 = vunpack.c.l.bf16 %v2969
  %v3034 = vunpack.c.l.bf16 %v2970
  %v3035 = vunpack.c.l.bf16 %v2971
  %v3036 = vunpack.c.l.bf16 %v2972
  %v3037 = vunpack.c.l.bf16 %v2973
  %v3038 = vunpack.c.l.bf16 %v2974
  %v3039 = vunpack.c.l.bf16 %v2975
  %v3040 = vunpack.c.l.bf16 %v2976
  %v3041 = vunpack.c.l.bf16 %v2977
  %v3042 = vunpack.c.l.bf16 %v2978
  %v3043 = vunpack.c.l.bf16 %v2979
  %v3044 = vunpack.c.l.bf16 %v2980
  %v3045 = vunpack.c.l.bf16 %v2981
  %v3046 = vunpack.c.l.bf16 %v2982
  %v3047 = vunpack.c.l.bf16 %v2983
  %v3048 = vunpack.c.l.bf16 %v2984
  %v3049 = vunpack.c.l.bf16 %v2985
  %v3050 = vunpack.c.l.bf16 %v2986
  %v3051 = vunpack.c.l.bf16 %v2987
  %v3052 = vunpack.c.l.bf16 %v2988
  %v3053 = vunpack.c.l.bf16 %v2989
  %v3054 = vunpack.c.l.bf16 %v2990
  %v3055 = vunpack.c.l.bf16 %v2991
  %v3056 = vunpack.c.l.bf16 %v2992
  %v3057 = vunpack.c.l.bf16 %v2993
  %v3058 = vunpack.c.l.bf16 %v2994
  %v3059 = vunpack.c.l.bf16 %v2995
  %v3060 = vunpack.c.l.bf16 %v2996
  %v3061 = vunpack.c.l.bf16 %v2997
  %v3062 = vunpack.c.l.bf16 %v2998
  %v3063 = vunpack.c.l.bf16 %v2999
  %v3064 = vunpack.c.l.bf16 %v3000
  %v3065 = vunpack.c.l.bf16 %v3001
  %v3066 = vunpack.c.l.bf16 %v3002
  %v3067 = vunpack.c.l.bf16 %v3003
  %v3068 = vunpack.c.l.bf16 %v3004
  %3133 = vrot.lane.b32.xlu0 %v3005, 56
  %v3134 = vpop.permute.xlu0 %3133
  %3135 = vrot.lane.b32.xlu0 %v3006, 56
  %v3136 = vpop.permute.xlu0 %3135
  %3137 = vrot.lane.b32.xlu0 %v3007, 56
  %v3138 = vpop.permute.xlu0 %3137
  %3139 = vrot.lane.b32.xlu0 %v3008, 56
  %v3140 = vpop.permute.xlu0 %3139
  %3141 = vrot.lane.b32.xlu0 %v3009, 56
  %v3142 = vpop.permute.xlu0 %3141
  %3143 = vrot.lane.b32.xlu0 %v3010, 56
  %v3144 = vpop.permute.xlu0 %3143
  %3145 = vrot.lane.b32.xlu0 %v3011, 56
  %v3146 = vpop.permute.xlu0 %3145
  %3147 = vrot.lane.b32.xlu0 %v3012, 56
  %v3148 = vpop.permute.xlu0 %3147
  %3149 = vrot.lane.b32.xlu0 %v3013, 56
  %v3150 = vpop.permute.xlu0 %3149
  %3151 = vrot.lane.b32.xlu0 %v3014, 56
  %v3152 = vpop.permute.xlu0 %3151
  %3153 = vrot.lane.b32.xlu0 %v3015, 56
  %v3154 = vpop.permute.xlu0 %3153
  %3155 = vrot.lane.b32.xlu0 %v3016, 56
  %v3156 = vpop.permute.xlu0 %3155
  %3157 = vrot.lane.b32.xlu0 %v3017, 56
  %v3158 = vpop.permute.xlu0 %3157
  %3159 = vrot.lane.b32.xlu0 %v3018, 56
  %v3160 = vpop.permute.xlu0 %3159
  %3161 = vrot.lane.b32.xlu0 %v3019, 56
  %v3162 = vpop.permute.xlu0 %3161
  %3163 = vrot.lane.b32.xlu0 %v3020, 56
  %v3164 = vpop.permute.xlu0 %3163
  %3165 = vrot.lane.b32.xlu0 %v3021, 56
  %v3166 = vpop.permute.xlu0 %3165
  %3167 = vrot.lane.b32.xlu0 %v3022, 56
  %v3168 = vpop.permute.xlu0 %3167
  %3169 = vrot.lane.b32.xlu0 %v3023, 56
  %v3170 = vpop.permute.xlu0 %3169
  %3171 = vrot.lane.b32.xlu0 %v3024, 56
  %v3172 = vpop.permute.xlu0 %3171
  %3173 = vrot.lane.b32.xlu0 %v3025, 56
  %v3174 = vpop.permute.xlu0 %3173
  %3175 = vrot.lane.b32.xlu0 %v3026, 56
  %v3176 = vpop.permute.xlu0 %3175
  %3177 = vrot.lane.b32.xlu0 %v3027, 56
  %v3178 = vpop.permute.xlu0 %3177
  %3179 = vrot.lane.b32.xlu0 %v3028, 56
  %v3180 = vpop.permute.xlu0 %3179
  %3181 = vrot.lane.b32.xlu0 %v3029, 56
  %v3182 = vpop.permute.xlu0 %3181
  %3183 = vrot.lane.b32.xlu0 %v3030, 56
  %v3184 = vpop.permute.xlu0 %3183
  %3185 = vrot.lane.b32.xlu0 %v3031, 56
  %v3186 = vpop.permute.xlu0 %3185
  %3187 = vrot.lane.b32.xlu0 %v3032, 56
  %v3188 = vpop.permute.xlu0 %3187
  %3189 = vrot.lane.b32.xlu0 %v3033, 56
  %v3190 = vpop.permute.xlu0 %3189
  %3191 = vrot.lane.b32.xlu0 %v3034, 56
  %v3192 = vpop.permute.xlu0 %3191
  %3193 = vrot.lane.b32.xlu0 %v3035, 56
  %v3194 = vpop.permute.xlu0 %3193
  %3195 = vrot.lane.b32.xlu0 %v3036, 56
  %v3196 = vpop.permute.xlu0 %3195
  %3197 = vrot.lane.b32.xlu0 %v3037, 56
  %v3198 = vpop.permute.xlu0 %3197
  %3199 = vrot.lane.b32.xlu0 %v3038, 56
  %v3200 = vpop.permute.xlu0 %3199
  %3201 = vrot.lane.b32.xlu0 %v3039, 56
  %v3202 = vpop.permute.xlu0 %3201
  %3203 = vrot.lane.b32.xlu0 %v3040, 56
  %v3204 = vpop.permute.xlu0 %3203
  %3205 = vrot.lane.b32.xlu0 %v3041, 56
  %v3206 = vpop.permute.xlu0 %3205
  %3207 = vrot.lane.b32.xlu0 %v3042, 56
  %v3208 = vpop.permute.xlu0 %3207
  %3209 = vrot.lane.b32.xlu0 %v3043, 56
  %v3210 = vpop.permute.xlu0 %3209
  %3211 = vrot.lane.b32.xlu0 %v3044, 56
  %v3212 = vpop.permute.xlu0 %3211
  %3213 = vrot.lane.b32.xlu0 %v3045, 56
  %v3214 = vpop.permute.xlu0 %3213
  %3215 = vrot.lane.b32.xlu0 %v3046, 56
  %v3216 = vpop.permute.xlu0 %3215
  %3217 = vrot.lane.b32.xlu0 %v3047, 56
  %v3218 = vpop.permute.xlu0 %3217
  %3219 = vrot.lane.b32.xlu0 %v3048, 56
  %v3220 = vpop.permute.xlu0 %3219
  %3221 = vrot.lane.b32.xlu0 %v3049, 56
  %v3222 = vpop.permute.xlu0 %3221
  %3223 = vrot.lane.b32.xlu0 %v3050, 56
  %v3224 = vpop.permute.xlu0 %3223
  %3225 = vrot.lane.b32.xlu0 %v3051, 56
  %v3226 = vpop.permute.xlu0 %3225
  %3227 = vrot.lane.b32.xlu0 %v3052, 56
  %v3228 = vpop.permute.xlu0 %3227
  %3229 = vrot.lane.b32.xlu0 %v3053, 56
  %v3230 = vpop.permute.xlu0 %3229
  %3231 = vrot.lane.b32.xlu0 %v3054, 56
  %v3232 = vpop.permute.xlu0 %3231
  %3233 = vrot.lane.b32.xlu0 %v3055, 56
  %v3234 = vpop.permute.xlu0 %3233
  %3235 = vrot.lane.b32.xlu0 %v3056, 56
  %v3236 = vpop.permute.xlu0 %3235
  %3237 = vrot.lane.b32.xlu0 %v3057, 56
  %v3238 = vpop.permute.xlu0 %3237
  %3239 = vrot.lane.b32.xlu0 %v3058, 56
  %v3240 = vpop.permute.xlu0 %3239
  %3241 = vrot.lane.b32.xlu0 %v3059, 56
  %v3242 = vpop.permute.xlu0 %3241
  %3243 = vrot.lane.b32.xlu0 %v3060, 56
  %v3244 = vpop.permute.xlu0 %3243
  %3245 = vrot.lane.b32.xlu0 %v3061, 56
  %v3246 = vpop.permute.xlu0 %3245
  %3247 = vrot.lane.b32.xlu0 %v3062, 56
  %v3248 = vpop.permute.xlu0 %3247
  %3249 = vrot.lane.b32.xlu0 %v3063, 56
  %v3250 = vpop.permute.xlu0 %3249
  %3251 = vrot.lane.b32.xlu0 %v3064, 56
  %v3252 = vpop.permute.xlu0 %3251
  %3253 = vrot.lane.b32.xlu0 %v3065, 56
  %v3254 = vpop.permute.xlu0 %3253
  %3255 = vrot.lane.b32.xlu0 %v3066, 56
  %v3256 = vpop.permute.xlu0 %3255
  %3257 = vrot.lane.b32.xlu0 %v3067, 56
  %v3258 = vpop.permute.xlu0 %3257
  %3259 = vrot.lane.b32.xlu0 %v3068, 56
  %v3260 = vpop.permute.xlu0 %3259
  %vm3325 = vcmask 523712
  %3326 = vst.msk [vmem:[#allocation2] sm:$0xff] %vm3325, %v3134
  %3327 = vst.msk [vmem:[#allocation2 + $0x8] sm:$0xff] %vm3325, %v3136
  %3328 = vst.msk [vmem:[#allocation2 + $0x10] sm:$0xff] %vm3325, %v3138
  %3329 = vst.msk [vmem:[#allocation2 + $0x18] sm:$0xff] %vm3325, %v3140
  %3330 = vst.msk [vmem:[#allocation2 + $0x20] sm:$0xff] %vm3325, %v3142
  %3331 = vst.msk [vmem:[#allocation2 + $0x28] sm:$0xff] %vm3325, %v3144
  %3332 = vst.msk [vmem:[#allocation2 + $0x30] sm:$0xff] %vm3325, %v3146
  %3333 = vst.msk [vmem:[#allocation2 + $0x38] sm:$0xff] %vm3325, %v3148
  %3334 = vst.msk [vmem:[#allocation2 + $0x40] sm:$0xff] %vm3325, %v3150
  %3335 = vst.msk [vmem:[#allocation2 + $0x48] sm:$0xff] %vm3325, %v3152
  %3336 = vst.msk [vmem:[#allocation2 + $0x50] sm:$0xff] %vm3325, %v3154
  %3337 = vst.msk [vmem:[#allocation2 + $0x58] sm:$0xff] %vm3325, %v3156
  %3338 = vst.msk [vmem:[#allocation2 + $0x60] sm:$0xff] %vm3325, %v3158
  %3339 = vst.msk [vmem:[#allocation2 + $0x68] sm:$0xff] %vm3325, %v3160
  %3340 = vst.msk [vmem:[#allocation2 + $0x70] sm:$0xff] %vm3325, %v3162
  %3341 = vst.msk [vmem:[#allocation2 + $0x78] sm:$0xff] %vm3325, %v3164
  %3342 = vst.msk [vmem:[#allocation2 + $0x80] sm:$0xff] %vm3325, %v3166
  %3343 = vst.msk [vmem:[#allocation2 + $0x88] sm:$0xff] %vm3325, %v3168
  %3344 = vst.msk [vmem:[#allocation2 + $0x90] sm:$0xff] %vm3325, %v3170
  %3345 = vst.msk [vmem:[#allocation2 + $0x98] sm:$0xff] %vm3325, %v3172
  %3346 = vst.msk [vmem:[#allocation2 + $0xa0] sm:$0xff] %vm3325, %v3174
  %3347 = vst.msk [vmem:[#allocation2 + $0xa8] sm:$0xff] %vm3325, %v3176
  %3348 = vst.msk [vmem:[#allocation2 + $0xb0] sm:$0xff] %vm3325, %v3178
  %3349 = vst.msk [vmem:[#allocation2 + $0xb8] sm:$0xff] %vm3325, %v3180
  %3350 = vst.msk [vmem:[#allocation2 + $0xc0] sm:$0xff] %vm3325, %v3182
  %3351 = vst.msk [vmem:[#allocation2 + $0xc8] sm:$0xff] %vm3325, %v3184
  %3352 = vst.msk [vmem:[#allocation2 + $0xd0] sm:$0xff] %vm3325, %v3186
  %3353 = vst.msk [vmem:[#allocation2 + $0xd8] sm:$0xff] %vm3325, %v3188
  %3354 = vst.msk [vmem:[#allocation2 + $0xe0] sm:$0xff] %vm3325, %v3190
  %3355 = vst.msk [vmem:[#allocation2 + $0xe8] sm:$0xff] %vm3325, %v3192
  %3356 = vst.msk [vmem:[#allocation2 + $0xf0] sm:$0xff] %vm3325, %v3194
  %3357 = vst.msk [vmem:[#allocation2 + $0xf8] sm:$0xff] %vm3325, %v3196
  %3358 = vst.msk [vmem:[#allocation2 + $0x100] sm:$0xff] %vm3325, %v3198
  %3359 = vst.msk [vmem:[#allocation2 + $0x108] sm:$0xff] %vm3325, %v3200
  %3360 = vst.msk [vmem:[#allocation2 + $0x110] sm:$0xff] %vm3325, %v3202
  %3361 = vst.msk [vmem:[#allocation2 + $0x118] sm:$0xff] %vm3325, %v3204
  %3362 = vst.msk [vmem:[#allocation2 + $0x120] sm:$0xff] %vm3325, %v3206
  %3363 = vst.msk [vmem:[#allocation2 + $0x128] sm:$0xff] %vm3325, %v3208
  %3364 = vst.msk [vmem:[#allocation2 + $0x130] sm:$0xff] %vm3325, %v3210
  %3365 = vst.msk [vmem:[#allocation2 + $0x138] sm:$0xff] %vm3325, %v3212
  %3366 = vst.msk [vmem:[#allocation2 + $0x140] sm:$0xff] %vm3325, %v3214
  %3367 = vst.msk [vmem:[#allocation2 + $0x148] sm:$0xff] %vm3325, %v3216
  %3368 = vst.msk [vmem:[#allocation2 + $0x150] sm:$0xff] %vm3325, %v3218
  %3369 = vst.msk [vmem:[#allocation2 + $0x158] sm:$0xff] %vm3325, %v3220
  %3370 = vst.msk [vmem:[#allocation2 + $0x160] sm:$0xff] %vm3325, %v3222
  %3371 = vst.msk [vmem:[#allocation2 + $0x168] sm:$0xff] %vm3325, %v3224
  %3372 = vst.msk [vmem:[#allocation2 + $0x170] sm:$0xff] %vm3325, %v3226
  %3373 = vst.msk [vmem:[#allocation2 + $0x178] sm:$0xff] %vm3325, %v3228
  %3374 = vst.msk [vmem:[#allocation2 + $0x180] sm:$0xff] %vm3325, %v3230
  %3375 = vst.msk [vmem:[#allocation2 + $0x188] sm:$0xff] %vm3325, %v3232
  %3376 = vst.msk [vmem:[#allocation2 + $0x190] sm:$0xff] %vm3325, %v3234
  %3377 = vst.msk [vmem:[#allocation2 + $0x198] sm:$0xff] %vm3325, %v3236
  %3378 = vst.msk [vmem:[#allocation2 + $0x1a0] sm:$0xff] %vm3325, %v3238
  %3379 = vst.msk [vmem:[#allocation2 + $0x1a8] sm:$0xff] %vm3325, %v3240
  %3380 = vst.msk [vmem:[#allocation2 + $0x1b0] sm:$0xff] %vm3325, %v3242
  %3381 = vst.msk [vmem:[#allocation2 + $0x1b8] sm:$0xff] %vm3325, %v3244
  %3382 = vst.msk [vmem:[#allocation2 + $0x1c0] sm:$0xff] %vm3325, %v3246
  %3383 = vst.msk [vmem:[#allocation2 + $0x1c8] sm:$0xff] %vm3325, %v3248
  %3384 = vst.msk [vmem:[#allocation2 + $0x1d0] sm:$0xff] %vm3325, %v3250
  %3385 = vst.msk [vmem:[#allocation2 + $0x1d8] sm:$0xff] %vm3325, %v3252
  %3386 = vst.msk [vmem:[#allocation2 + $0x1e0] sm:$0xff] %vm3325, %v3254
  %3387 = vst.msk [vmem:[#allocation2 + $0x1e8] sm:$0xff] %vm3325, %v3256
  %3388 = vst.msk [vmem:[#allocation2 + $0x1f0] sm:$0xff] %vm3325, %v3258
  %3389 = vst.msk [vmem:[#allocation2 + $0x1f8] sm:$0xff] %vm3325, %v3260
  %s3390 = scalar_lea.vmem %s0, 152
  %v3391 = vld [vmem:[%s3390] sm:$0xf]
  %v3392 = vld [vmem:[%s3390 + $0x8] sm:$0xf]
  %v3393 = vld [vmem:[%s3390 + $0x10] sm:$0xf]
  %v3394 = vld [vmem:[%s3390 + $0x18] sm:$0xf]
  %v3395 = vld [vmem:[%s3390 + $0x20] sm:$0xf]
  %v3396 = vld [vmem:[%s3390 + $0x28] sm:$0xf]
  %v3397 = vld [vmem:[%s3390 + $0x30] sm:$0xf]
  %v3398 = vld [vmem:[%s3390 + $0x38] sm:$0xf]
  %v3399 = vld [vmem:[%s3390 + $0x90] sm:$0xf]
  %v3400 = vld [vmem:[%s3390 + $0x98] sm:$0xf]
  %v3401 = vld [vmem:[%s3390 + $0xa0] sm:$0xf]
  %v3402 = vld [vmem:[%s3390 + $0xa8] sm:$0xf]
  %v3403 = vld [vmem:[%s3390 + $0xb0] sm:$0xf]
  %v3404 = vld [vmem:[%s3390 + $0xb8] sm:$0xf]
  %v3405 = vld [vmem:[%s3390 + $0xc0] sm:$0xf]
  %v3406 = vld [vmem:[%s3390 + $0xc8] sm:$0xf]
  %v3407 = vld [vmem:[%s3390 + $0x120] sm:$0xf]
  %v3408 = vld [vmem:[%s3390 + $0x128] sm:$0xf]
  %v3409 = vld [vmem:[%s3390 + $0x130] sm:$0xf]
  %v3410 = vld [vmem:[%s3390 + $0x138] sm:$0xf]
  %v3411 = vld [vmem:[%s3390 + $0x140] sm:$0xf]
  %v3412 = vld [vmem:[%s3390 + $0x148] sm:$0xf]
  %v3413 = vld [vmem:[%s3390 + $0x150] sm:$0xf]
  %v3414 = vld [vmem:[%s3390 + $0x158] sm:$0xf]
  %v3415 = vld [vmem:[%s3390 + $0x1b0] sm:$0xf]
  %v3416 = vld [vmem:[%s3390 + $0x1b8] sm:$0xf]
  %v3417 = vld [vmem:[%s3390 + $0x1c0] sm:$0xf]
  %v3418 = vld [vmem:[%s3390 + $0x1c8] sm:$0xf]
  %v3419 = vld [vmem:[%s3390 + $0x1d0] sm:$0xf]
  %v3420 = vld [vmem:[%s3390 + $0x1d8] sm:$0xf]
  %v3421 = vld [vmem:[%s3390 + $0x1e0] sm:$0xf]
  %v3422 = vld [vmem:[%s3390 + $0x1e8] sm:$0xf]
  %v3423 = vld [vmem:[%s3390 + $0x240] sm:$0xf]
  %v3424 = vld [vmem:[%s3390 + $0x248] sm:$0xf]
  %v3425 = vld [vmem:[%s3390 + $0x250] sm:$0xf]
  %v3426 = vld [vmem:[%s3390 + $0x258] sm:$0xf]
  %v3427 = vld [vmem:[%s3390 + $0x260] sm:$0xf]
  %v3428 = vld [vmem:[%s3390 + $0x268] sm:$0xf]
  %v3429 = vld [vmem:[%s3390 + $0x270] sm:$0xf]
  %v3430 = vld [vmem:[%s3390 + $0x278] sm:$0xf]
  %v3431 = vld [vmem:[%s3390 + $0x2d0] sm:$0xf]
  %v3432 = vld [vmem:[%s3390 + $0x2d8] sm:$0xf]
  %v3433 = vld [vmem:[%s3390 + $0x2e0] sm:$0xf]
  %v3434 = vld [vmem:[%s3390 + $0x2e8] sm:$0xf]
  %v3435 = vld [vmem:[%s3390 + $0x2f0] sm:$0xf]
  %v3436 = vld [vmem:[%s3390 + $0x2f8] sm:$0xf]
  %v3437 = vld [vmem:[%s3390 + $0x300] sm:$0xf]
  %v3438 = vld [vmem:[%s3390 + $0x308] sm:$0xf]
  %v3439 = vld [vmem:[%s3390 + $0x360] sm:$0xf]
  %v3440 = vld [vmem:[%s3390 + $0x368] sm:$0xf]
  %v3441 = vld [vmem:[%s3390 + $0x370] sm:$0xf]
  %v3442 = vld [vmem:[%s3390 + $0x378] sm:$0xf]
  %v3443 = vld [vmem:[%s3390 + $0x380] sm:$0xf]
  %v3444 = vld [vmem:[%s3390 + $0x388] sm:$0xf]
  %v3445 = vld [vmem:[%s3390 + $0x390] sm:$0xf]
  %v3446 = vld [vmem:[%s3390 + $0x398] sm:$0xf]
  %v3447 = vld [vmem:[%s3390 + $0x3f0] sm:$0xf]
  %v3448 = vld [vmem:[%s3390 + $0x3f8] sm:$0xf]
  %v3449 = vld [vmem:[%s3390 + $0x400] sm:$0xf]
  %v3450 = vld [vmem:[%s3390 + $0x408] sm:$0xf]
  %v3451 = vld [vmem:[%s3390 + $0x410] sm:$0xf]
  %v3452 = vld [vmem:[%s3390 + $0x418] sm:$0xf]
  %v3453 = vld [vmem:[%s3390 + $0x420] sm:$0xf]
  %v3454 = vld [vmem:[%s3390 + $0x428] sm:$0xf]
  %v3455 = vunpack.c.l.bf16 %v3391
  %v3456 = vunpack.c.l.bf16 %v3392
  %v3457 = vunpack.c.l.bf16 %v3393
  %v3458 = vunpack.c.l.bf16 %v3394
  %v3459 = vunpack.c.l.bf16 %v3395
  %v3460 = vunpack.c.l.bf16 %v3396
  %v3461 = vunpack.c.l.bf16 %v3397
  %v3462 = vunpack.c.l.bf16 %v3398
  %v3463 = vunpack.c.l.bf16 %v3399
  %v3464 = vunpack.c.l.bf16 %v3400
  %v3465 = vunpack.c.l.bf16 %v3401
  %v3466 = vunpack.c.l.bf16 %v3402
  %v3467 = vunpack.c.l.bf16 %v3403
  %v3468 = vunpack.c.l.bf16 %v3404
  %v3469 = vunpack.c.l.bf16 %v3405
  %v3470 = vunpack.c.l.bf16 %v3406
  %v3471 = vunpack.c.l.bf16 %v3407
  %v3472 = vunpack.c.l.bf16 %v3408
  %v3473 = vunpack.c.l.bf16 %v3409
  %v3474 = vunpack.c.l.bf16 %v3410
  %v3475 = vunpack.c.l.bf16 %v3411
  %v3476 = vunpack.c.l.bf16 %v3412
  %v3477 = vunpack.c.l.bf16 %v3413
  %v3478 = vunpack.c.l.bf16 %v3414
  %v3479 = vunpack.c.l.bf16 %v3415
  %v3480 = vunpack.c.l.bf16 %v3416
  %v3481 = vunpack.c.l.bf16 %v3417
  %v3482 = vunpack.c.l.bf16 %v3418
  %v3483 = vunpack.c.l.bf16 %v3419
  %v3484 = vunpack.c.l.bf16 %v3420
  %v3485 = vunpack.c.l.bf16 %v3421
  %v3486 = vunpack.c.l.bf16 %v3422
  %v3487 = vunpack.c.l.bf16 %v3423
  %v3488 = vunpack.c.l.bf16 %v3424
  %v3489 = vunpack.c.l.bf16 %v3425
  %v3490 = vunpack.c.l.bf16 %v3426
  %v3491 = vunpack.c.l.bf16 %v3427
  %v3492 = vunpack.c.l.bf16 %v3428
  %v3493 = vunpack.c.l.bf16 %v3429
  %v3494 = vunpack.c.l.bf16 %v3430
  %v3495 = vunpack.c.l.bf16 %v3431
  %v3496 = vunpack.c.l.bf16 %v3432
  %v3497 = vunpack.c.l.bf16 %v3433
  %v3498 = vunpack.c.l.bf16 %v3434
  %v3499 = vunpack.c.l.bf16 %v3435
  %v3500 = vunpack.c.l.bf16 %v3436
  %v3501 = vunpack.c.l.bf16 %v3437
  %v3502 = vunpack.c.l.bf16 %v3438
  %v3503 = vunpack.c.l.bf16 %v3439
  %v3504 = vunpack.c.l.bf16 %v3440
  %v3505 = vunpack.c.l.bf16 %v3441
  %v3506 = vunpack.c.l.bf16 %v3442
  %v3507 = vunpack.c.l.bf16 %v3443
  %v3508 = vunpack.c.l.bf16 %v3444
  %v3509 = vunpack.c.l.bf16 %v3445
  %v3510 = vunpack.c.l.bf16 %v3446
  %v3511 = vunpack.c.l.bf16 %v3447
  %v3512 = vunpack.c.l.bf16 %v3448
  %v3513 = vunpack.c.l.bf16 %v3449
  %v3514 = vunpack.c.l.bf16 %v3450
  %v3515 = vunpack.c.l.bf16 %v3451
  %v3516 = vunpack.c.l.bf16 %v3452
  %v3517 = vunpack.c.l.bf16 %v3453
  %v3518 = vunpack.c.l.bf16 %v3454
  %3583 = vrot.lane.b32.xlu0 %v3455, 64
  %v3584 = vpop.permute.xlu0 %3583
  %3585 = vrot.lane.b32.xlu0 %v3456, 64
  %v3586 = vpop.permute.xlu0 %3585
  %3587 = vrot.lane.b32.xlu0 %v3457, 64
  %v3588 = vpop.permute.xlu0 %3587
  %3589 = vrot.lane.b32.xlu0 %v3458, 64
  %v3590 = vpop.permute.xlu0 %3589
  %3591 = vrot.lane.b32.xlu0 %v3459, 64
  %v3592 = vpop.permute.xlu0 %3591
  %3593 = vrot.lane.b32.xlu0 %v3460, 64
  %v3594 = vpop.permute.xlu0 %3593
  %3595 = vrot.lane.b32.xlu0 %v3461, 64
  %v3596 = vpop.permute.xlu0 %3595
  %3597 = vrot.lane.b32.xlu0 %v3462, 64
  %v3598 = vpop.permute.xlu0 %3597
  %3599 = vrot.lane.b32.xlu0 %v3463, 64
  %v3600 = vpop.permute.xlu0 %3599
  %3601 = vrot.lane.b32.xlu0 %v3464, 64
  %v3602 = vpop.permute.xlu0 %3601
  %3603 = vrot.lane.b32.xlu0 %v3465, 64
  %v3604 = vpop.permute.xlu0 %3603
  %3605 = vrot.lane.b32.xlu0 %v3466, 64
  %v3606 = vpop.permute.xlu0 %3605
  %3607 = vrot.lane.b32.xlu0 %v3467, 64
  %v3608 = vpop.permute.xlu0 %3607
  %3609 = vrot.lane.b32.xlu0 %v3468, 64
  %v3610 = vpop.permute.xlu0 %3609
  %3611 = vrot.lane.b32.xlu0 %v3469, 64
  %v3612 = vpop.permute.xlu0 %3611
  %3613 = vrot.lane.b32.xlu0 %v3470, 64
  %v3614 = vpop.permute.xlu0 %3613
  %3615 = vrot.lane.b32.xlu0 %v3471, 64
  %v3616 = vpop.permute.xlu0 %3615
  %3617 = vrot.lane.b32.xlu0 %v3472, 64
  %v3618 = vpop.permute.xlu0 %3617
  %3619 = vrot.lane.b32.xlu0 %v3473, 64
  %v3620 = vpop.permute.xlu0 %3619
  %3621 = vrot.lane.b32.xlu0 %v3474, 64
  %v3622 = vpop.permute.xlu0 %3621
  %3623 = vrot.lane.b32.xlu0 %v3475, 64
  %v3624 = vpop.permute.xlu0 %3623
  %3625 = vrot.lane.b32.xlu0 %v3476, 64
  %v3626 = vpop.permute.xlu0 %3625
  %3627 = vrot.lane.b32.xlu0 %v3477, 64
  %v3628 = vpop.permute.xlu0 %3627
  %3629 = vrot.lane.b32.xlu0 %v3478, 64
  %v3630 = vpop.permute.xlu0 %3629
  %3631 = vrot.lane.b32.xlu0 %v3479, 64
  %v3632 = vpop.permute.xlu0 %3631
  %3633 = vrot.lane.b32.xlu0 %v3480, 64
  %v3634 = vpop.permute.xlu0 %3633
  %3635 = vrot.lane.b32.xlu0 %v3481, 64
  %v3636 = vpop.permute.xlu0 %3635
  %3637 = vrot.lane.b32.xlu0 %v3482, 64
  %v3638 = vpop.permute.xlu0 %3637
  %3639 = vrot.lane.b32.xlu0 %v3483, 64
  %v3640 = vpop.permute.xlu0 %3639
  %3641 = vrot.lane.b32.xlu0 %v3484, 64
  %v3642 = vpop.permute.xlu0 %3641
  %3643 = vrot.lane.b32.xlu0 %v3485, 64
  %v3644 = vpop.permute.xlu0 %3643
  %3645 = vrot.lane.b32.xlu0 %v3486, 64
  %v3646 = vpop.permute.xlu0 %3645
  %3647 = vrot.lane.b32.xlu0 %v3487, 64
  %v3648 = vpop.permute.xlu0 %3647
  %3649 = vrot.lane.b32.xlu0 %v3488, 64
  %v3650 = vpop.permute.xlu0 %3649
  %3651 = vrot.lane.b32.xlu0 %v3489, 64
  %v3652 = vpop.permute.xlu0 %3651
  %3653 = vrot.lane.b32.xlu0 %v3490, 64
  %v3654 = vpop.permute.xlu0 %3653
  %3655 = vrot.lane.b32.xlu0 %v3491, 64
  %v3656 = vpop.permute.xlu0 %3655
  %3657 = vrot.lane.b32.xlu0 %v3492, 64
  %v3658 = vpop.permute.xlu0 %3657
  %3659 = vrot.lane.b32.xlu0 %v3493, 64
  %v3660 = vpop.permute.xlu0 %3659
  %3661 = vrot.lane.b32.xlu0 %v3494, 64
  %v3662 = vpop.permute.xlu0 %3661
  %3663 = vrot.lane.b32.xlu0 %v3495, 64
  %v3664 = vpop.permute.xlu0 %3663
  %3665 = vrot.lane.b32.xlu0 %v3496, 64
  %v3666 = vpop.permute.xlu0 %3665
  %3667 = vrot.lane.b32.xlu0 %v3497, 64
  %v3668 = vpop.permute.xlu0 %3667
  %3669 = vrot.lane.b32.xlu0 %v3498, 64
  %v3670 = vpop.permute.xlu0 %3669
  %3671 = vrot.lane.b32.xlu0 %v3499, 64
  %v3672 = vpop.permute.xlu0 %3671
  %3673 = vrot.lane.b32.xlu0 %v3500, 64
  %v3674 = vpop.permute.xlu0 %3673
  %3675 = vrot.lane.b32.xlu0 %v3501, 64
  %v3676 = vpop.permute.xlu0 %3675
  %3677 = vrot.lane.b32.xlu0 %v3502, 64
  %v3678 = vpop.permute.xlu0 %3677
  %3679 = vrot.lane.b32.xlu0 %v3503, 64
  %v3680 = vpop.permute.xlu0 %3679
  %3681 = vrot.lane.b32.xlu0 %v3504, 64
  %v3682 = vpop.permute.xlu0 %3681
  %3683 = vrot.lane.b32.xlu0 %v3505, 64
  %v3684 = vpop.permute.xlu0 %3683
  %3685 = vrot.lane.b32.xlu0 %v3506, 64
  %v3686 = vpop.permute.xlu0 %3685
  %3687 = vrot.lane.b32.xlu0 %v3507, 64
  %v3688 = vpop.permute.xlu0 %3687
  %3689 = vrot.lane.b32.xlu0 %v3508, 64
  %v3690 = vpop.permute.xlu0 %3689
  %3691 = vrot.lane.b32.xlu0 %v3509, 64
  %v3692 = vpop.permute.xlu0 %3691
  %3693 = vrot.lane.b32.xlu0 %v3510, 64
  %v3694 = vpop.permute.xlu0 %3693
  %3695 = vrot.lane.b32.xlu0 %v3511, 64
  %v3696 = vpop.permute.xlu0 %3695
  %3697 = vrot.lane.b32.xlu0 %v3512, 64
  %v3698 = vpop.permute.xlu0 %3697
  %3699 = vrot.lane.b32.xlu0 %v3513, 64
  %v3700 = vpop.permute.xlu0 %3699
  %3701 = vrot.lane.b32.xlu0 %v3514, 64
  %v3702 = vpop.permute.xlu0 %3701
  %3703 = vrot.lane.b32.xlu0 %v3515, 64
  %v3704 = vpop.permute.xlu0 %3703
  %3705 = vrot.lane.b32.xlu0 %v3516, 64
  %v3706 = vpop.permute.xlu0 %3705
  %3707 = vrot.lane.b32.xlu0 %v3517, 64
  %v3708 = vpop.permute.xlu0 %3707
  %3709 = vrot.lane.b32.xlu0 %v3518, 64
  %v3710 = vpop.permute.xlu0 %3709
  %vm3775 = vcmask 589312
  %3776 = vst.msk [vmem:[#allocation2] sm:$0xff] %vm3775, %v3584
  %3777 = vst.msk [vmem:[#allocation2 + $0x8] sm:$0xff] %vm3775, %v3586
  %3778 = vst.msk [vmem:[#allocation2 + $0x10] sm:$0xff] %vm3775, %v3588
  %3779 = vst.msk [vmem:[#allocation2 + $0x18] sm:$0xff] %vm3775, %v3590
  %3780 = vst.msk [vmem:[#allocation2 + $0x20] sm:$0xff] %vm3775, %v3592
  %3781 = vst.msk [vmem:[#allocation2 + $0x28] sm:$0xff] %vm3775, %v3594
  %3782 = vst.msk [vmem:[#allocation2 + $0x30] sm:$0xff] %vm3775, %v3596
  %3783 = vst.msk [vmem:[#allocation2 + $0x38] sm:$0xff] %vm3775, %v3598
  %3784 = vst.msk [vmem:[#allocation2 + $0x40] sm:$0xff] %vm3775, %v3600
  %3785 = vst.msk [vmem:[#allocation2 + $0x48] sm:$0xff] %vm3775, %v3602
  %3786 = vst.msk [vmem:[#allocation2 + $0x50] sm:$0xff] %vm3775, %v3604
  %3787 = vst.msk [vmem:[#allocation2 + $0x58] sm:$0xff] %vm3775, %v3606
  %3788 = vst.msk [vmem:[#allocation2 + $0x60] sm:$0xff] %vm3775, %v3608
  %3789 = vst.msk [vmem:[#allocation2 + $0x68] sm:$0xff] %vm3775, %v3610
  %3790 = vst.msk [vmem:[#allocation2 + $0x70] sm:$0xff] %vm3775, %v3612
  %3791 = vst.msk [vmem:[#allocation2 + $0x78] sm:$0xff] %vm3775, %v3614
  %3792 = vst.msk [vmem:[#allocation2 + $0x80] sm:$0xff] %vm3775, %v3616
  %3793 = vst.msk [vmem:[#allocation2 + $0x88] sm:$0xff] %vm3775, %v3618
  %3794 = vst.msk [vmem:[#allocation2 + $0x90] sm:$0xff] %vm3775, %v3620
  %3795 = vst.msk [vmem:[#allocation2 + $0x98] sm:$0xff] %vm3775, %v3622
  %3796 = vst.msk [vmem:[#allocation2 + $0xa0] sm:$0xff] %vm3775, %v3624
  %3797 = vst.msk [vmem:[#allocation2 + $0xa8] sm:$0xff] %vm3775, %v3626
  %3798 = vst.msk [vmem:[#allocation2 + $0xb0] sm:$0xff] %vm3775, %v3628
  %3799 = vst.msk [vmem:[#allocation2 + $0xb8] sm:$0xff] %vm3775, %v3630
  %3800 = vst.msk [vmem:[#allocation2 + $0xc0] sm:$0xff] %vm3775, %v3632
  %3801 = vst.msk [vmem:[#allocation2 + $0xc8] sm:$0xff] %vm3775, %v3634
  %3802 = vst.msk [vmem:[#allocation2 + $0xd0] sm:$0xff] %vm3775, %v3636
  %3803 = vst.msk [vmem:[#allocation2 + $0xd8] sm:$0xff] %vm3775, %v3638
  %3804 = vst.msk [vmem:[#allocation2 + $0xe0] sm:$0xff] %vm3775, %v3640
  %3805 = vst.msk [vmem:[#allocation2 + $0xe8] sm:$0xff] %vm3775, %v3642
  %3806 = vst.msk [vmem:[#allocation2 + $0xf0] sm:$0xff] %vm3775, %v3644
  %3807 = vst.msk [vmem:[#allocation2 + $0xf8] sm:$0xff] %vm3775, %v3646
  %3808 = vst.msk [vmem:[#allocation2 + $0x100] sm:$0xff] %vm3775, %v3648
  %3809 = vst.msk [vmem:[#allocation2 + $0x108] sm:$0xff] %vm3775, %v3650
  %3810 = vst.msk [vmem:[#allocation2 + $0x110] sm:$0xff] %vm3775, %v3652
  %3811 = vst.msk [vmem:[#allocation2 + $0x118] sm:$0xff] %vm3775, %v3654
  %3812 = vst.msk [vmem:[#allocation2 + $0x120] sm:$0xff] %vm3775, %v3656
  %3813 = vst.msk [vmem:[#allocation2 + $0x128] sm:$0xff] %vm3775, %v3658
  %3814 = vst.msk [vmem:[#allocation2 + $0x130] sm:$0xff] %vm3775, %v3660
  %3815 = vst.msk [vmem:[#allocation2 + $0x138] sm:$0xff] %vm3775, %v3662
  %3816 = vst.msk [vmem:[#allocation2 + $0x140] sm:$0xff] %vm3775, %v3664
  %3817 = vst.msk [vmem:[#allocation2 + $0x148] sm:$0xff] %vm3775, %v3666
  %3818 = vst.msk [vmem:[#allocation2 + $0x150] sm:$0xff] %vm3775, %v3668
  %3819 = vst.msk [vmem:[#allocation2 + $0x158] sm:$0xff] %vm3775, %v3670
  %3820 = vst.msk [vmem:[#allocation2 + $0x160] sm:$0xff] %vm3775, %v3672
  %3821 = vst.msk [vmem:[#allocation2 + $0x168] sm:$0xff] %vm3775, %v3674
  %3822 = vst.msk [vmem:[#allocation2 + $0x170] sm:$0xff] %vm3775, %v3676
  %3823 = vst.msk [vmem:[#allocation2 + $0x178] sm:$0xff] %vm3775, %v3678
  %3824 = vst.msk [vmem:[#allocation2 + $0x180] sm:$0xff] %vm3775, %v3680
  %3825 = vst.msk [vmem:[#allocation2 + $0x188] sm:$0xff] %vm3775, %v3682
  %3826 = vst.msk [vmem:[#allocation2 + $0x190] sm:$0xff] %vm3775, %v3684
  %3827 = vst.msk [vmem:[#allocation2 + $0x198] sm:$0xff] %vm3775, %v3686
  %3828 = vst.msk [vmem:[#allocation2 + $0x1a0] sm:$0xff] %vm3775, %v3688
  %3829 = vst.msk [vmem:[#allocation2 + $0x1a8] sm:$0xff] %vm3775, %v3690
  %3830 = vst.msk [vmem:[#allocation2 + $0x1b0] sm:$0xff] %vm3775, %v3692
  %3831 = vst.msk [vmem:[#allocation2 + $0x1b8] sm:$0xff] %vm3775, %v3694
  %3832 = vst.msk [vmem:[#allocation2 + $0x1c0] sm:$0xff] %vm3775, %v3696
  %3833 = vst.msk [vmem:[#allocation2 + $0x1c8] sm:$0xff] %vm3775, %v3698
  %3834 = vst.msk [vmem:[#allocation2 + $0x1d0] sm:$0xff] %vm3775, %v3700
  %3835 = vst.msk [vmem:[#allocation2 + $0x1d8] sm:$0xff] %vm3775, %v3702
  %3836 = vst.msk [vmem:[#allocation2 + $0x1e0] sm:$0xff] %vm3775, %v3704
  %3837 = vst.msk [vmem:[#allocation2 + $0x1e8] sm:$0xff] %vm3775, %v3706
  %3838 = vst.msk [vmem:[#allocation2 + $0x1f0] sm:$0xff] %vm3775, %v3708
  %3839 = vst.msk [vmem:[#allocation2 + $0x1f8] sm:$0xff] %vm3775, %v3710
  %v3840 = vld [vmem:[#allocation2] sm:$0xff]
  %v3841 = vld [vmem:[#allocation2 + $0x8] sm:$0xff]
  %v3842 = vld [vmem:[#allocation2 + $0x10] sm:$0xff]
  %v3843 = vld [vmem:[#allocation2 + $0x18] sm:$0xff]
  %v3844 = vld [vmem:[#allocation2 + $0x20] sm:$0xff]
  %v3845 = vld [vmem:[#allocation2 + $0x28] sm:$0xff]
  %v3846 = vld [vmem:[#allocation2 + $0x30] sm:$0xff]
  %v3847 = vld [vmem:[#allocation2 + $0x38] sm:$0xff]
  %v3848 = vld [vmem:[#allocation2 + $0x40] sm:$0xff]
  %v3849 = vld [vmem:[#allocation2 + $0x48] sm:$0xff]
  %v3850 = vld [vmem:[#allocation2 + $0x50] sm:$0xff]
  %v3851 = vld [vmem:[#allocation2 + $0x58] sm:$0xff]
  %v3852 = vld [vmem:[#allocation2 + $0x60] sm:$0xff]
  %v3853 = vld [vmem:[#allocation2 + $0x68] sm:$0xff]
  %v3854 = vld [vmem:[#allocation2 + $0x70] sm:$0xff]
  %v3855 = vld [vmem:[#allocation2 + $0x78] sm:$0xff]
  %v3856 = vld [vmem:[#allocation2 + $0x80] sm:$0xff]
  %v3857 = vld [vmem:[#allocation2 + $0x88] sm:$0xff]
  %v3858 = vld [vmem:[#allocation2 + $0x90] sm:$0xff]
  %v3859 = vld [vmem:[#allocation2 + $0x98] sm:$0xff]
  %v3860 = vld [vmem:[#allocation2 + $0xa0] sm:$0xff]
  %v3861 = vld [vmem:[#allocation2 + $0xa8] sm:$0xff]
  %v3862 = vld [vmem:[#allocation2 + $0xb0] sm:$0xff]
  %v3863 = vld [vmem:[#allocation2 + $0xb8] sm:$0xff]
  %v3864 = vld [vmem:[#allocation2 + $0xc0] sm:$0xff]
  %v3865 = vld [vmem:[#allocation2 + $0xc8] sm:$0xff]
  %v3866 = vld [vmem:[#allocation2 + $0xd0] sm:$0xff]
  %v3867 = vld [vmem:[#allocation2 + $0xd8] sm:$0xff]
  %v3868 = vld [vmem:[#allocation2 + $0xe0] sm:$0xff]
  %v3869 = vld [vmem:[#allocation2 + $0xe8] sm:$0xff]
  %v3870 = vld [vmem:[#allocation2 + $0xf0] sm:$0xff]
  %v3871 = vld [vmem:[#allocation2 + $0xf8] sm:$0xff]
  %v3872 = vld [vmem:[#allocation2 + $0x100] sm:$0xff]
  %v3873 = vld [vmem:[#allocation2 + $0x108] sm:$0xff]
  %v3874 = vld [vmem:[#allocation2 + $0x110] sm:$0xff]
  %v3875 = vld [vmem:[#allocation2 + $0x118] sm:$0xff]
  %v3876 = vld [vmem:[#allocation2 + $0x120] sm:$0xff]
  %v3877 = vld [vmem:[#allocation2 + $0x128] sm:$0xff]
  %v3878 = vld [vmem:[#allocation2 + $0x130] sm:$0xff]
  %v3879 = vld [vmem:[#allocation2 + $0x138] sm:$0xff]
  %v3880 = vld [vmem:[#allocation2 + $0x140] sm:$0xff]
  %v3881 = vld [vmem:[#allocation2 + $0x148] sm:$0xff]
  %v3882 = vld [vmem:[#allocation2 + $0x150] sm:$0xff]
  %v3883 = vld [vmem:[#allocation2 + $0x158] sm:$0xff]
  %v3884 = vld [vmem:[#allocation2 + $0x160] sm:$0xff]
  %v3885 = vld [vmem:[#allocation2 + $0x168] sm:$0xff]
  %v3886 = vld [vmem:[#allocation2 + $0x170] sm:$0xff]
  %v3887 = vld [vmem:[#allocation2 + $0x178] sm:$0xff]
  %v3888 = vld [vmem:[#allocation2 + $0x180] sm:$0xff]
  %v3889 = vld [vmem:[#allocation2 + $0x188] sm:$0xff]
  %v3890 = vld [vmem:[#allocation2 + $0x190] sm:$0xff]
  %v3891 = vld [vmem:[#allocation2 + $0x198] sm:$0xff]
  %v3892 = vld [vmem:[#allocation2 + $0x1a0] sm:$0xff]
  %v3893 = vld [vmem:[#allocation2 + $0x1a8] sm:$0xff]
  %v3894 = vld [vmem:[#allocation2 + $0x1b0] sm:$0xff]
  %v3895 = vld [vmem:[#allocation2 + $0x1b8] sm:$0xff]
  %v3896 = vld [vmem:[#allocation2 + $0x1c0] sm:$0xff]
  %v3897 = vld [vmem:[#allocation2 + $0x1c8] sm:$0xff]
  %v3898 = vld [vmem:[#allocation2 + $0x1d0] sm:$0xff]
  %v3899 = vld [vmem:[#allocation2 + $0x1d8] sm:$0xff]
  %v3900 = vld [vmem:[#allocation2 + $0x1e0] sm:$0xff]
  %v3901 = vld [vmem:[#allocation2 + $0x1e8] sm:$0xff]
  %v3902 = vld [vmem:[#allocation2 + $0x1f0] sm:$0xff]
  %v3903 = vld [vmem:[#allocation2 + $0x1f8] sm:$0xff]
  %v3904 = vpack.c.bf16 %v3841, %v3840
  %v3905 = vpack.c.bf16 %v3843, %v3842
  %v3906 = vpack.c.bf16 %v3845, %v3844
  %v3907 = vpack.c.bf16 %v3847, %v3846
  %v3908 = vpack.c.bf16 %v3849, %v3848
  %v3909 = vpack.c.bf16 %v3851, %v3850
  %v3910 = vpack.c.bf16 %v3853, %v3852
  %v3911 = vpack.c.bf16 %v3855, %v3854
  %v3912 = vpack.c.bf16 %v3857, %v3856
  %v3913 = vpack.c.bf16 %v3859, %v3858
  %v3914 = vpack.c.bf16 %v3861, %v3860
  %v3915 = vpack.c.bf16 %v3863, %v3862
  %v3916 = vpack.c.bf16 %v3865, %v3864
  %v3917 = vpack.c.bf16 %v3867, %v3866
  %v3918 = vpack.c.bf16 %v3869, %v3868
  %v3919 = vpack.c.bf16 %v3871, %v3870
  %v3920 = vpack.c.bf16 %v3873, %v3872
  %v3921 = vpack.c.bf16 %v3875, %v3874
  %v3922 = vpack.c.bf16 %v3877, %v3876
  %v3923 = vpack.c.bf16 %v3879, %v3878
  %v3924 = vpack.c.bf16 %v3881, %v3880
  %v3925 = vpack.c.bf16 %v3883, %v3882
  %v3926 = vpack.c.bf16 %v3885, %v3884
  %v3927 = vpack.c.bf16 %v3887, %v3886
  %v3928 = vpack.c.bf16 %v3889, %v3888
  %v3929 = vpack.c.bf16 %v3891, %v3890
  %v3930 = vpack.c.bf16 %v3893, %v3892
  %v3931 = vpack.c.bf16 %v3895, %v3894
  %v3932 = vpack.c.bf16 %v3897, %v3896
  %v3933 = vpack.c.bf16 %v3899, %v3898
  %v3934 = vpack.c.bf16 %v3901, %v3900
  %v3935 = vpack.c.bf16 %v3903, %v3902
  %v3936 = vld [vmem:[%s1] sm:$0xf]
  %v3937 = vld [vmem:[%s1 + $0x4] sm:$0xf]
  %v3938 = vld [vmem:[%s1 + $0x8] sm:$0xf]
  %v3939 = vld [vmem:[%s1 + $0xc] sm:$0xf]
  %v3940 = vld [vmem:[%s1 + $0x10] sm:$0xf]
  %v3941 = vld [vmem:[%s1 + $0x14] sm:$0xf]
  %v3942 = vld [vmem:[%s1 + $0x18] sm:$0xf]
  %v3943 = vld [vmem:[%s1 + $0x1c] sm:$0xf]
  %v3944 = vld [vmem:[%s1 + $0x20] sm:$0xf]
  %v3945 = vld [vmem:[%s2] sm:$0x1]
  %v3947 = vlaneseq
  %v3948 = vshrl.u32 %v3947, 7
  %v3949 = vsub.s32 0, %v3948
  %v3950 = vrot.slane %v3945, %v3949
  %v3961 = vunpack.c.l.b16 %v3936
  %v3962 = vunpack.c.l.b16 %v3937
  %v3963 = vunpack.c.l.b16 %v3938
  %v3964 = vunpack.c.l.b16 %v3939
  %v3965 = vunpack.c.l.b16 %v3940
  %v3966 = vunpack.c.l.b16 %v3941
  %v3967 = vunpack.c.l.b16 %v3942
  %v3968 = vunpack.c.l.b16 %v3943
  %v3969 = vunpack.c.l.b16 %v3944
  %v3970 = vpack.c.b16 %v3962, %v3961
  %v3971 = vpack.c.b16 %v3964, %v3963
  %v3972 = vpack.c.b16 %v3966, %v3965
  %v3973 = vpack.c.b16 %v3968, %v3967
  %v3974 = vpack.c.b16 %v3969, %v3969
  %vm3979 = vcmask 588800
  %v3981 = vsel %vm3979, %v3904, 0
  %v3984 = vsel %vm3979, %v3905, 0
  %v3987 = vsel %vm3979, %v3906, 0
  %v3990 = vsel %vm3979, %v3907, 0
  %v3993 = vsel %vm3979, %v3908, 0
  %v3996 = vsel %vm3979, %v3909, 0
  %v3999 = vsel %vm3979, %v3910, 0
  %v4002 = vsel %vm3979, %v3911, 0
  %v4005 = vsel %vm3979, %v3912, 0
  %v4008 = vsel %vm3979, %v3913, 0
  %v4011 = vsel %vm3979, %v3914, 0
  %v4014 = vsel %vm3979, %v3915, 0
  %v4017 = vsel %vm3979, %v3916, 0
  %v4020 = vsel %vm3979, %v3917, 0
  %v4023 = vsel %vm3979, %v3918, 0
  %v4026 = vsel %vm3979, %v3919, 0
  %v4029 = vsel %vm3979, %v3920, 0
  %v4032 = vsel %vm3979, %v3921, 0
  %v4035 = vsel %vm3979, %v3922, 0
  %v4038 = vsel %vm3979, %v3923, 0
  %v4041 = vsel %vm3979, %v3924, 0
  %v4044 = vsel %vm3979, %v3925, 0
  %v4047 = vsel %vm3979, %v3926, 0
  %v4050 = vsel %vm3979, %v3927, 0
  %v4053 = vsel %vm3979, %v3928, 0
  %v4056 = vsel %vm3979, %v3929, 0
  %v4059 = vsel %vm3979, %v3930, 0
  %v4062 = vsel %vm3979, %v3931, 0
  %v4065 = vsel %vm3979, %v3932, 0
  %v4068 = vsel %vm3979, %v3933, 0
  %v4071 = vsel %vm3979, %v3934, 0
  %v4074 = vsel %vm3979, %v3935, 0
  %vm4076 = vcmask 1043456
  %v4078 = vsel %vm4076, %v3974, 0
  %4080 = vmatprep.subr.bf16.mxu0 0
  %4081 = vmatpush1.bf16.msra.mxu0 %v3970
  %4082 = vmatprep.subr.bf16.mxu0 0
  %4083 = vmatpush1.bf16.msra.mxu0 %v3971
  %4084 = vmatprep.subr.bf16.mxu0 0
  %4085 = vmatpush1.bf16.msra.mxu0 %v3972
  %4086 = vmatprep.subr.bf16.mxu0 0
  %4087 = vmatpush1.bf16.msra.mxu0 %v3973
  %4088 = vmatprep.subr.bf16.mxu0 0
  %4089 = vmatpush1.bf16.msra.mxu0 %v4078
  %4090 = vmatprep.subr.bf16.mxu0 0
  %4091 = vmatpush1.bf16.msra.mxu0 0
  %4092 = vmatprep.subr.bf16.mxu0 0
  %4093 = vmatpush1.bf16.msra.mxu0 0
  %4094 = vmatprep.subr.bf16.mxu0 0
  %4095 = vmatpush1.bf16.msra.mxu0 0
  %4096 = vmatprep.subr.bf16.mxu0 0
  %4097 = vmatpush1.bf16.msra.mxu0 0
  %4098 = vmatprep.subr.bf16.mxu0 0
  %4099 = vmatpush1.bf16.msra.mxu0 0
  %4100 = vmatprep.subr.bf16.mxu0 0
  %4101 = vmatpush1.bf16.msra.mxu0 0
  %4102 = vmatprep.subr.bf16.mxu0 0
  %4103 = vmatpush1.bf16.msra.mxu0 0
  %4104 = vmatprep.subr.bf16.mxu0 0
  %4105 = vmatpush1.bf16.msra.mxu0 0
  %4106 = vmatprep.subr.bf16.mxu0 0
  %4107 = vmatpush1.bf16.msra.mxu0 0
  %4108 = vmatprep.subr.bf16.mxu0 0
  %4109 = vmatpush1.bf16.msra.mxu0 0
  %4110 = vmatprep.subr.bf16.mxu0 0
  %4111 = vmatpush1.bf16.msra.mxu0 0
  %4112 = vmatprep.mubr.bf16.mxu0 0
  %4113 = vmatmul.mubr.bf16.gmra.mrb[0].mxu0 %v3981
  %v4114 = vpop.f32.mrb[0].mxu0
  %v4115 = vadd.f32 %v3950, %v4114
  %v4116 = vpop.f32.mrb[0].mxu0
  %v4117 = vpop.f32.mrb[0].mxu0
  %v4118 = vadd.f32 %v3950, %v4117
  %v4119 = vpop.f32.mrb[0].mxu0
  %4120 = vmatprep.mubr.bf16.mxu0 0
  %4121 = vmatmul.mubr.bf16.gmra.mrb[0].mxu0 %v3984
  %v4122 = vpop.f32.mrb[0].mxu0
  %v4123 = vadd.f32 %v3950, %v4122
  %v4124 = vpop.f32.mrb[0].mxu0
  %v4125 = vpop.f32.mrb[0].mxu0
  %v4126 = vadd.f32 %v3950, %v4125
  %v4127 = vpop.f32.mrb[0].mxu0
  %4128 = vmatprep.mubr.bf16.mxu0 0
  %4129 = vmatmul.mubr.bf16.gmra.mrb[0].mxu0 %v3987
  %v4130 = vpop.f32.mrb[0].mxu0
  %v4131 = vadd.f32 %v3950, %v4130
  %v4132 = vpop.f32.mrb[0].mxu0
  %v4133 = vpop.f32.mrb[0].mxu0
  %v4134 = vadd.f32 %v3950, %v4133
  %v4135 = vpop.f32.mrb[0].mxu0
  %4136 = vmatprep.mubr.bf16.mxu0 0
  %4137 = vmatmul.mubr.bf16.gmra.mrb[0].mxu0 %v3990
  %v4138 = vpop.f32.mrb[0].mxu0
  %v4139 = vadd.f32 %v3950, %v4138
  %v4140 = vpop.f32.mrb[0].mxu0
  %v4141 = vpop.f32.mrb[0].mxu0
  %v4142 = vadd.f32 %v3950, %v4141
  %v4143 = vpop.f32.mrb[0].mxu0
  %4144 = vmatprep.mubr.bf16.mxu0 0
  %4145 = vmatmul.mubr.bf16.gmra.mrb[0].mxu0 %v3993
  %v4146 = vpop.f32.mrb[0].mxu0
  %v4147 = vadd.f32 %v3950, %v4146
  %v4148 = vpop.f32.mrb[0].mxu0
  %v4149 = vpop.f32.mrb[0].mxu0
  %v4150 = vadd.f32 %v3950, %v4149
  %v4151 = vpop.f32.mrb[0].mxu0
  %4152 = vmatprep.mubr.bf16.mxu0 0
  %4153 = vmatmul.mubr.bf16.gmra.mrb[0].mxu0 %v3996
  %v4154 = vpop.f32.mrb[0].mxu0
  %v4155 = vadd.f32 %v3950, %v4154
  %v4156 = vpop.f32.mrb[0].mxu0
  %v4157 = vpop.f32.mrb[0].mxu0
  %v4158 = vadd.f32 %v3950, %v4157
  %v4159 = vpop.f32.mrb[0].mxu0
  %4160 = vmatprep.mubr.bf16.mxu0 0
  %4161 = vmatmul.mubr.bf16.gmra.mrb[0].mxu0 %v3999
  %v4162 = vpop.f32.mrb[0].mxu0
  %v4163 = vadd.f32 %v3950, %v4162
  %v4164 = vpop.f32.mrb[0].mxu0
  %v4165 = vpop.f32.mrb[0].mxu0
  %v4166 = vadd.f32 %v3950, %v4165
  %v4167 = vpop.f32.mrb[0].mxu0
  %4168 = vmatprep.mubr.bf16.mxu0 0
  %4169 = vmatmul.mubr.bf16.gmra.mrb[0].mxu0 %v4002
  %v4170 = vpop.f32.mrb[0].mxu0
  %v4171 = vadd.f32 %v3950, %v4170
  %v4172 = vpop.f32.mrb[0].mxu0
  %v4173 = vpop.f32.mrb[0].mxu0
  %v4174 = vadd.f32 %v3950, %v4173
  %v4175 = vpop.f32.mrb[0].mxu0
  %4176 = vmatprep.mubr.bf16.mxu0 0
  %4177 = vmatmul.mubr.bf16.gmra.mrb[0].mxu0 %v4005
  %v4178 = vpop.f32.mrb[0].mxu0
  %v4179 = vadd.f32 %v3950, %v4178
  %v4180 = vpop.f32.mrb[0].mxu0
  %v4181 = vpop.f32.mrb[0].mxu0
  %v4182 = vadd.f32 %v3950, %v4181
  %v4183 = vpop.f32.mrb[0].mxu0
  %4184 = vmatprep.mubr.bf16.mxu0 0
  %4185 = vmatmul.mubr.bf16.gmra.mrb[0].mxu0 %v4008
  %v4186 = vpop.f32.mrb[0].mxu0
  %v4187 = vadd.f32 %v3950, %v4186
  %v4188 = vpop.f32.mrb[0].mxu0
  %v4189 = vpop.f32.mrb[0].mxu0
  %v4190 = vadd.f32 %v3950, %v4189
  %v4191 = vpop.f32.mrb[0].mxu0
  %4192 = vmatprep.mubr.bf16.mxu0 0
  %4193 = vmatmul.mubr.bf16.gmra.mrb[0].mxu0 %v4011
  %v4194 = vpop.f32.mrb[0].mxu0
  %v4195 = vadd.f32 %v3950, %v4194
  %v4196 = vpop.f32.mrb[0].mxu0
  %v4197 = vpop.f32.mrb[0].mxu0
  %v4198 = vadd.f32 %v3950, %v4197
  %v4199 = vpop.f32.mrb[0].mxu0
  %4200 = vmatprep.mubr.bf16.mxu0 0
  %4201 = vmatmul.mubr.bf16.gmra.mrb[0].mxu0 %v4014
  %v4202 = vpop.f32.mrb[0].mxu0
  %v4203 = vadd.f32 %v3950, %v4202
  %v4204 = vpop.f32.mrb[0].mxu0
  %v4205 = vpop.f32.mrb[0].mxu0
  %v4206 = vadd.f32 %v3950, %v4205
  %v4207 = vpop.f32.mrb[0].mxu0
  %4208 = vmatprep.mubr.bf16.mxu0 0
  %4209 = vmatmul.mubr.bf16.gmra.mrb[0].mxu0 %v4017
  %v4210 = vpop.f32.mrb[0].mxu0
  %v4211 = vadd.f32 %v3950, %v4210
  %v4212 = vpop.f32.mrb[0].mxu0
  %v4213 = vpop.f32.mrb[0].mxu0
  %v4214 = vadd.f32 %v3950, %v4213
  %v4215 = vpop.f32.mrb[0].mxu0
  %4216 = vmatprep.mubr.bf16.mxu0 0
  %4217 = vmatmul.mubr.bf16.gmra.mrb[0].mxu0 %v4020
  %v4218 = vpop.f32.mrb[0].mxu0
  %v4219 = vadd.f32 %v3950, %v4218
  %v4220 = vpop.f32.mrb[0].mxu0
  %v4221 = vpop.f32.mrb[0].mxu0
  %v4222 = vadd.f32 %v3950, %v4221
  %v4223 = vpop.f32.mrb[0].mxu0
  %4224 = vmatprep.mubr.bf16.mxu0 0
  %4225 = vmatmul.mubr.bf16.gmra.mrb[0].mxu0 %v4023
  %v4226 = vpop.f32.mrb[0].mxu0
  %v4227 = vadd.f32 %v3950, %v4226
  %v4228 = vpop.f32.mrb[0].mxu0
  %v4229 = vpop.f32.mrb[0].mxu0
  %v4230 = vadd.f32 %v3950, %v4229
  %v4231 = vpop.f32.mrb[0].mxu0
  %4232 = vmatprep.mubr.bf16.mxu0 0
  %4233 = vmatmul.mubr.bf16.gmra.mrb[0].mxu0 %v4026
  %v4234 = vpop.f32.mrb[0].mxu0
  %v4235 = vadd.f32 %v3950, %v4234
  %v4236 = vpop.f32.mrb[0].mxu0
  %v4237 = vpop.f32.mrb[0].mxu0
  %v4238 = vadd.f32 %v3950, %v4237
  %v4239 = vpop.f32.mrb[0].mxu0
  %4240 = vmatprep.mubr.bf16.mxu0 0
  %4241 = vmatmul.mubr.bf16.gmra.mrb[0].mxu0 %v4029
  %v4242 = vpop.f32.mrb[0].mxu0
  %v4243 = vadd.f32 %v3950, %v4242
  %v4244 = vpop.f32.mrb[0].mxu0
  %v4245 = vpop.f32.mrb[0].mxu0
  %v4246 = vadd.f32 %v3950, %v4245
  %v4247 = vpop.f32.mrb[0].mxu0
  %4248 = vmatprep.mubr.bf16.mxu0 0
  %4249 = vmatmul.mubr.bf16.gmra.mrb[0].mxu0 %v4032
  %v4250 = vpop.f32.mrb[0].mxu0
  %v4251 = vadd.f32 %v3950, %v4250
  %v4252 = vpop.f32.mrb[0].mxu0
  %v4253 = vpop.f32.mrb[0].mxu0
  %v4254 = vadd.f32 %v3950, %v4253
  %v4255 = vpop.f32.mrb[0].mxu0
  %4256 = vmatprep.mubr.bf16.mxu0 0
  %4257 = vmatmul.mubr.bf16.gmra.mrb[0].mxu0 %v4035
  %v4258 = vpop.f32.mrb[0].mxu0
  %v4259 = vadd.f32 %v3950, %v4258
  %v4260 = vpop.f32.mrb[0].mxu0
  %v4261 = vpop.f32.mrb[0].mxu0
  %v4262 = vadd.f32 %v3950, %v4261
  %v4263 = vpop.f32.mrb[0].mxu0
  %4264 = vmatprep.mubr.bf16.mxu0 0
  %4265 = vmatmul.mubr.bf16.gmra.mrb[0].mxu0 %v4038
  %v4266 = vpop.f32.mrb[0].mxu0
  %v4267 = vadd.f32 %v3950, %v4266
  %v4268 = vpop.f32.mrb[0].mxu0
  %v4269 = vpop.f32.mrb[0].mxu0
  %v4270 = vadd.f32 %v3950, %v4269
  %v4271 = vpop.f32.mrb[0].mxu0
  %4272 = vmatprep.mubr.bf16.mxu0 0
  %4273 = vmatmul.mubr.bf16.gmra.mrb[0].mxu0 %v4041
  %v4274 = vpop.f32.mrb[0].mxu0
  %v4275 = vadd.f32 %v3950, %v4274
  %v4276 = vpop.f32.mrb[0].mxu0
  %v4277 = vpop.f32.mrb[0].mxu0
  %v4278 = vadd.f32 %v3950, %v4277
  %v4279 = vpop.f32.mrb[0].mxu0
  %4280 = vmatprep.mubr.bf16.mxu0 0
  %4281 = vmatmul.mubr.bf16.gmra.mrb[0].mxu0 %v4044
  %v4282 = vpop.f32.mrb[0].mxu0
  %v4283 = vadd.f32 %v3950, %v4282
  %v4284 = vpop.f32.mrb[0].mxu0
  %v4285 = vpop.f32.mrb[0].mxu0
  %v4286 = vadd.f32 %v3950, %v4285
  %v4287 = vpop.f32.mrb[0].mxu0
  %4288 = vmatprep.mubr.bf16.mxu0 0
  %4289 = vmatmul.mubr.bf16.gmra.mrb[0].mxu0 %v4047
  %v4290 = vpop.f32.mrb[0].mxu0
  %v4291 = vadd.f32 %v3950, %v4290
  %v4292 = vpop.f32.mrb[0].mxu0
  %v4293 = vpop.f32.mrb[0].mxu0
  %v4294 = vadd.f32 %v3950, %v4293
  %v4295 = vpop.f32.mrb[0].mxu0
  %4296 = vmatprep.mubr.bf16.mxu0 0
  %4297 = vmatmul.mubr.bf16.gmra.mrb[0].mxu0 %v4050
  %v4298 = vpop.f32.mrb[0].mxu0
  %v4299 = vadd.f32 %v3950, %v4298
  %v4300 = vpop.f32.mrb[0].mxu0
  %v4301 = vpop.f32.mrb[0].mxu0
  %v4302 = vadd.f32 %v3950, %v4301
  %v4303 = vpop.f32.mrb[0].mxu0
  %4304 = vmatprep.mubr.bf16.mxu0 0
  %4305 = vmatmul.mubr.bf16.gmra.mrb[0].mxu0 %v4053
  %v4306 = vpop.f32.mrb[0].mxu0
  %v4307 = vadd.f32 %v3950, %v4306
  %v4308 = vpop.f32.mrb[0].mxu0
  %v4309 = vpop.f32.mrb[0].mxu0
  %v4310 = vadd.f32 %v3950, %v4309
  %v4311 = vpop.f32.mrb[0].mxu0
  %4312 = vmatprep.mubr.bf16.mxu0 0
  %4313 = vmatmul.mubr.bf16.gmra.mrb[0].mxu0 %v4056
  %v4314 = vpop.f32.mrb[0].mxu0
  %v4315 = vadd.f32 %v3950, %v4314
  %v4316 = vpop.f32.mrb[0].mxu0
  %v4317 = vpop.f32.mrb[0].mxu0
  %v4318 = vadd.f32 %v3950, %v4317
  %v4319 = vpop.f32.mrb[0].mxu0
  %4320 = vmatprep.mubr.bf16.mxu0 0
  %4321 = vmatmul.mubr.bf16.gmra.mrb[0].mxu0 %v4059
  %v4322 = vpop.f32.mrb[0].mxu0
  %v4323 = vadd.f32 %v3950, %v4322
  %v4324 = vpop.f32.mrb[0].mxu0
  %v4325 = vpop.f32.mrb[0].mxu0
  %v4326 = vadd.f32 %v3950, %v4325
  %v4327 = vpop.f32.mrb[0].mxu0
  %4328 = vmatprep.mubr.bf16.mxu0 0
  %4329 = vmatmul.mubr.bf16.gmra.mrb[0].mxu0 %v4062
  %v4330 = vpop.f32.mrb[0].mxu0
  %v4331 = vadd.f32 %v3950, %v4330
  %v4332 = vpop.f32.mrb[0].mxu0
  %v4333 = vpop.f32.mrb[0].mxu0
  %v4334 = vadd.f32 %v3950, %v4333
  %v4335 = vpop.f32.mrb[0].mxu0
  %4336 = vmatprep.mubr.bf16.mxu0 0
  %4337 = vmatmul.mubr.bf16.gmra.mrb[0].mxu0 %v4065
  %v4338 = vpop.f32.mrb[0].mxu0
  %v4339 = vadd.f32 %v3950, %v4338
  %v4340 = vpop.f32.mrb[0].mxu0
  %v4341 = vpop.f32.mrb[0].mxu0
  %v4342 = vadd.f32 %v3950, %v4341
  %v4343 = vpop.f32.mrb[0].mxu0
  %4344 = vmatprep.mubr.bf16.mxu0 0
  %4345 = vmatmul.mubr.bf16.gmra.mrb[0].mxu0 %v4068
  %v4346 = vpop.f32.mrb[0].mxu0
  %v4347 = vadd.f32 %v3950, %v4346
  %v4348 = vpop.f32.mrb[0].mxu0
  %v4349 = vpop.f32.mrb[0].mxu0
  %v4350 = vadd.f32 %v3950, %v4349
  %v4351 = vpop.f32.mrb[0].mxu0
  %4352 = vmatprep.mubr.bf16.mxu0 0
  %4353 = vmatmul.mubr.bf16.gmra.mrb[0].mxu0 %v4071
  %v4354 = vpop.f32.mrb[0].mxu0
  %v4355 = vadd.f32 %v3950, %v4354
  %v4356 = vpop.f32.mrb[0].mxu0
  %v4357 = vpop.f32.mrb[0].mxu0
  %v4358 = vadd.f32 %v3950, %v4357
  %v4359 = vpop.f32.mrb[0].mxu0
  %4360 = vmatprep.mubr.bf16.mxu0 0
  %4361 = vmatmul.mubr.bf16.gmra.mrb[0].mxu0 %v4074
  %v4362 = vpop.f32.mrb[0].mxu0
  %v4363 = vadd.f32 %v3950, %v4362
  %v4364 = vpop.f32.mrb[0].mxu0
  %v4365 = vpop.f32.mrb[0].mxu0
  %v4366 = vadd.f32 %v3950, %v4365
  %v4367 = vpop.f32.mrb[0].mxu0
  %4368 = vdwg.mxu0
  %vm4369 = vcmp.gt.f32.partialorder %v4115, 0.0
  %vm4370 = vcmp.gt.f32.partialorder %v4118, 0.0
  %vm4371 = vcmp.gt.f32.partialorder %v4123, 0.0
  %vm4372 = vcmp.gt.f32.partialorder %v4126, 0.0
  %vm4373 = vcmp.gt.f32.partialorder %v4131, 0.0
  %vm4374 = vcmp.gt.f32.partialorder %v4134, 0.0
  %vm4375 = vcmp.gt.f32.partialorder %v4139, 0.0
  %vm4376 = vcmp.gt.f32.partialorder %v4142, 0.0
  %vm4377 = vcmp.gt.f32.partialorder %v4147, 0.0
  %vm4378 = vcmp.gt.f32.partialorder %v4150, 0.0
  %vm4379 = vcmp.gt.f32.partialorder %v4155, 0.0
  %vm4380 = vcmp.gt.f32.partialorder %v4158, 0.0
  %vm4381 = vcmp.gt.f32.partialorder %v4163, 0.0
  %vm4382 = vcmp.gt.f32.partialorder %v4166, 0.0
  %vm4383 = vcmp.gt.f32.partialorder %v4171, 0.0
  %vm4384 = vcmp.gt.f32.partialorder %v4174, 0.0
  %vm4385 = vcmp.gt.f32.partialorder %v4179, 0.0
  %vm4386 = vcmp.gt.f32.partialorder %v4182, 0.0
  %vm4387 = vcmp.gt.f32.partialorder %v4187, 0.0
  %vm4388 = vcmp.gt.f32.partialorder %v4190, 0.0
  %vm4389 = vcmp.gt.f32.partialorder %v4195, 0.0
  %vm4390 = vcmp.gt.f32.partialorder %v4198, 0.0
  %vm4391 = vcmp.gt.f32.partialorder %v4203, 0.0
  %vm4392 = vcmp.gt.f32.partialorder %v4206, 0.0
  %vm4393 = vcmp.gt.f32.partialorder %v4211, 0.0
  %vm4394 = vcmp.gt.f32.partialorder %v4214, 0.0
  %vm4395 = vcmp.gt.f32.partialorder %v4219, 0.0
  %vm4396 = vcmp.gt.f32.partialorder %v4222, 0.0
  %vm4397 = vcmp.gt.f32.partialorder %v4227, 0.0
  %vm4398 = vcmp.gt.f32.partialorder %v4230, 0.0
  %vm4399 = vcmp.gt.f32.partialorder %v4235, 0.0
  %vm4400 = vcmp.gt.f32.partialorder %v4238, 0.0
  %vm4401 = vcmp.gt.f32.partialorder %v4243, 0.0
  %vm4402 = vcmp.gt.f32.partialorder %v4246, 0.0
  %vm4403 = vcmp.gt.f32.partialorder %v4251, 0.0
  %vm4404 = vcmp.gt.f32.partialorder %v4254, 0.0
  %vm4405 = vcmp.gt.f32.partialorder %v4259, 0.0
  %vm4406 = vcmp.gt.f32.partialorder %v4262, 0.0
  %vm4407 = vcmp.gt.f32.partialorder %v4267, 0.0
  %vm4408 = vcmp.gt.f32.partialorder %v4270, 0.0
  %vm4409 = vcmp.gt.f32.partialorder %v4275, 0.0
  %vm4410 = vcmp.gt.f32.partialorder %v4278, 0.0
  %vm4411 = vcmp.gt.f32.partialorder %v4283, 0.0
  %vm4412 = vcmp.gt.f32.partialorder %v4286, 0.0
  %vm4413 = vcmp.gt.f32.partialorder %v4291, 0.0
  %vm4414 = vcmp.gt.f32.partialorder %v4294, 0.0
  %vm4415 = vcmp.gt.f32.partialorder %v4299, 0.0
  %vm4416 = vcmp.gt.f32.partialorder %v4302, 0.0
  %vm4417 = vcmp.gt.f32.partialorder %v4307, 0.0
  %vm4418 = vcmp.gt.f32.partialorder %v4310, 0.0
  %vm4419 = vcmp.gt.f32.partialorder %v4315, 0.0
  %vm4420 = vcmp.gt.f32.partialorder %v4318, 0.0
  %vm4421 = vcmp.gt.f32.partialorder %v4323, 0.0
  %vm4422 = vcmp.gt.f32.partialorder %v4326, 0.0
  %vm4423 = vcmp.gt.f32.partialorder %v4331, 0.0
  %vm4424 = vcmp.gt.f32.partialorder %v4334, 0.0
  %vm4425 = vcmp.gt.f32.partialorder %v4339, 0.0
  %vm4426 = vcmp.gt.f32.partialorder %v4342, 0.0
  %vm4427 = vcmp.gt.f32.partialorder %v4347, 0.0
  %vm4428 = vcmp.gt.f32.partialorder %v4350, 0.0
  %vm4429 = vcmp.gt.f32.partialorder %v4355, 0.0
  %vm4430 = vcmp.gt.f32.partialorder %v4358, 0.0
  %vm4431 = vcmp.gt.f32.partialorder %v4363, 0.0
  %vm4432 = vcmp.gt.f32.partialorder %v4366, 0.0
  %v4433 = vmul.f32 %v4115, 0.2
  %v4434 = vmul.f32 %v4118, 0.2
  %v4435 = vmul.f32 %v4123, 0.2
  %v4436 = vmul.f32 %v4126, 0.2
  %v4437 = vmul.f32 %v4131, 0.2
  %v4438 = vmul.f32 %v4134, 0.2
  %v4439 = vmul.f32 %v4139, 0.2
  %v4440 = vmul.f32 %v4142, 0.2
  %v4441 = vmul.f32 %v4147, 0.2
  %v4442 = vmul.f32 %v4150, 0.2
  %v4443 = vmul.f32 %v4155, 0.2
  %v4444 = vmul.f32 %v4158, 0.2
  %v4445 = vmul.f32 %v4163, 0.2
  %v4446 = vmul.f32 %v4166, 0.2
  %v4447 = vmul.f32 %v4171, 0.2
  %v4448 = vmul.f32 %v4174, 0.2
  %v4449 = vmul.f32 %v4179, 0.2
  %v4450 = vmul.f32 %v4182, 0.2
  %v4451 = vmul.f32 %v4187, 0.2
  %v4452 = vmul.f32 %v4190, 0.2
  %v4453 = vmul.f32 %v4195, 0.2
  %v4454 = vmul.f32 %v4198, 0.2
  %v4455 = vmul.f32 %v4203, 0.2
  %v4456 = vmul.f32 %v4206, 0.2
  %v4457 = vmul.f32 %v4211, 0.2
  %v4458 = vmul.f32 %v4214, 0.2
  %v4459 = vmul.f32 %v4219, 0.2
  %v4460 = vmul.f32 %v4222, 0.2
  %v4461 = vmul.f32 %v4227, 0.2
  %v4462 = vmul.f32 %v4230, 0.2
  %v4463 = vmul.f32 %v4235, 0.2
  %v4464 = vmul.f32 %v4238, 0.2
  %v4465 = vmul.f32 %v4243, 0.2
  %v4466 = vmul.f32 %v4246, 0.2
  %v4467 = vmul.f32 %v4251, 0.2
  %v4468 = vmul.f32 %v4254, 0.2
  %v4469 = vmul.f32 %v4259, 0.2
  %v4470 = vmul.f32 %v4262, 0.2
  %v4471 = vmul.f32 %v4267, 0.2
  %v4472 = vmul.f32 %v4270, 0.2
  %v4473 = vmul.f32 %v4275, 0.2
  %v4474 = vmul.f32 %v4278, 0.2
  %v4475 = vmul.f32 %v4283, 0.2
  %v4476 = vmul.f32 %v4286, 0.2
  %v4477 = vmul.f32 %v4291, 0.2
  %v4478 = vmul.f32 %v4294, 0.2
  %v4479 = vmul.f32 %v4299, 0.2
  %v4480 = vmul.f32 %v4302, 0.2
  %v4481 = vmul.f32 %v4307, 0.2
  %v4482 = vmul.f32 %v4310, 0.2
  %v4483 = vmul.f32 %v4315, 0.2
  %v4484 = vmul.f32 %v4318, 0.2
  %v4485 = vmul.f32 %v4323, 0.2
  %v4486 = vmul.f32 %v4326, 0.2
  %v4487 = vmul.f32 %v4331, 0.2
  %v4488 = vmul.f32 %v4334, 0.2
  %v4489 = vmul.f32 %v4339, 0.2
  %v4490 = vmul.f32 %v4342, 0.2
  %v4491 = vmul.f32 %v4347, 0.2
  %v4492 = vmul.f32 %v4350, 0.2
  %v4493 = vmul.f32 %v4355, 0.2
  %v4494 = vmul.f32 %v4358, 0.2
  %v4495 = vmul.f32 %v4363, 0.2
  %v4496 = vmul.f32 %v4366, 0.2
  %v4497 = vsel %vm4369, %v4115, %v4433
  %v4498 = vsel %vm4370, %v4118, %v4434
  %v4499 = vsel %vm4371, %v4123, %v4435
  %v4500 = vsel %vm4372, %v4126, %v4436
  %v4501 = vsel %vm4373, %v4131, %v4437
  %v4502 = vsel %vm4374, %v4134, %v4438
  %v4503 = vsel %vm4375, %v4139, %v4439
  %v4504 = vsel %vm4376, %v4142, %v4440
  %v4505 = vsel %vm4377, %v4147, %v4441
  %v4506 = vsel %vm4378, %v4150, %v4442
  %v4507 = vsel %vm4379, %v4155, %v4443
  %v4508 = vsel %vm4380, %v4158, %v4444
  %v4509 = vsel %vm4381, %v4163, %v4445
  %v4510 = vsel %vm4382, %v4166, %v4446
  %v4511 = vsel %vm4383, %v4171, %v4447
  %v4512 = vsel %vm4384, %v4174, %v4448
  %v4513 = vsel %vm4385, %v4179, %v4449
  %v4514 = vsel %vm4386, %v4182, %v4450
  %v4515 = vsel %vm4387, %v4187, %v4451
  %v4516 = vsel %vm4388, %v4190, %v4452
  %v4517 = vsel %vm4389, %v4195, %v4453
  %v4518 = vsel %vm4390, %v4198, %v4454
  %v4519 = vsel %vm4391, %v4203, %v4455
  %v4520 = vsel %vm4392, %v4206, %v4456
  %v4521 = vsel %vm4393, %v4211, %v4457
  %v4522 = vsel %vm4394, %v4214, %v4458
  %v4523 = vsel %vm4395, %v4219, %v4459
  %v4524 = vsel %vm4396, %v4222, %v4460
  %v4525 = vsel %vm4397, %v4227, %v4461
  %v4526 = vsel %vm4398, %v4230, %v4462
  %v4527 = vsel %vm4399, %v4235, %v4463
  %v4528 = vsel %vm4400, %v4238, %v4464
  %v4529 = vsel %vm4401, %v4243, %v4465
  %v4530 = vsel %vm4402, %v4246, %v4466
  %v4531 = vsel %vm4403, %v4251, %v4467
  %v4532 = vsel %vm4404, %v4254, %v4468
  %v4533 = vsel %vm4405, %v4259, %v4469
  %v4534 = vsel %vm4406, %v4262, %v4470
  %v4535 = vsel %vm4407, %v4267, %v4471
  %v4536 = vsel %vm4408, %v4270, %v4472
  %v4537 = vsel %vm4409, %v4275, %v4473
  %v4538 = vsel %vm4410, %v4278, %v4474
  %v4539 = vsel %vm4411, %v4283, %v4475
  %v4540 = vsel %vm4412, %v4286, %v4476
  %v4541 = vsel %vm4413, %v4291, %v4477
  %v4542 = vsel %vm4414, %v4294, %v4478
  %v4543 = vsel %vm4415, %v4299, %v4479
  %v4544 = vsel %vm4416, %v4302, %v4480
  %v4545 = vsel %vm4417, %v4307, %v4481
  %v4546 = vsel %vm4418, %v4310, %v4482
  %v4547 = vsel %vm4419, %v4315, %v4483
  %v4548 = vsel %vm4420, %v4318, %v4484
  %v4549 = vsel %vm4421, %v4323, %v4485
  %v4550 = vsel %vm4422, %v4326, %v4486
  %v4551 = vsel %vm4423, %v4331, %v4487
  %v4552 = vsel %vm4424, %v4334, %v4488
  %v4553 = vsel %vm4425, %v4339, %v4489
  %v4554 = vsel %vm4426, %v4342, %v4490
  %v4555 = vsel %vm4427, %v4347, %v4491
  %v4556 = vsel %vm4428, %v4350, %v4492
  %v4557 = vsel %vm4429, %v4355, %v4493
  %v4558 = vsel %vm4430, %v4358, %v4494
  %v4559 = vsel %vm4431, %v4363, %v4495
  %v4560 = vsel %vm4432, %v4366, %v4496
  %vm4561 = vcmask 523264
  %4562 = vst.msk [vmem:[#allocation6] sm:$0xff] %vm4561, 0.0
  %4563 = vst.msk [vmem:[#allocation6 + $0x8] sm:$0xff] %vm4561, 0.0
  %4564 = vst.msk [vmem:[#allocation6 + $0x10] sm:$0xff] %vm4561, 0.0
  %4565 = vst.msk [vmem:[#allocation6 + $0x18] sm:$0xff] %vm4561, 0.0
  %4566 = vst.msk [vmem:[#allocation6 + $0x20] sm:$0xff] %vm4561, 0.0
  %4567 = vst.msk [vmem:[#allocation6 + $0x28] sm:$0xff] %vm4561, 0.0
  %4568 = vst.msk [vmem:[#allocation6 + $0x30] sm:$0xff] %vm4561, 0.0
  %4569 = vst.msk [vmem:[#allocation6 + $0x38] sm:$0xff] %vm4561, 0.0
  %4570 = vst.msk [vmem:[#allocation6 + $0x40] sm:$0xff] %vm4561, 0.0
  %4571 = vst.msk [vmem:[#allocation6 + $0x48] sm:$0xff] %vm4561, 0.0
  %4572 = vst.msk [vmem:[#allocation6 + $0x50] sm:$0xff] %vm4561, 0.0
  %4573 = vst.msk [vmem:[#allocation6 + $0x58] sm:$0xff] %vm4561, 0.0
  %4574 = vst.msk [vmem:[#allocation6 + $0x60] sm:$0xff] %vm4561, 0.0
  %4575 = vst.msk [vmem:[#allocation6 + $0x68] sm:$0xff] %vm4561, 0.0
  %4576 = vst.msk [vmem:[#allocation6 + $0x70] sm:$0xff] %vm4561, 0.0
  %4577 = vst.msk [vmem:[#allocation6 + $0x78] sm:$0xff] %vm4561, 0.0
  %4578 = vst.msk [vmem:[#allocation6 + $0x80] sm:$0xff] %vm4561, 0.0
  %4579 = vst.msk [vmem:[#allocation6 + $0x88] sm:$0xff] %vm4561, 0.0
  %4580 = vst.msk [vmem:[#allocation6 + $0x90] sm:$0xff] %vm4561, 0.0
  %4581 = vst.msk [vmem:[#allocation6 + $0x98] sm:$0xff] %vm4561, 0.0
  %4582 = vst.msk [vmem:[#allocation6 + $0xa0] sm:$0xff] %vm4561, 0.0
  %4583 = vst.msk [vmem:[#allocation6 + $0xa8] sm:$0xff] %vm4561, 0.0
  %4584 = vst.msk [vmem:[#allocation6 + $0xb0] sm:$0xff] %vm4561, 0.0
  %4585 = vst.msk [vmem:[#allocation6 + $0xb8] sm:$0xff] %vm4561, 0.0
  %4586 = vst.msk [vmem:[#allocation6 + $0xc0] sm:$0xff] %vm4561, 0.0
  %4587 = vst.msk [vmem:[#allocation6 + $0xc8] sm:$0xff] %vm4561, 0.0
  %4588 = vst.msk [vmem:[#allocation6 + $0xd0] sm:$0xff] %vm4561, 0.0
  %4589 = vst.msk [vmem:[#allocation6 + $0xd8] sm:$0xff] %vm4561, 0.0
  %4590 = vst.msk [vmem:[#allocation6 + $0xe0] sm:$0xff] %vm4561, 0.0
  %4591 = vst.msk [vmem:[#allocation6 + $0xe8] sm:$0xff] %vm4561, 0.0
  %4592 = vst.msk [vmem:[#allocation6 + $0xf0] sm:$0xff] %vm4561, 0.0
  %4593 = vst.msk [vmem:[#allocation6 + $0xf8] sm:$0xff] %vm4561, 0.0
  %4594 = vst.msk [vmem:[#allocation6 + $0x100] sm:$0xff] %vm4561, 0.0
  %4595 = vst.msk [vmem:[#allocation6 + $0x108] sm:$0xff] %vm4561, 0.0
  %4596 = vst.msk [vmem:[#allocation6 + $0x110] sm:$0xff] %vm4561, 0.0
  %4597 = vst.msk [vmem:[#allocation6 + $0x118] sm:$0xff] %vm4561, 0.0
  %4598 = vst.msk [vmem:[#allocation6 + $0x120] sm:$0xff] %vm4561, 0.0
  %4599 = vst.msk [vmem:[#allocation6 + $0x128] sm:$0xff] %vm4561, 0.0
  %4600 = vst.msk [vmem:[#allocation6 + $0x130] sm:$0xff] %vm4561, 0.0
  %4601 = vst.msk [vmem:[#allocation6 + $0x138] sm:$0xff] %vm4561, 0.0
  %4602 = vst.msk [vmem:[#allocation6 + $0x140] sm:$0xff] %vm4561, 0.0
  %4603 = vst.msk [vmem:[#allocation6 + $0x148] sm:$0xff] %vm4561, 0.0
  %4604 = vst.msk [vmem:[#allocation6 + $0x150] sm:$0xff] %vm4561, 0.0
  %4605 = vst.msk [vmem:[#allocation6 + $0x158] sm:$0xff] %vm4561, 0.0
  %4606 = vst.msk [vmem:[#allocation6 + $0x160] sm:$0xff] %vm4561, 0.0
  %4607 = vst.msk [vmem:[#allocation6 + $0x168] sm:$0xff] %vm4561, 0.0
  %4608 = vst.msk [vmem:[#allocation6 + $0x170] sm:$0xff] %vm4561, 0.0
  %4609 = vst.msk [vmem:[#allocation6 + $0x178] sm:$0xff] %vm4561, 0.0
  %4610 = vst.msk [vmem:[#allocation6 + $0x180] sm:$0xff] %vm4561, 0.0
  %4611 = vst.msk [vmem:[#allocation6 + $0x188] sm:$0xff] %vm4561, 0.0
  %4612 = vst.msk [vmem:[#allocation6 + $0x190] sm:$0xff] %vm4561, 0.0
  %4613 = vst.msk [vmem:[#allocation6 + $0x198] sm:$0xff] %vm4561, 0.0
  %4614 = vst.msk [vmem:[#allocation6 + $0x1a0] sm:$0xff] %vm4561, 0.0
  %4615 = vst.msk [vmem:[#allocation6 + $0x1a8] sm:$0xff] %vm4561, 0.0
  %4616 = vst.msk [vmem:[#allocation6 + $0x1b0] sm:$0xff] %vm4561, 0.0
  %4617 = vst.msk [vmem:[#allocation6 + $0x1b8] sm:$0xff] %vm4561, 0.0
  %4618 = vst.msk [vmem:[#allocation6 + $0x1c0] sm:$0xff] %vm4561, 0.0
  %4619 = vst.msk [vmem:[#allocation6 + $0x1c8] sm:$0xff] %vm4561, 0.0
  %4620 = vst.msk [vmem:[#allocation6 + $0x1d0] sm:$0xff] %vm4561, 0.0
  %4621 = vst.msk [vmem:[#allocation6 + $0x1d8] sm:$0xff] %vm4561, 0.0
  %4622 = vst.msk [vmem:[#allocation6 + $0x1e0] sm:$0xff] %vm4561, 0.0
  %4623 = vst.msk [vmem:[#allocation6 + $0x1e8] sm:$0xff] %vm4561, 0.0
  %4624 = vst.msk [vmem:[#allocation6 + $0x1f0] sm:$0xff] %vm4561, 0.0
  %4625 = vst.msk [vmem:[#allocation6 + $0x1f8] sm:$0xff] %vm4561, 0.0
  %4626 = vst.msk [vmem:[#allocation6 + $0x200] sm:$0xff] %vm4561, 0.0
  %4627 = vst.msk [vmem:[#allocation6 + $0x208] sm:$0xff] %vm4561, 0.0
  %4628 = vst.msk [vmem:[#allocation6 + $0x210] sm:$0xff] %vm4561, 0.0
  %4629 = vst.msk [vmem:[#allocation6 + $0x218] sm:$0xff] %vm4561, 0.0
  %4630 = vst.msk [vmem:[#allocation6 + $0x220] sm:$0xff] %vm4561, 0.0
  %4631 = vst.msk [vmem:[#allocation6 + $0x228] sm:$0xff] %vm4561, 0.0
  %4632 = vst.msk [vmem:[#allocation6 + $0x230] sm:$0xff] %vm4561, 0.0
  %4633 = vst.msk [vmem:[#allocation6 + $0x238] sm:$0xff] %vm4561, 0.0
  %4634 = vst.msk [vmem:[#allocation6 + $0x240] sm:$0xff] %vm4561, 0.0
  %4635 = vst.msk [vmem:[#allocation6 + $0x248] sm:$0xff] %vm4561, 0.0
  %4636 = vst.msk [vmem:[#allocation6 + $0x250] sm:$0xff] %vm4561, 0.0
  %4637 = vst.msk [vmem:[#allocation6 + $0x258] sm:$0xff] %vm4561, 0.0
  %4638 = vst.msk [vmem:[#allocation6 + $0x260] sm:$0xff] %vm4561, 0.0
  %4639 = vst.msk [vmem:[#allocation6 + $0x268] sm:$0xff] %vm4561, 0.0
  %4640 = vst.msk [vmem:[#allocation6 + $0x270] sm:$0xff] %vm4561, 0.0
  %4641 = vst.msk [vmem:[#allocation6 + $0x278] sm:$0xff] %vm4561, 0.0
  %4642 = vst.msk [vmem:[#allocation6 + $0x280] sm:$0xff] %vm4561, 0.0
  %4643 = vst.msk [vmem:[#allocation6 + $0x288] sm:$0xff] %vm4561, 0.0
  %4644 = vst.msk [vmem:[#allocation6 + $0x290] sm:$0xff] %vm4561, 0.0
  %4645 = vst.msk [vmem:[#allocation6 + $0x298] sm:$0xff] %vm4561, 0.0
  %4646 = vst.msk [vmem:[#allocation6 + $0x2a0] sm:$0xff] %vm4561, 0.0
  %4647 = vst.msk [vmem:[#allocation6 + $0x2a8] sm:$0xff] %vm4561, 0.0
  %4648 = vst.msk [vmem:[#allocation6 + $0x2b0] sm:$0xff] %vm4561, 0.0
  %4649 = vst.msk [vmem:[#allocation6 + $0x2b8] sm:$0xff] %vm4561, 0.0
  %4650 = vst.msk [vmem:[#allocation6 + $0x2c0] sm:$0xff] %vm4561, 0.0
  %4651 = vst.msk [vmem:[#allocation6 + $0x2c8] sm:$0xff] %vm4561, 0.0
  %4652 = vst.msk [vmem:[#allocation6 + $0x2d0] sm:$0xff] %vm4561, 0.0
  %4653 = vst.msk [vmem:[#allocation6 + $0x2d8] sm:$0xff] %vm4561, 0.0
  %4654 = vst.msk [vmem:[#allocation6 + $0x2e0] sm:$0xff] %vm4561, 0.0
  %4655 = vst.msk [vmem:[#allocation6 + $0x2e8] sm:$0xff] %vm4561, 0.0
  %4656 = vst.msk [vmem:[#allocation6 + $0x2f0] sm:$0xff] %vm4561, 0.0
  %4657 = vst.msk [vmem:[#allocation6 + $0x2f8] sm:$0xff] %vm4561, 0.0
  %4658 = vst.msk [vmem:[#allocation6 + $0x300] sm:$0xff] %vm4561, 0.0
  %4659 = vst.msk [vmem:[#allocation6 + $0x308] sm:$0xff] %vm4561, 0.0
  %4660 = vst.msk [vmem:[#allocation6 + $0x310] sm:$0xff] %vm4561, 0.0
  %4661 = vst.msk [vmem:[#allocation6 + $0x318] sm:$0xff] %vm4561, 0.0
  %s4662 = scalar_lea.vmem [#allocation6], 88
  %4663 = vst.msk [vmem:[%s4662] sm:$0xff] %vm4561, %v4497
  %4664 = vst.msk [vmem:[%s4662 + $0x8] sm:$0xff] %vm4561, %v4498
  %4665 = vst.msk [vmem:[%s4662 + $0x10] sm:$0xff] %vm4561, %v4499
  %4666 = vst.msk [vmem:[%s4662 + $0x18] sm:$0xff] %vm4561, %v4500
  %4667 = vst.msk [vmem:[%s4662 + $0x20] sm:$0xff] %vm4561, %v4501
  %4668 = vst.msk [vmem:[%s4662 + $0x28] sm:$0xff] %vm4561, %v4502
  %4669 = vst.msk [vmem:[%s4662 + $0x30] sm:$0xff] %vm4561, %v4503
  %4670 = vst.msk [vmem:[%s4662 + $0x38] sm:$0xff] %vm4561, %v4504
  %4671 = vst.msk [vmem:[%s4662 + $0x50] sm:$0xff] %vm4561, %v4505
  %4672 = vst.msk [vmem:[%s4662 + $0x58] sm:$0xff] %vm4561, %v4506
  %4673 = vst.msk [vmem:[%s4662 + $0x60] sm:$0xff] %vm4561, %v4507
  %4674 = vst.msk [vmem:[%s4662 + $0x68] sm:$0xff] %vm4561, %v4508
  %4675 = vst.msk [vmem:[%s4662 + $0x70] sm:$0xff] %vm4561, %v4509
  %4676 = vst.msk [vmem:[%s4662 + $0x78] sm:$0xff] %vm4561, %v4510
  %4677 = vst.msk [vmem:[%s4662 + $0x80] sm:$0xff] %vm4561, %v4511
  %4678 = vst.msk [vmem:[%s4662 + $0x88] sm:$0xff] %vm4561, %v4512
  %4679 = vst.msk [vmem:[%s4662 + $0xa0] sm:$0xff] %vm4561, %v4513
  %4680 = vst.msk [vmem:[%s4662 + $0xa8] sm:$0xff] %vm4561, %v4514
  %4681 = vst.msk [vmem:[%s4662 + $0xb0] sm:$0xff] %vm4561, %v4515
  %4682 = vst.msk [vmem:[%s4662 + $0xb8] sm:$0xff] %vm4561, %v4516
  %4683 = vst.msk [vmem:[%s4662 + $0xc0] sm:$0xff] %vm4561, %v4517
  %4684 = vst.msk [vmem:[%s4662 + $0xc8] sm:$0xff] %vm4561, %v4518
  %4685 = vst.msk [vmem:[%s4662 + $0xd0] sm:$0xff] %vm4561, %v4519
  %4686 = vst.msk [vmem:[%s4662 + $0xd8] sm:$0xff] %vm4561, %v4520
  %4687 = vst.msk [vmem:[%s4662 + $0xf0] sm:$0xff] %vm4561, %v4521
  %4688 = vst.msk [vmem:[%s4662 + $0xf8] sm:$0xff] %vm4561, %v4522
  %4689 = vst.msk [vmem:[%s4662 + $0x100] sm:$0xff] %vm4561, %v4523
  %4690 = vst.msk [vmem:[%s4662 + $0x108] sm:$0xff] %vm4561, %v4524
  %4691 = vst.msk [vmem:[%s4662 + $0x110] sm:$0xff] %vm4561, %v4525
  %4692 = vst.msk [vmem:[%s4662 + $0x118] sm:$0xff] %vm4561, %v4526
  %4693 = vst.msk [vmem:[%s4662 + $0x120] sm:$0xff] %vm4561, %v4527
  %4694 = vst.msk [vmem:[%s4662 + $0x128] sm:$0xff] %vm4561, %v4528
  %4695 = vst.msk [vmem:[%s4662 + $0x140] sm:$0xff] %vm4561, %v4529
  %4696 = vst.msk [vmem:[%s4662 + $0x148] sm:$0xff] %vm4561, %v4530
  %4697 = vst.msk [vmem:[%s4662 + $0x150] sm:$0xff] %vm4561, %v4531
  %4698 = vst.msk [vmem:[%s4662 + $0x158] sm:$0xff] %vm4561, %v4532
  %4699 = vst.msk [vmem:[%s4662 + $0x160] sm:$0xff] %vm4561, %v4533
  %4700 = vst.msk [vmem:[%s4662 + $0x168] sm:$0xff] %vm4561, %v4534
  %4701 = vst.msk [vmem:[%s4662 + $0x170] sm:$0xff] %vm4561, %v4535
  %4702 = vst.msk [vmem:[%s4662 + $0x178] sm:$0xff] %vm4561, %v4536
  %4703 = vst.msk [vmem:[%s4662 + $0x190] sm:$0xff] %vm4561, %v4537
  %4704 = vst.msk [vmem:[%s4662 + $0x198] sm:$0xff] %vm4561, %v4538
  %4705 = vst.msk [vmem:[%s4662 + $0x1a0] sm:$0xff] %vm4561, %v4539
  %4706 = vst.msk [vmem:[%s4662 + $0x1a8] sm:$0xff] %vm4561, %v4540
  %4707 = vst.msk [vmem:[%s4662 + $0x1b0] sm:$0xff] %vm4561, %v4541
  %4708 = vst.msk [vmem:[%s4662 + $0x1b8] sm:$0xff] %vm4561, %v4542
  %4709 = vst.msk [vmem:[%s4662 + $0x1c0] sm:$0xff] %vm4561, %v4543
  %4710 = vst.msk [vmem:[%s4662 + $0x1c8] sm:$0xff] %vm4561, %v4544
  %4711 = vst.msk [vmem:[%s4662 + $0x1e0] sm:$0xff] %vm4561, %v4545
  %4712 = vst.msk [vmem:[%s4662 + $0x1e8] sm:$0xff] %vm4561, %v4546
  %4713 = vst.msk [vmem:[%s4662 + $0x1f0] sm:$0xff] %vm4561, %v4547
  %4714 = vst.msk [vmem:[%s4662 + $0x1f8] sm:$0xff] %vm4561, %v4548
  %4715 = vst.msk [vmem:[%s4662 + $0x200] sm:$0xff] %vm4561, %v4549
  %4716 = vst.msk [vmem:[%s4662 + $0x208] sm:$0xff] %vm4561, %v4550
  %4717 = vst.msk [vmem:[%s4662 + $0x210] sm:$0xff] %vm4561, %v4551
  %4718 = vst.msk [vmem:[%s4662 + $0x218] sm:$0xff] %vm4561, %v4552
  %4719 = vst.msk [vmem:[%s4662 + $0x230] sm:$0xff] %vm4561, %v4553
  %4720 = vst.msk [vmem:[%s4662 + $0x238] sm:$0xff] %vm4561, %v4554
  %4721 = vst.msk [vmem:[%s4662 + $0x240] sm:$0xff] %vm4561, %v4555
  %4722 = vst.msk [vmem:[%s4662 + $0x248] sm:$0xff] %vm4561, %v4556
  %4723 = vst.msk [vmem:[%s4662 + $0x250] sm:$0xff] %vm4561, %v4557
  %4724 = vst.msk [vmem:[%s4662 + $0x258] sm:$0xff] %vm4561, %v4558
  %4725 = vst.msk [vmem:[%s4662 + $0x260] sm:$0xff] %vm4561, %v4559
  %4726 = vst.msk [vmem:[%s4662 + $0x268] sm:$0xff] %vm4561, %v4560
  %v4727 = vld [vmem:[#allocation6] sm:$0xff]
  %v4728 = vld [vmem:[#allocation6 + $0x10] sm:$0xff]
  %v4729 = vld [vmem:[#allocation6 + $0x20] sm:$0xff]
  %v4730 = vld [vmem:[#allocation6 + $0x30] sm:$0xff]
  %v4731 = vld [vmem:[#allocation6 + $0xa0] sm:$0xff]
  %v4732 = vld [vmem:[#allocation6 + $0xb0] sm:$0xff]
  %v4733 = vld [vmem:[#allocation6 + $0xc0] sm:$0xff]
  %v4734 = vld [vmem:[#allocation6 + $0xd0] sm:$0xff]
  %v4735 = vld [vmem:[#allocation6 + $0x140] sm:$0xff]
  %v4736 = vld [vmem:[#allocation6 + $0x150] sm:$0xff]
  %v4737 = vld [vmem:[#allocation6 + $0x160] sm:$0xff]
  %v4738 = vld [vmem:[#allocation6 + $0x170] sm:$0xff]
  %v4739 = vld [vmem:[#allocation6 + $0x1e0] sm:$0xff]
  %v4740 = vld [vmem:[#allocation6 + $0x1f0] sm:$0xff]
  %v4741 = vld [vmem:[#allocation6 + $0x200] sm:$0xff]
  %v4742 = vld [vmem:[#allocation6 + $0x210] sm:$0xff]
  %4743 = vst.msk [vmem:[#allocation3] sm:$0xff] %vm4561, %v4727
  %4744 = vst.msk [vmem:[#allocation3 + $0x28] sm:$0xff] %vm4561, %v4728
  %4745 = vst.msk [vmem:[#allocation3 + $0x50] sm:$0xff] %vm4561, %v4729
  %4746 = vst.msk [vmem:[#allocation3 + $0x78] sm:$0xff] %vm4561, %v4730
  %4747 = vst.msk [vmem:[#allocation3 + $0xa0] sm:$0xff] %vm4561, %v4731
  %4748 = vst.msk [vmem:[#allocation3 + $0xc8] sm:$0xff] %vm4561, %v4732
  %4749 = vst.msk [vmem:[#allocation3 + $0xf0] sm:$0xff] %vm4561, %v4733
  %4750 = vst.msk [vmem:[#allocation3 + $0x118] sm:$0xff] %vm4561, %v4734
  %4751 = vst.msk [vmem:[#allocation3 + $0x140] sm:$0xff] %vm4561, %v4735
  %4752 = vst.msk [vmem:[#allocation3 + $0x168] sm:$0xff] %vm4561, %v4736
  %4753 = vst.msk [vmem:[#allocation3 + $0x190] sm:$0xff] %vm4561, %v4737
  %4754 = vst.msk [vmem:[#allocation3 + $0x1b8] sm:$0xff] %vm4561, %v4738
  %4755 = vst.msk [vmem:[#allocation3 + $0x1e0] sm:$0xff] %vm4561, %v4739
  %4756 = vst.msk [vmem:[#allocation3 + $0x208] sm:$0xff] %vm4561, %v4740
  %4757 = vst.msk [vmem:[#allocation3 + $0x230] sm:$0xff] %vm4561, %v4741
  %4758 = vst.msk [vmem:[#allocation3 + $0x258] sm:$0xff] %vm4561, %v4742
  %s4759 = scalar_lea.vmem [#allocation6], 8
  %v4760 = vld [vmem:[%s4759] sm:$0xff]
  %v4761 = vld [vmem:[%s4759 + $0x10] sm:$0xff]
  %v4762 = vld [vmem:[%s4759 + $0x20] sm:$0xff]
  %v4763 = vld [vmem:[%s4759 + $0x30] sm:$0xff]
  %v4764 = vld [vmem:[%s4759 + $0xa0] sm:$0xff]
  %v4765 = vld [vmem:[%s4759 + $0xb0] sm:$0xff]
  %v4766 = vld [vmem:[%s4759 + $0xc0] sm:$0xff]
  %v4767 = vld [vmem:[%s4759 + $0xd0] sm:$0xff]
  %v4768 = vld [vmem:[%s4759 + $0x140] sm:$0xff]
  %v4769 = vld [vmem:[%s4759 + $0x150] sm:$0xff]
  %v4770 = vld [vmem:[%s4759 + $0x160] sm:$0xff]
  %v4771 = vld [vmem:[%s4759 + $0x170] sm:$0xff]
  %v4772 = vld [vmem:[%s4759 + $0x1e0] sm:$0xff]
  %v4773 = vld [vmem:[%s4759 + $0x1f0] sm:$0xff]
  %v4774 = vld [vmem:[%s4759 + $0x200] sm:$0xff]
  %v4775 = vld [vmem:[%s4759 + $0x210] sm:$0xff]
  %4792 = vrot.lane.b32.xlu0 %v4760, 64
  %v4793 = vpop.permute.xlu0 %4792
  %4794 = vrot.lane.b32.xlu0 %v4761, 64
  %v4795 = vpop.permute.xlu0 %4794
  %4796 = vrot.lane.b32.xlu0 %v4762, 64
  %v4797 = vpop.permute.xlu0 %4796
  %4798 = vrot.lane.b32.xlu0 %v4763, 64
  %v4799 = vpop.permute.xlu0 %4798
  %4800 = vrot.lane.b32.xlu0 %v4764, 64
  %v4801 = vpop.permute.xlu0 %4800
  %4802 = vrot.lane.b32.xlu0 %v4765, 64
  %v4803 = vpop.permute.xlu0 %4802
  %4804 = vrot.lane.b32.xlu0 %v4766, 64
  %v4805 = vpop.permute.xlu0 %4804
  %4806 = vrot.lane.b32.xlu0 %v4767, 64
  %v4807 = vpop.permute.xlu0 %4806
  %4808 = vrot.lane.b32.xlu0 %v4768, 64
  %v4809 = vpop.permute.xlu0 %4808
  %4810 = vrot.lane.b32.xlu0 %v4769, 64
  %v4811 = vpop.permute.xlu0 %4810
  %4812 = vrot.lane.b32.xlu0 %v4770, 64
  %v4813 = vpop.permute.xlu0 %4812
  %4814 = vrot.lane.b32.xlu0 %v4771, 64
  %v4815 = vpop.permute.xlu0 %4814
  %4816 = vrot.lane.b32.xlu0 %v4772, 64
  %v4817 = vpop.permute.xlu0 %4816
  %4818 = vrot.lane.b32.xlu0 %v4773, 64
  %v4819 = vpop.permute.xlu0 %4818
  %4820 = vrot.lane.b32.xlu0 %v4774, 64
  %v4821 = vpop.permute.xlu0 %4820
  %4822 = vrot.lane.b32.xlu0 %v4775, 64
  %v4823 = vpop.permute.xlu0 %4822
  %vm4840 = vcmask 1048064
  %4841 = vst.msk [vmem:[#allocation3] sm:$0xff] %vm4840, %v4793
  %4842 = vst.msk [vmem:[#allocation3 + $0x28] sm:$0xff] %vm4840, %v4795
  %4843 = vst.msk [vmem:[#allocation3 + $0x50] sm:$0xff] %vm4840, %v4797
  %4844 = vst.msk [vmem:[#allocation3 + $0x78] sm:$0xff] %vm4840, %v4799
  %4845 = vst.msk [vmem:[#allocation3 + $0xa0] sm:$0xff] %vm4840, %v4801
  %4846 = vst.msk [vmem:[#allocation3 + $0xc8] sm:$0xff] %vm4840, %v4803
  %4847 = vst.msk [vmem:[#allocation3 + $0xf0] sm:$0xff] %vm4840, %v4805
  %4848 = vst.msk [vmem:[#allocation3 + $0x118] sm:$0xff] %vm4840, %v4807
  %4849 = vst.msk [vmem:[#allocation3 + $0x140] sm:$0xff] %vm4840, %v4809
  %4850 = vst.msk [vmem:[#allocation3 + $0x168] sm:$0xff] %vm4840, %v4811
  %4851 = vst.msk [vmem:[#allocation3 + $0x190] sm:$0xff] %vm4840, %v4813
  %4852 = vst.msk [vmem:[#allocation3 + $0x1b8] sm:$0xff] %vm4840, %v4815
  %4853 = vst.msk [vmem:[#allocation3 + $0x1e0] sm:$0xff] %vm4840, %v4817
  %4854 = vst.msk [vmem:[#allocation3 + $0x208] sm:$0xff] %vm4840, %v4819
  %4855 = vst.msk [vmem:[#allocation3 + $0x230] sm:$0xff] %vm4840, %v4821
  %4856 = vst.msk [vmem:[#allocation3 + $0x258] sm:$0xff] %vm4840, %v4823
  %s4857 = scalar_lea.vmem [#allocation6], 16
  %v4858 = vld [vmem:[%s4857] sm:$0xff]
  %v4859 = vld [vmem:[%s4857 + $0x10] sm:$0xff]
  %v4860 = vld [vmem:[%s4857 + $0x20] sm:$0xff]
  %v4861 = vld [vmem:[%s4857 + $0x30] sm:$0xff]
  %v4862 = vld [vmem:[%s4857 + $0xa0] sm:$0xff]
  %v4863 = vld [vmem:[%s4857 + $0xb0] sm:$0xff]
  %v4864 = vld [vmem:[%s4857 + $0xc0] sm:$0xff]
  %v4865 = vld [vmem:[%s4857 + $0xd0] sm:$0xff]
  %v4866 = vld [vmem:[%s4857 + $0x140] sm:$0xff]
  %v4867 = vld [vmem:[%s4857 + $0x150] sm:$0xff]
  %v4868 = vld [vmem:[%s4857 + $0x160] sm:$0xff]
  %v4869 = vld [vmem:[%s4857 + $0x170] sm:$0xff]
  %v4870 = vld [vmem:[%s4857 + $0x1e0] sm:$0xff]
  %v4871 = vld [vmem:[%s4857 + $0x1f0] sm:$0xff]
  %v4872 = vld [vmem:[%s4857 + $0x200] sm:$0xff]
  %v4873 = vld [vmem:[%s4857 + $0x210] sm:$0xff]
  %4874 = vst.msk [vmem:[#allocation3 + $0x8] sm:$0xff] %vm4561, %v4858
  %4875 = vst.msk [vmem:[#allocation3 + $0x30] sm:$0xff] %vm4561, %v4859
  %4876 = vst.msk [vmem:[#allocation3 + $0x58] sm:$0xff] %vm4561, %v4860
  %4877 = vst.msk [vmem:[#allocation3 + $0x80] sm:$0xff] %vm4561, %v4861
  %4878 = vst.msk [vmem:[#allocation3 + $0xa8] sm:$0xff] %vm4561, %v4862
  %4879 = vst.msk [vmem:[#allocation3 + $0xd0] sm:$0xff] %vm4561, %v4863
  %4880 = vst.msk [vmem:[#allocation3 + $0xf8] sm:$0xff] %vm4561, %v4864
  %4881 = vst.msk [vmem:[#allocation3 + $0x120] sm:$0xff] %vm4561, %v4865
  %4882 = vst.msk [vmem:[#allocation3 + $0x148] sm:$0xff] %vm4561, %v4866
  %4883 = vst.msk [vmem:[#allocation3 + $0x170] sm:$0xff] %vm4561, %v4867
  %4884 = vst.msk [vmem:[#allocation3 + $0x198] sm:$0xff] %vm4561, %v4868
  %4885 = vst.msk [vmem:[#allocation3 + $0x1c0] sm:$0xff] %vm4561, %v4869
  %4886 = vst.msk [vmem:[#allocation3 + $0x1e8] sm:$0xff] %vm4561, %v4870
  %4887 = vst.msk [vmem:[#allocation3 + $0x210] sm:$0xff] %vm4561, %v4871
  %4888 = vst.msk [vmem:[#allocation3 + $0x238] sm:$0xff] %vm4561, %v4872
  %4889 = vst.msk [vmem:[#allocation3 + $0x260] sm:$0xff] %vm4561, %v4873
  %s4890 = scalar_lea.vmem [#allocation6], 80
  %v4891 = vld [vmem:[%s4890] sm:$0xff]
  %v4892 = vld [vmem:[%s4890 + $0x10] sm:$0xff]
  %v4893 = vld [vmem:[%s4890 + $0x20] sm:$0xff]
  %v4894 = vld [vmem:[%s4890 + $0x30] sm:$0xff]
  %v4895 = vld [vmem:[%s4890 + $0xa0] sm:$0xff]
  %v4896 = vld [vmem:[%s4890 + $0xb0] sm:$0xff]
  %v4897 = vld [vmem:[%s4890 + $0xc0] sm:$0xff]
  %v4898 = vld [vmem:[%s4890 + $0xd0] sm:$0xff]
  %v4899 = vld [vmem:[%s4890 + $0x140] sm:$0xff]
  %v4900 = vld [vmem:[%s4890 + $0x150] sm:$0xff]
  %v4901 = vld [vmem:[%s4890 + $0x160] sm:$0xff]
  %v4902 = vld [vmem:[%s4890 + $0x170] sm:$0xff]
  %v4903 = vld [vmem:[%s4890 + $0x1e0] sm:$0xff]
  %v4904 = vld [vmem:[%s4890 + $0x1f0] sm:$0xff]
  %v4905 = vld [vmem:[%s4890 + $0x200] sm:$0xff]
  %v4906 = vld [vmem:[%s4890 + $0x210] sm:$0xff]
  %4923 = vrot.lane.b32.xlu0 %v4891, 64
  %v4924 = vpop.permute.xlu0 %4923
  %4925 = vrot.lane.b32.xlu0 %v4892, 64
  %v4926 = vpop.permute.xlu0 %4925
  %4927 = vrot.lane.b32.xlu0 %v4893, 64
  %v4928 = vpop.permute.xlu0 %4927
  %4929 = vrot.lane.b32.xlu0 %v4894, 64
  %v4930 = vpop.permute.xlu0 %4929
  %4931 = vrot.lane.b32.xlu0 %v4895, 64
  %v4932 = vpop.permute.xlu0 %4931
  %4933 = vrot.lane.b32.xlu0 %v4896, 64
  %v4934 = vpop.permute.xlu0 %4933
  %4935 = vrot.lane.b32.xlu0 %v4897, 64
  %v4936 = vpop.permute.xlu0 %4935
  %4937 = vrot.lane.b32.xlu0 %v4898, 64
  %v4938 = vpop.permute.xlu0 %4937
  %4939 = vrot.lane.b32.xlu0 %v4899, 64
  %v4940 = vpop.permute.xlu0 %4939
  %4941 = vrot.lane.b32.xlu0 %v4900, 64
  %v4942 = vpop.permute.xlu0 %4941
  %4943 = vrot.lane.b32.xlu0 %v4901, 64
  %v4944 = vpop.permute.xlu0 %4943
  %4945 = vrot.lane.b32.xlu0 %v4902, 64
  %v4946 = vpop.permute.xlu0 %4945
  %4947 = vrot.lane.b32.xlu0 %v4903, 64
  %v4948 = vpop.permute.xlu0 %4947
  %4949 = vrot.lane.b32.xlu0 %v4904, 64
  %v4950 = vpop.permute.xlu0 %4949
  %4951 = vrot.lane.b32.xlu0 %v4905, 64
  %v4952 = vpop.permute.xlu0 %4951
  %4953 = vrot.lane.b32.xlu0 %v4906, 64
  %v4954 = vpop.permute.xlu0 %4953
  %4971 = vst.msk [vmem:[#allocation3 + $0x8] sm:$0xff] %vm4840, %v4924
  %4972 = vst.msk [vmem:[#allocation3 + $0x30] sm:$0xff] %vm4840, %v4926
  %4973 = vst.msk [vmem:[#allocation3 + $0x58] sm:$0xff] %vm4840, %v4928
  %4974 = vst.msk [vmem:[#allocation3 + $0x80] sm:$0xff] %vm4840, %v4930
  %4975 = vst.msk [vmem:[#allocation3 + $0xa8] sm:$0xff] %vm4840, %v4932
  %4976 = vst.msk [vmem:[#allocation3 + $0xd0] sm:$0xff] %vm4840, %v4934
  %4977 = vst.msk [vmem:[#allocation3 + $0xf8] sm:$0xff] %vm4840, %v4936
  %4978 = vst.msk [vmem:[#allocation3 + $0x120] sm:$0xff] %vm4840, %v4938
  %4979 = vst.msk [vmem:[#allocation3 + $0x148] sm:$0xff] %vm4840, %v4940
  %4980 = vst.msk [vmem:[#allocation3 + $0x170] sm:$0xff] %vm4840, %v4942
  %4981 = vst.msk [vmem:[#allocation3 + $0x198] sm:$0xff] %vm4840, %v4944
  %4982 = vst.msk [vmem:[#allocation3 + $0x1c0] sm:$0xff] %vm4840, %v4946
  %4983 = vst.msk [vmem:[#allocation3 + $0x1e8] sm:$0xff] %vm4840, %v4948
  %4984 = vst.msk [vmem:[#allocation3 + $0x210] sm:$0xff] %vm4840, %v4950
  %4985 = vst.msk [vmem:[#allocation3 + $0x238] sm:$0xff] %vm4840, %v4952
  %4986 = vst.msk [vmem:[#allocation3 + $0x260] sm:$0xff] %vm4840, %v4954
  %v4987 = vld [vmem:[%s4662] sm:$0xff]
  %v4988 = vld [vmem:[%s4662 + $0x10] sm:$0xff]
  %v4989 = vld [vmem:[%s4662 + $0x20] sm:$0xff]
  %v4990 = vld [vmem:[%s4662 + $0x30] sm:$0xff]
  %v4991 = vld [vmem:[%s4662 + $0xa0] sm:$0xff]
  %v4992 = vld [vmem:[%s4662 + $0xb0] sm:$0xff]
  %v4993 = vld [vmem:[%s4662 + $0xc0] sm:$0xff]
  %v4994 = vld [vmem:[%s4662 + $0xd0] sm:$0xff]
  %v4995 = vld [vmem:[%s4662 + $0x140] sm:$0xff]
  %v4996 = vld [vmem:[%s4662 + $0x150] sm:$0xff]
  %v4997 = vld [vmem:[%s4662 + $0x160] sm:$0xff]
  %v4998 = vld [vmem:[%s4662 + $0x170] sm:$0xff]
  %v4999 = vld [vmem:[%s4662 + $0x1e0] sm:$0xff]
  %v5000 = vld [vmem:[%s4662 + $0x1f0] sm:$0xff]
  %v5001 = vld [vmem:[%s4662 + $0x200] sm:$0xff]
  %v5002 = vld [vmem:[%s4662 + $0x210] sm:$0xff]
  %5003 = vst.msk [vmem:[#allocation3 + $0x10] sm:$0xff] %vm4561, %v4987
  %5004 = vst.msk [vmem:[#allocation3 + $0x38] sm:$0xff] %vm4561, %v4988
  %5005 = vst.msk [vmem:[#allocation3 + $0x60] sm:$0xff] %vm4561, %v4989
  %5006 = vst.msk [vmem:[#allocation3 + $0x88] sm:$0xff] %vm4561, %v4990
  %5007 = vst.msk [vmem:[#allocation3 + $0xb0] sm:$0xff] %vm4561, %v4991
  %5008 = vst.msk [vmem:[#allocation3 + $0xd8] sm:$0xff] %vm4561, %v4992
  %5009 = vst.msk [vmem:[#allocation3 + $0x100] sm:$0xff] %vm4561, %v4993
  %5010 = vst.msk [vmem:[#allocation3 + $0x128] sm:$0xff] %vm4561, %v4994
  %5011 = vst.msk [vmem:[#allocation3 + $0x150] sm:$0xff] %vm4561, %v4995
  %5012 = vst.msk [vmem:[#allocation3 + $0x178] sm:$0xff] %vm4561, %v4996
  %5013 = vst.msk [vmem:[#allocation3 + $0x1a0] sm:$0xff] %vm4561, %v4997
  %5014 = vst.msk [vmem:[#allocation3 + $0x1c8] sm:$0xff] %vm4561, %v4998
  %5015 = vst.msk [vmem:[#allocation3 + $0x1f0] sm:$0xff] %vm4561, %v4999
  %5016 = vst.msk [vmem:[#allocation3 + $0x218] sm:$0xff] %vm4561, %v5000
  %5017 = vst.msk [vmem:[#allocation3 + $0x240] sm:$0xff] %vm4561, %v5001
  %5018 = vst.msk [vmem:[#allocation3 + $0x268] sm:$0xff] %vm4561, %v5002
  %s5019 = scalar_lea.vmem [#allocation6], 96
  %v5020 = vld [vmem:[%s5019] sm:$0xff]
  %v5021 = vld [vmem:[%s5019 + $0x10] sm:$0xff]
  %v5022 = vld [vmem:[%s5019 + $0x20] sm:$0xff]
  %v5023 = vld [vmem:[%s5019 + $0x30] sm:$0xff]
  %v5024 = vld [vmem:[%s5019 + $0xa0] sm:$0xff]
  %v5025 = vld [vmem:[%s5019 + $0xb0] sm:$0xff]
  %v5026 = vld [vmem:[%s5019 + $0xc0] sm:$0xff]
  %v5027 = vld [vmem:[%s5019 + $0xd0] sm:$0xff]
  %v5028 = vld [vmem:[%s5019 + $0x140] sm:$0xff]
  %v5029 = vld [vmem:[%s5019 + $0x150] sm:$0xff]
  %v5030 = vld [vmem:[%s5019 + $0x160] sm:$0xff]
  %v5031 = vld [vmem:[%s5019 + $0x170] sm:$0xff]
  %v5032 = vld [vmem:[%s5019 + $0x1e0] sm:$0xff]
  %v5033 = vld [vmem:[%s5019 + $0x1f0] sm:$0xff]
  %v5034 = vld [vmem:[%s5019 + $0x200] sm:$0xff]
  %v5035 = vld [vmem:[%s5019 + $0x210] sm:$0xff]
  %5052 = vrot.lane.b32.xlu0 %v5020, 64
  %v5053 = vpop.permute.xlu0 %5052
  %5054 = vrot.lane.b32.xlu0 %v5021, 64
  %v5055 = vpop.permute.xlu0 %5054
  %5056 = vrot.lane.b32.xlu0 %v5022, 64
  %v5057 = vpop.permute.xlu0 %5056
  %5058 = vrot.lane.b32.xlu0 %v5023, 64
  %v5059 = vpop.permute.xlu0 %5058
  %5060 = vrot.lane.b32.xlu0 %v5024, 64
  %v5061 = vpop.permute.xlu0 %5060
  %5062 = vrot.lane.b32.xlu0 %v5025, 64
  %v5063 = vpop.permute.xlu0 %5062
  %5064 = vrot.lane.b32.xlu0 %v5026, 64
  %v5065 = vpop.permute.xlu0 %5064
  %5066 = vrot.lane.b32.xlu0 %v5027, 64
  %v5067 = vpop.permute.xlu0 %5066
  %5068 = vrot.lane.b32.xlu0 %v5028, 64
  %v5069 = vpop.permute.xlu0 %5068
  %5070 = vrot.lane.b32.xlu0 %v5029, 64
  %v5071 = vpop.permute.xlu0 %5070
  %5072 = vrot.lane.b32.xlu0 %v5030, 64
  %v5073 = vpop.permute.xlu0 %5072
  %5074 = vrot.lane.b32.xlu0 %v5031, 64
  %v5075 = vpop.permute.xlu0 %5074
  %5076 = vrot.lane.b32.xlu0 %v5032, 64
  %v5077 = vpop.permute.xlu0 %5076
  %5078 = vrot.lane.b32.xlu0 %v5033, 64
  %v5079 = vpop.permute.xlu0 %5078
  %5080 = vrot.lane.b32.xlu0 %v5034, 64
  %v5081 = vpop.permute.xlu0 %5080
  %5082 = vrot.lane.b32.xlu0 %v5035, 64
  %v5083 = vpop.permute.xlu0 %5082
  %5100 = vst.msk [vmem:[#allocation3 + $0x10] sm:$0xff] %vm4840, %v5053
  %5101 = vst.msk [vmem:[#allocation3 + $0x38] sm:$0xff] %vm4840, %v5055
  %5102 = vst.msk [vmem:[#allocation3 + $0x60] sm:$0xff] %vm4840, %v5057
  %5103 = vst.msk [vmem:[#allocation3 + $0x88] sm:$0xff] %vm4840, %v5059
  %5104 = vst.msk [vmem:[#allocation3 + $0xb0] sm:$0xff] %vm4840, %v5061
  %5105 = vst.msk [vmem:[#allocation3 + $0xd8] sm:$0xff] %vm4840, %v5063
  %5106 = vst.msk [vmem:[#allocation3 + $0x100] sm:$0xff] %vm4840, %v5065
  %5107 = vst.msk [vmem:[#allocation3 + $0x128] sm:$0xff] %vm4840, %v5067
  %5108 = vst.msk [vmem:[#allocation3 + $0x150] sm:$0xff] %vm4840, %v5069
  %5109 = vst.msk [vmem:[#allocation3 + $0x178] sm:$0xff] %vm4840, %v5071
  %5110 = vst.msk [vmem:[#allocation3 + $0x1a0] sm:$0xff] %vm4840, %v5073
  %5111 = vst.msk [vmem:[#allocation3 + $0x1c8] sm:$0xff] %vm4840, %v5075
  %5112 = vst.msk [vmem:[#allocation3 + $0x1f0] sm:$0xff] %vm4840, %v5077
  %5113 = vst.msk [vmem:[#allocation3 + $0x218] sm:$0xff] %vm4840, %v5079
  %5114 = vst.msk [vmem:[#allocation3 + $0x240] sm:$0xff] %vm4840, %v5081
  %5115 = vst.msk [vmem:[#allocation3 + $0x268] sm:$0xff] %vm4840, %v5083
  %s5116 = scalar_lea.vmem [#allocation6], 160
  %v5117 = vld [vmem:[%s5116] sm:$0xff]
  %v5118 = vld [vmem:[%s5116 + $0x10] sm:$0xff]
  %v5119 = vld [vmem:[%s5116 + $0x20] sm:$0xff]
  %v5120 = vld [vmem:[%s5116 + $0x30] sm:$0xff]
  %v5121 = vld [vmem:[%s5116 + $0xa0] sm:$0xff]
  %v5122 = vld [vmem:[%s5116 + $0xb0] sm:$0xff]
  %v5123 = vld [vmem:[%s5116 + $0xc0] sm:$0xff]
  %v5124 = vld [vmem:[%s5116 + $0xd0] sm:$0xff]
  %v5125 = vld [vmem:[%s5116 + $0x140] sm:$0xff]
  %v5126 = vld [vmem:[%s5116 + $0x150] sm:$0xff]
  %v5127 = vld [vmem:[%s5116 + $0x160] sm:$0xff]
  %v5128 = vld [vmem:[%s5116 + $0x170] sm:$0xff]
  %v5129 = vld [vmem:[%s5116 + $0x1e0] sm:$0xff]
  %v5130 = vld [vmem:[%s5116 + $0x1f0] sm:$0xff]
  %v5131 = vld [vmem:[%s5116 + $0x200] sm:$0xff]
  %v5132 = vld [vmem:[%s5116 + $0x210] sm:$0xff]
  %5133 = vst.msk [vmem:[#allocation3 + $0x18] sm:$0xff] %vm4561, %v5117
  %5134 = vst.msk [vmem:[#allocation3 + $0x40] sm:$0xff] %vm4561, %v5118
  %5135 = vst.msk [vmem:[#allocation3 + $0x68] sm:$0xff] %vm4561, %v5119
  %5136 = vst.msk [vmem:[#allocation3 + $0x90] sm:$0xff] %vm4561, %v5120
  %5137 = vst.msk [vmem:[#allocation3 + $0xb8] sm:$0xff] %vm4561, %v5121
  %5138 = vst.msk [vmem:[#allocation3 + $0xe0] sm:$0xff] %vm4561, %v5122
  %5139 = vst.msk [vmem:[#allocation3 + $0x108] sm:$0xff] %vm4561, %v5123
  %5140 = vst.msk [vmem:[#allocation3 + $0x130] sm:$0xff] %vm4561, %v5124
  %5141 = vst.msk [vmem:[#allocation3 + $0x158] sm:$0xff] %vm4561, %v5125
  %5142 = vst.msk [vmem:[#allocation3 + $0x180] sm:$0xff] %vm4561, %v5126
  %5143 = vst.msk [vmem:[#allocation3 + $0x1a8] sm:$0xff] %vm4561, %v5127
  %5144 = vst.msk [vmem:[#allocation3 + $0x1d0] sm:$0xff] %vm4561, %v5128
  %5145 = vst.msk [vmem:[#allocation3 + $0x1f8] sm:$0xff] %vm4561, %v5129
  %5146 = vst.msk [vmem:[#allocation3 + $0x220] sm:$0xff] %vm4561, %v5130
  %5147 = vst.msk [vmem:[#allocation3 + $0x248] sm:$0xff] %vm4561, %v5131
  %5148 = vst.msk [vmem:[#allocation3 + $0x270] sm:$0xff] %vm4561, %v5132
  %s5149 = scalar_lea.vmem [#allocation6], 168
  %v5150 = vld [vmem:[%s5149] sm:$0xff]
  %v5151 = vld [vmem:[%s5149 + $0x10] sm:$0xff]
  %v5152 = vld [vmem:[%s5149 + $0x20] sm:$0xff]
  %v5153 = vld [vmem:[%s5149 + $0x30] sm:$0xff]
  %v5154 = vld [vmem:[%s5149 + $0xa0] sm:$0xff]
  %v5155 = vld [vmem:[%s5149 + $0xb0] sm:$0xff]
  %v5156 = vld [vmem:[%s5149 + $0xc0] sm:$0xff]
  %v5157 = vld [vmem:[%s5149 + $0xd0] sm:$0xff]
  %v5158 = vld [vmem:[%s5149 + $0x140] sm:$0xff]
  %v5159 = vld [vmem:[%s5149 + $0x150] sm:$0xff]
  %v5160 = vld [vmem:[%s5149 + $0x160] sm:$0xff]
  %v5161 = vld [vmem:[%s5149 + $0x170] sm:$0xff]
  %v5162 = vld [vmem:[%s5149 + $0x1e0] sm:$0xff]
  %v5163 = vld [vmem:[%s5149 + $0x1f0] sm:$0xff]
  %v5164 = vld [vmem:[%s5149 + $0x200] sm:$0xff]
  %v5165 = vld [vmem:[%s5149 + $0x210] sm:$0xff]
  %5182 = vrot.lane.b32.xlu0 %v5150, 64
  %v5183 = vpop.permute.xlu0 %5182
  %5184 = vrot.lane.b32.xlu0 %v5151, 64
  %v5185 = vpop.permute.xlu0 %5184
  %5186 = vrot.lane.b32.xlu0 %v5152, 64
  %v5187 = vpop.permute.xlu0 %5186
  %5188 = vrot.lane.b32.xlu0 %v5153, 64
  %v5189 = vpop.permute.xlu0 %5188
  %5190 = vrot.lane.b32.xlu0 %v5154, 64
  %v5191 = vpop.permute.xlu0 %5190
  %5192 = vrot.lane.b32.xlu0 %v5155, 64
  %v5193 = vpop.permute.xlu0 %5192
  %5194 = vrot.lane.b32.xlu0 %v5156, 64
  %v5195 = vpop.permute.xlu0 %5194
  %5196 = vrot.lane.b32.xlu0 %v5157, 64
  %v5197 = vpop.permute.xlu0 %5196
  %5198 = vrot.lane.b32.xlu0 %v5158, 64
  %v5199 = vpop.permute.xlu0 %5198
  %5200 = vrot.lane.b32.xlu0 %v5159, 64
  %v5201 = vpop.permute.xlu0 %5200
  %5202 = vrot.lane.b32.xlu0 %v5160, 64
  %v5203 = vpop.permute.xlu0 %5202
  %5204 = vrot.lane.b32.xlu0 %v5161, 64
  %v5205 = vpop.permute.xlu0 %5204
  %5206 = vrot.lane.b32.xlu0 %v5162, 64
  %v5207 = vpop.permute.xlu0 %5206
  %5208 = vrot.lane.b32.xlu0 %v5163, 64
  %v5209 = vpop.permute.xlu0 %5208
  %5210 = vrot.lane.b32.xlu0 %v5164, 64
  %v5211 = vpop.permute.xlu0 %5210
  %5212 = vrot.lane.b32.xlu0 %v5165, 64
  %v5213 = vpop.permute.xlu0 %5212
  %5230 = vst.msk [vmem:[#allocation3 + $0x18] sm:$0xff] %vm4840, %v5183
  %5231 = vst.msk [vmem:[#allocation3 + $0x40] sm:$0xff] %vm4840, %v5185
  %5232 = vst.msk [vmem:[#allocation3 + $0x68] sm:$0xff] %vm4840, %v5187
  %5233 = vst.msk [vmem:[#allocation3 + $0x90] sm:$0xff] %vm4840, %v5189
  %5234 = vst.msk [vmem:[#allocation3 + $0xb8] sm:$0xff] %vm4840, %v5191
  %5235 = vst.msk [vmem:[#allocation3 + $0xe0] sm:$0xff] %vm4840, %v5193
  %5236 = vst.msk [vmem:[#allocation3 + $0x108] sm:$0xff] %vm4840, %v5195
  %5237 = vst.msk [vmem:[#allocation3 + $0x130] sm:$0xff] %vm4840, %v5197
  %5238 = vst.msk [vmem:[#allocation3 + $0x158] sm:$0xff] %vm4840, %v5199
  %5239 = vst.msk [vmem:[#allocation3 + $0x180] sm:$0xff] %vm4840, %v5201
  %5240 = vst.msk [vmem:[#allocation3 + $0x1a8] sm:$0xff] %vm4840, %v5203
  %5241 = vst.msk [vmem:[#allocation3 + $0x1d0] sm:$0xff] %vm4840, %v5205
  %5242 = vst.msk [vmem:[#allocation3 + $0x1f8] sm:$0xff] %vm4840, %v5207
  %5243 = vst.msk [vmem:[#allocation3 + $0x220] sm:$0xff] %vm4840, %v5209
  %5244 = vst.msk [vmem:[#allocation3 + $0x248] sm:$0xff] %vm4840, %v5211
  %5245 = vst.msk [vmem:[#allocation3 + $0x270] sm:$0xff] %vm4840, %v5213
  %s5246 = scalar_lea.vmem [#allocation6], 176
  %v5247 = vld [vmem:[%s5246] sm:$0xff]
  %v5248 = vld [vmem:[%s5246 + $0x10] sm:$0xff]
  %v5249 = vld [vmem:[%s5246 + $0x20] sm:$0xff]
  %v5250 = vld [vmem:[%s5246 + $0x30] sm:$0xff]
  %v5251 = vld [vmem:[%s5246 + $0xa0] sm:$0xff]
  %v5252 = vld [vmem:[%s5246 + $0xb0] sm:$0xff]
  %v5253 = vld [vmem:[%s5246 + $0xc0] sm:$0xff]
  %v5254 = vld [vmem:[%s5246 + $0xd0] sm:$0xff]
  %v5255 = vld [vmem:[%s5246 + $0x140] sm:$0xff]
  %v5256 = vld [vmem:[%s5246 + $0x150] sm:$0xff]
  %v5257 = vld [vmem:[%s5246 + $0x160] sm:$0xff]
  %v5258 = vld [vmem:[%s5246 + $0x170] sm:$0xff]
  %v5259 = vld [vmem:[%s5246 + $0x1e0] sm:$0xff]
  %v5260 = vld [vmem:[%s5246 + $0x1f0] sm:$0xff]
  %v5261 = vld [vmem:[%s5246 + $0x200] sm:$0xff]
  %v5262 = vld [vmem:[%s5246 + $0x210] sm:$0xff]
  %5263 = vst.msk [vmem:[#allocation3 + $0x20] sm:$0xff] %vm4561, %v5247
  %5264 = vst.msk [vmem:[#allocation3 + $0x48] sm:$0xff] %vm4561, %v5248
  %5265 = vst.msk [vmem:[#allocation3 + $0x70] sm:$0xff] %vm4561, %v5249
  %5266 = vst.msk [vmem:[#allocation3 + $0x98] sm:$0xff] %vm4561, %v5250
  %5267 = vst.msk [vmem:[#allocation3 + $0xc0] sm:$0xff] %vm4561, %v5251
  %5268 = vst.msk [vmem:[#allocation3 + $0xe8] sm:$0xff] %vm4561, %v5252
  %5269 = vst.msk [vmem:[#allocation3 + $0x110] sm:$0xff] %vm4561, %v5253
  %5270 = vst.msk [vmem:[#allocation3 + $0x138] sm:$0xff] %vm4561, %v5254
  %5271 = vst.msk [vmem:[#allocation3 + $0x160] sm:$0xff] %vm4561, %v5255
  %5272 = vst.msk [vmem:[#allocation3 + $0x188] sm:$0xff] %vm4561, %v5256
  %5273 = vst.msk [vmem:[#allocation3 + $0x1b0] sm:$0xff] %vm4561, %v5257
  %5274 = vst.msk [vmem:[#allocation3 + $0x1d8] sm:$0xff] %vm4561, %v5258
  %5275 = vst.msk [vmem:[#allocation3 + $0x200] sm:$0xff] %vm4561, %v5259
  %5276 = vst.msk [vmem:[#allocation3 + $0x228] sm:$0xff] %vm4561, %v5260
  %5277 = vst.msk [vmem:[#allocation3 + $0x250] sm:$0xff] %vm4561, %v5261
  %5278 = vst.msk [vmem:[#allocation3 + $0x278] sm:$0xff] %vm4561, %v5262
  %v5279 = vld [vmem:[#allocation3] sm:$0xff]
  %v5280 = vld [vmem:[#allocation3 + $0x8] sm:$0xff]
  %v5281 = vld [vmem:[#allocation3 + $0x10] sm:$0xff]
  %v5282 = vld [vmem:[#allocation3 + $0x18] sm:$0xff]
  %v5283 = vld [vmem:[#allocation3 + $0x20] sm:$0xff]
  %v5284 = vld [vmem:[#allocation3 + $0x28] sm:$0xff]
  %v5285 = vld [vmem:[#allocation3 + $0x30] sm:$0xff]
  %v5286 = vld [vmem:[#allocation3 + $0x38] sm:$0xff]
  %v5287 = vld [vmem:[#allocation3 + $0x40] sm:$0xff]
  %v5288 = vld [vmem:[#allocation3 + $0x48] sm:$0xff]
  %v5289 = vld [vmem:[#allocation3 + $0x50] sm:$0xff]
  %v5290 = vld [vmem:[#allocation3 + $0x58] sm:$0xff]
  %v5291 = vld [vmem:[#allocation3 + $0x60] sm:$0xff]
  %v5292 = vld [vmem:[#allocation3 + $0x68] sm:$0xff]
  %v5293 = vld [vmem:[#allocation3 + $0x70] sm:$0xff]
  %v5294 = vld [vmem:[#allocation3 + $0x78] sm:$0xff]
  %v5295 = vld [vmem:[#allocation3 + $0x80] sm:$0xff]
  %v5296 = vld [vmem:[#allocation3 + $0x88] sm:$0xff]
  %v5297 = vld [vmem:[#allocation3 + $0x90] sm:$0xff]
  %v5298 = vld [vmem:[#allocation3 + $0x98] sm:$0xff]
  %v5299 = vld [vmem:[#allocation3 + $0xa0] sm:$0xff]
  %v5300 = vld [vmem:[#allocation3 + $0xa8] sm:$0xff]
  %v5301 = vld [vmem:[#allocation3 + $0xb0] sm:$0xff]
  %v5302 = vld [vmem:[#allocation3 + $0xb8] sm:$0xff]
  %v5303 = vld [vmem:[#allocation3 + $0xc0] sm:$0xff]
  %v5304 = vld [vmem:[#allocation3 + $0xc8] sm:$0xff]
  %v5305 = vld [vmem:[#allocation3 + $0xd0] sm:$0xff]
  %v5306 = vld [vmem:[#allocation3 + $0xd8] sm:$0xff]
  %v5307 = vld [vmem:[#allocation3 + $0xe0] sm:$0xff]
  %v5308 = vld [vmem:[#allocation3 + $0xe8] sm:$0xff]
  %v5309 = vld [vmem:[#allocation3 + $0xf0] sm:$0xff]
  %v5310 = vld [vmem:[#allocation3 + $0xf8] sm:$0xff]
  %v5311 = vld [vmem:[#allocation3 + $0x100] sm:$0xff]
  %v5312 = vld [vmem:[#allocation3 + $0x108] sm:$0xff]
  %v5313 = vld [vmem:[#allocation3 + $0x110] sm:$0xff]
  %v5314 = vld [vmem:[#allocation3 + $0x118] sm:$0xff]
  %v5315 = vld [vmem:[#allocation3 + $0x120] sm:$0xff]
  %v5316 = vld [vmem:[#allocation3 + $0x128] sm:$0xff]
  %v5317 = vld [vmem:[#allocation3 + $0x130] sm:$0xff]
  %v5318 = vld [vmem:[#allocation3 + $0x138] sm:$0xff]
  %v5319 = vld [vmem:[#allocation3 + $0x140] sm:$0xff]
  %v5320 = vld [vmem:[#allocation3 + $0x148] sm:$0xff]
  %v5321 = vld [vmem:[#allocation3 + $0x150] sm:$0xff]
  %v5322 = vld [vmem:[#allocation3 + $0x158] sm:$0xff]
  %v5323 = vld [vmem:[#allocation3 + $0x160] sm:$0xff]
  %v5324 = vld [vmem:[#allocation3 + $0x168] sm:$0xff]
  %v5325 = vld [vmem:[#allocation3 + $0x170] sm:$0xff]
  %v5326 = vld [vmem:[#allocation3 + $0x178] sm:$0xff]
  %v5327 = vld [vmem:[#allocation3 + $0x180] sm:$0xff]
  %v5328 = vld [vmem:[#allocation3 + $0x188] sm:$0xff]
  %v5329 = vld [vmem:[#allocation3 + $0x190] sm:$0xff]
  %v5330 = vld [vmem:[#allocation3 + $0x198] sm:$0xff]
  %v5331 = vld [vmem:[#allocation3 + $0x1a0] sm:$0xff]
  %v5332 = vld [vmem:[#allocation3 + $0x1a8] sm:$0xff]
  %v5333 = vld [vmem:[#allocation3 + $0x1b0] sm:$0xff]
  %v5334 = vld [vmem:[#allocation3 + $0x1b8] sm:$0xff]
  %v5335 = vld [vmem:[#allocation3 + $0x1c0] sm:$0xff]
  %v5336 = vld [vmem:[#allocation3 + $0x1c8] sm:$0xff]
  %v5337 = vld [vmem:[#allocation3 + $0x1d0] sm:$0xff]
  %v5338 = vld [vmem:[#allocation3 + $0x1d8] sm:$0xff]
  %v5339 = vld [vmem:[#allocation3 + $0x1e0] sm:$0xff]
  %v5340 = vld [vmem:[#allocation3 + $0x1e8] sm:$0xff]
  %v5341 = vld [vmem:[#allocation3 + $0x1f0] sm:$0xff]
  %v5342 = vld [vmem:[#allocation3 + $0x1f8] sm:$0xff]
  %v5343 = vld [vmem:[#allocation3 + $0x200] sm:$0xff]
  %v5344 = vld [vmem:[#allocation3 + $0x208] sm:$0xff]
  %v5345 = vld [vmem:[#allocation3 + $0x210] sm:$0xff]
  %v5346 = vld [vmem:[#allocation3 + $0x218] sm:$0xff]
  %v5347 = vld [vmem:[#allocation3 + $0x220] sm:$0xff]
  %v5348 = vld [vmem:[#allocation3 + $0x228] sm:$0xff]
  %v5349 = vld [vmem:[#allocation3 + $0x230] sm:$0xff]
  %v5350 = vld [vmem:[#allocation3 + $0x238] sm:$0xff]
  %v5351 = vld [vmem:[#allocation3 + $0x240] sm:$0xff]
  %v5352 = vld [vmem:[#allocation3 + $0x248] sm:$0xff]
  %v5353 = vld [vmem:[#allocation3 + $0x250] sm:$0xff]
  %v5354 = vld [vmem:[#allocation3 + $0x258] sm:$0xff]
  %v5355 = vld [vmem:[#allocation3 + $0x260] sm:$0xff]
  %v5356 = vld [vmem:[#allocation3 + $0x268] sm:$0xff]
  %v5357 = vld [vmem:[#allocation3 + $0x270] sm:$0xff]
  %v5358 = vld [vmem:[#allocation3 + $0x278] sm:$0xff]
  %v5359 = vpack.c.bf16 %v5284, %v5279
  %v5360 = vpack.c.bf16 %v5285, %v5280
  %v5361 = vpack.c.bf16 %v5286, %v5281
  %v5362 = vpack.c.bf16 %v5287, %v5282
  %v5363 = vpack.c.bf16 %v5288, %v5283
  %v5364 = vpack.c.bf16 %v5294, %v5289
  %v5365 = vpack.c.bf16 %v5295, %v5290
  %v5366 = vpack.c.bf16 %v5296, %v5291
  %v5367 = vpack.c.bf16 %v5297, %v5292
  %v5368 = vpack.c.bf16 %v5298, %v5293
  %v5369 = vpack.c.bf16 %v5304, %v5299
  %v5370 = vpack.c.bf16 %v5305, %v5300
  %v5371 = vpack.c.bf16 %v5306, %v5301
  %v5372 = vpack.c.bf16 %v5307, %v5302
  %v5373 = vpack.c.bf16 %v5308, %v5303
  %v5374 = vpack.c.bf16 %v5314, %v5309
  %v5375 = vpack.c.bf16 %v5315, %v5310
  %v5376 = vpack.c.bf16 %v5316, %v5311
  %v5377 = vpack.c.bf16 %v5317, %v5312
  %v5378 = vpack.c.bf16 %v5318, %v5313
  %v5379 = vpack.c.bf16 %v5324, %v5319
  %v5380 = vpack.c.bf16 %v5325, %v5320
  %v5381 = vpack.c.bf16 %v5326, %v5321
  %v5382 = vpack.c.bf16 %v5327, %v5322
  %v5383 = vpack.c.bf16 %v5328, %v5323
  %v5384 = vpack.c.bf16 %v5334, %v5329
  %v5385 = vpack.c.bf16 %v5335, %v5330
  %v5386 = vpack.c.bf16 %v5336, %v5331
  %v5387 = vpack.c.bf16 %v5337, %v5332
  %v5388 = vpack.c.bf16 %v5338, %v5333
  %v5389 = vpack.c.bf16 %v5344, %v5339
  %v5390 = vpack.c.bf16 %v5345, %v5340
  %v5391 = vpack.c.bf16 %v5346, %v5341
  %v5392 = vpack.c.bf16 %v5347, %v5342
  %v5393 = vpack.c.bf16 %v5348, %v5343
  %v5394 = vpack.c.bf16 %v5354, %v5349
  %v5395 = vpack.c.bf16 %v5355, %v5350
  %v5396 = vpack.c.bf16 %v5356, %v5351
  %v5397 = vpack.c.bf16 %v5357, %v5352
  %v5398 = vpack.c.bf16 %v5358, %v5353
  %v5399 = vld [vmem:[%s3] sm:$0xf]
  %v5400 = vld [vmem:[%s3 + $0x4] sm:$0xf]
  %v5401 = vld [vmem:[%s3 + $0x8] sm:$0xf]
  %v5402 = vld [vmem:[%s3 + $0xc] sm:$0xf]
  %v5403 = vld [vmem:[%s3 + $0x10] sm:$0xf]
  %v5404 = vld [vmem:[%s3 + $0x14] sm:$0xf]
  %v5405 = vld [vmem:[%s3 + $0x18] sm:$0xf]
  %v5406 = vld [vmem:[%s3 + $0x1c] sm:$0xf]
  %v5407 = vld [vmem:[%s3 + $0x20] sm:$0xf]
  %v5408 = vld [vmem:[%s3 + $0x24] sm:$0xf]
  %v5409 = vld [vmem:[%s3 + $0x28] sm:$0xf]
  %v5410 = vld [vmem:[%s3 + $0x2c] sm:$0xf]
  %v5411 = vld [vmem:[%s3 + $0x30] sm:$0xf]
  %v5412 = vld [vmem:[%s3 + $0x34] sm:$0xf]
  %v5413 = vld [vmem:[%s3 + $0x38] sm:$0xf]
  %v5414 = vld [vmem:[%s3 + $0x3c] sm:$0xf]
  %v5415 = vld [vmem:[%s3 + $0x40] sm:$0xf]
  %v5416 = vld [vmem:[%s3 + $0x44] sm:$0xf]
  %v5417 = vld [vmem:[%s3 + $0x48] sm:$0xf]
  %v5418 = vld [vmem:[%s3 + $0x4c] sm:$0xf]
  %v5419 = vld [vmem:[%s3 + $0x50] sm:$0xf]
  %v5420 = vld [vmem:[%s3 + $0x54] sm:$0xf]
  %v5421 = vld [vmem:[%s3 + $0x58] sm:$0xf]
  %v5422 = vld [vmem:[%s3 + $0x5c] sm:$0xf]
  %v5423 = vld [vmem:[%s3 + $0x60] sm:$0xf]
  %v5424 = vld [vmem:[%s3 + $0x64] sm:$0xf]
  %v5425 = vld [vmem:[%s3 + $0x68] sm:$0xf]
  %v5426 = vld [vmem:[%s3 + $0x6c] sm:$0xf]
  %v5427 = vld [vmem:[%s3 + $0x70] sm:$0xf]
  %v5428 = vld [vmem:[%s3 + $0x74] sm:$0xf]
  %v5429 = vld [vmem:[%s3 + $0x78] sm:$0xf]
  %v5430 = vld [vmem:[%s3 + $0x7c] sm:$0xf]
  %v5431 = vld [vmem:[%s3 + $0x80] sm:$0xf]
  %v5432 = vld [vmem:[%s3 + $0x84] sm:$0xf]
  %v5433 = vld [vmem:[%s3 + $0x88] sm:$0xf]
  %v5434 = vld [vmem:[%s3 + $0x8c] sm:$0xf]
  %v5435 = vld [vmem:[%s3 + $0x90] sm:$0xf]
  %v5436 = vld [vmem:[%s3 + $0x94] sm:$0xf]
  %v5437 = vld [vmem:[%s3 + $0x98] sm:$0xf]
  %v5438 = vld [vmem:[%s3 + $0x9c] sm:$0xf]
  %v5439 = vld [vmem:[%s3 + $0xa0] sm:$0xf]
  %v5440 = vld [vmem:[%s3 + $0xa4] sm:$0xf]
  %v5441 = vld [vmem:[%s3 + $0xa8] sm:$0xf]
  %v5442 = vld [vmem:[%s3 + $0xac] sm:$0xf]
  %v5443 = vld [vmem:[%s3 + $0xb0] sm:$0xf]
  %v5444 = vld [vmem:[%s3 + $0xb4] sm:$0xf]
  %v5445 = vld [vmem:[%s3 + $0xb8] sm:$0xf]
  %v5446 = vld [vmem:[%s3 + $0xbc] sm:$0xf]
  %v5447 = vld [vmem:[%s3 + $0xc0] sm:$0xf]
  %v5448 = vld [vmem:[%s3 + $0xc4] sm:$0xf]
  %v5449 = vld [vmem:[%s3 + $0xc8] sm:$0xf]
  %v5450 = vld [vmem:[%s3 + $0xcc] sm:$0xf]
  %v5451 = vld [vmem:[%s3 + $0xd0] sm:$0xf]
  %v5452 = vld [vmem:[%s3 + $0xd4] sm:$0xf]
  %v5453 = vld [vmem:[%s3 + $0xd8] sm:$0xf]
  %v5454 = vld [vmem:[%s3 + $0xdc] sm:$0xf]
  %v5455 = vld [vmem:[%s3 + $0xe0] sm:$0xf]
  %v5456 = vld [vmem:[%s3 + $0xe4] sm:$0xf]
  %v5457 = vld [vmem:[%s3 + $0xe8] sm:$0xf]
  %v5458 = vld [vmem:[%s3 + $0xec] sm:$0xf]
  %v5459 = vld [vmem:[%s3 + $0xf0] sm:$0xf]
  %v5460 = vld [vmem:[%s3 + $0xf4] sm:$0xf]
  %v5461 = vld [vmem:[%s3 + $0xf8] sm:$0xf]
  %v5462 = vld [vmem:[%s3 + $0xfc] sm:$0xf]
  %v5463 = vld [vmem:[%s3 + $0x100] sm:$0xf]
  %v5464 = vld [vmem:[%s3 + $0x104] sm:$0xf]
  %v5465 = vld [vmem:[%s3 + $0x108] sm:$0xf]
  %v5466 = vld [vmem:[%s3 + $0x10c] sm:$0xf]
  %v5467 = vld [vmem:[%s3 + $0x110] sm:$0xf]
  %v5468 = vld [vmem:[%s3 + $0x114] sm:$0xf]
  %v5469 = vld [vmem:[%s3 + $0x118] sm:$0xf]
  %v5470 = vld [vmem:[%s3 + $0x11c] sm:$0xf]
  %v5471 = vld [vmem:[%s4] sm:$0x1]
  %v5473 = vlaneseq
  %v5474 = vshrl.u32 %v5473, 7
  %v5475 = vsub.s32 0, %v5474
  %v5476 = vrot.slane %v5471, %v5475
  %v5550 = vunpack.c.l.b16 %v5399
  %v5551 = vunpack.c.l.b16 %v5400
  %v5552 = vunpack.c.l.b16 %v5401
  %v5553 = vunpack.c.l.b16 %v5402
  %v5554 = vunpack.c.l.b16 %v5403
  %v5555 = vunpack.c.l.b16 %v5404
  %v5556 = vunpack.c.l.b16 %v5405
  %v5557 = vunpack.c.l.b16 %v5406
  %v5558 = vunpack.c.l.b16 %v5407
  %v5559 = vunpack.c.l.b16 %v5408
  %v5560 = vunpack.c.l.b16 %v5409
  %v5561 = vunpack.c.l.b16 %v5410
  %v5562 = vunpack.c.l.b16 %v5411
  %v5563 = vunpack.c.l.b16 %v5412
  %v5564 = vunpack.c.l.b16 %v5413
  %v5565 = vunpack.c.l.b16 %v5414
  %v5566 = vunpack.c.l.b16 %v5415
  %v5567 = vunpack.c.l.b16 %v5416
  %v5568 = vunpack.c.l.b16 %v5417
  %v5569 = vunpack.c.l.b16 %v5418
  %v5570 = vunpack.c.l.b16 %v5419
  %v5571 = vunpack.c.l.b16 %v5420
  %v5572 = vunpack.c.l.b16 %v5421
  %v5573 = vunpack.c.l.b16 %v5422
  %v5574 = vunpack.c.l.b16 %v5423
  %v5575 = vunpack.c.l.b16 %v5424
  %v5576 = vunpack.c.l.b16 %v5425
  %v5577 = vunpack.c.l.b16 %v5426
  %v5578 = vunpack.c.l.b16 %v5427
  %v5579 = vunpack.c.l.b16 %v5428
  %v5580 = vunpack.c.l.b16 %v5429
  %v5581 = vunpack.c.l.b16 %v5430
  %v5582 = vunpack.c.l.b16 %v5431
  %v5583 = vunpack.c.l.b16 %v5432
  %v5584 = vunpack.c.l.b16 %v5433
  %v5585 = vunpack.c.l.b16 %v5434
  %v5586 = vunpack.c.l.b16 %v5435
  %v5587 = vunpack.c.l.b16 %v5436
  %v5588 = vunpack.c.l.b16 %v5437
  %v5589 = vunpack.c.l.b16 %v5438
  %v5590 = vunpack.c.l.b16 %v5439
  %v5591 = vunpack.c.l.b16 %v5440
  %v5592 = vunpack.c.l.b16 %v5441
  %v5593 = vunpack.c.l.b16 %v5442
  %v5594 = vunpack.c.l.b16 %v5443
  %v5595 = vunpack.c.l.b16 %v5444
  %v5596 = vunpack.c.l.b16 %v5445
  %v5597 = vunpack.c.l.b16 %v5446
  %v5598 = vunpack.c.l.b16 %v5447
  %v5599 = vunpack.c.l.b16 %v5448
  %v5600 = vunpack.c.l.b16 %v5449
  %v5601 = vunpack.c.l.b16 %v5450
  %v5602 = vunpack.c.l.b16 %v5451
  %v5603 = vunpack.c.l.b16 %v5452
  %v5604 = vunpack.c.l.b16 %v5453
  %v5605 = vunpack.c.l.b16 %v5454
  %v5606 = vunpack.c.l.b16 %v5455
  %v5607 = vunpack.c.l.b16 %v5456
  %v5608 = vunpack.c.l.b16 %v5457
  %v5609 = vunpack.c.l.b16 %v5458
  %v5610 = vunpack.c.l.b16 %v5459
  %v5611 = vunpack.c.l.b16 %v5460
  %v5612 = vunpack.c.l.b16 %v5461
  %v5613 = vunpack.c.l.b16 %v5462
  %v5614 = vunpack.c.l.b16 %v5463
  %v5615 = vunpack.c.l.b16 %v5464
  %v5616 = vunpack.c.l.b16 %v5465
  %v5617 = vunpack.c.l.b16 %v5466
  %v5618 = vunpack.c.l.b16 %v5467
  %v5619 = vunpack.c.l.b16 %v5468
  %v5620 = vunpack.c.l.b16 %v5469
  %v5621 = vunpack.c.l.b16 %v5470
  %v5622 = vpack.c.b16 %v5551, %v5550
  %v5623 = vpack.c.b16 %v5553, %v5552
  %v5624 = vpack.c.b16 %v5555, %v5554
  %v5625 = vpack.c.b16 %v5557, %v5556
  %v5626 = vpack.c.b16 %v5559, %v5558
  %v5627 = vpack.c.b16 %v5561, %v5560
  %v5628 = vpack.c.b16 %v5563, %v5562
  %v5629 = vpack.c.b16 %v5565, %v5564
  %v5630 = vpack.c.b16 %v5567, %v5566
  %v5631 = vpack.c.b16 %v5569, %v5568
  %v5632 = vpack.c.b16 %v5571, %v5570
  %v5633 = vpack.c.b16 %v5573, %v5572
  %v5634 = vpack.c.b16 %v5575, %v5574
  %v5635 = vpack.c.b16 %v5577, %v5576
  %v5636 = vpack.c.b16 %v5579, %v5578
  %v5637 = vpack.c.b16 %v5581, %v5580
  %v5638 = vpack.c.b16 %v5583, %v5582
  %v5639 = vpack.c.b16 %v5585, %v5584
  %v5640 = vpack.c.b16 %v5587, %v5586
  %v5641 = vpack.c.b16 %v5589, %v5588
  %v5642 = vpack.c.b16 %v5591, %v5590
  %v5643 = vpack.c.b16 %v5593, %v5592
  %v5644 = vpack.c.b16 %v5595, %v5594
  %v5645 = vpack.c.b16 %v5597, %v5596
  %v5646 = vpack.c.b16 %v5599, %v5598
  %v5647 = vpack.c.b16 %v5601, %v5600
  %v5648 = vpack.c.b16 %v5603, %v5602
  %v5649 = vpack.c.b16 %v5605, %v5604
  %v5650 = vpack.c.b16 %v5607, %v5606
  %v5651 = vpack.c.b16 %v5609, %v5608
  %v5652 = vpack.c.b16 %v5611, %v5610
  %v5653 = vpack.c.b16 %v5613, %v5612
  %v5654 = vpack.c.b16 %v5615, %v5614
  %v5655 = vpack.c.b16 %v5617, %v5616
  %v5656 = vpack.c.b16 %v5619, %v5618
  %v5657 = vpack.c.b16 %v5621, %v5620
  %v5695 = vsel %vm4561, %v5363, 0
  %v5698 = vsel %vm4561, %v5368, 0
  %v5701 = vsel %vm4561, %v5373, 0
  %v5704 = vsel %vm4561, %v5378, 0
  %v5707 = vsel %vm4561, %v5383, 0
  %v5710 = vsel %vm4561, %v5388, 0
  %v5713 = vsel %vm4561, %v5393, 0
  %v5716 = vsel %vm4561, %v5398, 0
  %5718 = vmatprep.subr.bf16.mxu0 0
  %5719 = vmatpush1.bf16.msra.mxu0 %v5622
  %5720 = vmatprep.subr.bf16.mxu0 0
  %5721 = vmatpush1.bf16.msra.mxu0 %v5623
  %5722 = vmatprep.subr.bf16.mxu0 0
  %5723 = vmatpush1.bf16.msra.mxu0 %v5624
  %5724 = vmatprep.subr.bf16.mxu0 0
  %5725 = vmatpush1.bf16.msra.mxu0 %v5625
  %5726 = vmatprep.subr.bf16.mxu0 0
  %5727 = vmatpush1.bf16.msra.mxu0 %v5626
  %5728 = vmatprep.subr.bf16.mxu0 0
  %5729 = vmatpush1.bf16.msra.mxu0 %v5627
  %5730 = vmatprep.subr.bf16.mxu0 0
  %5731 = vmatpush1.bf16.msra.mxu0 %v5628
  %5732 = vmatprep.subr.bf16.mxu0 0
  %5733 = vmatpush1.bf16.msra.mxu0 %v5629
  %5734 = vmatprep.subr.bf16.mxu0 0
  %5735 = vmatpush1.bf16.msra.mxu0 %v5630
  %5736 = vmatprep.subr.bf16.mxu0 0
  %5737 = vmatpush1.bf16.msra.mxu0 %v5631
  %5738 = vmatprep.subr.bf16.mxu0 0
  %5739 = vmatpush1.bf16.msra.mxu0 %v5632
  %5740 = vmatprep.subr.bf16.mxu0 0
  %5741 = vmatpush1.bf16.msra.mxu0 %v5633
  %5742 = vmatprep.subr.bf16.mxu0 0
  %5743 = vmatpush1.bf16.msra.mxu0 %v5634
  %5744 = vmatprep.subr.bf16.mxu0 0
  %5745 = vmatpush1.bf16.msra.mxu0 %v5635
  %5746 = vmatprep.subr.bf16.mxu0 0
  %5747 = vmatpush1.bf16.msra.mxu0 %v5636
  %5748 = vmatprep.subr.bf16.mxu0 0
  %5749 = vmatpush1.bf16.msra.mxu0 %v5637
  %5750 = vmatprep.mubr.bf16.mxu0 %v5360
  %5751 = vmatmul.mubr.bf16.gmra.mrb[0].mxu0 %v5359
  %v5752 = vpop.f32.mrb[0].mxu0
  %v5753 = vadd.f32 %v5476, %v5752
  %v5754 = vpop.f32.mrb[0].mxu0
  %v5755 = vpop.f32.mrb[0].mxu0
  %v5756 = vadd.f32 %v5476, %v5755
  %v5757 = vpop.f32.mrb[0].mxu0
  %5758 = vmatprep.mubr.bf16.mxu0 %v5365
  %5759 = vmatmul.mubr.bf16.gmra.mrb[0].mxu0 %v5364
  %v5760 = vpop.f32.mrb[0].mxu0
  %v5761 = vadd.f32 %v5476, %v5760
  %v5762 = vpop.f32.mrb[0].mxu0
  %v5763 = vpop.f32.mrb[0].mxu0
  %v5764 = vadd.f32 %v5476, %v5763
  %v5765 = vpop.f32.mrb[0].mxu0
  %5766 = vmatprep.mubr.bf16.mxu0 %v5370
  %5767 = vmatmul.mubr.bf16.gmra.mrb[0].mxu0 %v5369
  %v5768 = vpop.f32.mrb[0].mxu0
  %v5769 = vadd.f32 %v5476, %v5768
  %v5770 = vpop.f32.mrb[0].mxu0
  %v5771 = vpop.f32.mrb[0].mxu0
  %v5772 = vadd.f32 %v5476, %v5771
  %v5773 = vpop.f32.mrb[0].mxu0
  %5774 = vmatprep.mubr.bf16.mxu0 %v5375
  %5775 = vmatmul.mubr.bf16.gmra.mrb[0].mxu0 %v5374
  %v5776 = vpop.f32.mrb[0].mxu0
  %v5777 = vadd.f32 %v5476, %v5776
  %v5778 = vpop.f32.mrb[0].mxu0
  %v5779 = vpop.f32.mrb[0].mxu0
  %v5780 = vadd.f32 %v5476, %v5779
  %v5781 = vpop.f32.mrb[0].mxu0
  %5782 = vmatprep.mubr.bf16.mxu0 %v5380
  %5783 = vmatmul.mubr.bf16.gmra.mrb[0].mxu0 %v5379
  %v5784 = vpop.f32.mrb[0].mxu0
  %v5785 = vadd.f32 %v5476, %v5784
  %v5786 = vpop.f32.mrb[0].mxu0
  %v5787 = vpop.f32.mrb[0].mxu0
  %v5788 = vadd.f32 %v5476, %v5787
  %v5789 = vpop.f32.mrb[0].mxu0
  %5790 = vmatprep.mubr.bf16.mxu0 %v5385
  %5791 = vmatmul.mubr.bf16.gmra.mrb[0].mxu0 %v5384
  %v5792 = vpop.f32.mrb[0].mxu0
  %v5793 = vadd.f32 %v5476, %v5792
  %v5794 = vpop.f32.mrb[0].mxu0
  %v5795 = vpop.f32.mrb[0].mxu0
  %v5796 = vadd.f32 %v5476, %v5795
  %v5797 = vpop.f32.mrb[0].mxu0
  %5798 = vmatprep.mubr.bf16.mxu0 %v5390
  %5799 = vmatmul.mubr.bf16.gmra.mrb[0].mxu0 %v5389
  %v5800 = vpop.f32.mrb[0].mxu0
  %v5801 = vadd.f32 %v5476, %v5800
  %v5802 = vpop.f32.mrb[0].mxu0
  %v5803 = vpop.f32.mrb[0].mxu0
  %v5804 = vadd.f32 %v5476, %v5803
  %v5805 = vpop.f32.mrb[0].mxu0
  %5806 = vmatprep.mubr.bf16.mxu0 %v5395
  %5807 = vmatmul.mubr.bf16.gmra.mrb[0].mxu0 %v5394
  %v5808 = vpop.f32.mrb[0].mxu0
  %v5809 = vadd.f32 %v5476, %v5808
  %v5810 = vpop.f32.mrb[0].mxu0
  %v5811 = vpop.f32.mrb[0].mxu0
  %v5812 = vadd.f32 %v5476, %v5811
  %v5813 = vpop.f32.mrb[0].mxu0
  %5814 = vdwg.mxu0
  %5815 = vmatprep.subr.bf16.mxu0 0
  %5816 = vmatpush1.bf16.msra.mxu0 %v5638
  %5817 = vmatprep.subr.bf16.mxu0 0
  %5818 = vmatpush1.bf16.msra.mxu0 %v5639
  %5819 = vmatprep.subr.bf16.mxu0 0
  %5820 = vmatpush1.bf16.msra.mxu0 %v5640
  %5821 = vmatprep.subr.bf16.mxu0 0
  %5822 = vmatpush1.bf16.msra.mxu0 %v5641
  %5823 = vmatprep.subr.bf16.mxu0 0
  %5824 = vmatpush1.bf16.msra.mxu0 %v5642
  %5825 = vmatprep.subr.bf16.mxu0 0
  %5826 = vmatpush1.bf16.msra.mxu0 %v5643
  %5827 = vmatprep.subr.bf16.mxu0 0
  %5828 = vmatpush1.bf16.msra.mxu0 %v5644
  %5829 = vmatprep.subr.bf16.mxu0 0
  %5830 = vmatpush1.bf16.msra.mxu0 %v5645
  %5831 = vmatprep.subr.bf16.mxu0 0
  %5832 = vmatpush1.bf16.msra.mxu0 %v5646
  %5833 = vmatprep.subr.bf16.mxu0 0
  %5834 = vmatpush1.bf16.msra.mxu0 %v5647
  %5835 = vmatprep.subr.bf16.mxu0 0
  %5836 = vmatpush1.bf16.msra.mxu0 %v5648
  %5837 = vmatprep.subr.bf16.mxu0 0
  %5838 = vmatpush1.bf16.msra.mxu0 %v5649
  %5839 = vmatprep.subr.bf16.mxu0 0
  %5840 = vmatpush1.bf16.msra.mxu0 %v5650
  %5841 = vmatprep.subr.bf16.mxu0 0
  %5842 = vmatpush1.bf16.msra.mxu0 %v5651
  %5843 = vmatprep.subr.bf16.mxu0 0
  %5844 = vmatpush1.bf16.msra.mxu0 %v5652
  %5845 = vmatprep.subr.bf16.mxu0 0
  %5846 = vmatpush1.bf16.msra.mxu0 %v5653
  %5847 = vmatprep.mubr.bf16.mxu0 %v5362
  %5848 = vmatmul.mubr.bf16.gmra.mrb[0].mxu0 %v5361
  %v5849 = vpop.f32.mrb[0].mxu0
  %v5850 = vadd.f32 %v5753, %v5849
  %v5851 = vpop.f32.mrb[0].mxu0
  %v5852 = vpop.f32.mrb[0].mxu0
  %v5853 = vadd.f32 %v5756, %v5852
  %v5854 = vpop.f32.mrb[0].mxu0
  %5855 = vmatprep.mubr.bf16.mxu0 %v5367
  %5856 = vmatmul.mubr.bf16.gmra.mrb[0].mxu0 %v5366
  %v5857 = vpop.f32.mrb[0].mxu0
  %v5858 = vadd.f32 %v5761, %v5857
  %v5859 = vpop.f32.mrb[0].mxu0
  %v5860 = vpop.f32.mrb[0].mxu0
  %v5861 = vadd.f32 %v5764, %v5860
  %v5862 = vpop.f32.mrb[0].mxu0
  %5863 = vmatprep.mubr.bf16.mxu0 %v5372
  %5864 = vmatmul.mubr.bf16.gmra.mrb[0].mxu0 %v5371
  %v5865 = vpop.f32.mrb[0].mxu0
  %v5866 = vadd.f32 %v5769, %v5865
  %v5867 = vpop.f32.mrb[0].mxu0
  %v5868 = vpop.f32.mrb[0].mxu0
  %v5869 = vadd.f32 %v5772, %v5868
  %v5870 = vpop.f32.mrb[0].mxu0
  %5871 = vmatprep.mubr.bf16.mxu0 %v5377
  %5872 = vmatmul.mubr.bf16.gmra.mrb[0].mxu0 %v5376
  %v5873 = vpop.f32.mrb[0].mxu0
  %v5874 = vadd.f32 %v5777, %v5873
  %v5875 = vpop.f32.mrb[0].mxu0
  %v5876 = vpop.f32.mrb[0].mxu0
  %v5877 = vadd.f32 %v5780, %v5876
  %v5878 = vpop.f32.mrb[0].mxu0
  %5879 = vmatprep.mubr.bf16.mxu0 %v5382
  %5880 = vmatmul.mubr.bf16.gmra.mrb[0].mxu0 %v5381
  %v5881 = vpop.f32.mrb[0].mxu0
  %v5882 = vadd.f32 %v5785, %v5881
  %v5883 = vpop.f32.mrb[0].mxu0
  %v5884 = vpop.f32.mrb[0].mxu0
  %v5885 = vadd.f32 %v5788, %v5884
  %v5886 = vpop.f32.mrb[0].mxu0
  %5887 = vmatprep.mubr.bf16.mxu0 %v5387
  %5888 = vmatmul.mubr.bf16.gmra.mrb[0].mxu0 %v5386
  %v5889 = vpop.f32.mrb[0].mxu0
  %v5890 = vadd.f32 %v5793, %v5889
  %v5891 = vpop.f32.mrb[0].mxu0
  %v5892 = vpop.f32.mrb[0].mxu0
  %v5893 = vadd.f32 %v5796, %v5892
  %v5894 = vpop.f32.mrb[0].mxu0
  %5895 = vmatprep.mubr.bf16.mxu0 %v5392
  %5896 = vmatmul.mubr.bf16.gmra.mrb[0].mxu0 %v5391
  %v5897 = vpop.f32.mrb[0].mxu0
  %v5898 = vadd.f32 %v5801, %v5897
  %v5899 = vpop.f32.mrb[0].mxu0
  %v5900 = vpop.f32.mrb[0].mxu0
  %v5901 = vadd.f32 %v5804, %v5900
  %v5902 = vpop.f32.mrb[0].mxu0
  %5903 = vmatprep.mubr.bf16.mxu0 %v5397
  %5904 = vmatmul.mubr.bf16.gmra.mrb[0].mxu0 %v5396
  %v5905 = vpop.f32.mrb[0].mxu0
  %v5906 = vadd.f32 %v5809, %v5905
  %v5907 = vpop.f32.mrb[0].mxu0
  %v5908 = vpop.f32.mrb[0].mxu0
  %v5909 = vadd.f32 %v5812, %v5908
  %v5910 = vpop.f32.mrb[0].mxu0
  %5911 = vdwg.mxu0
  %5912 = vmatprep.subr.bf16.mxu0 0
  %5913 = vmatpush1.bf16.msra.mxu0 %v5654
  %5914 = vmatprep.subr.bf16.mxu0 0
  %5915 = vmatpush1.bf16.msra.mxu0 %v5655
  %5916 = vmatprep.subr.bf16.mxu0 0
  %5917 = vmatpush1.bf16.msra.mxu0 %v5656
  %5918 = vmatprep.subr.bf16.mxu0 0
  %5919 = vmatpush1.bf16.msra.mxu0 %v5657
  %5920 = vmatprep.subr.bf16.mxu0 0
  %5921 = vmatpush1.bf16.msra.mxu0 0
  %5922 = vmatprep.subr.bf16.mxu0 0
  %5923 = vmatpush1.bf16.msra.mxu0 0
  %5924 = vmatprep.subr.bf16.mxu0 0
  %5925 = vmatpush1.bf16.msra.mxu0 0
  %5926 = vmatprep.subr.bf16.mxu0 0
  %5927 = vmatpush1.bf16.msra.mxu0 0
  %5928 = vmatprep.subr.bf16.mxu0 0
  %5929 = vmatpush1.bf16.msra.mxu0 0
  %5930 = vmatprep.subr.bf16.mxu0 0
  %5931 = vmatpush1.bf16.msra.mxu0 0
  %5932 = vmatprep.subr.bf16.mxu0 0
  %5933 = vmatpush1.bf16.msra.mxu0 0
  %5934 = vmatprep.subr.bf16.mxu0 0
  %5935 = vmatpush1.bf16.msra.mxu0 0
  %5936 = vmatprep.subr.bf16.mxu0 0
  %5937 = vmatpush1.bf16.msra.mxu0 0
  %5938 = vmatprep.subr.bf16.mxu0 0
  %5939 = vmatpush1.bf16.msra.mxu0 0
  %5940 = vmatprep.subr.bf16.mxu0 0
  %5941 = vmatpush1.bf16.msra.mxu0 0
  %5942 = vmatprep.subr.bf16.mxu0 0
  %5943 = vmatpush1.bf16.msra.mxu0 0
  %5944 = vmatprep.mubr.bf16.mxu0 0
  %5945 = vmatmul.mubr.bf16.gmra.mrb[0].mxu0 %v5695
  %v5946 = vpop.f32.mrb[0].mxu0
  %v5947 = vadd.f32 %v5850, %v5946
  %v5948 = vpop.f32.mrb[0].mxu0
  %v5949 = vpop.f32.mrb[0].mxu0
  %v5950 = vadd.f32 %v5853, %v5949
  %v5951 = vpop.f32.mrb[0].mxu0
  %5952 = vmatprep.mubr.bf16.mxu0 0
  %5953 = vmatmul.mubr.bf16.gmra.mrb[0].mxu0 %v5698
  %v5954 = vpop.f32.mrb[0].mxu0
  %v5955 = vadd.f32 %v5858, %v5954
  %v5956 = vpop.f32.mrb[0].mxu0
  %v5957 = vpop.f32.mrb[0].mxu0
  %v5958 = vadd.f32 %v5861, %v5957
  %v5959 = vpop.f32.mrb[0].mxu0
  %5960 = vmatprep.mubr.bf16.mxu0 0
  %5961 = vmatmul.mubr.bf16.gmra.mrb[0].mxu0 %v5701
  %v5962 = vpop.f32.mrb[0].mxu0
  %v5963 = vadd.f32 %v5866, %v5962
  %v5964 = vpop.f32.mrb[0].mxu0
  %v5965 = vpop.f32.mrb[0].mxu0
  %v5966 = vadd.f32 %v5869, %v5965
  %v5967 = vpop.f32.mrb[0].mxu0
  %5968 = vmatprep.mubr.bf16.mxu0 0
  %5969 = vmatmul.mubr.bf16.gmra.mrb[0].mxu0 %v5704
  %v5970 = vpop.f32.mrb[0].mxu0
  %v5971 = vadd.f32 %v5874, %v5970
  %v5972 = vpop.f32.mrb[0].mxu0
  %v5973 = vpop.f32.mrb[0].mxu0
  %v5974 = vadd.f32 %v5877, %v5973
  %v5975 = vpop.f32.mrb[0].mxu0
  %5976 = vmatprep.mubr.bf16.mxu0 0
  %5977 = vmatmul.mubr.bf16.gmra.mrb[0].mxu0 %v5707
  %v5978 = vpop.f32.mrb[0].mxu0
  %v5979 = vadd.f32 %v5882, %v5978
  %v5980 = vpop.f32.mrb[0].mxu0
  %v5981 = vpop.f32.mrb[0].mxu0
  %v5982 = vadd.f32 %v5885, %v5981
  %v5983 = vpop.f32.mrb[0].mxu0
  %5984 = vmatprep.mubr.bf16.mxu0 0
  %5985 = vmatmul.mubr.bf16.gmra.mrb[0].mxu0 %v5710
  %v5986 = vpop.f32.mrb[0].mxu0
  %v5987 = vadd.f32 %v5890, %v5986
  %v5988 = vpop.f32.mrb[0].mxu0
  %v5989 = vpop.f32.mrb[0].mxu0
  %v5990 = vadd.f32 %v5893, %v5989
  %v5991 = vpop.f32.mrb[0].mxu0
  %5992 = vmatprep.mubr.bf16.mxu0 0
  %5993 = vmatmul.mubr.bf16.gmra.mrb[0].mxu0 %v5713
  %v5994 = vpop.f32.mrb[0].mxu0
  %v5995 = vadd.f32 %v5898, %v5994
  %v5996 = vpop.f32.mrb[0].mxu0
  %v5997 = vpop.f32.mrb[0].mxu0
  %v5998 = vadd.f32 %v5901, %v5997
  %v5999 = vpop.f32.mrb[0].mxu0
  %6000 = vmatprep.mubr.bf16.mxu0 0
  %6001 = vmatmul.mubr.bf16.gmra.mrb[0].mxu0 %v5716
  %v6002 = vpop.f32.mrb[0].mxu0
  %v6003 = vadd.f32 %v5906, %v6002
  %v6004 = vpop.f32.mrb[0].mxu0
  %v6005 = vpop.f32.mrb[0].mxu0
  %v6006 = vadd.f32 %v5909, %v6005
  %v6007 = vpop.f32.mrb[0].mxu0
  %6008 = vdwg.mxu0
  %vm6009 = vcmp.gt.f32.partialorder %v5947, 0.0
  %vm6010 = vcmp.gt.f32.partialorder %v5950, 0.0
  %vm6011 = vcmp.gt.f32.partialorder %v5955, 0.0
  %vm6012 = vcmp.gt.f32.partialorder %v5958, 0.0
  %vm6013 = vcmp.gt.f32.partialorder %v5963, 0.0
  %vm6014 = vcmp.gt.f32.partialorder %v5966, 0.0
  %vm6015 = vcmp.gt.f32.partialorder %v5971, 0.0
  %vm6016 = vcmp.gt.f32.partialorder %v5974, 0.0
  %vm6017 = vcmp.gt.f32.partialorder %v5979, 0.0
  %vm6018 = vcmp.gt.f32.partialorder %v5982, 0.0
  %vm6019 = vcmp.gt.f32.partialorder %v5987, 0.0
  %vm6020 = vcmp.gt.f32.partialorder %v5990, 0.0
  %vm6021 = vcmp.gt.f32.partialorder %v5995, 0.0
  %vm6022 = vcmp.gt.f32.partialorder %v5998, 0.0
  %vm6023 = vcmp.gt.f32.partialorder %v6003, 0.0
  %vm6024 = vcmp.gt.f32.partialorder %v6006, 0.0
  %v6025 = vmul.f32 %v5947, 0.2
  %v6026 = vmul.f32 %v5950, 0.2
  %v6027 = vmul.f32 %v5955, 0.2
  %v6028 = vmul.f32 %v5958, 0.2
  %v6029 = vmul.f32 %v5963, 0.2
  %v6030 = vmul.f32 %v5966, 0.2
  %v6031 = vmul.f32 %v5971, 0.2
  %v6032 = vmul.f32 %v5974, 0.2
  %v6033 = vmul.f32 %v5979, 0.2
  %v6034 = vmul.f32 %v5982, 0.2
  %v6035 = vmul.f32 %v5987, 0.2
  %v6036 = vmul.f32 %v5990, 0.2
  %v6037 = vmul.f32 %v5995, 0.2
  %v6038 = vmul.f32 %v5998, 0.2
  %v6039 = vmul.f32 %v6003, 0.2
  %v6040 = vmul.f32 %v6006, 0.2
  %v6041 = vsel %vm6009, %v5947, %v6025
  %v6042 = vsel %vm6010, %v5950, %v6026
  %v6043 = vsel %vm6011, %v5955, %v6027
  %v6044 = vsel %vm6012, %v5958, %v6028
  %v6045 = vsel %vm6013, %v5963, %v6029
  %v6046 = vsel %vm6014, %v5966, %v6030
  %v6047 = vsel %vm6015, %v5971, %v6031
  %v6048 = vsel %vm6016, %v5974, %v6032
  %v6049 = vsel %vm6017, %v5979, %v6033
  %v6050 = vsel %vm6018, %v5982, %v6034
  %v6051 = vsel %vm6019, %v5987, %v6035
  %v6052 = vsel %vm6020, %v5990, %v6036
  %v6053 = vsel %vm6021, %v5995, %v6037
  %v6054 = vsel %vm6022, %v5998, %v6038
  %v6055 = vsel %vm6023, %v6003, %v6039
  %v6056 = vsel %vm6024, %v6006, %v6040
  %6057 = vst [vmem:[#allocation7] sm:$0xff] 0.0
  %6058 = vst [vmem:[#allocation7 + $0x8] sm:$0xff] 0.0
  %6059 = vst [vmem:[#allocation7 + $0x10] sm:$0xff] 0.0
  %6060 = vst [vmem:[#allocation7 + $0x18] sm:$0xff] 0.0
  %6061 = vst [vmem:[#allocation7 + $0x20] sm:$0xff] 0.0
  %6062 = vst [vmem:[#allocation7 + $0x28] sm:$0xff] 0.0
  %6063 = vst [vmem:[#allocation7 + $0x30] sm:$0xff] 0.0
  %6064 = vst [vmem:[#allocation7 + $0x38] sm:$0xff] 0.0
  %6065 = vst [vmem:[#allocation7 + $0x40] sm:$0xff] 0.0
  %6066 = vst [vmem:[#allocation7 + $0x48] sm:$0xff] 0.0
  %6067 = vst [vmem:[#allocation7 + $0x50] sm:$0xff] 0.0
  %6068 = vst [vmem:[#allocation7 + $0x58] sm:$0xff] 0.0
  %6069 = vst [vmem:[#allocation7 + $0x60] sm:$0xff] 0.0
  %6070 = vst [vmem:[#allocation7 + $0x68] sm:$0xff] 0.0
  %6071 = vst [vmem:[#allocation7 + $0x70] sm:$0xff] 0.0
  %6072 = vst [vmem:[#allocation7 + $0x78] sm:$0xff] 0.0
  %6073 = vst [vmem:[#allocation7 + $0x80] sm:$0xff] 0.0
  %6074 = vst [vmem:[#allocation7 + $0x88] sm:$0xff] 0.0
  %6075 = vst [vmem:[#allocation7 + $0x90] sm:$0xff] 0.0
  %6076 = vst [vmem:[#allocation7 + $0x98] sm:$0xff] 0.0
  %6077 = vst [vmem:[#allocation7 + $0xa0] sm:$0xff] 0.0
  %6078 = vst [vmem:[#allocation7 + $0xa8] sm:$0xff] 0.0
  %6079 = vst [vmem:[#allocation7 + $0xb0] sm:$0xff] 0.0
  %6080 = vst [vmem:[#allocation7 + $0xb8] sm:$0xff] 0.0
  %6081 = vst [vmem:[#allocation7 + $0xc0] sm:$0xff] 0.0
  %6082 = vst [vmem:[#allocation7 + $0xc8] sm:$0xff] 0.0
  %6083 = vst [vmem:[#allocation7 + $0xd0] sm:$0xff] 0.0
  %6084 = vst [vmem:[#allocation7 + $0xd8] sm:$0xff] 0.0
  %6085 = vst [vmem:[#allocation7 + $0xe0] sm:$0xff] 0.0
  %6086 = vst [vmem:[#allocation7 + $0xe8] sm:$0xff] 0.0
  %6087 = vst [vmem:[#allocation7 + $0xf0] sm:$0xff] 0.0
  %6088 = vst [vmem:[#allocation7 + $0xf8] sm:$0xff] 0.0
  %6089 = vst [vmem:[#allocation7 + $0x100] sm:$0xff] 0.0
  %6090 = vst [vmem:[#allocation7 + $0x108] sm:$0xff] 0.0
  %6091 = vst [vmem:[#allocation7 + $0x110] sm:$0xff] 0.0
  %6092 = vst [vmem:[#allocation7 + $0x118] sm:$0xff] 0.0
  %s6093 = scalar_lea.vmem [#allocation7], 56
  %6094 = vst [vmem:[%s6093] sm:$0xff] %v6041
  %6095 = vst [vmem:[%s6093 + $0x8] sm:$0xff] %v6042
  %6096 = vst [vmem:[%s6093 + $0x10] sm:$0xff] %v6043
  %6097 = vst [vmem:[%s6093 + $0x18] sm:$0xff] %v6044
  %6098 = vst [vmem:[%s6093 + $0x30] sm:$0xff] %v6045
  %6099 = vst [vmem:[%s6093 + $0x38] sm:$0xff] %v6046
  %6100 = vst [vmem:[%s6093 + $0x40] sm:$0xff] %v6047
  %6101 = vst [vmem:[%s6093 + $0x48] sm:$0xff] %v6048
  %6102 = vst [vmem:[%s6093 + $0x60] sm:$0xff] %v6049
  %6103 = vst [vmem:[%s6093 + $0x68] sm:$0xff] %v6050
  %6104 = vst [vmem:[%s6093 + $0x70] sm:$0xff] %v6051
  %6105 = vst [vmem:[%s6093 + $0x78] sm:$0xff] %v6052
  %6106 = vst [vmem:[%s6093 + $0x90] sm:$0xff] %v6053
  %6107 = vst [vmem:[%s6093 + $0x98] sm:$0xff] %v6054
  %6108 = vst [vmem:[%s6093 + $0xa0] sm:$0xff] %v6055
  %6109 = vst [vmem:[%s6093 + $0xa8] sm:$0xff] %v6056
  %v6110 = vld [vmem:[#allocation7] sm:$0xff]
  %v6111 = vld [vmem:[#allocation7 + $0x10] sm:$0xff]
  %v6112 = vld [vmem:[#allocation7 + $0x60] sm:$0xff]
  %v6113 = vld [vmem:[#allocation7 + $0x70] sm:$0xff]
  %6114 = vst [vmem:[#allocation4] sm:$0xff] %v6110
  %6115 = vst [vmem:[#allocation4 + $0x48] sm:$0xff] %v6111
  %6116 = vst [vmem:[#allocation4 + $0x90] sm:$0xff] %v6112
  %6117 = vst [vmem:[#allocation4 + $0xd8] sm:$0xff] %v6113
  %s6118 = scalar_lea.vmem [#allocation7], 8
  %v6119 = vld [vmem:[%s6118] sm:$0xff]
  %v6120 = vld [vmem:[%s6118 + $0x10] sm:$0xff]
  %v6121 = vld [vmem:[%s6118 + $0x60] sm:$0xff]
  %v6122 = vld [vmem:[%s6118 + $0x70] sm:$0xff]
  %6123 = vst [vmem:[#allocation4 + $0x8] sm:$0xff] %v6119
  %6124 = vst [vmem:[#allocation4 + $0x50] sm:$0xff] %v6120
  %6125 = vst [vmem:[#allocation4 + $0x98] sm:$0xff] %v6121
  %6126 = vst [vmem:[#allocation4 + $0xe0] sm:$0xff] %v6122
  %s6127 = scalar_lea.vmem [#allocation7], 16
  %v6128 = vld [vmem:[%s6127] sm:$0xff]
  %v6129 = vld [vmem:[%s6127 + $0x10] sm:$0xff]
  %v6130 = vld [vmem:[%s6127 + $0x60] sm:$0xff]
  %v6131 = vld [vmem:[%s6127 + $0x70] sm:$0xff]
  %6132 = vst [vmem:[#allocation4 + $0x10] sm:$0xff] %v6128
  %6133 = vst [vmem:[#allocation4 + $0x58] sm:$0xff] %v6129
  %6134 = vst [vmem:[#allocation4 + $0xa0] sm:$0xff] %v6130
  %6135 = vst [vmem:[#allocation4 + $0xe8] sm:$0xff] %v6131
  %s6136 = scalar_lea.vmem [#allocation7], 48
  %v6137 = vld [vmem:[%s6136] sm:$0xff]
  %v6138 = vld [vmem:[%s6136 + $0x10] sm:$0xff]
  %v6139 = vld [vmem:[%s6136 + $0x60] sm:$0xff]
  %v6140 = vld [vmem:[%s6136 + $0x70] sm:$0xff]
  %6141 = vst [vmem:[#allocation4 + $0x18] sm:$0xff] %v6137
  %6142 = vst [vmem:[#allocation4 + $0x60] sm:$0xff] %v6138
  %6143 = vst [vmem:[#allocation4 + $0xa8] sm:$0xff] %v6139
  %6144 = vst [vmem:[#allocation4 + $0xf0] sm:$0xff] %v6140
  %v6145 = vld [vmem:[%s6093] sm:$0xff]
  %v6146 = vld [vmem:[%s6093 + $0x10] sm:$0xff]
  %v6147 = vld [vmem:[%s6093 + $0x60] sm:$0xff]
  %v6148 = vld [vmem:[%s6093 + $0x70] sm:$0xff]
  %6149 = vst [vmem:[#allocation4 + $0x20] sm:$0xff] %v6145
  %6150 = vst [vmem:[#allocation4 + $0x68] sm:$0xff] %v6146
  %6151 = vst [vmem:[#allocation4 + $0xb0] sm:$0xff] %v6147
  %6152 = vst [vmem:[#allocation4 + $0xf8] sm:$0xff] %v6148
  %s6153 = scalar_lea.vmem [#allocation7], 64
  %v6154 = vld [vmem:[%s6153] sm:$0xff]
  %v6155 = vld [vmem:[%s6153 + $0x10] sm:$0xff]
  %v6156 = vld [vmem:[%s6153 + $0x60] sm:$0xff]
  %v6157 = vld [vmem:[%s6153 + $0x70] sm:$0xff]
  %6158 = vst [vmem:[#allocation4 + $0x28] sm:$0xff] %v6154
  %6159 = vst [vmem:[#allocation4 + $0x70] sm:$0xff] %v6155
  %6160 = vst [vmem:[#allocation4 + $0xb8] sm:$0xff] %v6156
  %6161 = vst [vmem:[#allocation4 + $0x100] sm:$0xff] %v6157
  %s6162 = scalar_lea.vmem [#allocation7], 96
  %v6163 = vld [vmem:[%s6162] sm:$0xff]
  %v6164 = vld [vmem:[%s6162 + $0x10] sm:$0xff]
  %v6165 = vld [vmem:[%s6162 + $0x60] sm:$0xff]
  %v6166 = vld [vmem:[%s6162 + $0x70] sm:$0xff]
  %6167 = vst [vmem:[#allocation4 + $0x30] sm:$0xff] %v6163
  %6168 = vst [vmem:[#allocation4 + $0x78] sm:$0xff] %v6164
  %6169 = vst [vmem:[#allocation4 + $0xc0] sm:$0xff] %v6165
  %6170 = vst [vmem:[#allocation4 + $0x108] sm:$0xff] %v6166
  %s6171 = scalar_lea.vmem [#allocation7], 104
  %v6172 = vld [vmem:[%s6171] sm:$0xff]
  %v6173 = vld [vmem:[%s6171 + $0x10] sm:$0xff]
  %v6174 = vld [vmem:[%s6171 + $0x60] sm:$0xff]
  %v6175 = vld [vmem:[%s6171 + $0x70] sm:$0xff]
  %6176 = vst [vmem:[#allocation4 + $0x38] sm:$0xff] %v6172
  %6177 = vst [vmem:[#allocation4 + $0x80] sm:$0xff] %v6173
  %6178 = vst [vmem:[#allocation4 + $0xc8] sm:$0xff] %v6174
  %6179 = vst [vmem:[#allocation4 + $0x110] sm:$0xff] %v6175
  %s6180 = scalar_lea.vmem [#allocation7], 112
  %v6181 = vld [vmem:[%s6180] sm:$0xff]
  %v6182 = vld [vmem:[%s6180 + $0x10] sm:$0xff]
  %v6183 = vld [vmem:[%s6180 + $0x60] sm:$0xff]
  %v6184 = vld [vmem:[%s6180 + $0x70] sm:$0xff]
  %6185 = vst [vmem:[#allocation4 + $0x40] sm:$0xff] %v6181
  %6186 = vst [vmem:[#allocation4 + $0x88] sm:$0xff] %v6182
  %6187 = vst [vmem:[#allocation4 + $0xd0] sm:$0xff] %v6183
  %6188 = vst [vmem:[#allocation4 + $0x118] sm:$0xff] %v6184
  %v6189 = vld [vmem:[#allocation4] sm:$0xff]
  %v6190 = vld [vmem:[#allocation4 + $0x8] sm:$0xff]
  %v6191 = vld [vmem:[#allocation4 + $0x10] sm:$0xff]
  %v6192 = vld [vmem:[#allocation4 + $0x18] sm:$0xff]
  %v6193 = vld [vmem:[#allocation4 + $0x20] sm:$0xff]
  %v6194 = vld [vmem:[#allocation4 + $0x28] sm:$0xff]
  %v6195 = vld [vmem:[#allocation4 + $0x30] sm:$0xff]
  %v6196 = vld [vmem:[#allocation4 + $0x38] sm:$0xff]
  %v6197 = vld [vmem:[#allocation4 + $0x40] sm:$0xff]
  %v6198 = vld [vmem:[#allocation4 + $0x48] sm:$0xff]
  %v6199 = vld [vmem:[#allocation4 + $0x50] sm:$0xff]
  %v6200 = vld [vmem:[#allocation4 + $0x58] sm:$0xff]
  %v6201 = vld [vmem:[#allocation4 + $0x60] sm:$0xff]
  %v6202 = vld [vmem:[#allocation4 + $0x68] sm:$0xff]
  %v6203 = vld [vmem:[#allocation4 + $0x70] sm:$0xff]
  %v6204 = vld [vmem:[#allocation4 + $0x78] sm:$0xff]
  %v6205 = vld [vmem:[#allocation4 + $0x80] sm:$0xff]
  %v6206 = vld [vmem:[#allocation4 + $0x88] sm:$0xff]
  %v6207 = vld [vmem:[#allocation4 + $0x90] sm:$0xff]
  %v6208 = vld [vmem:[#allocation4 + $0x98] sm:$0xff]
  %v6209 = vld [vmem:[#allocation4 + $0xa0] sm:$0xff]
  %v6210 = vld [vmem:[#allocation4 + $0xa8] sm:$0xff]
  %v6211 = vld [vmem:[#allocation4 + $0xb0] sm:$0xff]
  %v6212 = vld [vmem:[#allocation4 + $0xb8] sm:$0xff]
  %v6213 = vld [vmem:[#allocation4 + $0xc0] sm:$0xff]
  %v6214 = vld [vmem:[#allocation4 + $0xc8] sm:$0xff]
  %v6215 = vld [vmem:[#allocation4 + $0xd0] sm:$0xff]
  %v6216 = vld [vmem:[#allocation4 + $0xd8] sm:$0xff]
  %v6217 = vld [vmem:[#allocation4 + $0xe0] sm:$0xff]
  %v6218 = vld [vmem:[#allocation4 + $0xe8] sm:$0xff]
  %v6219 = vld [vmem:[#allocation4 + $0xf0] sm:$0xff]
  %v6220 = vld [vmem:[#allocation4 + $0xf8] sm:$0xff]
  %v6221 = vld [vmem:[#allocation4 + $0x100] sm:$0xff]
  %v6222 = vld [vmem:[#allocation4 + $0x108] sm:$0xff]
  %v6223 = vld [vmem:[#allocation4 + $0x110] sm:$0xff]
  %v6224 = vld [vmem:[#allocation4 + $0x118] sm:$0xff]
  %v6225 = vpack.c.bf16 %v6198, %v6189
  %v6226 = vpack.c.bf16 %v6199, %v6190
  %v6227 = vpack.c.bf16 %v6200, %v6191
  %v6228 = vpack.c.bf16 %v6201, %v6192
  %v6229 = vpack.c.bf16 %v6202, %v6193
  %v6230 = vpack.c.bf16 %v6203, %v6194
  %v6231 = vpack.c.bf16 %v6204, %v6195
  %v6232 = vpack.c.bf16 %v6205, %v6196
  %v6233 = vpack.c.bf16 %v6206, %v6197
  %v6234 = vpack.c.bf16 %v6216, %v6207
  %v6235 = vpack.c.bf16 %v6217, %v6208
  %v6236 = vpack.c.bf16 %v6218, %v6209
  %v6237 = vpack.c.bf16 %v6219, %v6210
  %v6238 = vpack.c.bf16 %v6220, %v6211
  %v6239 = vpack.c.bf16 %v6221, %v6212
  %v6240 = vpack.c.bf16 %v6222, %v6213
  %v6241 = vpack.c.bf16 %v6223, %v6214
  %v6242 = vpack.c.bf16 %v6224, %v6215
  %v6243 = vld [vmem:[%s5] sm:$0xff]
  %v6244 = vld [vmem:[%s5 + $0x8] sm:$0xff]
  %v6245 = vld [vmem:[%s5 + $0x10] sm:$0xff]
  %v6246 = vld [vmem:[%s5 + $0x18] sm:$0xff]
  %v6247 = vld [vmem:[%s5 + $0x20] sm:$0xff]
  %v6248 = vld [vmem:[%s5 + $0x28] sm:$0xff]
  %v6249 = vld [vmem:[%s5 + $0x30] sm:$0xff]
  %v6250 = vld [vmem:[%s5 + $0x38] sm:$0xff]
  %v6251 = vld [vmem:[%s5 + $0x40] sm:$0xff]
  %v6252 = vld [vmem:[%s5 + $0x48] sm:$0xff]
  %v6253 = vld [vmem:[%s5 + $0x50] sm:$0xff]
  %v6254 = vld [vmem:[%s5 + $0x58] sm:$0xff]
  %v6255 = vld [vmem:[%s5 + $0x60] sm:$0xff]
  %v6256 = vld [vmem:[%s5 + $0x68] sm:$0xff]
  %v6257 = vld [vmem:[%s5 + $0x70] sm:$0xff]
  %v6258 = vld [vmem:[%s5 + $0x78] sm:$0xff]
  %v6259 = vld [vmem:[%s5 + $0x80] sm:$0xff]
  %v6260 = vld [vmem:[%s5 + $0x88] sm:$0xff]
  %v6261 = vld [vmem:[%s5 + $0x90] sm:$0xff]
  %v6262 = vld [vmem:[%s5 + $0x98] sm:$0xff]
  %v6263 = vld [vmem:[%s5 + $0xa0] sm:$0xff]
  %v6264 = vld [vmem:[%s5 + $0xa8] sm:$0xff]
  %v6265 = vld [vmem:[%s5 + $0xb0] sm:$0xff]
  %v6266 = vld [vmem:[%s5 + $0xb8] sm:$0xff]
  %v6267 = vld [vmem:[%s5 + $0xc0] sm:$0xff]
  %v6268 = vld [vmem:[%s5 + $0xc8] sm:$0xff]
  %v6269 = vld [vmem:[%s5 + $0xd0] sm:$0xff]
  %v6270 = vld [vmem:[%s5 + $0xd8] sm:$0xff]
  %v6271 = vld [vmem:[%s5 + $0xe0] sm:$0xff]
  %v6272 = vld [vmem:[%s5 + $0xe8] sm:$0xff]
  %v6273 = vld [vmem:[%s5 + $0xf0] sm:$0xff]
  %v6274 = vld [vmem:[%s5 + $0xf8] sm:$0xff]
  %v6275 = vld [vmem:[%s5 + $0x100] sm:$0xff]
  %v6276 = vld [vmem:[%s5 + $0x108] sm:$0xff]
  %v6277 = vld [vmem:[%s5 + $0x110] sm:$0xff]
  %v6278 = vld [vmem:[%s5 + $0x118] sm:$0xff]
  %v6279 = vld [vmem:[%s5 + $0x120] sm:$0xff]
  %v6280 = vld [vmem:[%s5 + $0x128] sm:$0xff]
  %v6281 = vld [vmem:[%s5 + $0x130] sm:$0xff]
  %v6282 = vld [vmem:[%s5 + $0x138] sm:$0xff]
  %v6283 = vld [vmem:[%s5 + $0x140] sm:$0xff]
  %v6284 = vld [vmem:[%s5 + $0x148] sm:$0xff]
  %v6285 = vld [vmem:[%s5 + $0x150] sm:$0xff]
  %v6286 = vld [vmem:[%s5 + $0x158] sm:$0xff]
  %v6287 = vld [vmem:[%s5 + $0x160] sm:$0xff]
  %v6288 = vld [vmem:[%s5 + $0x168] sm:$0xff]
  %v6289 = vld [vmem:[%s5 + $0x170] sm:$0xff]
  %v6290 = vld [vmem:[%s5 + $0x178] sm:$0xff]
  %v6291 = vld [vmem:[%s5 + $0x180] sm:$0xff]
  %v6292 = vld [vmem:[%s5 + $0x188] sm:$0xff]
  %v6293 = vld [vmem:[%s5 + $0x190] sm:$0xff]
  %v6294 = vld [vmem:[%s5 + $0x198] sm:$0xff]
  %v6295 = vld [vmem:[%s5 + $0x1a0] sm:$0xff]
  %v6296 = vld [vmem:[%s5 + $0x1a8] sm:$0xff]
  %v6297 = vld [vmem:[%s5 + $0x1b0] sm:$0xff]
  %v6298 = vld [vmem:[%s5 + $0x1b8] sm:$0xff]
  %v6299 = vld [vmem:[%s5 + $0x1c0] sm:$0xff]
  %v6300 = vld [vmem:[%s5 + $0x1c8] sm:$0xff]
  %v6301 = vld [vmem:[%s5 + $0x1d0] sm:$0xff]
  %v6302 = vld [vmem:[%s5 + $0x1d8] sm:$0xff]
  %v6303 = vld [vmem:[%s5 + $0x1e0] sm:$0xff]
  %v6304 = vld [vmem:[%s5 + $0x1e8] sm:$0xff]
  %v6305 = vld [vmem:[%s5 + $0x1f0] sm:$0xff]
  %v6306 = vld [vmem:[%s5 + $0x1f8] sm:$0xff]
  %v6307 = vld [vmem:[%s5 + $0x200] sm:$0xff]
  %v6308 = vld [vmem:[%s5 + $0x208] sm:$0xff]
  %v6309 = vld [vmem:[%s5 + $0x210] sm:$0xff]
  %v6310 = vld [vmem:[%s5 + $0x218] sm:$0xff]
  %v6311 = vld [vmem:[%s5 + $0x220] sm:$0xff]
  %v6312 = vld [vmem:[%s5 + $0x228] sm:$0xff]
  %v6313 = vld [vmem:[%s5 + $0x230] sm:$0xff]
  %v6314 = vld [vmem:[%s5 + $0x238] sm:$0xff]
  %v6315 = vld [vmem:[%s5 + $0x240] sm:$0xff]
  %v6316 = vld [vmem:[%s5 + $0x248] sm:$0xff]
  %v6317 = vld [vmem:[%s5 + $0x250] sm:$0xff]
  %v6318 = vld [vmem:[%s5 + $0x258] sm:$0xff]
  %v6319 = vld [vmem:[%s5 + $0x260] sm:$0xff]
  %v6320 = vld [vmem:[%s5 + $0x268] sm:$0xff]
  %v6321 = vld [vmem:[%s5 + $0x270] sm:$0xff]
  %v6322 = vld [vmem:[%s5 + $0x278] sm:$0xff]
  %v6323 = vld [vmem:[%s5 + $0x280] sm:$0xff]
  %v6324 = vld [vmem:[%s5 + $0x288] sm:$0xff]
  %v6325 = vld [vmem:[%s5 + $0x290] sm:$0xff]
  %v6326 = vld [vmem:[%s5 + $0x298] sm:$0xff]
  %v6327 = vld [vmem:[%s5 + $0x2a0] sm:$0xff]
  %v6328 = vld [vmem:[%s5 + $0x2a8] sm:$0xff]
  %v6329 = vld [vmem:[%s5 + $0x2b0] sm:$0xff]
  %v6330 = vld [vmem:[%s5 + $0x2b8] sm:$0xff]
  %v6331 = vld [vmem:[%s5 + $0x2c0] sm:$0xff]
  %v6332 = vld [vmem:[%s5 + $0x2c8] sm:$0xff]
  %v6333 = vld [vmem:[%s5 + $0x2d0] sm:$0xff]
  %v6334 = vld [vmem:[%s5 + $0x2d8] sm:$0xff]
  %v6335 = vld [vmem:[%s5 + $0x2e0] sm:$0xff]
  %v6336 = vld [vmem:[%s5 + $0x2e8] sm:$0xff]
  %v6337 = vld [vmem:[%s5 + $0x2f0] sm:$0xff]
  %v6338 = vld [vmem:[%s5 + $0x2f8] sm:$0xff]
  %v6339 = vld [vmem:[%s5 + $0x300] sm:$0xff]
  %v6340 = vld [vmem:[%s5 + $0x308] sm:$0xff]
  %v6341 = vld [vmem:[%s5 + $0x310] sm:$0xff]
  %v6342 = vld [vmem:[%s5 + $0x318] sm:$0xff]
  %v6343 = vld [vmem:[%s5 + $0x320] sm:$0xff]
  %v6344 = vld [vmem:[%s5 + $0x328] sm:$0xff]
  %v6345 = vld [vmem:[%s5 + $0x330] sm:$0xff]
  %v6346 = vld [vmem:[%s5 + $0x338] sm:$0xff]
  %v6347 = vld [vmem:[%s5 + $0x340] sm:$0xff]
  %v6348 = vld [vmem:[%s5 + $0x348] sm:$0xff]
  %v6349 = vld [vmem:[%s5 + $0x350] sm:$0xff]
  %v6350 = vld [vmem:[%s5 + $0x358] sm:$0xff]
  %v6351 = vld [vmem:[%s5 + $0x360] sm:$0xff]
  %v6352 = vld [vmem:[%s5 + $0x368] sm:$0xff]
  %v6353 = vld [vmem:[%s5 + $0x370] sm:$0xff]
  %v6354 = vld [vmem:[%s5 + $0x378] sm:$0xff]
  %v6355 = vld [vmem:[%s5 + $0x380] sm:$0xff]
  %v6356 = vld [vmem:[%s5 + $0x388] sm:$0xff]
  %v6357 = vld [vmem:[%s5 + $0x390] sm:$0xff]
  %v6358 = vld [vmem:[%s5 + $0x398] sm:$0xff]
  %v6359 = vld [vmem:[%s5 + $0x3a0] sm:$0xff]
  %v6360 = vld [vmem:[%s5 + $0x3a8] sm:$0xff]
  %v6361 = vld [vmem:[%s5 + $0x3b0] sm:$0xff]
  %v6362 = vld [vmem:[%s5 + $0x3b8] sm:$0xff]
  %v6363 = vld [vmem:[%s5 + $0x3c0] sm:$0xff]
  %v6364 = vld [vmem:[%s5 + $0x3c8] sm:$0xff]
  %v6365 = vld [vmem:[%s5 + $0x3d0] sm:$0xff]
  %v6366 = vld [vmem:[%s5 + $0x3d8] sm:$0xff]
  %v6367 = vld [vmem:[%s5 + $0x3e0] sm:$0xff]
  %v6368 = vld [vmem:[%s5 + $0x3e8] sm:$0xff]
  %v6369 = vld [vmem:[%s5 + $0x3f0] sm:$0xff]
  %v6370 = vld [vmem:[%s5 + $0x3f8] sm:$0xff]
  %v6371 = vld [vmem:[%s5 + $0x400] sm:$0xff]
  %v6372 = vld [vmem:[%s5 + $0x408] sm:$0xff]
  %v6373 = vld [vmem:[%s5 + $0x410] sm:$0xff]
  %v6374 = vld [vmem:[%s5 + $0x418] sm:$0xff]
  %v6375 = vld [vmem:[%s5 + $0x420] sm:$0xff]
  %v6376 = vld [vmem:[%s5 + $0x428] sm:$0xff]
  %v6377 = vld [vmem:[%s5 + $0x430] sm:$0xff]
  %v6378 = vld [vmem:[%s5 + $0x438] sm:$0xff]
  %v6379 = vld [vmem:[%s5 + $0x440] sm:$0xff]
  %v6380 = vld [vmem:[%s5 + $0x448] sm:$0xff]
  %v6381 = vld [vmem:[%s5 + $0x450] sm:$0xff]
  %v6382 = vld [vmem:[%s5 + $0x458] sm:$0xff]
  %v6383 = vld [vmem:[%s5 + $0x460] sm:$0xff]
  %v6384 = vld [vmem:[%s5 + $0x468] sm:$0xff]
  %v6385 = vld [vmem:[%s5 + $0x470] sm:$0xff]
  %v6386 = vld [vmem:[%s5 + $0x478] sm:$0xff]
  %v6387 = vld [vmem:[%s6] sm:$0x3]
  %v6389 = vlaneseq
  %v6390 = vshrl.u32 %v6389, 7
  %v6391 = vsub.s32 0, %v6390
  %v6392 = vrot.slane %v6387, %v6391
  %v6393 = vlaneseq
  %v6394 = vshrl.u32 %v6393, 7
  %v6395 = vsub.s32 1, %v6394
  %v6396 = vrot.slane %v6387, %v6395
  %v6543 = vunpack.c.l.b16 %v6243
  %v6544 = vunpack.c.h.b16 %v6243
  %v6545 = vunpack.c.l.b16 %v6244
  %v6546 = vunpack.c.h.b16 %v6244
  %v6547 = vunpack.c.l.b16 %v6245
  %v6548 = vunpack.c.h.b16 %v6245
  %v6549 = vunpack.c.l.b16 %v6246
  %v6550 = vunpack.c.h.b16 %v6246
  %v6551 = vunpack.c.l.b16 %v6247
  %v6552 = vunpack.c.h.b16 %v6247
  %v6553 = vunpack.c.l.b16 %v6248
  %v6554 = vunpack.c.h.b16 %v6248
  %v6555 = vunpack.c.l.b16 %v6249
  %v6556 = vunpack.c.h.b16 %v6249
  %v6557 = vunpack.c.l.b16 %v6250
  %v6558 = vunpack.c.h.b16 %v6250
  %v6559 = vunpack.c.l.b16 %v6251
  %v6560 = vunpack.c.h.b16 %v6251
  %v6561 = vunpack.c.l.b16 %v6252
  %v6562 = vunpack.c.h.b16 %v6252
  %v6563 = vunpack.c.l.b16 %v6253
  %v6564 = vunpack.c.h.b16 %v6253
  %v6565 = vunpack.c.l.b16 %v6254
  %v6566 = vunpack.c.h.b16 %v6254
  %v6567 = vunpack.c.l.b16 %v6255
  %v6568 = vunpack.c.h.b16 %v6255
  %v6569 = vunpack.c.l.b16 %v6256
  %v6570 = vunpack.c.h.b16 %v6256
  %v6571 = vunpack.c.l.b16 %v6257
  %v6572 = vunpack.c.h.b16 %v6257
  %v6573 = vunpack.c.l.b16 %v6258
  %v6574 = vunpack.c.h.b16 %v6258
  %v6575 = vunpack.c.l.b16 %v6259
  %v6576 = vunpack.c.h.b16 %v6259
  %v6577 = vunpack.c.l.b16 %v6260
  %v6578 = vunpack.c.h.b16 %v6260
  %v6579 = vunpack.c.l.b16 %v6261
  %v6580 = vunpack.c.h.b16 %v6261
  %v6581 = vunpack.c.l.b16 %v6262
  %v6582 = vunpack.c.h.b16 %v6262
  %v6583 = vunpack.c.l.b16 %v6263
  %v6584 = vunpack.c.h.b16 %v6263
  %v6585 = vunpack.c.l.b16 %v6264
  %v6586 = vunpack.c.h.b16 %v6264
  %v6587 = vunpack.c.l.b16 %v6265
  %v6588 = vunpack.c.h.b16 %v6265
  %v6589 = vunpack.c.l.b16 %v6266
  %v6590 = vunpack.c.h.b16 %v6266
  %v6591 = vunpack.c.l.b16 %v6267
  %v6592 = vunpack.c.h.b16 %v6267
  %v6593 = vunpack.c.l.b16 %v6268
  %v6594 = vunpack.c.h.b16 %v6268
  %v6595 = vunpack.c.l.b16 %v6269
  %v6596 = vunpack.c.h.b16 %v6269
  %v6597 = vunpack.c.l.b16 %v6270
  %v6598 = vunpack.c.h.b16 %v6270
  %v6599 = vunpack.c.l.b16 %v6271
  %v6600 = vunpack.c.h.b16 %v6271
  %v6601 = vunpack.c.l.b16 %v6272
  %v6602 = vunpack.c.h.b16 %v6272
  %v6603 = vunpack.c.l.b16 %v6273
  %v6604 = vunpack.c.h.b16 %v6273
  %v6605 = vunpack.c.l.b16 %v6274
  %v6606 = vunpack.c.h.b16 %v6274
  %v6607 = vunpack.c.l.b16 %v6275
  %v6608 = vunpack.c.h.b16 %v6275
  %v6609 = vunpack.c.l.b16 %v6276
  %v6610 = vunpack.c.h.b16 %v6276
  %v6611 = vunpack.c.l.b16 %v6277
  %v6612 = vunpack.c.h.b16 %v6277
  %v6613 = vunpack.c.l.b16 %v6278
  %v6614 = vunpack.c.h.b16 %v6278
  %v6615 = vunpack.c.l.b16 %v6279
  %v6616 = vunpack.c.h.b16 %v6279
  %v6617 = vunpack.c.l.b16 %v6280
  %v6618 = vunpack.c.h.b16 %v6280
  %v6619 = vunpack.c.l.b16 %v6281
  %v6620 = vunpack.c.h.b16 %v6281
  %v6621 = vunpack.c.l.b16 %v6282
  %v6622 = vunpack.c.h.b16 %v6282
  %v6623 = vunpack.c.l.b16 %v6283
  %v6624 = vunpack.c.h.b16 %v6283
  %v6625 = vunpack.c.l.b16 %v6284
  %v6626 = vunpack.c.h.b16 %v6284
  %v6627 = vunpack.c.l.b16 %v6285
  %v6628 = vunpack.c.h.b16 %v6285
  %v6629 = vunpack.c.l.b16 %v6286
  %v6630 = vunpack.c.h.b16 %v6286
  %v6631 = vunpack.c.l.b16 %v6287
  %v6632 = vunpack.c.h.b16 %v6287
  %v6633 = vunpack.c.l.b16 %v6288
  %v6634 = vunpack.c.h.b16 %v6288
  %v6635 = vunpack.c.l.b16 %v6289
  %v6636 = vunpack.c.h.b16 %v6289
  %v6637 = vunpack.c.l.b16 %v6290
  %v6638 = vunpack.c.h.b16 %v6290
  %v6639 = vunpack.c.l.b16 %v6291
  %v6640 = vunpack.c.h.b16 %v6291
  %v6641 = vunpack.c.l.b16 %v6292
  %v6642 = vunpack.c.h.b16 %v6292
  %v6643 = vunpack.c.l.b16 %v6293
  %v6644 = vunpack.c.h.b16 %v6293
  %v6645 = vunpack.c.l.b16 %v6294
  %v6646 = vunpack.c.h.b16 %v6294
  %v6647 = vunpack.c.l.b16 %v6295
  %v6648 = vunpack.c.h.b16 %v6295
  %v6649 = vunpack.c.l.b16 %v6296
  %v6650 = vunpack.c.h.b16 %v6296
  %v6651 = vunpack.c.l.b16 %v6297
  %v6652 = vunpack.c.h.b16 %v6297
  %v6653 = vunpack.c.l.b16 %v6298
  %v6654 = vunpack.c.h.b16 %v6298
  %v6655 = vunpack.c.l.b16 %v6299
  %v6656 = vunpack.c.h.b16 %v6299
  %v6657 = vunpack.c.l.b16 %v6300
  %v6658 = vunpack.c.h.b16 %v6300
  %v6659 = vunpack.c.l.b16 %v6301
  %v6660 = vunpack.c.h.b16 %v6301
  %v6661 = vunpack.c.l.b16 %v6302
  %v6662 = vunpack.c.h.b16 %v6302
  %v6663 = vunpack.c.l.b16 %v6303
  %v6664 = vunpack.c.h.b16 %v6303
  %v6665 = vunpack.c.l.b16 %v6304
  %v6666 = vunpack.c.h.b16 %v6304
  %v6667 = vunpack.c.l.b16 %v6305
  %v6668 = vunpack.c.h.b16 %v6305
  %v6669 = vunpack.c.l.b16 %v6306
  %v6670 = vunpack.c.h.b16 %v6306
  %v6671 = vunpack.c.l.b16 %v6307
  %v6672 = vunpack.c.h.b16 %v6307
  %v6673 = vunpack.c.l.b16 %v6308
  %v6674 = vunpack.c.h.b16 %v6308
  %v6675 = vunpack.c.l.b16 %v6309
  %v6676 = vunpack.c.h.b16 %v6309
  %v6677 = vunpack.c.l.b16 %v6310
  %v6678 = vunpack.c.h.b16 %v6310
  %v6679 = vunpack.c.l.b16 %v6311
  %v6680 = vunpack.c.h.b16 %v6311
  %v6681 = vunpack.c.l.b16 %v6312
  %v6682 = vunpack.c.h.b16 %v6312
  %v6683 = vunpack.c.l.b16 %v6313
  %v6684 = vunpack.c.h.b16 %v6313
  %v6685 = vunpack.c.l.b16 %v6314
  %v6686 = vunpack.c.h.b16 %v6314
  %v6687 = vunpack.c.l.b16 %v6315
  %v6688 = vunpack.c.h.b16 %v6315
  %v6689 = vunpack.c.l.b16 %v6316
  %v6690 = vunpack.c.h.b16 %v6316
  %v6691 = vunpack.c.l.b16 %v6317
  %v6692 = vunpack.c.h.b16 %v6317
  %v6693 = vunpack.c.l.b16 %v6318
  %v6694 = vunpack.c.h.b16 %v6318
  %v6695 = vunpack.c.l.b16 %v6319
  %v6696 = vunpack.c.h.b16 %v6319
  %v6697 = vunpack.c.l.b16 %v6320
  %v6698 = vunpack.c.h.b16 %v6320
  %v6699 = vunpack.c.l.b16 %v6321
  %v6700 = vunpack.c.h.b16 %v6321
  %v6701 = vunpack.c.l.b16 %v6322
  %v6702 = vunpack.c.h.b16 %v6322
  %v6703 = vunpack.c.l.b16 %v6323
  %v6704 = vunpack.c.h.b16 %v6323
  %v6705 = vunpack.c.l.b16 %v6324
  %v6706 = vunpack.c.h.b16 %v6324
  %v6707 = vunpack.c.l.b16 %v6325
  %v6708 = vunpack.c.h.b16 %v6325
  %v6709 = vunpack.c.l.b16 %v6326
  %v6710 = vunpack.c.h.b16 %v6326
  %v6711 = vunpack.c.l.b16 %v6327
  %v6712 = vunpack.c.h.b16 %v6327
  %v6713 = vunpack.c.l.b16 %v6328
  %v6714 = vunpack.c.h.b16 %v6328
  %v6715 = vunpack.c.l.b16 %v6329
  %v6716 = vunpack.c.h.b16 %v6329
  %v6717 = vunpack.c.l.b16 %v6330
  %v6718 = vunpack.c.h.b16 %v6330
  %v6719 = vunpack.c.l.b16 %v6331
  %v6720 = vunpack.c.h.b16 %v6331
  %v6721 = vunpack.c.l.b16 %v6332
  %v6722 = vunpack.c.h.b16 %v6332
  %v6723 = vunpack.c.l.b16 %v6333
  %v6724 = vunpack.c.h.b16 %v6333
  %v6725 = vunpack.c.l.b16 %v6334
  %v6726 = vunpack.c.h.b16 %v6334
  %v6727 = vunpack.c.l.b16 %v6335
  %v6728 = vunpack.c.h.b16 %v6335
  %v6729 = vunpack.c.l.b16 %v6336
  %v6730 = vunpack.c.h.b16 %v6336
  %v6731 = vunpack.c.l.b16 %v6337
  %v6732 = vunpack.c.h.b16 %v6337
  %v6733 = vunpack.c.l.b16 %v6338
  %v6734 = vunpack.c.h.b16 %v6338
  %v6735 = vunpack.c.l.b16 %v6339
  %v6736 = vunpack.c.h.b16 %v6339
  %v6737 = vunpack.c.l.b16 %v6340
  %v6738 = vunpack.c.h.b16 %v6340
  %v6739 = vunpack.c.l.b16 %v6341
  %v6740 = vunpack.c.h.b16 %v6341
  %v6741 = vunpack.c.l.b16 %v6342
  %v6742 = vunpack.c.h.b16 %v6342
  %v6743 = vunpack.c.l.b16 %v6343
  %v6744 = vunpack.c.h.b16 %v6343
  %v6745 = vunpack.c.l.b16 %v6344
  %v6746 = vunpack.c.h.b16 %v6344
  %v6747 = vunpack.c.l.b16 %v6345
  %v6748 = vunpack.c.h.b16 %v6345
  %v6749 = vunpack.c.l.b16 %v6346
  %v6750 = vunpack.c.h.b16 %v6346
  %v6751 = vunpack.c.l.b16 %v6347
  %v6752 = vunpack.c.h.b16 %v6347
  %v6753 = vunpack.c.l.b16 %v6348
  %v6754 = vunpack.c.h.b16 %v6348
  %v6755 = vunpack.c.l.b16 %v6349
  %v6756 = vunpack.c.h.b16 %v6349
  %v6757 = vunpack.c.l.b16 %v6350
  %v6758 = vunpack.c.h.b16 %v6350
  %v6759 = vunpack.c.l.b16 %v6351
  %v6760 = vunpack.c.h.b16 %v6351
  %v6761 = vunpack.c.l.b16 %v6352
  %v6762 = vunpack.c.h.b16 %v6352
  %v6763 = vunpack.c.l.b16 %v6353
  %v6764 = vunpack.c.h.b16 %v6353
  %v6765 = vunpack.c.l.b16 %v6354
  %v6766 = vunpack.c.h.b16 %v6354
  %v6767 = vunpack.c.l.b16 %v6355
  %v6768 = vunpack.c.h.b16 %v6355
  %v6769 = vunpack.c.l.b16 %v6356
  %v6770 = vunpack.c.h.b16 %v6356
  %v6771 = vunpack.c.l.b16 %v6357
  %v6772 = vunpack.c.h.b16 %v6357
  %v6773 = vunpack.c.l.b16 %v6358
  %v6774 = vunpack.c.h.b16 %v6358
  %v6775 = vunpack.c.l.b16 %v6359
  %v6776 = vunpack.c.h.b16 %v6359
  %v6777 = vunpack.c.l.b16 %v6360
  %v6778 = vunpack.c.h.b16 %v6360
  %v6779 = vunpack.c.l.b16 %v6361
  %v6780 = vunpack.c.h.b16 %v6361
  %v6781 = vunpack.c.l.b16 %v6362
  %v6782 = vunpack.c.h.b16 %v6362
  %v6783 = vunpack.c.l.b16 %v6363
  %v6784 = vunpack.c.h.b16 %v6363
  %v6785 = vunpack.c.l.b16 %v6364
  %v6786 = vunpack.c.h.b16 %v6364
  %v6787 = vunpack.c.l.b16 %v6365
  %v6788 = vunpack.c.h.b16 %v6365
  %v6789 = vunpack.c.l.b16 %v6366
  %v6790 = vunpack.c.h.b16 %v6366
  %v6791 = vunpack.c.l.b16 %v6367
  %v6792 = vunpack.c.h.b16 %v6367
  %v6793 = vunpack.c.l.b16 %v6368
  %v6794 = vunpack.c.h.b16 %v6368
  %v6795 = vunpack.c.l.b16 %v6369
  %v6796 = vunpack.c.h.b16 %v6369
  %v6797 = vunpack.c.l.b16 %v6370
  %v6798 = vunpack.c.h.b16 %v6370
  %v6799 = vunpack.c.l.b16 %v6371
  %v6800 = vunpack.c.h.b16 %v6371
  %v6801 = vunpack.c.l.b16 %v6372
  %v6802 = vunpack.c.h.b16 %v6372
  %v6803 = vunpack.c.l.b16 %v6373
  %v6804 = vunpack.c.h.b16 %v6373
  %v6805 = vunpack.c.l.b16 %v6374
  %v6806 = vunpack.c.h.b16 %v6374
  %v6807 = vunpack.c.l.b16 %v6375
  %v6808 = vunpack.c.h.b16 %v6375
  %v6809 = vunpack.c.l.b16 %v6376
  %v6810 = vunpack.c.h.b16 %v6376
  %v6811 = vunpack.c.l.b16 %v6377
  %v6812 = vunpack.c.h.b16 %v6377
  %v6813 = vunpack.c.l.b16 %v6378
  %v6814 = vunpack.c.h.b16 %v6378
  %v6815 = vunpack.c.l.b16 %v6379
  %v6816 = vunpack.c.h.b16 %v6379
  %v6817 = vunpack.c.l.b16 %v6380
  %v6818 = vunpack.c.h.b16 %v6380
  %v6819 = vunpack.c.l.b16 %v6381
  %v6820 = vunpack.c.h.b16 %v6381
  %v6821 = vunpack.c.l.b16 %v6382
  %v6822 = vunpack.c.h.b16 %v6382
  %v6823 = vunpack.c.l.b16 %v6383
  %v6824 = vunpack.c.h.b16 %v6383
  %v6825 = vunpack.c.l.b16 %v6384
  %v6826 = vunpack.c.h.b16 %v6384
  %v6827 = vunpack.c.l.b16 %v6385
  %v6828 = vunpack.c.h.b16 %v6385
  %v6829 = vunpack.c.l.b16 %v6386
  %v6830 = vunpack.c.h.b16 %v6386
  %v6831 = vpack.c.b16 %v6545, %v6543
  %v6832 = vpack.c.b16 %v6546, %v6544
  %v6833 = vpack.c.b16 %v6549, %v6547
  %v6834 = vpack.c.b16 %v6550, %v6548
  %v6835 = vpack.c.b16 %v6553, %v6551
  %v6836 = vpack.c.b16 %v6554, %v6552
  %v6837 = vpack.c.b16 %v6557, %v6555
  %v6838 = vpack.c.b16 %v6558, %v6556
  %v6839 = vpack.c.b16 %v6561, %v6559
  %v6840 = vpack.c.b16 %v6562, %v6560
  %v6841 = vpack.c.b16 %v6565, %v6563
  %v6842 = vpack.c.b16 %v6566, %v6564
  %v6843 = vpack.c.b16 %v6569, %v6567
  %v6844 = vpack.c.b16 %v6570, %v6568
  %v6845 = vpack.c.b16 %v6573, %v6571
  %v6846 = vpack.c.b16 %v6574, %v6572
  %v6847 = vpack.c.b16 %v6577, %v6575
  %v6848 = vpack.c.b16 %v6578, %v6576
  %v6849 = vpack.c.b16 %v6581, %v6579
  %v6850 = vpack.c.b16 %v6582, %v6580
  %v6851 = vpack.c.b16 %v6585, %v6583
  %v6852 = vpack.c.b16 %v6586, %v6584
  %v6853 = vpack.c.b16 %v6589, %v6587
  %v6854 = vpack.c.b16 %v6590, %v6588
  %v6855 = vpack.c.b16 %v6593, %v6591
  %v6856 = vpack.c.b16 %v6594, %v6592
  %v6857 = vpack.c.b16 %v6597, %v6595
  %v6858 = vpack.c.b16 %v6598, %v6596
  %v6859 = vpack.c.b16 %v6601, %v6599
  %v6860 = vpack.c.b16 %v6602, %v6600
  %v6861 = vpack.c.b16 %v6605, %v6603
  %v6862 = vpack.c.b16 %v6606, %v6604
  %v6863 = vpack.c.b16 %v6609, %v6607
  %v6864 = vpack.c.b16 %v6610, %v6608
  %v6865 = vpack.c.b16 %v6613, %v6611
  %v6866 = vpack.c.b16 %v6614, %v6612
  %v6867 = vpack.c.b16 %v6617, %v6615
  %v6868 = vpack.c.b16 %v6618, %v6616
  %v6869 = vpack.c.b16 %v6621, %v6619
  %v6870 = vpack.c.b16 %v6622, %v6620
  %v6871 = vpack.c.b16 %v6625, %v6623
  %v6872 = vpack.c.b16 %v6626, %v6624
  %v6873 = vpack.c.b16 %v6629, %v6627
  %v6874 = vpack.c.b16 %v6630, %v6628
  %v6875 = vpack.c.b16 %v6633, %v6631
  %v6876 = vpack.c.b16 %v6634, %v6632
  %v6877 = vpack.c.b16 %v6637, %v6635
  %v6878 = vpack.c.b16 %v6638, %v6636
  %v6879 = vpack.c.b16 %v6641, %v6639
  %v6880 = vpack.c.b16 %v6642, %v6640
  %v6881 = vpack.c.b16 %v6645, %v6643
  %v6882 = vpack.c.b16 %v6646, %v6644
  %v6883 = vpack.c.b16 %v6649, %v6647
  %v6884 = vpack.c.b16 %v6650, %v6648
  %v6885 = vpack.c.b16 %v6653, %v6651
  %v6886 = vpack.c.b16 %v6654, %v6652
  %v6887 = vpack.c.b16 %v6657, %v6655
  %v6888 = vpack.c.b16 %v6658, %v6656
  %v6889 = vpack.c.b16 %v6661, %v6659
  %v6890 = vpack.c.b16 %v6662, %v6660
  %v6891 = vpack.c.b16 %v6665, %v6663
  %v6892 = vpack.c.b16 %v6666, %v6664
  %v6893 = vpack.c.b16 %v6669, %v6667
  %v6894 = vpack.c.b16 %v6670, %v6668
  %v6895 = vpack.c.b16 %v6673, %v6671
  %v6896 = vpack.c.b16 %v6674, %v6672
  %v6897 = vpack.c.b16 %v6677, %v6675
  %v6898 = vpack.c.b16 %v6678, %v6676
  %v6899 = vpack.c.b16 %v6681, %v6679
  %v6900 = vpack.c.b16 %v6682, %v6680
  %v6901 = vpack.c.b16 %v6685, %v6683
  %v6902 = vpack.c.b16 %v6686, %v6684
  %v6903 = vpack.c.b16 %v6689, %v6687
  %v6904 = vpack.c.b16 %v6690, %v6688
  %v6905 = vpack.c.b16 %v6693, %v6691
  %v6906 = vpack.c.b16 %v6694, %v6692
  %v6907 = vpack.c.b16 %v6697, %v6695
  %v6908 = vpack.c.b16 %v6698, %v6696
  %v6909 = vpack.c.b16 %v6701, %v6699
  %v6910 = vpack.c.b16 %v6702, %v6700
  %v6911 = vpack.c.b16 %v6705, %v6703
  %v6912 = vpack.c.b16 %v6706, %v6704
  %v6913 = vpack.c.b16 %v6709, %v6707
  %v6914 = vpack.c.b16 %v6710, %v6708
  %v6915 = vpack.c.b16 %v6713, %v6711
  %v6916 = vpack.c.b16 %v6714, %v6712
  %v6917 = vpack.c.b16 %v6717, %v6715
  %v6918 = vpack.c.b16 %v6718, %v6716
  %v6919 = vpack.c.b16 %v6721, %v6719
  %v6920 = vpack.c.b16 %v6722, %v6720
  %v6921 = vpack.c.b16 %v6725, %v6723
  %v6922 = vpack.c.b16 %v6726, %v6724
  %v6923 = vpack.c.b16 %v6729, %v6727
  %v6924 = vpack.c.b16 %v6730, %v6728
  %v6925 = vpack.c.b16 %v6733, %v6731
  %v6926 = vpack.c.b16 %v6734, %v6732
  %v6927 = vpack.c.b16 %v6737, %v6735
  %v6928 = vpack.c.b16 %v6738, %v6736
  %v6929 = vpack.c.b16 %v6741, %v6739
  %v6930 = vpack.c.b16 %v6742, %v6740
  %v6931 = vpack.c.b16 %v6745, %v6743
  %v6932 = vpack.c.b16 %v6746, %v6744
  %v6933 = vpack.c.b16 %v6749, %v6747
  %v6934 = vpack.c.b16 %v6750, %v6748
  %v6935 = vpack.c.b16 %v6753, %v6751
  %v6936 = vpack.c.b16 %v6754, %v6752
  %v6937 = vpack.c.b16 %v6757, %v6755
  %v6938 = vpack.c.b16 %v6758, %v6756
  %v6939 = vpack.c.b16 %v6761, %v6759
  %v6940 = vpack.c.b16 %v6762, %v6760
  %v6941 = vpack.c.b16 %v6765, %v6763
  %v6942 = vpack.c.b16 %v6766, %v6764
  %v6943 = vpack.c.b16 %v6769, %v6767
  %v6944 = vpack.c.b16 %v6770, %v6768
  %v6945 = vpack.c.b16 %v6773, %v6771
  %v6946 = vpack.c.b16 %v6774, %v6772
  %v6947 = vpack.c.b16 %v6777, %v6775
  %v6948 = vpack.c.b16 %v6778, %v6776
  %v6949 = vpack.c.b16 %v6781, %v6779
  %v6950 = vpack.c.b16 %v6782, %v6780
  %v6951 = vpack.c.b16 %v6785, %v6783
  %v6952 = vpack.c.b16 %v6786, %v6784
  %v6953 = vpack.c.b16 %v6789, %v6787
  %v6954 = vpack.c.b16 %v6790, %v6788
  %v6955 = vpack.c.b16 %v6793, %v6791
  %v6956 = vpack.c.b16 %v6794, %v6792
  %v6957 = vpack.c.b16 %v6797, %v6795
  %v6958 = vpack.c.b16 %v6798, %v6796
  %v6959 = vpack.c.b16 %v6801, %v6799
  %v6960 = vpack.c.b16 %v6802, %v6800
  %v6961 = vpack.c.b16 %v6805, %v6803
  %v6962 = vpack.c.b16 %v6806, %v6804
  %v6963 = vpack.c.b16 %v6809, %v6807
  %v6964 = vpack.c.b16 %v6810, %v6808
  %v6965 = vpack.c.b16 %v6813, %v6811
  %v6966 = vpack.c.b16 %v6814, %v6812
  %v6967 = vpack.c.b16 %v6817, %v6815
  %v6968 = vpack.c.b16 %v6818, %v6816
  %v6969 = vpack.c.b16 %v6821, %v6819
  %v6970 = vpack.c.b16 %v6822, %v6820
  %v6971 = vpack.c.b16 %v6825, %v6823
  %v6972 = vpack.c.b16 %v6826, %v6824
  %v6973 = vpack.c.b16 %v6829, %v6827
  %v6974 = vpack.c.b16 %v6830, %v6828
  %7119 = vmatprep.subr.bf16.mxu0 %v6832
  %7120 = vmatpush1.bf16.msra.mxu0 %v6831
  %7121 = vmatprep.subr.bf16.mxu0 %v6834
  %7122 = vmatpush1.bf16.msra.mxu0 %v6833
  %7123 = vmatprep.subr.bf16.mxu0 %v6836
  %7124 = vmatpush1.bf16.msra.mxu0 %v6835
  %7125 = vmatprep.subr.bf16.mxu0 %v6838
  %7126 = vmatpush1.bf16.msra.mxu0 %v6837
  %7127 = vmatprep.subr.bf16.mxu0 %v6840
  %7128 = vmatpush1.bf16.msra.mxu0 %v6839
  %7129 = vmatprep.subr.bf16.mxu0 %v6842
  %7130 = vmatpush1.bf16.msra.mxu0 %v6841
  %7131 = vmatprep.subr.bf16.mxu0 %v6844
  %7132 = vmatpush1.bf16.msra.mxu0 %v6843
  %7133 = vmatprep.subr.bf16.mxu0 %v6846
  %7134 = vmatpush1.bf16.msra.mxu0 %v6845
  %7135 = vmatprep.subr.bf16.mxu0 %v6848
  %7136 = vmatpush1.bf16.msra.mxu0 %v6847
  %7137 = vmatprep.subr.bf16.mxu0 %v6850
  %7138 = vmatpush1.bf16.msra.mxu0 %v6849
  %7139 = vmatprep.subr.bf16.mxu0 %v6852
  %7140 = vmatpush1.bf16.msra.mxu0 %v6851
  %7141 = vmatprep.subr.bf16.mxu0 %v6854
  %7142 = vmatpush1.bf16.msra.mxu0 %v6853
  %7143 = vmatprep.subr.bf16.mxu0 %v6856
  %7144 = vmatpush1.bf16.msra.mxu0 %v6855
  %7145 = vmatprep.subr.bf16.mxu0 %v6858
  %7146 = vmatpush1.bf16.msra.mxu0 %v6857
  %7147 = vmatprep.subr.bf16.mxu0 %v6860
  %7148 = vmatpush1.bf16.msra.mxu0 %v6859
  %7149 = vmatprep.subr.bf16.mxu0 %v6862
  %7150 = vmatpush1.bf16.msra.mxu0 %v6861
  %7151 = vmatprep.mubr.bf16.mxu0 %v6226
  %7152 = vmatmul.mubr.bf16.gmra.mrb[0].mxu0 %v6225
  %v7153 = vpop.f32.mrb[0].mxu0
  %v7154 = vadd.f32 %v6392, %v7153
  %v7155 = vpop.f32.mrb[0].mxu0
  %v7156 = vadd.f32 %v6396, %v7155
  %v7157 = vpop.f32.mrb[0].mxu0
  %v7158 = vadd.f32 %v6392, %v7157
  %v7159 = vpop.f32.mrb[0].mxu0
  %v7160 = vadd.f32 %v6396, %v7159
  %7161 = vmatprep.mubr.bf16.mxu0 %v6235
  %7162 = vmatmul.mubr.bf16.gmra.mrb[0].mxu0 %v6234
  %v7163 = vpop.f32.mrb[0].mxu0
  %v7164 = vadd.f32 %v6392, %v7163
  %v7165 = vpop.f32.mrb[0].mxu0
  %v7166 = vadd.f32 %v6396, %v7165
  %v7167 = vpop.f32.mrb[0].mxu0
  %v7168 = vadd.f32 %v6392, %v7167
  %v7169 = vpop.f32.mrb[0].mxu0
  %v7170 = vadd.f32 %v6396, %v7169
  %7171 = vdwg.mxu0
  %7172 = vmatprep.subr.bf16.mxu0 %v6864
  %7173 = vmatpush1.bf16.msra.mxu0 %v6863
  %7174 = vmatprep.subr.bf16.mxu0 %v6866
  %7175 = vmatpush1.bf16.msra.mxu0 %v6865
  %7176 = vmatprep.subr.bf16.mxu0 %v6868
  %7177 = vmatpush1.bf16.msra.mxu0 %v6867
  %7178 = vmatprep.subr.bf16.mxu0 %v6870
  %7179 = vmatpush1.bf16.msra.mxu0 %v6869
  %7180 = vmatprep.subr.bf16.mxu0 %v6872
  %7181 = vmatpush1.bf16.msra.mxu0 %v6871
  %7182 = vmatprep.subr.bf16.mxu0 %v6874
  %7183 = vmatpush1.bf16.msra.mxu0 %v6873
  %7184 = vmatprep.subr.bf16.mxu0 %v6876
  %7185 = vmatpush1.bf16.msra.mxu0 %v6875
  %7186 = vmatprep.subr.bf16.mxu0 %v6878
  %7187 = vmatpush1.bf16.msra.mxu0 %v6877
  %7188 = vmatprep.subr.bf16.mxu0 %v6880
  %7189 = vmatpush1.bf16.msra.mxu0 %v6879
  %7190 = vmatprep.subr.bf16.mxu0 %v6882
  %7191 = vmatpush1.bf16.msra.mxu0 %v6881
  %7192 = vmatprep.subr.bf16.mxu0 %v6884
  %7193 = vmatpush1.bf16.msra.mxu0 %v6883
  %7194 = vmatprep.subr.bf16.mxu0 %v6886
  %7195 = vmatpush1.bf16.msra.mxu0 %v6885
  %7196 = vmatprep.subr.bf16.mxu0 %v6888
  %7197 = vmatpush1.bf16.msra.mxu0 %v6887
  %7198 = vmatprep.subr.bf16.mxu0 %v6890
  %7199 = vmatpush1.bf16.msra.mxu0 %v6889
  %7200 = vmatprep.subr.bf16.mxu0 %v6892
  %7201 = vmatpush1.bf16.msra.mxu0 %v6891
  %7202 = vmatprep.subr.bf16.mxu0 %v6894
  %7203 = vmatpush1.bf16.msra.mxu0 %v6893
  %7204 = vmatprep.mubr.bf16.mxu0 %v6228
  %7205 = vmatmul.mubr.bf16.gmra.mrb[0].mxu0 %v6227
  %v7206 = vpop.f32.mrb[0].mxu0
  %v7207 = vadd.f32 %v7154, %v7206
  %v7208 = vpop.f32.mrb[0].mxu0
  %v7209 = vadd.f32 %v7156, %v7208
  %v7210 = vpop.f32.mrb[0].mxu0
  %v7211 = vadd.f32 %v7158, %v7210
  %v7212 = vpop.f32.mrb[0].mxu0
  %v7213 = vadd.f32 %v7160, %v7212
  %7214 = vmatprep.mubr.bf16.mxu0 %v6237
  %7215 = vmatmul.mubr.bf16.gmra.mrb[0].mxu0 %v6236
  %v7216 = vpop.f32.mrb[0].mxu0
  %v7217 = vadd.f32 %v7164, %v7216
  %v7218 = vpop.f32.mrb[0].mxu0
  %v7219 = vadd.f32 %v7166, %v7218
  %v7220 = vpop.f32.mrb[0].mxu0
  %v7221 = vadd.f32 %v7168, %v7220
  %v7222 = vpop.f32.mrb[0].mxu0
  %v7223 = vadd.f32 %v7170, %v7222
  %7224 = vdwg.mxu0
  %7225 = vmatprep.subr.bf16.mxu0 %v6896
  %7226 = vmatpush1.bf16.msra.mxu0 %v6895
  %7227 = vmatprep.subr.bf16.mxu0 %v6898
  %7228 = vmatpush1.bf16.msra.mxu0 %v6897
  %7229 = vmatprep.subr.bf16.mxu0 %v6900
  %7230 = vmatpush1.bf16.msra.mxu0 %v6899
  %7231 = vmatprep.subr.bf16.mxu0 %v6902
  %7232 = vmatpush1.bf16.msra.mxu0 %v6901
  %7233 = vmatprep.subr.bf16.mxu0 %v6904
  %7234 = vmatpush1.bf16.msra.mxu0 %v6903
  %7235 = vmatprep.subr.bf16.mxu0 %v6906
  %7236 = vmatpush1.bf16.msra.mxu0 %v6905
  %7237 = vmatprep.subr.bf16.mxu0 %v6908
  %7238 = vmatpush1.bf16.msra.mxu0 %v6907
  %7239 = vmatprep.subr.bf16.mxu0 %v6910
  %7240 = vmatpush1.bf16.msra.mxu0 %v6909
  %7241 = vmatprep.subr.bf16.mxu0 %v6912
  %7242 = vmatpush1.bf16.msra.mxu0 %v6911
  %7243 = vmatprep.subr.bf16.mxu0 %v6914
  %7244 = vmatpush1.bf16.msra.mxu0 %v6913
  %7245 = vmatprep.subr.bf16.mxu0 %v6916
  %7246 = vmatpush1.bf16.msra.mxu0 %v6915
  %7247 = vmatprep.subr.bf16.mxu0 %v6918
  %7248 = vmatpush1.bf16.msra.mxu0 %v6917
  %7249 = vmatprep.subr.bf16.mxu0 %v6920
  %7250 = vmatpush1.bf16.msra.mxu0 %v6919
  %7251 = vmatprep.subr.bf16.mxu0 %v6922
  %7252 = vmatpush1.bf16.msra.mxu0 %v6921
  %7253 = vmatprep.subr.bf16.mxu0 %v6924
  %7254 = vmatpush1.bf16.msra.mxu0 %v6923
  %7255 = vmatprep.subr.bf16.mxu0 %v6926
  %7256 = vmatpush1.bf16.msra.mxu0 %v6925
  %7257 = vmatprep.mubr.bf16.mxu0 %v6230
  %7258 = vmatmul.mubr.bf16.gmra.mrb[0].mxu0 %v6229
  %v7259 = vpop.f32.mrb[0].mxu0
  %v7260 = vadd.f32 %v7207, %v7259
  %v7261 = vpop.f32.mrb[0].mxu0
  %v7262 = vadd.f32 %v7209, %v7261
  %v7263 = vpop.f32.mrb[0].mxu0
  %v7264 = vadd.f32 %v7211, %v7263
  %v7265 = vpop.f32.mrb[0].mxu0
  %v7266 = vadd.f32 %v7213, %v7265
  %7267 = vmatprep.mubr.bf16.mxu0 %v6239
  %7268 = vmatmul.mubr.bf16.gmra.mrb[0].mxu0 %v6238
  %v7269 = vpop.f32.mrb[0].mxu0
  %v7270 = vadd.f32 %v7217, %v7269
  %v7271 = vpop.f32.mrb[0].mxu0
  %v7272 = vadd.f32 %v7219, %v7271
  %v7273 = vpop.f32.mrb[0].mxu0
  %v7274 = vadd.f32 %v7221, %v7273
  %v7275 = vpop.f32.mrb[0].mxu0
  %v7276 = vadd.f32 %v7223, %v7275
  %7277 = vdwg.mxu0
  %7278 = vmatprep.subr.bf16.mxu0 %v6928
  %7279 = vmatpush1.bf16.msra.mxu0 %v6927
  %7280 = vmatprep.subr.bf16.mxu0 %v6930
  %7281 = vmatpush1.bf16.msra.mxu0 %v6929
  %7282 = vmatprep.subr.bf16.mxu0 %v6932
  %7283 = vmatpush1.bf16.msra.mxu0 %v6931
  %7284 = vmatprep.subr.bf16.mxu0 %v6934
  %7285 = vmatpush1.bf16.msra.mxu0 %v6933
  %7286 = vmatprep.subr.bf16.mxu0 %v6936
  %7287 = vmatpush1.bf16.msra.mxu0 %v6935
  %7288 = vmatprep.subr.bf16.mxu0 %v6938
  %7289 = vmatpush1.bf16.msra.mxu0 %v6937
  %7290 = vmatprep.subr.bf16.mxu0 %v6940
  %7291 = vmatpush1.bf16.msra.mxu0 %v6939
  %7292 = vmatprep.subr.bf16.mxu0 %v6942
  %7293 = vmatpush1.bf16.msra.mxu0 %v6941
  %7294 = vmatprep.subr.bf16.mxu0 %v6944
  %7295 = vmatpush1.bf16.msra.mxu0 %v6943
  %7296 = vmatprep.subr.bf16.mxu0 %v6946
  %7297 = vmatpush1.bf16.msra.mxu0 %v6945
  %7298 = vmatprep.subr.bf16.mxu0 %v6948
  %7299 = vmatpush1.bf16.msra.mxu0 %v6947
  %7300 = vmatprep.subr.bf16.mxu0 %v6950
  %7301 = vmatpush1.bf16.msra.mxu0 %v6949
  %7302 = vmatprep.subr.bf16.mxu0 %v6952
  %7303 = vmatpush1.bf16.msra.mxu0 %v6951
  %7304 = vmatprep.subr.bf16.mxu0 %v6954
  %7305 = vmatpush1.bf16.msra.mxu0 %v6953
  %7306 = vmatprep.subr.bf16.mxu0 %v6956
  %7307 = vmatpush1.bf16.msra.mxu0 %v6955
  %7308 = vmatprep.subr.bf16.mxu0 %v6958
  %7309 = vmatpush1.bf16.msra.mxu0 %v6957
  %7310 = vmatprep.mubr.bf16.mxu0 %v6232
  %7311 = vmatmul.mubr.bf16.gmra.mrb[0].mxu0 %v6231
  %v7312 = vpop.f32.mrb[0].mxu0
  %v7313 = vadd.f32 %v7260, %v7312
  %v7314 = vpop.f32.mrb[0].mxu0
  %v7315 = vadd.f32 %v7262, %v7314
  %v7316 = vpop.f32.mrb[0].mxu0
  %v7317 = vadd.f32 %v7264, %v7316
  %v7318 = vpop.f32.mrb[0].mxu0
  %v7319 = vadd.f32 %v7266, %v7318
  %7320 = vmatprep.mubr.bf16.mxu0 %v6241
  %7321 = vmatmul.mubr.bf16.gmra.mrb[0].mxu0 %v6240
  %v7322 = vpop.f32.mrb[0].mxu0
  %v7323 = vadd.f32 %v7270, %v7322
  %v7324 = vpop.f32.mrb[0].mxu0
  %v7325 = vadd.f32 %v7272, %v7324
  %v7326 = vpop.f32.mrb[0].mxu0
  %v7327 = vadd.f32 %v7274, %v7326
  %v7328 = vpop.f32.mrb[0].mxu0
  %v7329 = vadd.f32 %v7276, %v7328
  %7330 = vdwg.mxu0
  %7331 = vmatprep.subr.bf16.mxu0 %v6960
  %7332 = vmatpush1.bf16.msra.mxu0 %v6959
  %7333 = vmatprep.subr.bf16.mxu0 %v6962
  %7334 = vmatpush1.bf16.msra.mxu0 %v6961
  %7335 = vmatprep.subr.bf16.mxu0 %v6964
  %7336 = vmatpush1.bf16.msra.mxu0 %v6963
  %7337 = vmatprep.subr.bf16.mxu0 %v6966
  %7338 = vmatpush1.bf16.msra.mxu0 %v6965
  %7339 = vmatprep.subr.bf16.mxu0 %v6968
  %7340 = vmatpush1.bf16.msra.mxu0 %v6967
  %7341 = vmatprep.subr.bf16.mxu0 %v6970
  %7342 = vmatpush1.bf16.msra.mxu0 %v6969
  %7343 = vmatprep.subr.bf16.mxu0 %v6972
  %7344 = vmatpush1.bf16.msra.mxu0 %v6971
  %7345 = vmatprep.subr.bf16.mxu0 %v6974
  %7346 = vmatpush1.bf16.msra.mxu0 %v6973
  %7347 = vmatprep.subr.bf16.mxu0 0
  %7348 = vmatpush1.bf16.msra.mxu0 0
  %7349 = vmatprep.subr.bf16.mxu0 0
  %7350 = vmatpush1.bf16.msra.mxu0 0
  %7351 = vmatprep.subr.bf16.mxu0 0
  %7352 = vmatpush1.bf16.msra.mxu0 0
  %7353 = vmatprep.subr.bf16.mxu0 0
  %7354 = vmatpush1.bf16.msra.mxu0 0
  %7355 = vmatprep.subr.bf16.mxu0 0
  %7356 = vmatpush1.bf16.msra.mxu0 0
  %7357 = vmatprep.subr.bf16.mxu0 0
  %7358 = vmatpush1.bf16.msra.mxu0 0
  %7359 = vmatprep.subr.bf16.mxu0 0
  %7360 = vmatpush1.bf16.msra.mxu0 0
  %7361 = vmatprep.subr.bf16.mxu0 0
  %7362 = vmatpush1.bf16.msra.mxu0 0
  %7363 = vmatprep.mubr.bf16.mxu0 0
  %7364 = vmatmul.mubr.bf16.gmra.mrb[0].mxu0 %v6233
  %v7365 = vpop.f32.mrb[0].mxu0
  %v7366 = vadd.f32 %v7313, %v7365
  %v7367 = vpop.f32.mrb[0].mxu0
  %v7368 = vadd.f32 %v7315, %v7367
  %v7369 = vpop.f32.mrb[0].mxu0
  %v7370 = vadd.f32 %v7317, %v7369
  %v7371 = vpop.f32.mrb[0].mxu0
  %v7372 = vadd.f32 %v7319, %v7371
  %7373 = vmatprep.mubr.bf16.mxu0 0
  %7374 = vmatmul.mubr.bf16.gmra.mrb[0].mxu0 %v6242
  %v7375 = vpop.f32.mrb[0].mxu0
  %v7376 = vadd.f32 %v7323, %v7375
  %v7377 = vpop.f32.mrb[0].mxu0
  %v7378 = vadd.f32 %v7325, %v7377
  %v7379 = vpop.f32.mrb[0].mxu0
  %v7380 = vadd.f32 %v7327, %v7379
  %v7381 = vpop.f32.mrb[0].mxu0
  %v7382 = vadd.f32 %v7329, %v7381
  %7383 = vdwg.mxu0
  %vm7384 = vcmp.gt.f32.partialorder %v7366, 0.0
  %vm7385 = vcmp.gt.f32.partialorder %v7368, 0.0
  %vm7386 = vcmp.gt.f32.partialorder %v7370, 0.0
  %vm7387 = vcmp.gt.f32.partialorder %v7372, 0.0
  %vm7388 = vcmp.gt.f32.partialorder %v7376, 0.0
  %vm7389 = vcmp.gt.f32.partialorder %v7378, 0.0
  %vm7390 = vcmp.gt.f32.partialorder %v7380, 0.0
  %vm7391 = vcmp.gt.f32.partialorder %v7382, 0.0
  %v7392 = vmul.f32 %v7366, 0.2
  %v7393 = vmul.f32 %v7368, 0.2
  %v7394 = vmul.f32 %v7370, 0.2
  %v7395 = vmul.f32 %v7372, 0.2
  %v7396 = vmul.f32 %v7376, 0.2
  %v7397 = vmul.f32 %v7378, 0.2
  %v7398 = vmul.f32 %v7380, 0.2
  %v7399 = vmul.f32 %v7382, 0.2
  %v7400 = vsel %vm7384, %v7366, %v7392
  %v7401 = vsel %vm7385, %v7368, %v7393
  %v7402 = vsel %vm7386, %v7370, %v7394
  %v7403 = vsel %vm7387, %v7372, %v7395
  %v7404 = vsel %vm7388, %v7376, %v7396
  %v7405 = vsel %vm7389, %v7378, %v7397
  %v7406 = vsel %vm7390, %v7380, %v7398
  %v7407 = vsel %vm7391, %v7382, %v7399
  %7408 = vst [vmem:[#allocation8] sm:$0xff] 0.0
  %7409 = vst [vmem:[#allocation8 + $0x8] sm:$0xff] 0.0
  %7410 = vst [vmem:[#allocation8 + $0x10] sm:$0xff] 0.0
  %7411 = vst [vmem:[#allocation8 + $0x18] sm:$0xff] 0.0
  %7412 = vst [vmem:[#allocation8 + $0x20] sm:$0xff] 0.0
  %7413 = vst [vmem:[#allocation8 + $0x28] sm:$0xff] 0.0
  %7414 = vst [vmem:[#allocation8 + $0x30] sm:$0xff] 0.0
  %7415 = vst [vmem:[#allocation8 + $0x38] sm:$0xff] 0.0
  %7416 = vst [vmem:[#allocation8 + $0x40] sm:$0xff] 0.0
  %7417 = vst [vmem:[#allocation8 + $0x48] sm:$0xff] 0.0
  %7418 = vst [vmem:[#allocation8 + $0x50] sm:$0xff] 0.0
  %7419 = vst [vmem:[#allocation8 + $0x58] sm:$0xff] 0.0
  %7420 = vst [vmem:[#allocation8 + $0x60] sm:$0xff] 0.0
  %7421 = vst [vmem:[#allocation8 + $0x68] sm:$0xff] 0.0
  %7422 = vst [vmem:[#allocation8 + $0x70] sm:$0xff] 0.0
  %7423 = vst [vmem:[#allocation8 + $0x78] sm:$0xff] 0.0
  %7424 = vst [vmem:[#allocation8 + $0x80] sm:$0xff] 0.0
  %7425 = vst [vmem:[#allocation8 + $0x88] sm:$0xff] 0.0
  %7426 = vst [vmem:[#allocation8 + $0x90] sm:$0xff] 0.0
  %7427 = vst [vmem:[#allocation8 + $0x98] sm:$0xff] 0.0
  %7428 = vst [vmem:[#allocation8 + $0xa0] sm:$0xff] 0.0
  %7429 = vst [vmem:[#allocation8 + $0xa8] sm:$0xff] 0.0
  %7430 = vst [vmem:[#allocation8 + $0xb0] sm:$0xff] 0.0
  %7431 = vst [vmem:[#allocation8 + $0xb8] sm:$0xff] 0.0
  %7432 = vst [vmem:[#allocation8 + $0xc0] sm:$0xff] 0.0
  %7433 = vst [vmem:[#allocation8 + $0xc8] sm:$0xff] 0.0
  %7434 = vst [vmem:[#allocation8 + $0xd0] sm:$0xff] 0.0
  %7435 = vst [vmem:[#allocation8 + $0xd8] sm:$0xff] 0.0
  %7436 = vst [vmem:[#allocation8 + $0xe0] sm:$0xff] 0.0
  %7437 = vst [vmem:[#allocation8 + $0xe8] sm:$0xff] 0.0
  %7438 = vst [vmem:[#allocation8 + $0xf0] sm:$0xff] 0.0
  %7439 = vst [vmem:[#allocation8 + $0xf8] sm:$0xff] 0.0
  %s7440 = scalar_lea.vmem [#allocation8], 80
  %7441 = vst [vmem:[%s7440] sm:$0xff] %v7400
  %7442 = vst [vmem:[%s7440 + $0x8] sm:$0xff] %v7401
  %7443 = vst [vmem:[%s7440 + $0x10] sm:$0xff] %v7402
  %7444 = vst [vmem:[%s7440 + $0x18] sm:$0xff] %v7403
  %7445 = vst [vmem:[%s7440 + $0x40] sm:$0xff] %v7404
  %7446 = vst [vmem:[%s7440 + $0x48] sm:$0xff] %v7405
  %7447 = vst [vmem:[%s7440 + $0x50] sm:$0xff] %v7406
  %7448 = vst [vmem:[%s7440 + $0x58] sm:$0xff] %v7407
  %v7449 = vld [vmem:[#allocation8] sm:$0xff]
  %v7450 = vld [vmem:[#allocation8 + $0x8] sm:$0xff]
  %v7451 = vld [vmem:[#allocation8 + $0x10] sm:$0xff]
  %v7452 = vld [vmem:[#allocation8 + $0x18] sm:$0xff]
  %v7453 = vld [vmem:[#allocation8 + $0x40] sm:$0xff]
  %v7454 = vld [vmem:[#allocation8 + $0x48] sm:$0xff]
  %v7455 = vld [vmem:[#allocation8 + $0x50] sm:$0xff]
  %v7456 = vld [vmem:[#allocation8 + $0x58] sm:$0xff]
  %7457 = vst [vmem:[#allocation5] sm:$0xff] %v7449
  %7458 = vst [vmem:[#allocation5 + $0x8] sm:$0xff] %v7450
  %7459 = vst [vmem:[#allocation5 + $0x90] sm:$0xff] %v7451
  %7460 = vst [vmem:[#allocation5 + $0x98] sm:$0xff] %v7452
  %7461 = vst [vmem:[#allocation5 + $0x120] sm:$0xff] %v7453
  %7462 = vst [vmem:[#allocation5 + $0x128] sm:$0xff] %v7454
  %7463 = vst [vmem:[#allocation5 + $0x1b0] sm:$0xff] %v7455
  %7464 = vst [vmem:[#allocation5 + $0x1b8] sm:$0xff] %v7456
  %s7465 = scalar_lea.vmem [#allocation8], 16
  %v7466 = vld [vmem:[%s7465] sm:$0xff]
  %v7467 = vld [vmem:[%s7465 + $0x8] sm:$0xff]
  %v7468 = vld [vmem:[%s7465 + $0x10] sm:$0xff]
  %v7469 = vld [vmem:[%s7465 + $0x18] sm:$0xff]
  %v7470 = vld [vmem:[%s7465 + $0x40] sm:$0xff]
  %v7471 = vld [vmem:[%s7465 + $0x48] sm:$0xff]
  %v7472 = vld [vmem:[%s7465 + $0x50] sm:$0xff]
  %v7473 = vld [vmem:[%s7465 + $0x58] sm:$0xff]
  %7474 = vst [vmem:[#allocation5 + $0x10] sm:$0xff] %v7466
  %7475 = vst [vmem:[#allocation5 + $0x18] sm:$0xff] %v7467
  %7476 = vst [vmem:[#allocation5 + $0xa0] sm:$0xff] %v7468
  %7477 = vst [vmem:[#allocation5 + $0xa8] sm:$0xff] %v7469
  %7478 = vst [vmem:[#allocation5 + $0x130] sm:$0xff] %v7470
  %7479 = vst [vmem:[#allocation5 + $0x138] sm:$0xff] %v7471
  %7480 = vst [vmem:[#allocation5 + $0x1c0] sm:$0xff] %v7472
  %7481 = vst [vmem:[#allocation5 + $0x1c8] sm:$0xff] %v7473
  %s7482 = scalar_lea.vmem [#allocation8], 32
  %v7483 = vld [vmem:[%s7482] sm:$0xff]
  %v7484 = vld [vmem:[%s7482 + $0x8] sm:$0xff]
  %v7485 = vld [vmem:[%s7482 + $0x10] sm:$0xff]
  %v7486 = vld [vmem:[%s7482 + $0x18] sm:$0xff]
  %v7487 = vld [vmem:[%s7482 + $0x40] sm:$0xff]
  %v7488 = vld [vmem:[%s7482 + $0x48] sm:$0xff]
  %v7489 = vld [vmem:[%s7482 + $0x50] sm:$0xff]
  %v7490 = vld [vmem:[%s7482 + $0x58] sm:$0xff]
  %7491 = vst [vmem:[#allocation5 + $0x20] sm:$0xff] %v7483
  %7492 = vst [vmem:[#allocation5 + $0x28] sm:$0xff] %v7484
  %7493 = vst [vmem:[#allocation5 + $0xb0] sm:$0xff] %v7485
  %7494 = vst [vmem:[#allocation5 + $0xb8] sm:$0xff] %v7486
  %7495 = vst [vmem:[#allocation5 + $0x140] sm:$0xff] %v7487
  %7496 = vst [vmem:[#allocation5 + $0x148] sm:$0xff] %v7488
  %7497 = vst [vmem:[#allocation5 + $0x1d0] sm:$0xff] %v7489
  %7498 = vst [vmem:[#allocation5 + $0x1d8] sm:$0xff] %v7490
  %s7499 = scalar_lea.vmem [#allocation8], 64
  %v7500 = vld [vmem:[%s7499] sm:$0xff]
  %v7501 = vld [vmem:[%s7499 + $0x8] sm:$0xff]
  %v7502 = vld [vmem:[%s7499 + $0x10] sm:$0xff]
  %v7503 = vld [vmem:[%s7499 + $0x18] sm:$0xff]
  %v7504 = vld [vmem:[%s7499 + $0x40] sm:$0xff]
  %v7505 = vld [vmem:[%s7499 + $0x48] sm:$0xff]
  %v7506 = vld [vmem:[%s7499 + $0x50] sm:$0xff]
  %v7507 = vld [vmem:[%s7499 + $0x58] sm:$0xff]
  %7508 = vst [vmem:[#allocation5 + $0x30] sm:$0xff] %v7500
  %7509 = vst [vmem:[#allocation5 + $0x38] sm:$0xff] %v7501
  %7510 = vst [vmem:[#allocation5 + $0xc0] sm:$0xff] %v7502
  %7511 = vst [vmem:[#allocation5 + $0xc8] sm:$0xff] %v7503
  %7512 = vst [vmem:[#allocation5 + $0x150] sm:$0xff] %v7504
  %7513 = vst [vmem:[#allocation5 + $0x158] sm:$0xff] %v7505
  %7514 = vst [vmem:[#allocation5 + $0x1e0] sm:$0xff] %v7506
  %7515 = vst [vmem:[#allocation5 + $0x1e8] sm:$0xff] %v7507
  %v7516 = vld [vmem:[%s7440] sm:$0xff]
  %v7517 = vld [vmem:[%s7440 + $0x8] sm:$0xff]
  %v7518 = vld [vmem:[%s7440 + $0x10] sm:$0xff]
  %v7519 = vld [vmem:[%s7440 + $0x18] sm:$0xff]
  %v7520 = vld [vmem:[%s7440 + $0x40] sm:$0xff]
  %v7521 = vld [vmem:[%s7440 + $0x48] sm:$0xff]
  %v7522 = vld [vmem:[%s7440 + $0x50] sm:$0xff]
  %v7523 = vld [vmem:[%s7440 + $0x58] sm:$0xff]
  %7524 = vst [vmem:[#allocation5 + $0x40] sm:$0xff] %v7516
  %7525 = vst [vmem:[#allocation5 + $0x48] sm:$0xff] %v7517
  %7526 = vst [vmem:[#allocation5 + $0xd0] sm:$0xff] %v7518
  %7527 = vst [vmem:[#allocation5 + $0xd8] sm:$0xff] %v7519
  %7528 = vst [vmem:[#allocation5 + $0x160] sm:$0xff] %v7520
  %7529 = vst [vmem:[#allocation5 + $0x168] sm:$0xff] %v7521
  %7530 = vst [vmem:[#allocation5 + $0x1f0] sm:$0xff] %v7522
  %7531 = vst [vmem:[#allocation5 + $0x1f8] sm:$0xff] %v7523
  %s7532 = scalar_lea.vmem [#allocation8], 96
  %v7533 = vld [vmem:[%s7532] sm:$0xff]
  %v7534 = vld [vmem:[%s7532 + $0x8] sm:$0xff]
  %v7535 = vld [vmem:[%s7532 + $0x10] sm:$0xff]
  %v7536 = vld [vmem:[%s7532 + $0x18] sm:$0xff]
  %v7537 = vld [vmem:[%s7532 + $0x40] sm:$0xff]
  %v7538 = vld [vmem:[%s7532 + $0x48] sm:$0xff]
  %v7539 = vld [vmem:[%s7532 + $0x50] sm:$0xff]
  %v7540 = vld [vmem:[%s7532 + $0x58] sm:$0xff]
  %7541 = vst [vmem:[#allocation5 + $0x50] sm:$0xff] %v7533
  %7542 = vst [vmem:[#allocation5 + $0x58] sm:$0xff] %v7534
  %7543 = vst [vmem:[#allocation5 + $0xe0] sm:$0xff] %v7535
  %7544 = vst [vmem:[#allocation5 + $0xe8] sm:$0xff] %v7536
  %7545 = vst [vmem:[#allocation5 + $0x170] sm:$0xff] %v7537
  %7546 = vst [vmem:[#allocation5 + $0x178] sm:$0xff] %v7538
  %7547 = vst [vmem:[#allocation5 + $0x200] sm:$0xff] %v7539
  %7548 = vst [vmem:[#allocation5 + $0x208] sm:$0xff] %v7540
  %s7549 = scalar_lea.vmem [#allocation8], 128
  %v7550 = vld [vmem:[%s7549] sm:$0xff]
  %v7551 = vld [vmem:[%s7549 + $0x8] sm:$0xff]
  %v7552 = vld [vmem:[%s7549 + $0x10] sm:$0xff]
  %v7553 = vld [vmem:[%s7549 + $0x18] sm:$0xff]
  %v7554 = vld [vmem:[%s7549 + $0x40] sm:$0xff]
  %v7555 = vld [vmem:[%s7549 + $0x48] sm:$0xff]
  %v7556 = vld [vmem:[%s7549 + $0x50] sm:$0xff]
  %v7557 = vld [vmem:[%s7549 + $0x58] sm:$0xff]
  %7558 = vst [vmem:[#allocation5 + $0x60] sm:$0xff] %v7550
  %7559 = vst [vmem:[#allocation5 + $0x68] sm:$0xff] %v7551
  %7560 = vst [vmem:[#allocation5 + $0xf0] sm:$0xff] %v7552
  %7561 = vst [vmem:[#allocation5 + $0xf8] sm:$0xff] %v7553
  %7562 = vst [vmem:[#allocation5 + $0x180] sm:$0xff] %v7554
  %7563 = vst [vmem:[#allocation5 + $0x188] sm:$0xff] %v7555
  %7564 = vst [vmem:[#allocation5 + $0x210] sm:$0xff] %v7556
  %7565 = vst [vmem:[#allocation5 + $0x218] sm:$0xff] %v7557
  %s7566 = scalar_lea.vmem [#allocation8], 144
  %v7567 = vld [vmem:[%s7566] sm:$0xff]
  %v7568 = vld [vmem:[%s7566 + $0x8] sm:$0xff]
  %v7569 = vld [vmem:[%s7566 + $0x10] sm:$0xff]
  %v7570 = vld [vmem:[%s7566 + $0x18] sm:$0xff]
  %v7571 = vld [vmem:[%s7566 + $0x40] sm:$0xff]
  %v7572 = vld [vmem:[%s7566 + $0x48] sm:$0xff]
  %v7573 = vld [vmem:[%s7566 + $0x50] sm:$0xff]
  %v7574 = vld [vmem:[%s7566 + $0x58] sm:$0xff]
  %7575 = vst [vmem:[#allocation5 + $0x70] sm:$0xff] %v7567
  %7576 = vst [vmem:[#allocation5 + $0x78] sm:$0xff] %v7568
  %7577 = vst [vmem:[#allocation5 + $0x100] sm:$0xff] %v7569
  %7578 = vst [vmem:[#allocation5 + $0x108] sm:$0xff] %v7570
  %7579 = vst [vmem:[#allocation5 + $0x190] sm:$0xff] %v7571
  %7580 = vst [vmem:[#allocation5 + $0x198] sm:$0xff] %v7572
  %7581 = vst [vmem:[#allocation5 + $0x220] sm:$0xff] %v7573
  %7582 = vst [vmem:[#allocation5 + $0x228] sm:$0xff] %v7574
  %s7583 = scalar_lea.vmem [#allocation8], 160
  %v7584 = vld [vmem:[%s7583] sm:$0xff]
  %v7585 = vld [vmem:[%s7583 + $0x8] sm:$0xff]
  %v7586 = vld [vmem:[%s7583 + $0x10] sm:$0xff]
  %v7587 = vld [vmem:[%s7583 + $0x18] sm:$0xff]
  %v7588 = vld [vmem:[%s7583 + $0x40] sm:$0xff]
  %v7589 = vld [vmem:[%s7583 + $0x48] sm:$0xff]
  %v7590 = vld [vmem:[%s7583 + $0x50] sm:$0xff]
  %v7591 = vld [vmem:[%s7583 + $0x58] sm:$0xff]
  %7592 = vst [vmem:[#allocation5 + $0x80] sm:$0xff] %v7584
  %7593 = vst [vmem:[#allocation5 + $0x88] sm:$0xff] %v7585
  %7594 = vst [vmem:[#allocation5 + $0x110] sm:$0xff] %v7586
  %7595 = vst [vmem:[#allocation5 + $0x118] sm:$0xff] %v7587
  %7596 = vst [vmem:[#allocation5 + $0x1a0] sm:$0xff] %v7588
  %7597 = vst [vmem:[#allocation5 + $0x1a8] sm:$0xff] %v7589
  %7598 = vst [vmem:[#allocation5 + $0x230] sm:$0xff] %v7590
  %7599 = vst [vmem:[#allocation5 + $0x238] sm:$0xff] %v7591
  %v7600 = vld [vmem:[#allocation5] sm:$0xff]
  %v7601 = vld [vmem:[#allocation5 + $0x8] sm:$0xff]
  %v7602 = vld [vmem:[#allocation5 + $0x10] sm:$0xff]
  %v7603 = vld [vmem:[#allocation5 + $0x18] sm:$0xff]
  %v7604 = vld [vmem:[#allocation5 + $0x20] sm:$0xff]
  %v7605 = vld [vmem:[#allocation5 + $0x28] sm:$0xff]
  %v7606 = vld [vmem:[#allocation5 + $0x30] sm:$0xff]
  %v7607 = vld [vmem:[#allocation5 + $0x38] sm:$0xff]
  %v7608 = vld [vmem:[#allocation5 + $0x40] sm:$0xff]
  %v7609 = vld [vmem:[#allocation5 + $0x48] sm:$0xff]
  %v7610 = vld [vmem:[#allocation5 + $0x50] sm:$0xff]
  %v7611 = vld [vmem:[#allocation5 + $0x58] sm:$0xff]
  %v7612 = vld [vmem:[#allocation5 + $0x60] sm:$0xff]
  %v7613 = vld [vmem:[#allocation5 + $0x68] sm:$0xff]
  %v7614 = vld [vmem:[#allocation5 + $0x70] sm:$0xff]
  %v7615 = vld [vmem:[#allocation5 + $0x78] sm:$0xff]
  %v7616 = vld [vmem:[#allocation5 + $0x80] sm:$0xff]
  %v7617 = vld [vmem:[#allocation5 + $0x88] sm:$0xff]
  %v7618 = vld [vmem:[#allocation5 + $0x90] sm:$0xff]
  %v7619 = vld [vmem:[#allocation5 + $0x98] sm:$0xff]
  %v7620 = vld [vmem:[#allocation5 + $0xa0] sm:$0xff]
  %v7621 = vld [vmem:[#allocation5 + $0xa8] sm:$0xff]
  %v7622 = vld [vmem:[#allocation5 + $0xb0] sm:$0xff]
  %v7623 = vld [vmem:[#allocation5 + $0xb8] sm:$0xff]
  %v7624 = vld [vmem:[#allocation5 + $0xc0] sm:$0xff]
  %v7625 = vld [vmem:[#allocation5 + $0xc8] sm:$0xff]
  %v7626 = vld [vmem:[#allocation5 + $0xd0] sm:$0xff]
  %v7627 = vld [vmem:[#allocation5 + $0xd8] sm:$0xff]
  %v7628 = vld [vmem:[#allocation5 + $0xe0] sm:$0xff]
  %v7629 = vld [vmem:[#allocation5 + $0xe8] sm:$0xff]
  %v7630 = vld [vmem:[#allocation5 + $0xf0] sm:$0xff]
  %v7631 = vld [vmem:[#allocation5 + $0xf8] sm:$0xff]
  %v7632 = vld [vmem:[#allocation5 + $0x100] sm:$0xff]
  %v7633 = vld [vmem:[#allocation5 + $0x108] sm:$0xff]
  %v7634 = vld [vmem:[#allocation5 + $0x110] sm:$0xff]
  %v7635 = vld [vmem:[#allocation5 + $0x118] sm:$0xff]
  %v7636 = vld [vmem:[#allocation5 + $0x120] sm:$0xff]
  %v7637 = vld [vmem:[#allocation5 + $0x128] sm:$0xff]
  %v7638 = vld [vmem:[#allocation5 + $0x130] sm:$0xff]
  %v7639 = vld [vmem:[#allocation5 + $0x138] sm:$0xff]
  %v7640 = vld [vmem:[#allocation5 + $0x140] sm:$0xff]
  %v7641 = vld [vmem:[#allocation5 + $0x148] sm:$0xff]
  %v7642 = vld [vmem:[#allocation5 + $0x150] sm:$0xff]
  %v7643 = vld [vmem:[#allocation5 + $0x158] sm:$0xff]
  %v7644 = vld [vmem:[#allocation5 + $0x160] sm:$0xff]
  %v7645 = vld [vmem:[#allocation5 + $0x168] sm:$0xff]
  %v7646 = vld [vmem:[#allocation5 + $0x170] sm:$0xff]
  %v7647 = vld [vmem:[#allocation5 + $0x178] sm:$0xff]
  %v7648 = vld [vmem:[#allocation5 + $0x180] sm:$0xff]
  %v7649 = vld [vmem:[#allocation5 + $0x188] sm:$0xff]
  %v7650 = vld [vmem:[#allocation5 + $0x190] sm:$0xff]
  %v7651 = vld [vmem:[#allocation5 + $0x198] sm:$0xff]
  %v7652 = vld [vmem:[#allocation5 + $0x1a0] sm:$0xff]
  %v7653 = vld [vmem:[#allocation5 + $0x1a8] sm:$0xff]
  %v7654 = vld [vmem:[#allocation5 + $0x1b0] sm:$0xff]
  %v7655 = vld [vmem:[#allocation5 + $0x1b8] sm:$0xff]
  %v7656 = vld [vmem:[#allocation5 + $0x1c0] sm:$0xff]
  %v7657 = vld [vmem:[#allocation5 + $0x1c8] sm:$0xff]
  %v7658 = vld [vmem:[#allocation5 + $0x1d0] sm:$0xff]
  %v7659 = vld [vmem:[#allocation5 + $0x1d8] sm:$0xff]
  %v7660 = vld [vmem:[#allocation5 + $0x1e0] sm:$0xff]
  %v7661 = vld [vmem:[#allocation5 + $0x1e8] sm:$0xff]
  %v7662 = vld [vmem:[#allocation5 + $0x1f0] sm:$0xff]
  %v7663 = vld [vmem:[#allocation5 + $0x1f8] sm:$0xff]
  %v7664 = vld [vmem:[#allocation5 + $0x200] sm:$0xff]
  %v7665 = vld [vmem:[#allocation5 + $0x208] sm:$0xff]
  %v7666 = vld [vmem:[#allocation5 + $0x210] sm:$0xff]
  %v7667 = vld [vmem:[#allocation5 + $0x218] sm:$0xff]
  %v7668 = vld [vmem:[#allocation5 + $0x220] sm:$0xff]
  %v7669 = vld [vmem:[#allocation5 + $0x228] sm:$0xff]
  %v7670 = vld [vmem:[#allocation5 + $0x230] sm:$0xff]
  %v7671 = vld [vmem:[#allocation5 + $0x238] sm:$0xff]
  %v7672 = vpack.c.bf16 %v7618, %v7600
  %v7673 = vpack.c.bf16 %v7619, %v7601
  %v7674 = vpack.c.bf16 %v7620, %v7602
  %v7675 = vpack.c.bf16 %v7621, %v7603
  %v7676 = vpack.c.bf16 %v7622, %v7604
  %v7677 = vpack.c.bf16 %v7623, %v7605
  %v7678 = vpack.c.bf16 %v7624, %v7606
  %v7679 = vpack.c.bf16 %v7625, %v7607
  %v7680 = vpack.c.bf16 %v7626, %v7608
  %v7681 = vpack.c.bf16 %v7627, %v7609
  %v7682 = vpack.c.bf16 %v7628, %v7610
  %v7683 = vpack.c.bf16 %v7629, %v7611
  %v7684 = vpack.c.bf16 %v7630, %v7612
  %v7685 = vpack.c.bf16 %v7631, %v7613
  %v7686 = vpack.c.bf16 %v7632, %v7614
  %v7687 = vpack.c.bf16 %v7633, %v7615
  %v7688 = vpack.c.bf16 %v7634, %v7616
  %v7689 = vpack.c.bf16 %v7635, %v7617
  %v7690 = vpack.c.bf16 %v7654, %v7636
  %v7691 = vpack.c.bf16 %v7655, %v7637
  %v7692 = vpack.c.bf16 %v7656, %v7638
  %v7693 = vpack.c.bf16 %v7657, %v7639
  %v7694 = vpack.c.bf16 %v7658, %v7640
  %v7695 = vpack.c.bf16 %v7659, %v7641
  %v7696 = vpack.c.bf16 %v7660, %v7642
  %v7697 = vpack.c.bf16 %v7661, %v7643
  %v7698 = vpack.c.bf16 %v7662, %v7644
  %v7699 = vpack.c.bf16 %v7663, %v7645
  %v7700 = vpack.c.bf16 %v7664, %v7646
  %v7701 = vpack.c.bf16 %v7665, %v7647
  %v7702 = vpack.c.bf16 %v7666, %v7648
  %v7703 = vpack.c.bf16 %v7667, %v7649
  %v7704 = vpack.c.bf16 %v7668, %v7650
  %v7705 = vpack.c.bf16 %v7669, %v7651
  %v7706 = vpack.c.bf16 %v7670, %v7652
  %v7707 = vpack.c.bf16 %v7671, %v7653
  %v7708 = vld [vmem:[%s7] sm:$0xff]
  %v7709 = vld [vmem:[%s7 + $0x8] sm:$0xff]
  %v7710 = vld [vmem:[%s7 + $0x10] sm:$0xff]
  %v7711 = vld [vmem:[%s7 + $0x18] sm:$0xff]
  %v7712 = vld [vmem:[%s7 + $0x20] sm:$0xff]
  %v7713 = vld [vmem:[%s7 + $0x28] sm:$0xff]
  %v7714 = vld [vmem:[%s7 + $0x30] sm:$0xff]
  %v7715 = vld [vmem:[%s7 + $0x38] sm:$0xff]
  %v7716 = vld [vmem:[%s7 + $0x40] sm:$0xff]
  %v7717 = vld [vmem:[%s7 + $0x48] sm:$0xff]
  %v7718 = vld [vmem:[%s7 + $0x50] sm:$0xff]
  %v7719 = vld [vmem:[%s7 + $0x58] sm:$0xff]
  %v7720 = vld [vmem:[%s7 + $0x60] sm:$0xff]
  %v7721 = vld [vmem:[%s7 + $0x68] sm:$0xff]
  %v7722 = vld [vmem:[%s7 + $0x70] sm:$0xff]
  %v7723 = vld [vmem:[%s7 + $0x78] sm:$0xff]
  %v7724 = vld [vmem:[%s7 + $0x80] sm:$0xff]
  %v7725 = vld [vmem:[%s7 + $0x88] sm:$0xff]
  %v7726 = vld [vmem:[%s7 + $0x90] sm:$0xff]
  %v7727 = vld [vmem:[%s7 + $0x98] sm:$0xff]
  %v7728 = vld [vmem:[%s7 + $0xa0] sm:$0xff]
  %v7729 = vld [vmem:[%s7 + $0xa8] sm:$0xff]
  %v7730 = vld [vmem:[%s7 + $0xb0] sm:$0xff]
  %v7731 = vld [vmem:[%s7 + $0xb8] sm:$0xff]
  %v7732 = vld [vmem:[%s7 + $0xc0] sm:$0xff]
  %v7733 = vld [vmem:[%s7 + $0xc8] sm:$0xff]
  %v7734 = vld [vmem:[%s7 + $0xd0] sm:$0xff]
  %v7735 = vld [vmem:[%s7 + $0xd8] sm:$0xff]
  %v7736 = vld [vmem:[%s7 + $0xe0] sm:$0xff]
  %v7737 = vld [vmem:[%s7 + $0xe8] sm:$0xff]
  %v7738 = vld [vmem:[%s7 + $0xf0] sm:$0xff]
  %v7739 = vld [vmem:[%s7 + $0xf8] sm:$0xff]
  %v7740 = vld [vmem:[%s7 + $0x100] sm:$0xff]
  %v7741 = vld [vmem:[%s7 + $0x108] sm:$0xff]
  %v7742 = vld [vmem:[%s7 + $0x110] sm:$0xff]
  %v7743 = vld [vmem:[%s7 + $0x118] sm:$0xff]
  %v7744 = vld [vmem:[%s7 + $0x120] sm:$0xff]
  %v7745 = vld [vmem:[%s7 + $0x128] sm:$0xff]
  %v7746 = vld [vmem:[%s7 + $0x130] sm:$0xff]
  %v7747 = vld [vmem:[%s7 + $0x138] sm:$0xff]
  %v7748 = vld [vmem:[%s7 + $0x140] sm:$0xff]
  %v7749 = vld [vmem:[%s7 + $0x148] sm:$0xff]
  %v7750 = vld [vmem:[%s7 + $0x150] sm:$0xff]
  %v7751 = vld [vmem:[%s7 + $0x158] sm:$0xff]
  %v7752 = vld [vmem:[%s7 + $0x160] sm:$0xff]
  %v7753 = vld [vmem:[%s7 + $0x168] sm:$0xff]
  %v7754 = vld [vmem:[%s7 + $0x170] sm:$0xff]
  %v7755 = vld [vmem:[%s7 + $0x178] sm:$0xff]
  %v7756 = vld [vmem:[%s7 + $0x180] sm:$0xff]
  %v7757 = vld [vmem:[%s7 + $0x188] sm:$0xff]
  %v7758 = vld [vmem:[%s7 + $0x190] sm:$0xff]
  %v7759 = vld [vmem:[%s7 + $0x198] sm:$0xff]
  %v7760 = vld [vmem:[%s7 + $0x1a0] sm:$0xff]
  %v7761 = vld [vmem:[%s7 + $0x1a8] sm:$0xff]
  %v7762 = vld [vmem:[%s7 + $0x1b0] sm:$0xff]
  %v7763 = vld [vmem:[%s7 + $0x1b8] sm:$0xff]
  %v7764 = vld [vmem:[%s7 + $0x1c0] sm:$0xff]
  %v7765 = vld [vmem:[%s7 + $0x1c8] sm:$0xff]
  %v7766 = vld [vmem:[%s7 + $0x1d0] sm:$0xff]
  %v7767 = vld [vmem:[%s7 + $0x1d8] sm:$0xff]
  %v7768 = vld [vmem:[%s7 + $0x1e0] sm:$0xff]
  %v7769 = vld [vmem:[%s7 + $0x1e8] sm:$0xff]
  %v7770 = vld [vmem:[%s7 + $0x1f0] sm:$0xff]
  %v7771 = vld [vmem:[%s7 + $0x1f8] sm:$0xff]
  %v7772 = vld [vmem:[%s7 + $0x200] sm:$0xff]
  %v7773 = vld [vmem:[%s7 + $0x208] sm:$0xff]
  %v7774 = vld [vmem:[%s7 + $0x210] sm:$0xff]
  %v7775 = vld [vmem:[%s7 + $0x218] sm:$0xff]
  %v7776 = vld [vmem:[%s7 + $0x220] sm:$0xff]
  %v7777 = vld [vmem:[%s7 + $0x228] sm:$0xff]
  %v7778 = vld [vmem:[%s7 + $0x230] sm:$0xff]
  %v7779 = vld [vmem:[%s7 + $0x238] sm:$0xff]
  %v7780 = vld [vmem:[%s7 + $0x240] sm:$0xff]
  %v7781 = vld [vmem:[%s7 + $0x248] sm:$0xff]
  %v7782 = vld [vmem:[%s7 + $0x250] sm:$0xff]
  %v7783 = vld [vmem:[%s7 + $0x258] sm:$0xff]
  %v7784 = vld [vmem:[%s7 + $0x260] sm:$0xff]
  %v7785 = vld [vmem:[%s7 + $0x268] sm:$0xff]
  %v7786 = vld [vmem:[%s7 + $0x270] sm:$0xff]
  %v7787 = vld [vmem:[%s7 + $0x278] sm:$0xff]
  %v7788 = vld [vmem:[%s7 + $0x280] sm:$0xff]
  %v7789 = vld [vmem:[%s7 + $0x288] sm:$0xff]
  %v7790 = vld [vmem:[%s7 + $0x290] sm:$0xff]
  %v7791 = vld [vmem:[%s7 + $0x298] sm:$0xff]
  %v7792 = vld [vmem:[%s7 + $0x2a0] sm:$0xff]
  %v7793 = vld [vmem:[%s7 + $0x2a8] sm:$0xff]
  %v7794 = vld [vmem:[%s7 + $0x2b0] sm:$0xff]
  %v7795 = vld [vmem:[%s7 + $0x2b8] sm:$0xff]
  %v7796 = vld [vmem:[%s7 + $0x2c0] sm:$0xff]
  %v7797 = vld [vmem:[%s7 + $0x2c8] sm:$0xff]
  %v7798 = vld [vmem:[%s7 + $0x2d0] sm:$0xff]
  %v7799 = vld [vmem:[%s7 + $0x2d8] sm:$0xff]
  %v7800 = vld [vmem:[%s7 + $0x2e0] sm:$0xff]
  %v7801 = vld [vmem:[%s7 + $0x2e8] sm:$0xff]
  %v7802 = vld [vmem:[%s7 + $0x2f0] sm:$0xff]
  %v7803 = vld [vmem:[%s7 + $0x2f8] sm:$0xff]
  %v7804 = vld [vmem:[%s7 + $0x300] sm:$0xff]
  %v7805 = vld [vmem:[%s7 + $0x308] sm:$0xff]
  %v7806 = vld [vmem:[%s7 + $0x310] sm:$0xff]
  %v7807 = vld [vmem:[%s7 + $0x318] sm:$0xff]
  %v7808 = vld [vmem:[%s7 + $0x320] sm:$0xff]
  %v7809 = vld [vmem:[%s7 + $0x328] sm:$0xff]
  %v7810 = vld [vmem:[%s7 + $0x330] sm:$0xff]
  %v7811 = vld [vmem:[%s7 + $0x338] sm:$0xff]
  %v7812 = vld [vmem:[%s7 + $0x340] sm:$0xff]
  %v7813 = vld [vmem:[%s7 + $0x348] sm:$0xff]
  %v7814 = vld [vmem:[%s7 + $0x350] sm:$0xff]
  %v7815 = vld [vmem:[%s7 + $0x358] sm:$0xff]
  %v7816 = vld [vmem:[%s7 + $0x360] sm:$0xff]
  %v7817 = vld [vmem:[%s7 + $0x368] sm:$0xff]
  %v7818 = vld [vmem:[%s7 + $0x370] sm:$0xff]
  %v7819 = vld [vmem:[%s7 + $0x378] sm:$0xff]
  %v7820 = vld [vmem:[%s7 + $0x380] sm:$0xff]
  %v7821 = vld [vmem:[%s7 + $0x388] sm:$0xff]
  %v7822 = vld [vmem:[%s7 + $0x390] sm:$0xff]
  %v7823 = vld [vmem:[%s7 + $0x398] sm:$0xff]
  %v7824 = vld [vmem:[%s7 + $0x3a0] sm:$0xff]
  %v7825 = vld [vmem:[%s7 + $0x3a8] sm:$0xff]
  %v7826 = vld [vmem:[%s7 + $0x3b0] sm:$0xff]
  %v7827 = vld [vmem:[%s7 + $0x3b8] sm:$0xff]
  %v7828 = vld [vmem:[%s7 + $0x3c0] sm:$0xff]
  %v7829 = vld [vmem:[%s7 + $0x3c8] sm:$0xff]
  %v7830 = vld [vmem:[%s7 + $0x3d0] sm:$0xff]
  %v7831 = vld [vmem:[%s7 + $0x3d8] sm:$0xff]
  %v7832 = vld [vmem:[%s7 + $0x3e0] sm:$0xff]
  %v7833 = vld [vmem:[%s7 + $0x3e8] sm:$0xff]
  %v7834 = vld [vmem:[%s7 + $0x3f0] sm:$0xff]
  %v7835 = vld [vmem:[%s7 + $0x3f8] sm:$0xff]
  %v7836 = vld [vmem:[%s7 + $0x400] sm:$0xff]
  %v7837 = vld [vmem:[%s7 + $0x408] sm:$0xff]
  %v7838 = vld [vmem:[%s7 + $0x410] sm:$0xff]
  %v7839 = vld [vmem:[%s7 + $0x418] sm:$0xff]
  %v7840 = vld [vmem:[%s7 + $0x420] sm:$0xff]
  %v7841 = vld [vmem:[%s7 + $0x428] sm:$0xff]
  %v7842 = vld [vmem:[%s7 + $0x430] sm:$0xff]
  %v7843 = vld [vmem:[%s7 + $0x438] sm:$0xff]
  %v7844 = vld [vmem:[%s7 + $0x440] sm:$0xff]
  %v7845 = vld [vmem:[%s7 + $0x448] sm:$0xff]
  %v7846 = vld [vmem:[%s7 + $0x450] sm:$0xff]
  %v7847 = vld [vmem:[%s7 + $0x458] sm:$0xff]
  %v7848 = vld [vmem:[%s7 + $0x460] sm:$0xff]
  %v7849 = vld [vmem:[%s7 + $0x468] sm:$0xff]
  %v7850 = vld [vmem:[%s7 + $0x470] sm:$0xff]
  %v7851 = vld [vmem:[%s7 + $0x478] sm:$0xff]
  %v7852 = vld [vmem:[%s7 + $0x480] sm:$0xff]
  %v7853 = vld [vmem:[%s7 + $0x488] sm:$0xff]
  %v7854 = vld [vmem:[%s7 + $0x490] sm:$0xff]
  %v7855 = vld [vmem:[%s7 + $0x498] sm:$0xff]
  %v7856 = vld [vmem:[%s7 + $0x4a0] sm:$0xff]
  %v7857 = vld [vmem:[%s7 + $0x4a8] sm:$0xff]
  %v7858 = vld [vmem:[%s7 + $0x4b0] sm:$0xff]
  %v7859 = vld [vmem:[%s7 + $0x4b8] sm:$0xff]
  %v7860 = vld [vmem:[%s7 + $0x4c0] sm:$0xff]
  %v7861 = vld [vmem:[%s7 + $0x4c8] sm:$0xff]
  %v7862 = vld [vmem:[%s7 + $0x4d0] sm:$0xff]
  %v7863 = vld [vmem:[%s7 + $0x4d8] sm:$0xff]
  %v7864 = vld [vmem:[%s7 + $0x4e0] sm:$0xff]
  %v7865 = vld [vmem:[%s7 + $0x4e8] sm:$0xff]
  %v7866 = vld [vmem:[%s7 + $0x4f0] sm:$0xff]
  %v7867 = vld [vmem:[%s7 + $0x4f8] sm:$0xff]
  %v7868 = vld [vmem:[%s7 + $0x500] sm:$0xff]
  %v7869 = vld [vmem:[%s7 + $0x508] sm:$0xff]
  %v7870 = vld [vmem:[%s7 + $0x510] sm:$0xff]
  %v7871 = vld [vmem:[%s7 + $0x518] sm:$0xff]
  %v7872 = vld [vmem:[%s7 + $0x520] sm:$0xff]
  %v7873 = vld [vmem:[%s7 + $0x528] sm:$0xff]
  %v7874 = vld [vmem:[%s7 + $0x530] sm:$0xff]
  %v7875 = vld [vmem:[%s7 + $0x538] sm:$0xff]
  %v7876 = vld [vmem:[%s7 + $0x540] sm:$0xff]
  %v7877 = vld [vmem:[%s7 + $0x548] sm:$0xff]
  %v7878 = vld [vmem:[%s7 + $0x550] sm:$0xff]
  %v7879 = vld [vmem:[%s7 + $0x558] sm:$0xff]
  %v7880 = vld [vmem:[%s7 + $0x560] sm:$0xff]
  %v7881 = vld [vmem:[%s7 + $0x568] sm:$0xff]
  %v7882 = vld [vmem:[%s7 + $0x570] sm:$0xff]
  %v7883 = vld [vmem:[%s7 + $0x578] sm:$0xff]
  %v7884 = vld [vmem:[%s7 + $0x580] sm:$0xff]
  %v7885 = vld [vmem:[%s7 + $0x588] sm:$0xff]
  %v7886 = vld [vmem:[%s7 + $0x590] sm:$0xff]
  %v7887 = vld [vmem:[%s7 + $0x598] sm:$0xff]
  %v7888 = vld [vmem:[%s7 + $0x5a0] sm:$0xff]
  %v7889 = vld [vmem:[%s7 + $0x5a8] sm:$0xff]
  %v7890 = vld [vmem:[%s7 + $0x5b0] sm:$0xff]
  %v7891 = vld [vmem:[%s7 + $0x5b8] sm:$0xff]
  %v7892 = vld [vmem:[%s7 + $0x5c0] sm:$0xff]
  %v7893 = vld [vmem:[%s7 + $0x5c8] sm:$0xff]
  %v7894 = vld [vmem:[%s7 + $0x5d0] sm:$0xff]
  %v7895 = vld [vmem:[%s7 + $0x5d8] sm:$0xff]
  %v7896 = vld [vmem:[%s7 + $0x5e0] sm:$0xff]
  %v7897 = vld [vmem:[%s7 + $0x5e8] sm:$0xff]
  %v7898 = vld [vmem:[%s7 + $0x5f0] sm:$0xff]
  %v7899 = vld [vmem:[%s7 + $0x5f8] sm:$0xff]
  %v7900 = vld [vmem:[%s7 + $0x600] sm:$0xff]
  %v7901 = vld [vmem:[%s7 + $0x608] sm:$0xff]
  %v7902 = vld [vmem:[%s7 + $0x610] sm:$0xff]
  %v7903 = vld [vmem:[%s7 + $0x618] sm:$0xff]
  %v7904 = vld [vmem:[%s7 + $0x620] sm:$0xff]
  %v7905 = vld [vmem:[%s7 + $0x628] sm:$0xff]
  %v7906 = vld [vmem:[%s7 + $0x630] sm:$0xff]
  %v7907 = vld [vmem:[%s7 + $0x638] sm:$0xff]
  %v7908 = vld [vmem:[%s7 + $0x640] sm:$0xff]
  %v7909 = vld [vmem:[%s7 + $0x648] sm:$0xff]
  %v7910 = vld [vmem:[%s7 + $0x650] sm:$0xff]
  %v7911 = vld [vmem:[%s7 + $0x658] sm:$0xff]
  %v7912 = vld [vmem:[%s7 + $0x660] sm:$0xff]
  %v7913 = vld [vmem:[%s7 + $0x668] sm:$0xff]
  %v7914 = vld [vmem:[%s7 + $0x670] sm:$0xff]
  %v7915 = vld [vmem:[%s7 + $0x678] sm:$0xff]
  %v7916 = vld [vmem:[%s7 + $0x680] sm:$0xff]
  %v7917 = vld [vmem:[%s7 + $0x688] sm:$0xff]
  %v7918 = vld [vmem:[%s7 + $0x690] sm:$0xff]
  %v7919 = vld [vmem:[%s7 + $0x698] sm:$0xff]
  %v7920 = vld [vmem:[%s7 + $0x6a0] sm:$0xff]
  %v7921 = vld [vmem:[%s7 + $0x6a8] sm:$0xff]
  %v7922 = vld [vmem:[%s7 + $0x6b0] sm:$0xff]
  %v7923 = vld [vmem:[%s7 + $0x6b8] sm:$0xff]
  %v7924 = vld [vmem:[%s7 + $0x6c0] sm:$0xff]
  %v7925 = vld [vmem:[%s7 + $0x6c8] sm:$0xff]
  %v7926 = vld [vmem:[%s7 + $0x6d0] sm:$0xff]
  %v7927 = vld [vmem:[%s7 + $0x6d8] sm:$0xff]
  %v7928 = vld [vmem:[%s7 + $0x6e0] sm:$0xff]
  %v7929 = vld [vmem:[%s7 + $0x6e8] sm:$0xff]
  %v7930 = vld [vmem:[%s7 + $0x6f0] sm:$0xff]
  %v7931 = vld [vmem:[%s7 + $0x6f8] sm:$0xff]
  %v7932 = vld [vmem:[%s7 + $0x700] sm:$0xff]
  %v7933 = vld [vmem:[%s7 + $0x708] sm:$0xff]
  %v7934 = vld [vmem:[%s7 + $0x710] sm:$0xff]
  %v7935 = vld [vmem:[%s7 + $0x718] sm:$0xff]
  %v7936 = vld [vmem:[%s7 + $0x720] sm:$0xff]
  %v7937 = vld [vmem:[%s7 + $0x728] sm:$0xff]
  %v7938 = vld [vmem:[%s7 + $0x730] sm:$0xff]
  %v7939 = vld [vmem:[%s7 + $0x738] sm:$0xff]
  %v7940 = vld [vmem:[%s7 + $0x740] sm:$0xff]
  %v7941 = vld [vmem:[%s7 + $0x748] sm:$0xff]
  %v7942 = vld [vmem:[%s7 + $0x750] sm:$0xff]
  %v7943 = vld [vmem:[%s7 + $0x758] sm:$0xff]
  %v7944 = vld [vmem:[%s7 + $0x760] sm:$0xff]
  %v7945 = vld [vmem:[%s7 + $0x768] sm:$0xff]
  %v7946 = vld [vmem:[%s7 + $0x770] sm:$0xff]
  %v7947 = vld [vmem:[%s7 + $0x778] sm:$0xff]
  %v7948 = vld [vmem:[%s7 + $0x780] sm:$0xff]
  %v7949 = vld [vmem:[%s7 + $0x788] sm:$0xff]
  %v7950 = vld [vmem:[%s7 + $0x790] sm:$0xff]
  %v7951 = vld [vmem:[%s7 + $0x798] sm:$0xff]
  %v7952 = vld [vmem:[%s7 + $0x7a0] sm:$0xff]
  %v7953 = vld [vmem:[%s7 + $0x7a8] sm:$0xff]
  %v7954 = vld [vmem:[%s7 + $0x7b0] sm:$0xff]
  %v7955 = vld [vmem:[%s7 + $0x7b8] sm:$0xff]
  %v7956 = vld [vmem:[%s7 + $0x7c0] sm:$0xff]
  %v7957 = vld [vmem:[%s7 + $0x7c8] sm:$0xff]
  %v7958 = vld [vmem:[%s7 + $0x7d0] sm:$0xff]
  %v7959 = vld [vmem:[%s7 + $0x7d8] sm:$0xff]
  %v7960 = vld [vmem:[%s7 + $0x7e0] sm:$0xff]
  %v7961 = vld [vmem:[%s7 + $0x7e8] sm:$0xff]
  %v7962 = vld [vmem:[%s7 + $0x7f0] sm:$0xff]
  %v7963 = vld [vmem:[%s7 + $0x7f8] sm:$0xff]
  %v7964 = vld [vmem:[%s7 + $0x800] sm:$0xff]
  %v7965 = vld [vmem:[%s7 + $0x808] sm:$0xff]
  %v7966 = vld [vmem:[%s7 + $0x810] sm:$0xff]
  %v7967 = vld [vmem:[%s7 + $0x818] sm:$0xff]
  %v7968 = vld [vmem:[%s7 + $0x820] sm:$0xff]
  %v7969 = vld [vmem:[%s7 + $0x828] sm:$0xff]
  %v7970 = vld [vmem:[%s7 + $0x830] sm:$0xff]
  %v7971 = vld [vmem:[%s7 + $0x838] sm:$0xff]
  %v7972 = vld [vmem:[%s7 + $0x840] sm:$0xff]
  %v7973 = vld [vmem:[%s7 + $0x848] sm:$0xff]
  %v7974 = vld [vmem:[%s7 + $0x850] sm:$0xff]
  %v7975 = vld [vmem:[%s7 + $0x858] sm:$0xff]
  %v7976 = vld [vmem:[%s7 + $0x860] sm:$0xff]
  %v7977 = vld [vmem:[%s7 + $0x868] sm:$0xff]
  %v7978 = vld [vmem:[%s7 + $0x870] sm:$0xff]
  %v7979 = vld [vmem:[%s7 + $0x878] sm:$0xff]
  %v7980 = vld [vmem:[%s7 + $0x880] sm:$0xff]
  %v7981 = vld [vmem:[%s7 + $0x888] sm:$0xff]
  %v7982 = vld [vmem:[%s7 + $0x890] sm:$0xff]
  %v7983 = vld [vmem:[%s7 + $0x898] sm:$0xff]
  %v7984 = vld [vmem:[%s7 + $0x8a0] sm:$0xff]
  %v7985 = vld [vmem:[%s7 + $0x8a8] sm:$0xff]
  %v7986 = vld [vmem:[%s7 + $0x8b0] sm:$0xff]
  %v7987 = vld [vmem:[%s7 + $0x8b8] sm:$0xff]
  %v7988 = vld [vmem:[%s7 + $0x8c0] sm:$0xff]
  %v7989 = vld [vmem:[%s7 + $0x8c8] sm:$0xff]
  %v7990 = vld [vmem:[%s7 + $0x8d0] sm:$0xff]
  %v7991 = vld [vmem:[%s7 + $0x8d8] sm:$0xff]
  %v7992 = vld [vmem:[%s7 + $0x8e0] sm:$0xff]
  %v7993 = vld [vmem:[%s7 + $0x8e8] sm:$0xff]
  %v7994 = vld [vmem:[%s7 + $0x8f0] sm:$0xff]
  %v7995 = vld [vmem:[%s7 + $0x8f8] sm:$0xff]
  %v7996 = vld [vmem:[%s8] sm:$0x3]
  %v7998 = vlaneseq
  %v7999 = vshrl.u32 %v7998, 7
  %v8000 = vsub.s32 0, %v7999
  %v8001 = vrot.slane %v7996, %v8000
  %v8002 = vlaneseq
  %v8003 = vshrl.u32 %v8002, 7
  %v8004 = vsub.s32 1, %v8003
  %v8005 = vrot.slane %v7996, %v8004
  %v8296 = vunpack.c.l.b16 %v7708
  %v8297 = vunpack.c.h.b16 %v7708
  %v8298 = vunpack.c.l.b16 %v7709
  %v8299 = vunpack.c.h.b16 %v7709
  %v8300 = vunpack.c.l.b16 %v7710
  %v8301 = vunpack.c.h.b16 %v7710
  %v8302 = vunpack.c.l.b16 %v7711
  %v8303 = vunpack.c.h.b16 %v7711
  %v8304 = vunpack.c.l.b16 %v7712
  %v8305 = vunpack.c.h.b16 %v7712
  %v8306 = vunpack.c.l.b16 %v7713
  %v8307 = vunpack.c.h.b16 %v7713
  %v8308 = vunpack.c.l.b16 %v7714
  %v8309 = vunpack.c.h.b16 %v7714
  %v8310 = vunpack.c.l.b16 %v7715
  %v8311 = vunpack.c.h.b16 %v7715
  %v8312 = vunpack.c.l.b16 %v7716
  %v8313 = vunpack.c.h.b16 %v7716
  %v8314 = vunpack.c.l.b16 %v7717
  %v8315 = vunpack.c.h.b16 %v7717
  %v8316 = vunpack.c.l.b16 %v7718
  %v8317 = vunpack.c.h.b16 %v7718
  %v8318 = vunpack.c.l.b16 %v7719
  %v8319 = vunpack.c.h.b16 %v7719
  %v8320 = vunpack.c.l.b16 %v7720
  %v8321 = vunpack.c.h.b16 %v7720
  %v8322 = vunpack.c.l.b16 %v7721
  %v8323 = vunpack.c.h.b16 %v7721
  %v8324 = vunpack.c.l.b16 %v7722
  %v8325 = vunpack.c.h.b16 %v7722
  %v8326 = vunpack.c.l.b16 %v7723
  %v8327 = vunpack.c.h.b16 %v7723
  %v8328 = vunpack.c.l.b16 %v7724
  %v8329 = vunpack.c.h.b16 %v7724
  %v8330 = vunpack.c.l.b16 %v7725
  %v8331 = vunpack.c.h.b16 %v7725
  %v8332 = vunpack.c.l.b16 %v7726
  %v8333 = vunpack.c.h.b16 %v7726
  %v8334 = vunpack.c.l.b16 %v7727
  %v8335 = vunpack.c.h.b16 %v7727
  %v8336 = vunpack.c.l.b16 %v7728
  %v8337 = vunpack.c.h.b16 %v7728
  %v8338 = vunpack.c.l.b16 %v7729
  %v8339 = vunpack.c.h.b16 %v7729
  %v8340 = vunpack.c.l.b16 %v7730
  %v8341 = vunpack.c.h.b16 %v7730
  %v8342 = vunpack.c.l.b16 %v7731
  %v8343 = vunpack.c.h.b16 %v7731
  %v8344 = vunpack.c.l.b16 %v7732
  %v8345 = vunpack.c.h.b16 %v7732
  %v8346 = vunpack.c.l.b16 %v7733
  %v8347 = vunpack.c.h.b16 %v7733
  %v8348 = vunpack.c.l.b16 %v7734
  %v8349 = vunpack.c.h.b16 %v7734
  %v8350 = vunpack.c.l.b16 %v7735
  %v8351 = vunpack.c.h.b16 %v7735
  %v8352 = vunpack.c.l.b16 %v7736
  %v8353 = vunpack.c.h.b16 %v7736
  %v8354 = vunpack.c.l.b16 %v7737
  %v8355 = vunpack.c.h.b16 %v7737
  %v8356 = vunpack.c.l.b16 %v7738
  %v8357 = vunpack.c.h.b16 %v7738
  %v8358 = vunpack.c.l.b16 %v7739
  %v8359 = vunpack.c.h.b16 %v7739
  %v8360 = vunpack.c.l.b16 %v7740
  %v8361 = vunpack.c.h.b16 %v7740
  %v8362 = vunpack.c.l.b16 %v7741
  %v8363 = vunpack.c.h.b16 %v7741
  %v8364 = vunpack.c.l.b16 %v7742
  %v8365 = vunpack.c.h.b16 %v7742
  %v8366 = vunpack.c.l.b16 %v7743
  %v8367 = vunpack.c.h.b16 %v7743
  %v8368 = vunpack.c.l.b16 %v7744
  %v8369 = vunpack.c.h.b16 %v7744
  %v8370 = vunpack.c.l.b16 %v7745
  %v8371 = vunpack.c.h.b16 %v7745
  %v8372 = vunpack.c.l.b16 %v7746
  %v8373 = vunpack.c.h.b16 %v7746
  %v8374 = vunpack.c.l.b16 %v7747
  %v8375 = vunpack.c.h.b16 %v7747
  %v8376 = vunpack.c.l.b16 %v7748
  %v8377 = vunpack.c.h.b16 %v7748
  %v8378 = vunpack.c.l.b16 %v7749
  %v8379 = vunpack.c.h.b16 %v7749
  %v8380 = vunpack.c.l.b16 %v7750
  %v8381 = vunpack.c.h.b16 %v7750
  %v8382 = vunpack.c.l.b16 %v7751
  %v8383 = vunpack.c.h.b16 %v7751
  %v8384 = vunpack.c.l.b16 %v7752
  %v8385 = vunpack.c.h.b16 %v7752
  %v8386 = vunpack.c.l.b16 %v7753
  %v8387 = vunpack.c.h.b16 %v7753
  %v8388 = vunpack.c.l.b16 %v7754
  %v8389 = vunpack.c.h.b16 %v7754
  %v8390 = vunpack.c.l.b16 %v7755
  %v8391 = vunpack.c.h.b16 %v7755
  %v8392 = vunpack.c.l.b16 %v7756
  %v8393 = vunpack.c.h.b16 %v7756
  %v8394 = vunpack.c.l.b16 %v7757
  %v8395 = vunpack.c.h.b16 %v7757
  %v8396 = vunpack.c.l.b16 %v7758
  %v8397 = vunpack.c.h.b16 %v7758
  %v8398 = vunpack.c.l.b16 %v7759
  %v8399 = vunpack.c.h.b16 %v7759
  %v8400 = vunpack.c.l.b16 %v7760
  %v8401 = vunpack.c.h.b16 %v7760
  %v8402 = vunpack.c.l.b16 %v7761
  %v8403 = vunpack.c.h.b16 %v7761
  %v8404 = vunpack.c.l.b16 %v7762
  %v8405 = vunpack.c.h.b16 %v7762
  %v8406 = vunpack.c.l.b16 %v7763
  %v8407 = vunpack.c.h.b16 %v7763
  %v8408 = vunpack.c.l.b16 %v7764
  %v8409 = vunpack.c.h.b16 %v7764
  %v8410 = vunpack.c.l.b16 %v7765
  %v8411 = vunpack.c.h.b16 %v7765
  %v8412 = vunpack.c.l.b16 %v7766
  %v8413 = vunpack.c.h.b16 %v7766
  %v8414 = vunpack.c.l.b16 %v7767
  %v8415 = vunpack.c.h.b16 %v7767
  %v8416 = vunpack.c.l.b16 %v7768
  %v8417 = vunpack.c.h.b16 %v7768
  %v8418 = vunpack.c.l.b16 %v7769
  %v8419 = vunpack.c.h.b16 %v7769
  %v8420 = vunpack.c.l.b16 %v7770
  %v8421 = vunpack.c.h.b16 %v7770
  %v8422 = vunpack.c.l.b16 %v7771
  %v8423 = vunpack.c.h.b16 %v7771
  %v8424 = vunpack.c.l.b16 %v7772
  %v8425 = vunpack.c.h.b16 %v7772
  %v8426 = vunpack.c.l.b16 %v7773
  %v8427 = vunpack.c.h.b16 %v7773
  %v8428 = vunpack.c.l.b16 %v7774
  %v8429 = vunpack.c.h.b16 %v7774
  %v8430 = vunpack.c.l.b16 %v7775
  %v8431 = vunpack.c.h.b16 %v7775
  %v8432 = vunpack.c.l.b16 %v7776
  %v8433 = vunpack.c.h.b16 %v7776
  %v8434 = vunpack.c.l.b16 %v7777
  %v8435 = vunpack.c.h.b16 %v7777
  %v8436 = vunpack.c.l.b16 %v7778
  %v8437 = vunpack.c.h.b16 %v7778
  %v8438 = vunpack.c.l.b16 %v7779
  %v8439 = vunpack.c.h.b16 %v7779
  %v8440 = vunpack.c.l.b16 %v7780
  %v8441 = vunpack.c.h.b16 %v7780
  %v8442 = vunpack.c.l.b16 %v7781
  %v8443 = vunpack.c.h.b16 %v7781
  %v8444 = vunpack.c.l.b16 %v7782
  %v8445 = vunpack.c.h.b16 %v7782
  %v8446 = vunpack.c.l.b16 %v7783
  %v8447 = vunpack.c.h.b16 %v7783
  %v8448 = vunpack.c.l.b16 %v7784
  %v8449 = vunpack.c.h.b16 %v7784
  %v8450 = vunpack.c.l.b16 %v7785
  %v8451 = vunpack.c.h.b16 %v7785
  %v8452 = vunpack.c.l.b16 %v7786
  %v8453 = vunpack.c.h.b16 %v7786
  %v8454 = vunpack.c.l.b16 %v7787
  %v8455 = vunpack.c.h.b16 %v7787
  %v8456 = vunpack.c.l.b16 %v7788
  %v8457 = vunpack.c.h.b16 %v7788
  %v8458 = vunpack.c.l.b16 %v7789
  %v8459 = vunpack.c.h.b16 %v7789
  %v8460 = vunpack.c.l.b16 %v7790
  %v8461 = vunpack.c.h.b16 %v7790
  %v8462 = vunpack.c.l.b16 %v7791
  %v8463 = vunpack.c.h.b16 %v7791
  %v8464 = vunpack.c.l.b16 %v7792
  %v8465 = vunpack.c.h.b16 %v7792
  %v8466 = vunpack.c.l.b16 %v7793
  %v8467 = vunpack.c.h.b16 %v7793
  %v8468 = vunpack.c.l.b16 %v7794
  %v8469 = vunpack.c.h.b16 %v7794
  %v8470 = vunpack.c.l.b16 %v7795
  %v8471 = vunpack.c.h.b16 %v7795
  %v8472 = vunpack.c.l.b16 %v7796
  %v8473 = vunpack.c.h.b16 %v7796
  %v8474 = vunpack.c.l.b16 %v7797
  %v8475 = vunpack.c.h.b16 %v7797
  %v8476 = vunpack.c.l.b16 %v7798
  %v8477 = vunpack.c.h.b16 %v7798
  %v8478 = vunpack.c.l.b16 %v7799
  %v8479 = vunpack.c.h.b16 %v7799
  %v8480 = vunpack.c.l.b16 %v7800
  %v8481 = vunpack.c.h.b16 %v7800
  %v8482 = vunpack.c.l.b16 %v7801
  %v8483 = vunpack.c.h.b16 %v7801
  %v8484 = vunpack.c.l.b16 %v7802
  %v8485 = vunpack.c.h.b16 %v7802
  %v8486 = vunpack.c.l.b16 %v7803
  %v8487 = vunpack.c.h.b16 %v7803
  %v8488 = vunpack.c.l.b16 %v7804
  %v8489 = vunpack.c.h.b16 %v7804
  %v8490 = vunpack.c.l.b16 %v7805
  %v8491 = vunpack.c.h.b16 %v7805
  %v8492 = vunpack.c.l.b16 %v7806
  %v8493 = vunpack.c.h.b16 %v7806
  %v8494 = vunpack.c.l.b16 %v7807
  %v8495 = vunpack.c.h.b16 %v7807
  %v8496 = vunpack.c.l.b16 %v7808
  %v8497 = vunpack.c.h.b16 %v7808
  %v8498 = vunpack.c.l.b16 %v7809
  %v8499 = vunpack.c.h.b16 %v7809
  %v8500 = vunpack.c.l.b16 %v7810
  %v8501 = vunpack.c.h.b16 %v7810
  %v8502 = vunpack.c.l.b16 %v7811
  %v8503 = vunpack.c.h.b16 %v7811
  %v8504 = vunpack.c.l.b16 %v7812
  %v8505 = vunpack.c.h.b16 %v7812
  %v8506 = vunpack.c.l.b16 %v7813
  %v8507 = vunpack.c.h.b16 %v7813
  %v8508 = vunpack.c.l.b16 %v7814
  %v8509 = vunpack.c.h.b16 %v7814
  %v8510 = vunpack.c.l.b16 %v7815
  %v8511 = vunpack.c.h.b16 %v7815
  %v8512 = vunpack.c.l.b16 %v7816
  %v8513 = vunpack.c.h.b16 %v7816
  %v8514 = vunpack.c.l.b16 %v7817
  %v8515 = vunpack.c.h.b16 %v7817
  %v8516 = vunpack.c.l.b16 %v7818
  %v8517 = vunpack.c.h.b16 %v7818
  %v8518 = vunpack.c.l.b16 %v7819
  %v8519 = vunpack.c.h.b16 %v7819
  %v8520 = vunpack.c.l.b16 %v7820
  %v8521 = vunpack.c.h.b16 %v7820
  %v8522 = vunpack.c.l.b16 %v7821
  %v8523 = vunpack.c.h.b16 %v7821
  %v8524 = vunpack.c.l.b16 %v7822
  %v8525 = vunpack.c.h.b16 %v7822
  %v8526 = vunpack.c.l.b16 %v7823
  %v8527 = vunpack.c.h.b16 %v7823
  %v8528 = vunpack.c.l.b16 %v7824
  %v8529 = vunpack.c.h.b16 %v7824
  %v8530 = vunpack.c.l.b16 %v7825
  %v8531 = vunpack.c.h.b16 %v7825
  %v8532 = vunpack.c.l.b16 %v7826
  %v8533 = vunpack.c.h.b16 %v7826
  %v8534 = vunpack.c.l.b16 %v7827
  %v8535 = vunpack.c.h.b16 %v7827
  %v8536 = vunpack.c.l.b16 %v7828
  %v8537 = vunpack.c.h.b16 %v7828
  %v8538 = vunpack.c.l.b16 %v7829
  %v8539 = vunpack.c.h.b16 %v7829
  %v8540 = vunpack.c.l.b16 %v7830
  %v8541 = vunpack.c.h.b16 %v7830
  %v8542 = vunpack.c.l.b16 %v7831
  %v8543 = vunpack.c.h.b16 %v7831
  %v8544 = vunpack.c.l.b16 %v7832
  %v8545 = vunpack.c.h.b16 %v7832
  %v8546 = vunpack.c.l.b16 %v7833
  %v8547 = vunpack.c.h.b16 %v7833
  %v8548 = vunpack.c.l.b16 %v7834
  %v8549 = vunpack.c.h.b16 %v7834
  %v8550 = vunpack.c.l.b16 %v7835
  %v8551 = vunpack.c.h.b16 %v7835
  %v8552 = vunpack.c.l.b16 %v7836
  %v8553 = vunpack.c.h.b16 %v7836
  %v8554 = vunpack.c.l.b16 %v7837
  %v8555 = vunpack.c.h.b16 %v7837
  %v8556 = vunpack.c.l.b16 %v7838
  %v8557 = vunpack.c.h.b16 %v7838
  %v8558 = vunpack.c.l.b16 %v7839
  %v8559 = vunpack.c.h.b16 %v7839
  %v8560 = vunpack.c.l.b16 %v7840
  %v8561 = vunpack.c.h.b16 %v7840
  %v8562 = vunpack.c.l.b16 %v7841
  %v8563 = vunpack.c.h.b16 %v7841
  %v8564 = vunpack.c.l.b16 %v7842
  %v8565 = vunpack.c.h.b16 %v7842
  %v8566 = vunpack.c.l.b16 %v7843
  %v8567 = vunpack.c.h.b16 %v7843
  %v8568 = vunpack.c.l.b16 %v7844
  %v8569 = vunpack.c.h.b16 %v7844
  %v8570 = vunpack.c.l.b16 %v7845
  %v8571 = vunpack.c.h.b16 %v7845
  %v8572 = vunpack.c.l.b16 %v7846
  %v8573 = vunpack.c.h.b16 %v7846
  %v8574 = vunpack.c.l.b16 %v7847
  %v8575 = vunpack.c.h.b16 %v7847
  %v8576 = vunpack.c.l.b16 %v7848
  %v8577 = vunpack.c.h.b16 %v7848
  %v8578 = vunpack.c.l.b16 %v7849
  %v8579 = vunpack.c.h.b16 %v7849
  %v8580 = vunpack.c.l.b16 %v7850
  %v8581 = vunpack.c.h.b16 %v7850
  %v8582 = vunpack.c.l.b16 %v7851
  %v8583 = vunpack.c.h.b16 %v7851
  %v8584 = vunpack.c.l.b16 %v7852
  %v8585 = vunpack.c.h.b16 %v7852
  %v8586 = vunpack.c.l.b16 %v7853
  %v8587 = vunpack.c.h.b16 %v7853
  %v8588 = vunpack.c.l.b16 %v7854
  %v8589 = vunpack.c.h.b16 %v7854
  %v8590 = vunpack.c.l.b16 %v7855
  %v8591 = vunpack.c.h.b16 %v7855
  %v8592 = vunpack.c.l.b16 %v7856
  %v8593 = vunpack.c.h.b16 %v7856
  %v8594 = vunpack.c.l.b16 %v7857
  %v8595 = vunpack.c.h.b16 %v7857
  %v8596 = vunpack.c.l.b16 %v7858
  %v8597 = vunpack.c.h.b16 %v7858
  %v8598 = vunpack.c.l.b16 %v7859
  %v8599 = vunpack.c.h.b16 %v7859
  %v8600 = vunpack.c.l.b16 %v7860
  %v8601 = vunpack.c.h.b16 %v7860
  %v8602 = vunpack.c.l.b16 %v7861
  %v8603 = vunpack.c.h.b16 %v7861
  %v8604 = vunpack.c.l.b16 %v7862
  %v8605 = vunpack.c.h.b16 %v7862
  %v8606 = vunpack.c.l.b16 %v7863
  %v8607 = vunpack.c.h.b16 %v7863
  %v8608 = vunpack.c.l.b16 %v7864
  %v8609 = vunpack.c.h.b16 %v7864
  %v8610 = vunpack.c.l.b16 %v7865
  %v8611 = vunpack.c.h.b16 %v7865
  %v8612 = vunpack.c.l.b16 %v7866
  %v8613 = vunpack.c.h.b16 %v7866
  %v8614 = vunpack.c.l.b16 %v7867
  %v8615 = vunpack.c.h.b16 %v7867
  %v8616 = vunpack.c.l.b16 %v7868
  %v8617 = vunpack.c.h.b16 %v7868
  %v8618 = vunpack.c.l.b16 %v7869
  %v8619 = vunpack.c.h.b16 %v7869
  %v8620 = vunpack.c.l.b16 %v7870
  %v8621 = vunpack.c.h.b16 %v7870
  %v8622 = vunpack.c.l.b16 %v7871
  %v8623 = vunpack.c.h.b16 %v7871
  %v8624 = vunpack.c.l.b16 %v7872
  %v8625 = vunpack.c.h.b16 %v7872
  %v8626 = vunpack.c.l.b16 %v7873
  %v8627 = vunpack.c.h.b16 %v7873
  %v8628 = vunpack.c.l.b16 %v7874
  %v8629 = vunpack.c.h.b16 %v7874
  %v8630 = vunpack.c.l.b16 %v7875
  %v8631 = vunpack.c.h.b16 %v7875
  %v8632 = vunpack.c.l.b16 %v7876
  %v8633 = vunpack.c.h.b16 %v7876
  %v8634 = vunpack.c.l.b16 %v7877
  %v8635 = vunpack.c.h.b16 %v7877
  %v8636 = vunpack.c.l.b16 %v7878
  %v8637 = vunpack.c.h.b16 %v7878
  %v8638 = vunpack.c.l.b16 %v7879
  %v8639 = vunpack.c.h.b16 %v7879
  %v8640 = vunpack.c.l.b16 %v7880
  %v8641 = vunpack.c.h.b16 %v7880
  %v8642 = vunpack.c.l.b16 %v7881
  %v8643 = vunpack.c.h.b16 %v7881
  %v8644 = vunpack.c.l.b16 %v7882
  %v8645 = vunpack.c.h.b16 %v7882
  %v8646 = vunpack.c.l.b16 %v7883
  %v8647 = vunpack.c.h.b16 %v7883
  %v8648 = vunpack.c.l.b16 %v7884
  %v8649 = vunpack.c.h.b16 %v7884
  %v8650 = vunpack.c.l.b16 %v7885
  %v8651 = vunpack.c.h.b16 %v7885
  %v8652 = vunpack.c.l.b16 %v7886
  %v8653 = vunpack.c.h.b16 %v7886
  %v8654 = vunpack.c.l.b16 %v7887
  %v8655 = vunpack.c.h.b16 %v7887
  %v8656 = vunpack.c.l.b16 %v7888
  %v8657 = vunpack.c.h.b16 %v7888
  %v8658 = vunpack.c.l.b16 %v7889
  %v8659 = vunpack.c.h.b16 %v7889
  %v8660 = vunpack.c.l.b16 %v7890
  %v8661 = vunpack.c.h.b16 %v7890
  %v8662 = vunpack.c.l.b16 %v7891
  %v8663 = vunpack.c.h.b16 %v7891
  %v8664 = vunpack.c.l.b16 %v7892
  %v8665 = vunpack.c.h.b16 %v7892
  %v8666 = vunpack.c.l.b16 %v7893
  %v8667 = vunpack.c.h.b16 %v7893
  %v8668 = vunpack.c.l.b16 %v7894
  %v8669 = vunpack.c.h.b16 %v7894
  %v8670 = vunpack.c.l.b16 %v7895
  %v8671 = vunpack.c.h.b16 %v7895
  %v8672 = vunpack.c.l.b16 %v7896
  %v8673 = vunpack.c.h.b16 %v7896
  %v8674 = vunpack.c.l.b16 %v7897
  %v8675 = vunpack.c.h.b16 %v7897
  %v8676 = vunpack.c.l.b16 %v7898
  %v8677 = vunpack.c.h.b16 %v7898
  %v8678 = vunpack.c.l.b16 %v7899
  %v8679 = vunpack.c.h.b16 %v7899
  %v8680 = vunpack.c.l.b16 %v7900
  %v8681 = vunpack.c.h.b16 %v7900
  %v8682 = vunpack.c.l.b16 %v7901
  %v8683 = vunpack.c.h.b16 %v7901
  %v8684 = vunpack.c.l.b16 %v7902
  %v8685 = vunpack.c.h.b16 %v7902
  %v8686 = vunpack.c.l.b16 %v7903
  %v8687 = vunpack.c.h.b16 %v7903
  %v8688 = vunpack.c.l.b16 %v7904
  %v8689 = vunpack.c.h.b16 %v7904
  %v8690 = vunpack.c.l.b16 %v7905
  %v8691 = vunpack.c.h.b16 %v7905
  %v8692 = vunpack.c.l.b16 %v7906
  %v8693 = vunpack.c.h.b16 %v7906
  %v8694 = vunpack.c.l.b16 %v7907
  %v8695 = vunpack.c.h.b16 %v7907
  %v8696 = vunpack.c.l.b16 %v7908
  %v8697 = vunpack.c.h.b16 %v7908
  %v8698 = vunpack.c.l.b16 %v7909
  %v8699 = vunpack.c.h.b16 %v7909
  %v8700 = vunpack.c.l.b16 %v7910
  %v8701 = vunpack.c.h.b16 %v7910
  %v8702 = vunpack.c.l.b16 %v7911
  %v8703 = vunpack.c.h.b16 %v7911
  %v8704 = vunpack.c.l.b16 %v7912
  %v8705 = vunpack.c.h.b16 %v7912
  %v8706 = vunpack.c.l.b16 %v7913
  %v8707 = vunpack.c.h.b16 %v7913
  %v8708 = vunpack.c.l.b16 %v7914
  %v8709 = vunpack.c.h.b16 %v7914
  %v8710 = vunpack.c.l.b16 %v7915
  %v8711 = vunpack.c.h.b16 %v7915
  %v8712 = vunpack.c.l.b16 %v7916
  %v8713 = vunpack.c.h.b16 %v7916
  %v8714 = vunpack.c.l.b16 %v7917
  %v8715 = vunpack.c.h.b16 %v7917
  %v8716 = vunpack.c.l.b16 %v7918
  %v8717 = vunpack.c.h.b16 %v7918
  %v8718 = vunpack.c.l.b16 %v7919
  %v8719 = vunpack.c.h.b16 %v7919
  %v8720 = vunpack.c.l.b16 %v7920
  %v8721 = vunpack.c.h.b16 %v7920
  %v8722 = vunpack.c.l.b16 %v7921
  %v8723 = vunpack.c.h.b16 %v7921
  %v8724 = vunpack.c.l.b16 %v7922
  %v8725 = vunpack.c.h.b16 %v7922
  %v8726 = vunpack.c.l.b16 %v7923
  %v8727 = vunpack.c.h.b16 %v7923
  %v8728 = vunpack.c.l.b16 %v7924
  %v8729 = vunpack.c.h.b16 %v7924
  %v8730 = vunpack.c.l.b16 %v7925
  %v8731 = vunpack.c.h.b16 %v7925
  %v8732 = vunpack.c.l.b16 %v7926
  %v8733 = vunpack.c.h.b16 %v7926
  %v8734 = vunpack.c.l.b16 %v7927
  %v8735 = vunpack.c.h.b16 %v7927
  %v8736 = vunpack.c.l.b16 %v7928
  %v8737 = vunpack.c.h.b16 %v7928
  %v8738 = vunpack.c.l.b16 %v7929
  %v8739 = vunpack.c.h.b16 %v7929
  %v8740 = vunpack.c.l.b16 %v7930
  %v8741 = vunpack.c.h.b16 %v7930
  %v8742 = vunpack.c.l.b16 %v7931
  %v8743 = vunpack.c.h.b16 %v7931
  %v8744 = vunpack.c.l.b16 %v7932
  %v8745 = vunpack.c.h.b16 %v7932
  %v8746 = vunpack.c.l.b16 %v7933
  %v8747 = vunpack.c.h.b16 %v7933
  %v8748 = vunpack.c.l.b16 %v7934
  %v8749 = vunpack.c.h.b16 %v7934
  %v8750 = vunpack.c.l.b16 %v7935
  %v8751 = vunpack.c.h.b16 %v7935
  %v8752 = vunpack.c.l.b16 %v7936
  %v8753 = vunpack.c.h.b16 %v7936
  %v8754 = vunpack.c.l.b16 %v7937
  %v8755 = vunpack.c.h.b16 %v7937
  %v8756 = vunpack.c.l.b16 %v7938
  %v8757 = vunpack.c.h.b16 %v7938
  %v8758 = vunpack.c.l.b16 %v7939
  %v8759 = vunpack.c.h.b16 %v7939
  %v8760 = vunpack.c.l.b16 %v7940
  %v8761 = vunpack.c.h.b16 %v7940
  %v8762 = vunpack.c.l.b16 %v7941
  %v8763 = vunpack.c.h.b16 %v7941
  %v8764 = vunpack.c.l.b16 %v7942
  %v8765 = vunpack.c.h.b16 %v7942
  %v8766 = vunpack.c.l.b16 %v7943
  %v8767 = vunpack.c.h.b16 %v7943
  %v8768 = vunpack.c.l.b16 %v7944
  %v8769 = vunpack.c.h.b16 %v7944
  %v8770 = vunpack.c.l.b16 %v7945
  %v8771 = vunpack.c.h.b16 %v7945
  %v8772 = vunpack.c.l.b16 %v7946
  %v8773 = vunpack.c.h.b16 %v7946
  %v8774 = vunpack.c.l.b16 %v7947
  %v8775 = vunpack.c.h.b16 %v7947
  %v8776 = vunpack.c.l.b16 %v7948
  %v8777 = vunpack.c.h.b16 %v7948
  %v8778 = vunpack.c.l.b16 %v7949
  %v8779 = vunpack.c.h.b16 %v7949
  %v8780 = vunpack.c.l.b16 %v7950
  %v8781 = vunpack.c.h.b16 %v7950
  %v8782 = vunpack.c.l.b16 %v7951
  %v8783 = vunpack.c.h.b16 %v7951
  %v8784 = vunpack.c.l.b16 %v7952
  %v8785 = vunpack.c.h.b16 %v7952
  %v8786 = vunpack.c.l.b16 %v7953
  %v8787 = vunpack.c.h.b16 %v7953
  %v8788 = vunpack.c.l.b16 %v7954
  %v8789 = vunpack.c.h.b16 %v7954
  %v8790 = vunpack.c.l.b16 %v7955
  %v8791 = vunpack.c.h.b16 %v7955
  %v8792 = vunpack.c.l.b16 %v7956
  %v8793 = vunpack.c.h.b16 %v7956
  %v8794 = vunpack.c.l.b16 %v7957
  %v8795 = vunpack.c.h.b16 %v7957
  %v8796 = vunpack.c.l.b16 %v7958
  %v8797 = vunpack.c.h.b16 %v7958
  %v8798 = vunpack.c.l.b16 %v7959
  %v8799 = vunpack.c.h.b16 %v7959
  %v8800 = vunpack.c.l.b16 %v7960
  %v8801 = vunpack.c.h.b16 %v7960
  %v8802 = vunpack.c.l.b16 %v7961
  %v8803 = vunpack.c.h.b16 %v7961
  %v8804 = vunpack.c.l.b16 %v7962
  %v8805 = vunpack.c.h.b16 %v7962
  %v8806 = vunpack.c.l.b16 %v7963
  %v8807 = vunpack.c.h.b16 %v7963
  %v8808 = vunpack.c.l.b16 %v7964
  %v8809 = vunpack.c.h.b16 %v7964
  %v8810 = vunpack.c.l.b16 %v7965
  %v8811 = vunpack.c.h.b16 %v7965
  %v8812 = vunpack.c.l.b16 %v7966
  %v8813 = vunpack.c.h.b16 %v7966
  %v8814 = vunpack.c.l.b16 %v7967
  %v8815 = vunpack.c.h.b16 %v7967
  %v8816 = vunpack.c.l.b16 %v7968
  %v8817 = vunpack.c.h.b16 %v7968
  %v8818 = vunpack.c.l.b16 %v7969
  %v8819 = vunpack.c.h.b16 %v7969
  %v8820 = vunpack.c.l.b16 %v7970
  %v8821 = vunpack.c.h.b16 %v7970
  %v8822 = vunpack.c.l.b16 %v7971
  %v8823 = vunpack.c.h.b16 %v7971
  %v8824 = vunpack.c.l.b16 %v7972
  %v8825 = vunpack.c.h.b16 %v7972
  %v8826 = vunpack.c.l.b16 %v7973
  %v8827 = vunpack.c.h.b16 %v7973
  %v8828 = vunpack.c.l.b16 %v7974
  %v8829 = vunpack.c.h.b16 %v7974
  %v8830 = vunpack.c.l.b16 %v7975
  %v8831 = vunpack.c.h.b16 %v7975
  %v8832 = vunpack.c.l.b16 %v7976
  %v8833 = vunpack.c.h.b16 %v7976
  %v8834 = vunpack.c.l.b16 %v7977
  %v8835 = vunpack.c.h.b16 %v7977
  %v8836 = vunpack.c.l.b16 %v7978
  %v8837 = vunpack.c.h.b16 %v7978
  %v8838 = vunpack.c.l.b16 %v7979
  %v8839 = vunpack.c.h.b16 %v7979
  %v8840 = vunpack.c.l.b16 %v7980
  %v8841 = vunpack.c.h.b16 %v7980
  %v8842 = vunpack.c.l.b16 %v7981
  %v8843 = vunpack.c.h.b16 %v7981
  %v8844 = vunpack.c.l.b16 %v7982
  %v8845 = vunpack.c.h.b16 %v7982
  %v8846 = vunpack.c.l.b16 %v7983
  %v8847 = vunpack.c.h.b16 %v7983
  %v8848 = vunpack.c.l.b16 %v7984
  %v8849 = vunpack.c.h.b16 %v7984
  %v8850 = vunpack.c.l.b16 %v7985
  %v8851 = vunpack.c.h.b16 %v7985
  %v8852 = vunpack.c.l.b16 %v7986
  %v8853 = vunpack.c.h.b16 %v7986
  %v8854 = vunpack.c.l.b16 %v7987
  %v8855 = vunpack.c.h.b16 %v7987
  %v8856 = vunpack.c.l.b16 %v7988
  %v8857 = vunpack.c.h.b16 %v7988
  %v8858 = vunpack.c.l.b16 %v7989
  %v8859 = vunpack.c.h.b16 %v7989
  %v8860 = vunpack.c.l.b16 %v7990
  %v8861 = vunpack.c.h.b16 %v7990
  %v8862 = vunpack.c.l.b16 %v7991
  %v8863 = vunpack.c.h.b16 %v7991
  %v8864 = vunpack.c.l.b16 %v7992
  %v8865 = vunpack.c.h.b16 %v7992
  %v8866 = vunpack.c.l.b16 %v7993
  %v8867 = vunpack.c.h.b16 %v7993
  %v8868 = vunpack.c.l.b16 %v7994
  %v8869 = vunpack.c.h.b16 %v7994
  %v8870 = vunpack.c.l.b16 %v7995
  %v8871 = vunpack.c.h.b16 %v7995
  %v8872 = vpack.c.b16 %v8298, %v8296
  %v8873 = vpack.c.b16 %v8299, %v8297
  %v8874 = vpack.c.b16 %v8302, %v8300
  %v8875 = vpack.c.b16 %v8303, %v8301
  %v8876 = vpack.c.b16 %v8306, %v8304
  %v8877 = vpack.c.b16 %v8307, %v8305
  %v8878 = vpack.c.b16 %v8310, %v8308
  %v8879 = vpack.c.b16 %v8311, %v8309
  %v8880 = vpack.c.b16 %v8314, %v8312
  %v8881 = vpack.c.b16 %v8315, %v8313
  %v8882 = vpack.c.b16 %v8318, %v8316
  %v8883 = vpack.c.b16 %v8319, %v8317
  %v8884 = vpack.c.b16 %v8322, %v8320
  %v8885 = vpack.c.b16 %v8323, %v8321
  %v8886 = vpack.c.b16 %v8326, %v8324
  %v8887 = vpack.c.b16 %v8327, %v8325
  %v8888 = vpack.c.b16 %v8330, %v8328
  %v8889 = vpack.c.b16 %v8331, %v8329
  %v8890 = vpack.c.b16 %v8334, %v8332
  %v8891 = vpack.c.b16 %v8335, %v8333
  %v8892 = vpack.c.b16 %v8338, %v8336
  %v8893 = vpack.c.b16 %v8339, %v8337
  %v8894 = vpack.c.b16 %v8342, %v8340
  %v8895 = vpack.c.b16 %v8343, %v8341
  %v8896 = vpack.c.b16 %v8346, %v8344
  %v8897 = vpack.c.b16 %v8347, %v8345
  %v8898 = vpack.c.b16 %v8350, %v8348
  %v8899 = vpack.c.b16 %v8351, %v8349
  %v8900 = vpack.c.b16 %v8354, %v8352
  %v8901 = vpack.c.b16 %v8355, %v8353
  %v8902 = vpack.c.b16 %v8358, %v8356
  %v8903 = vpack.c.b16 %v8359, %v8357
  %v8904 = vpack.c.b16 %v8362, %v8360
  %v8905 = vpack.c.b16 %v8363, %v8361
  %v8906 = vpack.c.b16 %v8366, %v8364
  %v8907 = vpack.c.b16 %v8367, %v8365
  %v8908 = vpack.c.b16 %v8370, %v8368
  %v8909 = vpack.c.b16 %v8371, %v8369
  %v8910 = vpack.c.b16 %v8374, %v8372
  %v8911 = vpack.c.b16 %v8375, %v8373
  %v8912 = vpack.c.b16 %v8378, %v8376
  %v8913 = vpack.c.b16 %v8379, %v8377
  %v8914 = vpack.c.b16 %v8382, %v8380
  %v8915 = vpack.c.b16 %v8383, %v8381
  %v8916 = vpack.c.b16 %v8386, %v8384
  %v8917 = vpack.c.b16 %v8387, %v8385
  %v8918 = vpack.c.b16 %v8390, %v8388
  %v8919 = vpack.c.b16 %v8391, %v8389
  %v8920 = vpack.c.b16 %v8394, %v8392
  %v8921 = vpack.c.b16 %v8395, %v8393
  %v8922 = vpack.c.b16 %v8398, %v8396
  %v8923 = vpack.c.b16 %v8399, %v8397
  %v8924 = vpack.c.b16 %v8402, %v8400
  %v8925 = vpack.c.b16 %v8403, %v8401
  %v8926 = vpack.c.b16 %v8406, %v8404
  %v8927 = vpack.c.b16 %v8407, %v8405
  %v8928 = vpack.c.b16 %v8410, %v8408
  %v8929 = vpack.c.b16 %v8411, %v8409
  %v8930 = vpack.c.b16 %v8414, %v8412
  %v8931 = vpack.c.b16 %v8415, %v8413
  %v8932 = vpack.c.b16 %v8418, %v8416
  %v8933 = vpack.c.b16 %v8419, %v8417
  %v8934 = vpack.c.b16 %v8422, %v8420
  %v8935 = vpack.c.b16 %v8423, %v8421
  %v8936 = vpack.c.b16 %v8426, %v8424
  %v8937 = vpack.c.b16 %v8427, %v8425
  %v8938 = vpack.c.b16 %v8430, %v8428
  %v8939 = vpack.c.b16 %v8431, %v8429
  %v8940 = vpack.c.b16 %v8434, %v8432
  %v8941 = vpack.c.b16 %v8435, %v8433
  %v8942 = vpack.c.b16 %v8438, %v8436
  %v8943 = vpack.c.b16 %v8439, %v8437
  %v8944 = vpack.c.b16 %v8442, %v8440
  %v8945 = vpack.c.b16 %v8443, %v8441
  %v8946 = vpack.c.b16 %v8446, %v8444
  %v8947 = vpack.c.b16 %v8447, %v8445
  %v8948 = vpack.c.b16 %v8450, %v8448
  %v8949 = vpack.c.b16 %v8451, %v8449
  %v8950 = vpack.c.b16 %v8454, %v8452
  %v8951 = vpack.c.b16 %v8455, %v8453
  %v8952 = vpack.c.b16 %v8458, %v8456
  %v8953 = vpack.c.b16 %v8459, %v8457
  %v8954 = vpack.c.b16 %v8462, %v8460
  %v8955 = vpack.c.b16 %v8463, %v8461
  %v8956 = vpack.c.b16 %v8466, %v8464
  %v8957 = vpack.c.b16 %v8467, %v8465
  %v8958 = vpack.c.b16 %v8470, %v8468
  %v8959 = vpack.c.b16 %v8471, %v8469
  %v8960 = vpack.c.b16 %v8474, %v8472
  %v8961 = vpack.c.b16 %v8475, %v8473
  %v8962 = vpack.c.b16 %v8478, %v8476
  %v8963 = vpack.c.b16 %v8479, %v8477
  %v8964 = vpack.c.b16 %v8482, %v8480
  %v8965 = vpack.c.b16 %v8483, %v8481
  %v8966 = vpack.c.b16 %v8486, %v8484
  %v8967 = vpack.c.b16 %v8487, %v8485
  %v8968 = vpack.c.b16 %v8490, %v8488
  %v8969 = vpack.c.b16 %v8491, %v8489
  %v8970 = vpack.c.b16 %v8494, %v8492
  %v8971 = vpack.c.b16 %v8495, %v8493
  %v8972 = vpack.c.b16 %v8498, %v8496
  %v8973 = vpack.c.b16 %v8499, %v8497
  %v8974 = vpack.c.b16 %v8502, %v8500
  %v8975 = vpack.c.b16 %v8503, %v8501
  %v8976 = vpack.c.b16 %v8506, %v8504
  %v8977 = vpack.c.b16 %v8507, %v8505
  %v8978 = vpack.c.b16 %v8510, %v8508
  %v8979 = vpack.c.b16 %v8511, %v8509
  %v8980 = vpack.c.b16 %v8514, %v8512
  %v8981 = vpack.c.b16 %v8515, %v8513
  %v8982 = vpack.c.b16 %v8518, %v8516
  %v8983 = vpack.c.b16 %v8519, %v8517
  %v8984 = vpack.c.b16 %v8522, %v8520
  %v8985 = vpack.c.b16 %v8523, %v8521
  %v8986 = vpack.c.b16 %v8526, %v8524
  %v8987 = vpack.c.b16 %v8527, %v8525
  %v8988 = vpack.c.b16 %v8530, %v8528
  %v8989 = vpack.c.b16 %v8531, %v8529
  %v8990 = vpack.c.b16 %v8534, %v8532
  %v8991 = vpack.c.b16 %v8535, %v8533
  %v8992 = vpack.c.b16 %v8538, %v8536
  %v8993 = vpack.c.b16 %v8539, %v8537
  %v8994 = vpack.c.b16 %v8542, %v8540
  %v8995 = vpack.c.b16 %v8543, %v8541
  %v8996 = vpack.c.b16 %v8546, %v8544
  %v8997 = vpack.c.b16 %v8547, %v8545
  %v8998 = vpack.c.b16 %v8550, %v8548
  %v8999 = vpack.c.b16 %v8551, %v8549
  %v9000 = vpack.c.b16 %v8554, %v8552
  %v9001 = vpack.c.b16 %v8555, %v8553
  %v9002 = vpack.c.b16 %v8558, %v8556
  %v9003 = vpack.c.b16 %v8559, %v8557
  %v9004 = vpack.c.b16 %v8562, %v8560
  %v9005 = vpack.c.b16 %v8563, %v8561
  %v9006 = vpack.c.b16 %v8566, %v8564
  %v9007 = vpack.c.b16 %v8567, %v8565
  %v9008 = vpack.c.b16 %v8570, %v8568
  %v9009 = vpack.c.b16 %v8571, %v8569
  %v9010 = vpack.c.b16 %v8574, %v8572
  %v9011 = vpack.c.b16 %v8575, %v8573
  %v9012 = vpack.c.b16 %v8578, %v8576
  %v9013 = vpack.c.b16 %v8579, %v8577
  %v9014 = vpack.c.b16 %v8582, %v8580
  %v9015 = vpack.c.b16 %v8583, %v8581
  %v9016 = vpack.c.b16 %v8586, %v8584
  %v9017 = vpack.c.b16 %v8587, %v8585
  %v9018 = vpack.c.b16 %v8590, %v8588
  %v9019 = vpack.c.b16 %v8591, %v8589
  %v9020 = vpack.c.b16 %v8594, %v8592
  %v9021 = vpack.c.b16 %v8595, %v8593
  %v9022 = vpack.c.b16 %v8598, %v8596
  %v9023 = vpack.c.b16 %v8599, %v8597
  %v9024 = vpack.c.b16 %v8602, %v8600
  %v9025 = vpack.c.b16 %v8603, %v8601
  %v9026 = vpack.c.b16 %v8606, %v8604
  %v9027 = vpack.c.b16 %v8607, %v8605
  %v9028 = vpack.c.b16 %v8610, %v8608
  %v9029 = vpack.c.b16 %v8611, %v8609
  %v9030 = vpack.c.b16 %v8614, %v8612
  %v9031 = vpack.c.b16 %v8615, %v8613
  %v9032 = vpack.c.b16 %v8618, %v8616
  %v9033 = vpack.c.b16 %v8619, %v8617
  %v9034 = vpack.c.b16 %v8622, %v8620
  %v9035 = vpack.c.b16 %v8623, %v8621
  %v9036 = vpack.c.b16 %v8626, %v8624
  %v9037 = vpack.c.b16 %v8627, %v8625
  %v9038 = vpack.c.b16 %v8630, %v8628
  %v9039 = vpack.c.b16 %v8631, %v8629
  %v9040 = vpack.c.b16 %v8634, %v8632
  %v9041 = vpack.c.b16 %v8635, %v8633
  %v9042 = vpack.c.b16 %v8638, %v8636
  %v9043 = vpack.c.b16 %v8639, %v8637
  %v9044 = vpack.c.b16 %v8642, %v8640
  %v9045 = vpack.c.b16 %v8643, %v8641
  %v9046 = vpack.c.b16 %v8646, %v8644
  %v9047 = vpack.c.b16 %v8647, %v8645
  %v9048 = vpack.c.b16 %v8650, %v8648
  %v9049 = vpack.c.b16 %v8651, %v8649
  %v9050 = vpack.c.b16 %v8654, %v8652
  %v9051 = vpack.c.b16 %v8655, %v8653
  %v9052 = vpack.c.b16 %v8658, %v8656
  %v9053 = vpack.c.b16 %v8659, %v8657
  %v9054 = vpack.c.b16 %v8662, %v8660
  %v9055 = vpack.c.b16 %v8663, %v8661
  %v9056 = vpack.c.b16 %v8666, %v8664
  %v9057 = vpack.c.b16 %v8667, %v8665
  %v9058 = vpack.c.b16 %v8670, %v8668
  %v9059 = vpack.c.b16 %v8671, %v8669
  %v9060 = vpack.c.b16 %v8674, %v8672
  %v9061 = vpack.c.b16 %v8675, %v8673
  %v9062 = vpack.c.b16 %v8678, %v8676
  %v9063 = vpack.c.b16 %v8679, %v8677
  %v9064 = vpack.c.b16 %v8682, %v8680
  %v9065 = vpack.c.b16 %v8683, %v8681
  %v9066 = vpack.c.b16 %v8686, %v8684
  %v9067 = vpack.c.b16 %v8687, %v8685
  %v9068 = vpack.c.b16 %v8690, %v8688
  %v9069 = vpack.c.b16 %v8691, %v8689
  %v9070 = vpack.c.b16 %v8694, %v8692
  %v9071 = vpack.c.b16 %v8695, %v8693
  %v9072 = vpack.c.b16 %v8698, %v8696
  %v9073 = vpack.c.b16 %v8699, %v8697
  %v9074 = vpack.c.b16 %v8702, %v8700
  %v9075 = vpack.c.b16 %v8703, %v8701
  %v9076 = vpack.c.b16 %v8706, %v8704
  %v9077 = vpack.c.b16 %v8707, %v8705
  %v9078 = vpack.c.b16 %v8710, %v8708
  %v9079 = vpack.c.b16 %v8711, %v8709
  %v9080 = vpack.c.b16 %v8714, %v8712
  %v9081 = vpack.c.b16 %v8715, %v8713
  %v9082 = vpack.c.b16 %v8718, %v8716
  %v9083 = vpack.c.b16 %v8719, %v8717
  %v9084 = vpack.c.b16 %v8722, %v8720
  %v9085 = vpack.c.b16 %v8723, %v8721
  %v9086 = vpack.c.b16 %v8726, %v8724
  %v9087 = vpack.c.b16 %v8727, %v8725
  %v9088 = vpack.c.b16 %v8730, %v8728
  %v9089 = vpack.c.b16 %v8731, %v8729
  %v9090 = vpack.c.b16 %v8734, %v8732
  %v9091 = vpack.c.b16 %v8735, %v8733
  %v9092 = vpack.c.b16 %v8738, %v8736
  %v9093 = vpack.c.b16 %v8739, %v8737
  %v9094 = vpack.c.b16 %v8742, %v8740
  %v9095 = vpack.c.b16 %v8743, %v8741
  %v9096 = vpack.c.b16 %v8746, %v8744
  %v9097 = vpack.c.b16 %v8747, %v8745
  %v9098 = vpack.c.b16 %v8750, %v8748
  %v9099 = vpack.c.b16 %v8751, %v8749
  %v9100 = vpack.c.b16 %v8754, %v8752
  %v9101 = vpack.c.b16 %v8755, %v8753
  %v9102 = vpack.c.b16 %v8758, %v8756
  %v9103 = vpack.c.b16 %v8759, %v8757
  %v9104 = vpack.c.b16 %v8762, %v8760
  %v9105 = vpack.c.b16 %v8763, %v8761
  %v9106 = vpack.c.b16 %v8766, %v8764
  %v9107 = vpack.c.b16 %v8767, %v8765
  %v9108 = vpack.c.b16 %v8770, %v8768
  %v9109 = vpack.c.b16 %v8771, %v8769
  %v9110 = vpack.c.b16 %v8774, %v8772
  %v9111 = vpack.c.b16 %v8775, %v8773
  %v9112 = vpack.c.b16 %v8778, %v8776
  %v9113 = vpack.c.b16 %v8779, %v8777
  %v9114 = vpack.c.b16 %v8782, %v8780
  %v9115 = vpack.c.b16 %v8783, %v8781
  %v9116 = vpack.c.b16 %v8786, %v8784
  %v9117 = vpack.c.b16 %v8787, %v8785
  %v9118 = vpack.c.b16 %v8790, %v8788
  %v9119 = vpack.c.b16 %v8791, %v8789
  %v9120 = vpack.c.b16 %v8794, %v8792
  %v9121 = vpack.c.b16 %v8795, %v8793
  %v9122 = vpack.c.b16 %v8798, %v8796
  %v9123 = vpack.c.b16 %v8799, %v8797
  %v9124 = vpack.c.b16 %v8802, %v8800
  %v9125 = vpack.c.b16 %v8803, %v8801
  %v9126 = vpack.c.b16 %v8806, %v8804
  %v9127 = vpack.c.b16 %v8807, %v8805
  %v9128 = vpack.c.b16 %v8810, %v8808
  %v9129 = vpack.c.b16 %v8811, %v8809
  %v9130 = vpack.c.b16 %v8814, %v8812
  %v9131 = vpack.c.b16 %v8815, %v8813
  %v9132 = vpack.c.b16 %v8818, %v8816
  %v9133 = vpack.c.b16 %v8819, %v8817
  %v9134 = vpack.c.b16 %v8822, %v8820
  %v9135 = vpack.c.b16 %v8823, %v8821
  %v9136 = vpack.c.b16 %v8826, %v8824
  %v9137 = vpack.c.b16 %v8827, %v8825
  %v9138 = vpack.c.b16 %v8830, %v8828
  %v9139 = vpack.c.b16 %v8831, %v8829
  %v9140 = vpack.c.b16 %v8834, %v8832
  %v9141 = vpack.c.b16 %v8835, %v8833
  %v9142 = vpack.c.b16 %v8838, %v8836
  %v9143 = vpack.c.b16 %v8839, %v8837
  %v9144 = vpack.c.b16 %v8842, %v8840
  %v9145 = vpack.c.b16 %v8843, %v8841
  %v9146 = vpack.c.b16 %v8846, %v8844
  %v9147 = vpack.c.b16 %v8847, %v8845
  %v9148 = vpack.c.b16 %v8850, %v8848
  %v9149 = vpack.c.b16 %v8851, %v8849
  %v9150 = vpack.c.b16 %v8854, %v8852
  %v9151 = vpack.c.b16 %v8855, %v8853
  %v9152 = vpack.c.b16 %v8858, %v8856
  %v9153 = vpack.c.b16 %v8859, %v8857
  %v9154 = vpack.c.b16 %v8862, %v8860
  %v9155 = vpack.c.b16 %v8863, %v8861
  %v9156 = vpack.c.b16 %v8866, %v8864
  %v9157 = vpack.c.b16 %v8867, %v8865
  %v9158 = vpack.c.b16 %v8870, %v8868
  %v9159 = vpack.c.b16 %v8871, %v8869
  %9448 = vmatprep.subr.bf16.mxu0 %v8873
  %9449 = vmatpush1.bf16.msra.mxu0 %v8872
  %9450 = vmatprep.subr.bf16.mxu0 %v8875
  %9451 = vmatpush1.bf16.msra.mxu0 %v8874
  %9452 = vmatprep.subr.bf16.mxu0 %v8877
  %9453 = vmatpush1.bf16.msra.mxu0 %v8876
  %9454 = vmatprep.subr.bf16.mxu0 %v8879
  %9455 = vmatpush1.bf16.msra.mxu0 %v8878
  %9456 = vmatprep.subr.bf16.mxu0 %v8881
  %9457 = vmatpush1.bf16.msra.mxu0 %v8880
  %9458 = vmatprep.subr.bf16.mxu0 %v8883
  %9459 = vmatpush1.bf16.msra.mxu0 %v8882
  %9460 = vmatprep.subr.bf16.mxu0 %v8885
  %9461 = vmatpush1.bf16.msra.mxu0 %v8884
  %9462 = vmatprep.subr.bf16.mxu0 %v8887
  %9463 = vmatpush1.bf16.msra.mxu0 %v8886
  %9464 = vmatprep.subr.bf16.mxu0 %v8889
  %9465 = vmatpush1.bf16.msra.mxu0 %v8888
  %9466 = vmatprep.subr.bf16.mxu0 %v8891
  %9467 = vmatpush1.bf16.msra.mxu0 %v8890
  %9468 = vmatprep.subr.bf16.mxu0 %v8893
  %9469 = vmatpush1.bf16.msra.mxu0 %v8892
  %9470 = vmatprep.subr.bf16.mxu0 %v8895
  %9471 = vmatpush1.bf16.msra.mxu0 %v8894
  %9472 = vmatprep.subr.bf16.mxu0 %v8897
  %9473 = vmatpush1.bf16.msra.mxu0 %v8896
  %9474 = vmatprep.subr.bf16.mxu0 %v8899
  %9475 = vmatpush1.bf16.msra.mxu0 %v8898
  %9476 = vmatprep.subr.bf16.mxu0 %v8901
  %9477 = vmatpush1.bf16.msra.mxu0 %v8900
  %9478 = vmatprep.subr.bf16.mxu0 %v8903
  %9479 = vmatpush1.bf16.msra.mxu0 %v8902
  %9480 = vmatprep.mubr.bf16.mxu0 %v7673
  %9481 = vmatmul.mubr.bf16.gmra.mrb[0].mxu0 %v7672
  %v9482 = vpop.f32.mrb[0].mxu0
  %v9483 = vadd.f32 %v8001, %v9482
  %v9484 = vpop.f32.mrb[0].mxu0
  %v9485 = vadd.f32 %v8005, %v9484
  %v9486 = vpop.f32.mrb[0].mxu0
  %v9487 = vadd.f32 %v8001, %v9486
  %v9488 = vpop.f32.mrb[0].mxu0
  %v9489 = vadd.f32 %v8005, %v9488
  %9490 = vmatprep.mubr.bf16.mxu0 %v7691
  %9491 = vmatmul.mubr.bf16.gmra.mrb[0].mxu0 %v7690
  %v9492 = vpop.f32.mrb[0].mxu0
  %v9493 = vadd.f32 %v8001, %v9492
  %v9494 = vpop.f32.mrb[0].mxu0
  %v9495 = vadd.f32 %v8005, %v9494
  %v9496 = vpop.f32.mrb[0].mxu0
  %v9497 = vadd.f32 %v8001, %v9496
  %v9498 = vpop.f32.mrb[0].mxu0
  %v9499 = vadd.f32 %v8005, %v9498
  %9500 = vdwg.mxu0
  %9501 = vmatprep.subr.bf16.mxu0 %v8905
  %9502 = vmatpush1.bf16.msra.mxu0 %v8904
  %9503 = vmatprep.subr.bf16.mxu0 %v8907
  %9504 = vmatpush1.bf16.msra.mxu0 %v8906
  %9505 = vmatprep.subr.bf16.mxu0 %v8909
  %9506 = vmatpush1.bf16.msra.mxu0 %v8908
  %9507 = vmatprep.subr.bf16.mxu0 %v8911
  %9508 = vmatpush1.bf16.msra.mxu0 %v8910
  %9509 = vmatprep.subr.bf16.mxu0 %v8913
  %9510 = vmatpush1.bf16.msra.mxu0 %v8912
  %9511 = vmatprep.subr.bf16.mxu0 %v8915
  %9512 = vmatpush1.bf16.msra.mxu0 %v8914
  %9513 = vmatprep.subr.bf16.mxu0 %v8917
  %9514 = vmatpush1.bf16.msra.mxu0 %v8916
  %9515 = vmatprep.subr.bf16.mxu0 %v8919
  %9516 = vmatpush1.bf16.msra.mxu0 %v8918
  %9517 = vmatprep.subr.bf16.mxu0 %v8921
  %9518 = vmatpush1.bf16.msra.mxu0 %v8920
  %9519 = vmatprep.subr.bf16.mxu0 %v8923
  %9520 = vmatpush1.bf16.msra.mxu0 %v8922
  %9521 = vmatprep.subr.bf16.mxu0 %v8925
  %9522 = vmatpush1.bf16.msra.mxu0 %v8924
  %9523 = vmatprep.subr.bf16.mxu0 %v8927
  %9524 = vmatpush1.bf16.msra.mxu0 %v8926
  %9525 = vmatprep.subr.bf16.mxu0 %v8929
  %9526 = vmatpush1.bf16.msra.mxu0 %v8928
  %9527 = vmatprep.subr.bf16.mxu0 %v8931
  %9528 = vmatpush1.bf16.msra.mxu0 %v8930
  %9529 = vmatprep.subr.bf16.mxu0 %v8933
  %9530 = vmatpush1.bf16.msra.mxu0 %v8932
  %9531 = vmatprep.subr.bf16.mxu0 %v8935
  %9532 = vmatpush1.bf16.msra.mxu0 %v8934
  %9533 = vmatprep.mubr.bf16.mxu0 %v7675
  %9534 = vmatmul.mubr.bf16.gmra.mrb[0].mxu0 %v7674
  %v9535 = vpop.f32.mrb[0].mxu0
  %v9536 = vadd.f32 %v9483, %v9535
  %v9537 = vpop.f32.mrb[0].mxu0
  %v9538 = vadd.f32 %v9485, %v9537
  %v9539 = vpop.f32.mrb[0].mxu0
  %v9540 = vadd.f32 %v9487, %v9539
  %v9541 = vpop.f32.mrb[0].mxu0
  %v9542 = vadd.f32 %v9489, %v9541
  %9543 = vmatprep.mubr.bf16.mxu0 %v7693
  %9544 = vmatmul.mubr.bf16.gmra.mrb[0].mxu0 %v7692
  %v9545 = vpop.f32.mrb[0].mxu0
  %v9546 = vadd.f32 %v9493, %v9545
  %v9547 = vpop.f32.mrb[0].mxu0
  %v9548 = vadd.f32 %v9495, %v9547
  %v9549 = vpop.f32.mrb[0].mxu0
  %v9550 = vadd.f32 %v9497, %v9549
  %v9551 = vpop.f32.mrb[0].mxu0
  %v9552 = vadd.f32 %v9499, %v9551
  %9553 = vdwg.mxu0
  %9554 = vmatprep.subr.bf16.mxu0 %v8937
  %9555 = vmatpush1.bf16.msra.mxu0 %v8936
  %9556 = vmatprep.subr.bf16.mxu0 %v8939
  %9557 = vmatpush1.bf16.msra.mxu0 %v8938
  %9558 = vmatprep.subr.bf16.mxu0 %v8941
  %9559 = vmatpush1.bf16.msra.mxu0 %v8940
  %9560 = vmatprep.subr.bf16.mxu0 %v8943
  %9561 = vmatpush1.bf16.msra.mxu0 %v8942
  %9562 = vmatprep.subr.bf16.mxu0 %v8945
  %9563 = vmatpush1.bf16.msra.mxu0 %v8944
  %9564 = vmatprep.subr.bf16.mxu0 %v8947
  %9565 = vmatpush1.bf16.msra.mxu0 %v8946
  %9566 = vmatprep.subr.bf16.mxu0 %v8949
  %9567 = vmatpush1.bf16.msra.mxu0 %v8948
  %9568 = vmatprep.subr.bf16.mxu0 %v8951
  %9569 = vmatpush1.bf16.msra.mxu0 %v8950
  %9570 = vmatprep.subr.bf16.mxu0 %v8953
  %9571 = vmatpush1.bf16.msra.mxu0 %v8952
  %9572 = vmatprep.subr.bf16.mxu0 %v8955
  %9573 = vmatpush1.bf16.msra.mxu0 %v8954
  %9574 = vmatprep.subr.bf16.mxu0 %v8957
  %9575 = vmatpush1.bf16.msra.mxu0 %v8956
  %9576 = vmatprep.subr.bf16.mxu0 %v8959
  %9577 = vmatpush1.bf16.msra.mxu0 %v8958
  %9578 = vmatprep.subr.bf16.mxu0 %v8961
  %9579 = vmatpush1.bf16.msra.mxu0 %v8960
  %9580 = vmatprep.subr.bf16.mxu0 %v8963
  %9581 = vmatpush1.bf16.msra.mxu0 %v8962
  %9582 = vmatprep.subr.bf16.mxu0 %v8965
  %9583 = vmatpush1.bf16.msra.mxu0 %v8964
  %9584 = vmatprep.subr.bf16.mxu0 %v8967
  %9585 = vmatpush1.bf16.msra.mxu0 %v8966
  %9586 = vmatprep.mubr.bf16.mxu0 %v7677
  %9587 = vmatmul.mubr.bf16.gmra.mrb[0].mxu0 %v7676
  %v9588 = vpop.f32.mrb[0].mxu0
  %v9589 = vadd.f32 %v9536, %v9588
  %v9590 = vpop.f32.mrb[0].mxu0
  %v9591 = vadd.f32 %v9538, %v9590
  %v9592 = vpop.f32.mrb[0].mxu0
  %v9593 = vadd.f32 %v9540, %v9592
  %v9594 = vpop.f32.mrb[0].mxu0
  %v9595 = vadd.f32 %v9542, %v9594
  %9596 = vmatprep.mubr.bf16.mxu0 %v7695
  %9597 = vmatmul.mubr.bf16.gmra.mrb[0].mxu0 %v7694
  %v9598 = vpop.f32.mrb[0].mxu0
  %v9599 = vadd.f32 %v9546, %v9598
  %v9600 = vpop.f32.mrb[0].mxu0
  %v9601 = vadd.f32 %v9548, %v9600
  %v9602 = vpop.f32.mrb[0].mxu0
  %v9603 = vadd.f32 %v9550, %v9602
  %v9604 = vpop.f32.mrb[0].mxu0
  %v9605 = vadd.f32 %v9552, %v9604
  %9606 = vdwg.mxu0
  %9607 = vmatprep.subr.bf16.mxu0 %v8969
  %9608 = vmatpush1.bf16.msra.mxu0 %v8968
  %9609 = vmatprep.subr.bf16.mxu0 %v8971
  %9610 = vmatpush1.bf16.msra.mxu0 %v8970
  %9611 = vmatprep.subr.bf16.mxu0 %v8973
  %9612 = vmatpush1.bf16.msra.mxu0 %v8972
  %9613 = vmatprep.subr.bf16.mxu0 %v8975
  %9614 = vmatpush1.bf16.msra.mxu0 %v8974
  %9615 = vmatprep.subr.bf16.mxu0 %v8977
  %9616 = vmatpush1.bf16.msra.mxu0 %v8976
  %9617 = vmatprep.subr.bf16.mxu0 %v8979
  %9618 = vmatpush1.bf16.msra.mxu0 %v8978
  %9619 = vmatprep.subr.bf16.mxu0 %v8981
  %9620 = vmatpush1.bf16.msra.mxu0 %v8980
  %9621 = vmatprep.subr.bf16.mxu0 %v8983
  %9622 = vmatpush1.bf16.msra.mxu0 %v8982
  %9623 = vmatprep.subr.bf16.mxu0 %v8985
  %9624 = vmatpush1.bf16.msra.mxu0 %v8984
  %9625 = vmatprep.subr.bf16.mxu0 %v8987
  %9626 = vmatpush1.bf16.msra.mxu0 %v8986
  %9627 = vmatprep.subr.bf16.mxu0 %v8989
  %9628 = vmatpush1.bf16.msra.mxu0 %v8988
  %9629 = vmatprep.subr.bf16.mxu0 %v8991
  %9630 = vmatpush1.bf16.msra.mxu0 %v8990
  %9631 = vmatprep.subr.bf16.mxu0 %v8993
  %9632 = vmatpush1.bf16.msra.mxu0 %v8992
  %9633 = vmatprep.subr.bf16.mxu0 %v8995
  %9634 = vmatpush1.bf16.msra.mxu0 %v8994
  %9635 = vmatprep.subr.bf16.mxu0 %v8997
  %9636 = vmatpush1.bf16.msra.mxu0 %v8996
  %9637 = vmatprep.subr.bf16.mxu0 %v8999
  %9638 = vmatpush1.bf16.msra.mxu0 %v8998
  %9639 = vmatprep.mubr.bf16.mxu0 %v7679
  %9640 = vmatmul.mubr.bf16.gmra.mrb[0].mxu0 %v7678
  %v9641 = vpop.f32.mrb[0].mxu0
  %v9642 = vadd.f32 %v9589, %v9641
  %v9643 = vpop.f32.mrb[0].mxu0
  %v9644 = vadd.f32 %v9591, %v9643
  %v9645 = vpop.f32.mrb[0].mxu0
  %v9646 = vadd.f32 %v9593, %v9645
  %v9647 = vpop.f32.mrb[0].mxu0
  %v9648 = vadd.f32 %v9595, %v9647
  %9649 = vmatprep.mubr.bf16.mxu0 %v7697
  %9650 = vmatmul.mubr.bf16.gmra.mrb[0].mxu0 %v7696
  %v9651 = vpop.f32.mrb[0].mxu0
  %v9652 = vadd.f32 %v9599, %v9651
  %v9653 = vpop.f32.mrb[0].mxu0
  %v9654 = vadd.f32 %v9601, %v9653
  %v9655 = vpop.f32.mrb[0].mxu0
  %v9656 = vadd.f32 %v9603, %v9655
  %v9657 = vpop.f32.mrb[0].mxu0
  %v9658 = vadd.f32 %v9605, %v9657
  %9659 = vdwg.mxu0
  %9660 = vmatprep.subr.bf16.mxu0 %v9001
  %9661 = vmatpush1.bf16.msra.mxu0 %v9000
  %9662 = vmatprep.subr.bf16.mxu0 %v9003
  %9663 = vmatpush1.bf16.msra.mxu0 %v9002
  %9664 = vmatprep.subr.bf16.mxu0 %v9005
  %9665 = vmatpush1.bf16.msra.mxu0 %v9004
  %9666 = vmatprep.subr.bf16.mxu0 %v9007
  %9667 = vmatpush1.bf16.msra.mxu0 %v9006
  %9668 = vmatprep.subr.bf16.mxu0 %v9009
  %9669 = vmatpush1.bf16.msra.mxu0 %v9008
  %9670 = vmatprep.subr.bf16.mxu0 %v9011
  %9671 = vmatpush1.bf16.msra.mxu0 %v9010
  %9672 = vmatprep.subr.bf16.mxu0 %v9013
  %9673 = vmatpush1.bf16.msra.mxu0 %v9012
  %9674 = vmatprep.subr.bf16.mxu0 %v9015
  %9675 = vmatpush1.bf16.msra.mxu0 %v9014
  %9676 = vmatprep.subr.bf16.mxu0 %v9017
  %9677 = vmatpush1.bf16.msra.mxu0 %v9016
  %9678 = vmatprep.subr.bf16.mxu0 %v9019
  %9679 = vmatpush1.bf16.msra.mxu0 %v9018
  %9680 = vmatprep.subr.bf16.mxu0 %v9021
  %9681 = vmatpush1.bf16.msra.mxu0 %v9020
  %9682 = vmatprep.subr.bf16.mxu0 %v9023
  %9683 = vmatpush1.bf16.msra.mxu0 %v9022
  %9684 = vmatprep.subr.bf16.mxu0 %v9025
  %9685 = vmatpush1.bf16.msra.mxu0 %v9024
  %9686 = vmatprep.subr.bf16.mxu0 %v9027
  %9687 = vmatpush1.bf16.msra.mxu0 %v9026
  %9688 = vmatprep.subr.bf16.mxu0 %v9029
  %9689 = vmatpush1.bf16.msra.mxu0 %v9028
  %9690 = vmatprep.subr.bf16.mxu0 %v9031
  %9691 = vmatpush1.bf16.msra.mxu0 %v9030
  %9692 = vmatprep.mubr.bf16.mxu0 %v7681
  %9693 = vmatmul.mubr.bf16.gmra.mrb[0].mxu0 %v7680
  %v9694 = vpop.f32.mrb[0].mxu0
  %v9695 = vadd.f32 %v9642, %v9694
  %v9696 = vpop.f32.mrb[0].mxu0
  %v9697 = vadd.f32 %v9644, %v9696
  %v9698 = vpop.f32.mrb[0].mxu0
  %v9699 = vadd.f32 %v9646, %v9698
  %v9700 = vpop.f32.mrb[0].mxu0
  %v9701 = vadd.f32 %v9648, %v9700
  %9702 = vmatprep.mubr.bf16.mxu0 %v7699
  %9703 = vmatmul.mubr.bf16.gmra.mrb[0].mxu0 %v7698
  %v9704 = vpop.f32.mrb[0].mxu0
  %v9705 = vadd.f32 %v9652, %v9704
  %v9706 = vpop.f32.mrb[0].mxu0
  %v9707 = vadd.f32 %v9654, %v9706
  %v9708 = vpop.f32.mrb[0].mxu0
  %v9709 = vadd.f32 %v9656, %v9708
  %v9710 = vpop.f32.mrb[0].mxu0
  %v9711 = vadd.f32 %v9658, %v9710
  %9712 = vdwg.mxu0
  %9713 = vmatprep.subr.bf16.mxu0 %v9033
  %9714 = vmatpush1.bf16.msra.mxu0 %v9032
  %9715 = vmatprep.subr.bf16.mxu0 %v9035
  %9716 = vmatpush1.bf16.msra.mxu0 %v9034
  %9717 = vmatprep.subr.bf16.mxu0 %v9037
  %9718 = vmatpush1.bf16.msra.mxu0 %v9036
  %9719 = vmatprep.subr.bf16.mxu0 %v9039
  %9720 = vmatpush1.bf16.msra.mxu0 %v9038
  %9721 = vmatprep.subr.bf16.mxu0 %v9041
  %9722 = vmatpush1.bf16.msra.mxu0 %v9040
  %9723 = vmatprep.subr.bf16.mxu0 %v9043
  %9724 = vmatpush1.bf16.msra.mxu0 %v9042
  %9725 = vmatprep.subr.bf16.mxu0 %v9045
  %9726 = vmatpush1.bf16.msra.mxu0 %v9044
  %9727 = vmatprep.subr.bf16.mxu0 %v9047
  %9728 = vmatpush1.bf16.msra.mxu0 %v9046
  %9729 = vmatprep.subr.bf16.mxu0 %v9049
  %9730 = vmatpush1.bf16.msra.mxu0 %v9048
  %9731 = vmatprep.subr.bf16.mxu0 %v9051
  %9732 = vmatpush1.bf16.msra.mxu0 %v9050
  %9733 = vmatprep.subr.bf16.mxu0 %v9053
  %9734 = vmatpush1.bf16.msra.mxu0 %v9052
  %9735 = vmatprep.subr.bf16.mxu0 %v9055
  %9736 = vmatpush1.bf16.msra.mxu0 %v9054
  %9737 = vmatprep.subr.bf16.mxu0 %v9057
  %9738 = vmatpush1.bf16.msra.mxu0 %v9056
  %9739 = vmatprep.subr.bf16.mxu0 %v9059
  %9740 = vmatpush1.bf16.msra.mxu0 %v9058
  %9741 = vmatprep.subr.bf16.mxu0 %v9061
  %9742 = vmatpush1.bf16.msra.mxu0 %v9060
  %9743 = vmatprep.subr.bf16.mxu0 %v9063
  %9744 = vmatpush1.bf16.msra.mxu0 %v9062
  %9745 = vmatprep.mubr.bf16.mxu0 %v7683
  %9746 = vmatmul.mubr.bf16.gmra.mrb[0].mxu0 %v7682
  %v9747 = vpop.f32.mrb[0].mxu0
  %v9748 = vadd.f32 %v9695, %v9747
  %v9749 = vpop.f32.mrb[0].mxu0
  %v9750 = vadd.f32 %v9697, %v9749
  %v9751 = vpop.f32.mrb[0].mxu0
  %v9752 = vadd.f32 %v9699, %v9751
  %v9753 = vpop.f32.mrb[0].mxu0
  %v9754 = vadd.f32 %v9701, %v9753
  %9755 = vmatprep.mubr.bf16.mxu0 %v7701
  %9756 = vmatmul.mubr.bf16.gmra.mrb[0].mxu0 %v7700
  %v9757 = vpop.f32.mrb[0].mxu0
  %v9758 = vadd.f32 %v9705, %v9757
  %v9759 = vpop.f32.mrb[0].mxu0
  %v9760 = vadd.f32 %v9707, %v9759
  %v9761 = vpop.f32.mrb[0].mxu0
  %v9762 = vadd.f32 %v9709, %v9761
  %v9763 = vpop.f32.mrb[0].mxu0
  %v9764 = vadd.f32 %v9711, %v9763
  %9765 = vdwg.mxu0
  %9766 = vmatprep.subr.bf16.mxu0 %v9065
  %9767 = vmatpush1.bf16.msra.mxu0 %v9064
  %9768 = vmatprep.subr.bf16.mxu0 %v9067
  %9769 = vmatpush1.bf16.msra.mxu0 %v9066
  %9770 = vmatprep.subr.bf16.mxu0 %v9069
  %9771 = vmatpush1.bf16.msra.mxu0 %v9068
  %9772 = vmatprep.subr.bf16.mxu0 %v9071
  %9773 = vmatpush1.bf16.msra.mxu0 %v9070
  %9774 = vmatprep.subr.bf16.mxu0 %v9073
  %9775 = vmatpush1.bf16.msra.mxu0 %v9072
  %9776 = vmatprep.subr.bf16.mxu0 %v9075
  %9777 = vmatpush1.bf16.msra.mxu0 %v9074
  %9778 = vmatprep.subr.bf16.mxu0 %v9077
  %9779 = vmatpush1.bf16.msra.mxu0 %v9076
  %9780 = vmatprep.subr.bf16.mxu0 %v9079
  %9781 = vmatpush1.bf16.msra.mxu0 %v9078
  %9782 = vmatprep.subr.bf16.mxu0 %v9081
  %9783 = vmatpush1.bf16.msra.mxu0 %v9080
  %9784 = vmatprep.subr.bf16.mxu0 %v9083
  %9785 = vmatpush1.bf16.msra.mxu0 %v9082
  %9786 = vmatprep.subr.bf16.mxu0 %v9085
  %9787 = vmatpush1.bf16.msra.mxu0 %v9084
  %9788 = vmatprep.subr.bf16.mxu0 %v9087
  %9789 = vmatpush1.bf16.msra.mxu0 %v9086
  %9790 = vmatprep.subr.bf16.mxu0 %v9089
  %9791 = vmatpush1.bf16.msra.mxu0 %v9088
  %9792 = vmatprep.subr.bf16.mxu0 %v9091
  %9793 = vmatpush1.bf16.msra.mxu0 %v9090
  %9794 = vmatprep.subr.bf16.mxu0 %v9093
  %9795 = vmatpush1.bf16.msra.mxu0 %v9092
  %9796 = vmatprep.subr.bf16.mxu0 %v9095
  %9797 = vmatpush1.bf16.msra.mxu0 %v9094
  %9798 = vmatprep.mubr.bf16.mxu0 %v7685
  %9799 = vmatmul.mubr.bf16.gmra.mrb[0].mxu0 %v7684
  %v9800 = vpop.f32.mrb[0].mxu0
  %v9801 = vadd.f32 %v9748, %v9800
  %v9802 = vpop.f32.mrb[0].mxu0
  %v9803 = vadd.f32 %v9750, %v9802
  %v9804 = vpop.f32.mrb[0].mxu0
  %v9805 = vadd.f32 %v9752, %v9804
  %v9806 = vpop.f32.mrb[0].mxu0
  %v9807 = vadd.f32 %v9754, %v9806
  %9808 = vmatprep.mubr.bf16.mxu0 %v7703
  %9809 = vmatmul.mubr.bf16.gmra.mrb[0].mxu0 %v7702
  %v9810 = vpop.f32.mrb[0].mxu0
  %v9811 = vadd.f32 %v9758, %v9810
  %v9812 = vpop.f32.mrb[0].mxu0
  %v9813 = vadd.f32 %v9760, %v9812
  %v9814 = vpop.f32.mrb[0].mxu0
  %v9815 = vadd.f32 %v9762, %v9814
  %v9816 = vpop.f32.mrb[0].mxu0
  %v9817 = vadd.f32 %v9764, %v9816
  %9818 = vdwg.mxu0
  %9819 = vmatprep.subr.bf16.mxu0 %v9097
  %9820 = vmatpush1.bf16.msra.mxu0 %v9096
  %9821 = vmatprep.subr.bf16.mxu0 %v9099
  %9822 = vmatpush1.bf16.msra.mxu0 %v9098
  %9823 = vmatprep.subr.bf16.mxu0 %v9101
  %9824 = vmatpush1.bf16.msra.mxu0 %v9100
  %9825 = vmatprep.subr.bf16.mxu0 %v9103
  %9826 = vmatpush1.bf16.msra.mxu0 %v9102
  %9827 = vmatprep.subr.bf16.mxu0 %v9105
  %9828 = vmatpush1.bf16.msra.mxu0 %v9104
  %9829 = vmatprep.subr.bf16.mxu0 %v9107
  %9830 = vmatpush1.bf16.msra.mxu0 %v9106
  %9831 = vmatprep.subr.bf16.mxu0 %v9109
  %9832 = vmatpush1.bf16.msra.mxu0 %v9108
  %9833 = vmatprep.subr.bf16.mxu0 %v9111
  %9834 = vmatpush1.bf16.msra.mxu0 %v9110
  %9835 = vmatprep.subr.bf16.mxu0 %v9113
  %9836 = vmatpush1.bf16.msra.mxu0 %v9112
  %9837 = vmatprep.subr.bf16.mxu0 %v9115
  %9838 = vmatpush1.bf16.msra.mxu0 %v9114
  %9839 = vmatprep.subr.bf16.mxu0 %v9117
  %9840 = vmatpush1.bf16.msra.mxu0 %v9116
  %9841 = vmatprep.subr.bf16.mxu0 %v9119
  %9842 = vmatpush1.bf16.msra.mxu0 %v9118
  %9843 = vmatprep.subr.bf16.mxu0 %v9121
  %9844 = vmatpush1.bf16.msra.mxu0 %v9120
  %9845 = vmatprep.subr.bf16.mxu0 %v9123
  %9846 = vmatpush1.bf16.msra.mxu0 %v9122
  %9847 = vmatprep.subr.bf16.mxu0 %v9125
  %9848 = vmatpush1.bf16.msra.mxu0 %v9124
  %9849 = vmatprep.subr.bf16.mxu0 %v9127
  %9850 = vmatpush1.bf16.msra.mxu0 %v9126
  %9851 = vmatprep.mubr.bf16.mxu0 %v7687
  %9852 = vmatmul.mubr.bf16.gmra.mrb[0].mxu0 %v7686
  %v9853 = vpop.f32.mrb[0].mxu0
  %v9854 = vadd.f32 %v9801, %v9853
  %v9855 = vpop.f32.mrb[0].mxu0
  %v9856 = vadd.f32 %v9803, %v9855
  %v9857 = vpop.f32.mrb[0].mxu0
  %v9858 = vadd.f32 %v9805, %v9857
  %v9859 = vpop.f32.mrb[0].mxu0
  %v9860 = vadd.f32 %v9807, %v9859
  %9861 = vmatprep.mubr.bf16.mxu0 %v7705
  %9862 = vmatmul.mubr.bf16.gmra.mrb[0].mxu0 %v7704
  %v9863 = vpop.f32.mrb[0].mxu0
  %v9864 = vadd.f32 %v9811, %v9863
  %v9865 = vpop.f32.mrb[0].mxu0
  %v9866 = vadd.f32 %v9813, %v9865
  %v9867 = vpop.f32.mrb[0].mxu0
  %v9868 = vadd.f32 %v9815, %v9867
  %v9869 = vpop.f32.mrb[0].mxu0
  %v9870 = vadd.f32 %v9817, %v9869
  %9871 = vdwg.mxu0
  %9872 = vmatprep.subr.bf16.mxu0 %v9129
  %9873 = vmatpush1.bf16.msra.mxu0 %v9128
  %9874 = vmatprep.subr.bf16.mxu0 %v9131
  %9875 = vmatpush1.bf16.msra.mxu0 %v9130
  %9876 = vmatprep.subr.bf16.mxu0 %v9133
  %9877 = vmatpush1.bf16.msra.mxu0 %v9132
  %9878 = vmatprep.subr.bf16.mxu0 %v9135
  %9879 = vmatpush1.bf16.msra.mxu0 %v9134
  %9880 = vmatprep.subr.bf16.mxu0 %v9137
  %9881 = vmatpush1.bf16.msra.mxu0 %v9136
  %9882 = vmatprep.subr.bf16.mxu0 %v9139
  %9883 = vmatpush1.bf16.msra.mxu0 %v9138
  %9884 = vmatprep.subr.bf16.mxu0 %v9141
  %9885 = vmatpush1.bf16.msra.mxu0 %v9140
  %9886 = vmatprep.subr.bf16.mxu0 %v9143
  %9887 = vmatpush1.bf16.msra.mxu0 %v9142
  %9888 = vmatprep.subr.bf16.mxu0 %v9145
  %9889 = vmatpush1.bf16.msra.mxu0 %v9144
  %9890 = vmatprep.subr.bf16.mxu0 %v9147
  %9891 = vmatpush1.bf16.msra.mxu0 %v9146
  %9892 = vmatprep.subr.bf16.mxu0 %v9149
  %9893 = vmatpush1.bf16.msra.mxu0 %v9148
  %9894 = vmatprep.subr.bf16.mxu0 %v9151
  %9895 = vmatpush1.bf16.msra.mxu0 %v9150
  %9896 = vmatprep.subr.bf16.mxu0 %v9153
  %9897 = vmatpush1.bf16.msra.mxu0 %v9152
  %9898 = vmatprep.subr.bf16.mxu0 %v9155
  %9899 = vmatpush1.bf16.msra.mxu0 %v9154
  %9900 = vmatprep.subr.bf16.mxu0 %v9157
  %9901 = vmatpush1.bf16.msra.mxu0 %v9156
  %9902 = vmatprep.subr.bf16.mxu0 %v9159
  %9903 = vmatpush1.bf16.msra.mxu0 %v9158
  %9904 = vmatprep.mubr.bf16.mxu0 %v7689
  %9905 = vmatmul.mubr.bf16.gmra.mrb[0].mxu0 %v7688
  %v9906 = vpop.f32.mrb[0].mxu0
  %v9907 = vadd.f32 %v9854, %v9906
  %v9908 = vpop.f32.mrb[0].mxu0
  %v9909 = vadd.f32 %v9856, %v9908
  %v9910 = vpop.f32.mrb[0].mxu0
  %v9911 = vadd.f32 %v9858, %v9910
  %v9912 = vpop.f32.mrb[0].mxu0
  %v9913 = vadd.f32 %v9860, %v9912
  %9914 = vmatprep.mubr.bf16.mxu0 %v7707
  %9915 = vmatmul.mubr.bf16.gmra.mrb[0].mxu0 %v7706
  %v9916 = vpop.f32.mrb[0].mxu0
  %v9917 = vadd.f32 %v9864, %v9916
  %v9918 = vpop.f32.mrb[0].mxu0
  %v9919 = vadd.f32 %v9866, %v9918
  %v9920 = vpop.f32.mrb[0].mxu0
  %v9921 = vadd.f32 %v9868, %v9920
  %v9922 = vpop.f32.mrb[0].mxu0
  %v9923 = vadd.f32 %v9870, %v9922
  %9924 = vdwg.mxu0
  %vm9925 = vcmp.gt.f32.partialorder %v9907, 0.0
  %vm9926 = vcmp.gt.f32.partialorder %v9909, 0.0
  %vm9927 = vcmp.gt.f32.partialorder %v9911, 0.0
  %vm9928 = vcmp.gt.f32.partialorder %v9913, 0.0
  %vm9929 = vcmp.gt.f32.partialorder %v9917, 0.0
  %vm9930 = vcmp.gt.f32.partialorder %v9919, 0.0
  %vm9931 = vcmp.gt.f32.partialorder %v9921, 0.0
  %vm9932 = vcmp.gt.f32.partialorder %v9923, 0.0
  %v9933 = vmul.f32 %v9907, 0.2
  %v9934 = vmul.f32 %v9909, 0.2
  %v9935 = vmul.f32 %v9911, 0.2
  %v9936 = vmul.f32 %v9913, 0.2
  %v9937 = vmul.f32 %v9917, 0.2
  %v9938 = vmul.f32 %v9919, 0.2
  %v9939 = vmul.f32 %v9921, 0.2
  %v9940 = vmul.f32 %v9923, 0.2
  %v9941 = vsel %vm9925, %v9907, %v9933
  %v9942 = vsel %vm9926, %v9909, %v9934
  %v9943 = vsel %vm9927, %v9911, %v9935
  %v9944 = vsel %vm9928, %v9913, %v9936
  %v9945 = vsel %vm9929, %v9917, %v9937
  %v9946 = vsel %vm9930, %v9919, %v9938
  %v9947 = vsel %vm9931, %v9921, %v9939
  %v9948 = vsel %vm9932, %v9923, %v9940
  %v9949 = vadd.f32 %v9941, %v9943
  %v9950 = vadd.f32 %v9949, %v9945
  %v9951 = vadd.f32 %v9950, %v9947
  %v9952 = vadd.f32 %v9942, %v9944
  %v9953 = vadd.f32 %v9952, %v9946
  %v9954 = vadd.f32 %v9953, %v9948
  %v9955 = vrcp.pop 4.0
  %v9956 = vmul.f32 %v9951, %v9955
  %v9957 = vmul.f32 %v9954, %v9955
  %v9958 = vpack.c.bf16 %v9956, %v9956
  %v9959 = vpack.c.bf16 %v9957, %v9957
  %v9960 = vld [vmem:[%s9] sm:$0xff]
  %v9961 = vld [vmem:[%s9 + $0x8] sm:$0xff]
  %v9962 = vld [vmem:[%s9 + $0x10] sm:$0xff]
  %v9963 = vld [vmem:[%s9 + $0x18] sm:$0xff]
  %v9964 = vld [vmem:[%s9 + $0x20] sm:$0xff]
  %v9965 = vld [vmem:[%s9 + $0x28] sm:$0xff]
  %v9966 = vld [vmem:[%s9 + $0x30] sm:$0xff]
  %v9967 = vld [vmem:[%s9 + $0x38] sm:$0xff]
  %v9968 = vld [vmem:[%s9 + $0x40] sm:$0xff]
  %v9969 = vld [vmem:[%s9 + $0x48] sm:$0xff]
  %v9970 = vld [vmem:[%s9 + $0x50] sm:$0xff]
  %v9971 = vld [vmem:[%s9 + $0x58] sm:$0xff]
  %v9972 = vld [vmem:[%s9 + $0x60] sm:$0xff]
  %v9973 = vld [vmem:[%s9 + $0x68] sm:$0xff]
  %v9974 = vld [vmem:[%s9 + $0x70] sm:$0xff]
  %v9975 = vld [vmem:[%s9 + $0x78] sm:$0xff]
  %v9976 = vld [vmem:[%s9 + $0x80] sm:$0xff]
  %v9977 = vld [vmem:[%s9 + $0x88] sm:$0xff]
  %v9978 = vld [vmem:[%s9 + $0x90] sm:$0xff]
  %v9979 = vld [vmem:[%s9 + $0x98] sm:$0xff]
  %v9980 = vld [vmem:[%s9 + $0xa0] sm:$0xff]
  %v9981 = vld [vmem:[%s9 + $0xa8] sm:$0xff]
  %v9982 = vld [vmem:[%s9 + $0xb0] sm:$0xff]
  %v9983 = vld [vmem:[%s9 + $0xb8] sm:$0xff]
  %v9984 = vld [vmem:[%s9 + $0xc0] sm:$0xff]
  %v9985 = vld [vmem:[%s9 + $0xc8] sm:$0xff]
  %v9986 = vld [vmem:[%s9 + $0xd0] sm:$0xff]
  %v9987 = vld [vmem:[%s9 + $0xd8] sm:$0xff]
  %v9988 = vld [vmem:[%s9 + $0xe0] sm:$0xff]
  %v9989 = vld [vmem:[%s9 + $0xe8] sm:$0xff]
  %v9990 = vld [vmem:[%s9 + $0xf0] sm:$0xff]
  %v9991 = vld [vmem:[%s9 + $0xf8] sm:$0xff]
  %v9992 = vld [vmem:[%s10] sm:$0x3]
  %v9994 = vlaneseq
  %v9995 = vshrl.u32 %v9994, 7
  %v9996 = vsub.s32 0, %v9995
  %v9997 = vrot.slane %v9992, %v9996
  %v9998 = vlaneseq
  %v9999 = vshrl.u32 %v9998, 7
  %v10000 = vsub.s32 1, %v9999
  %v10001 = vrot.slane %v9992, %v10000
  %v10036 = vunpack.c.l.b16 %v9960
  %v10037 = vunpack.c.h.b16 %v9960
  %v10038 = vunpack.c.l.b16 %v9961
  %v10039 = vunpack.c.h.b16 %v9961
  %v10040 = vunpack.c.l.b16 %v9962
  %v10041 = vunpack.c.h.b16 %v9962
  %v10042 = vunpack.c.l.b16 %v9963
  %v10043 = vunpack.c.h.b16 %v9963
  %v10044 = vunpack.c.l.b16 %v9964
  %v10045 = vunpack.c.h.b16 %v9964
  %v10046 = vunpack.c.l.b16 %v9965
  %v10047 = vunpack.c.h.b16 %v9965
  %v10048 = vunpack.c.l.b16 %v9966
  %v10049 = vunpack.c.h.b16 %v9966
  %v10050 = vunpack.c.l.b16 %v9967
  %v10051 = vunpack.c.h.b16 %v9967
  %v10052 = vunpack.c.l.b16 %v9968
  %v10053 = vunpack.c.h.b16 %v9968
  %v10054 = vunpack.c.l.b16 %v9969
  %v10055 = vunpack.c.h.b16 %v9969
  %v10056 = vunpack.c.l.b16 %v9970
  %v10057 = vunpack.c.h.b16 %v9970
  %v10058 = vunpack.c.l.b16 %v9971
  %v10059 = vunpack.c.h.b16 %v9971
  %v10060 = vunpack.c.l.b16 %v9972
  %v10061 = vunpack.c.h.b16 %v9972
  %v10062 = vunpack.c.l.b16 %v9973
  %v10063 = vunpack.c.h.b16 %v9973
  %v10064 = vunpack.c.l.b16 %v9974
  %v10065 = vunpack.c.h.b16 %v9974
  %v10066 = vunpack.c.l.b16 %v9975
  %v10067 = vunpack.c.h.b16 %v9975
  %v10068 = vunpack.c.l.b16 %v9976
  %v10069 = vunpack.c.h.b16 %v9976
  %v10070 = vunpack.c.l.b16 %v9977
  %v10071 = vunpack.c.h.b16 %v9977
  %v10072 = vunpack.c.l.b16 %v9978
  %v10073 = vunpack.c.h.b16 %v9978
  %v10074 = vunpack.c.l.b16 %v9979
  %v10075 = vunpack.c.h.b16 %v9979
  %v10076 = vunpack.c.l.b16 %v9980
  %v10077 = vunpack.c.h.b16 %v9980
  %v10078 = vunpack.c.l.b16 %v9981
  %v10079 = vunpack.c.h.b16 %v9981
  %v10080 = vunpack.c.l.b16 %v9982
  %v10081 = vunpack.c.h.b16 %v9982
  %v10082 = vunpack.c.l.b16 %v9983
  %v10083 = vunpack.c.h.b16 %v9983
  %v10084 = vunpack.c.l.b16 %v9984
  %v10085 = vunpack.c.h.b16 %v9984
  %v10086 = vunpack.c.l.b16 %v9985
  %v10087 = vunpack.c.h.b16 %v9985
  %v10088 = vunpack.c.l.b16 %v9986
  %v10089 = vunpack.c.h.b16 %v9986
  %v10090 = vunpack.c.l.b16 %v9987
  %v10091 = vunpack.c.h.b16 %v9987
  %v10092 = vunpack.c.l.b16 %v9988
  %v10093 = vunpack.c.h.b16 %v9988
  %v10094 = vunpack.c.l.b16 %v9989
  %v10095 = vunpack.c.h.b16 %v9989
  %v10096 = vunpack.c.l.b16 %v9990
  %v10097 = vunpack.c.h.b16 %v9990
  %v10098 = vunpack.c.l.b16 %v9991
  %v10099 = vunpack.c.h.b16 %v9991
  %v10100 = vpack.c.b16 %v10038, %v10036
  %v10101 = vpack.c.b16 %v10039, %v10037
  %v10102 = vpack.c.b16 %v10042, %v10040
  %v10103 = vpack.c.b16 %v10043, %v10041
  %v10104 = vpack.c.b16 %v10046, %v10044
  %v10105 = vpack.c.b16 %v10047, %v10045
  %v10106 = vpack.c.b16 %v10050, %v10048
  %v10107 = vpack.c.b16 %v10051, %v10049
  %v10108 = vpack.c.b16 %v10054, %v10052
  %v10109 = vpack.c.b16 %v10055, %v10053
  %v10110 = vpack.c.b16 %v10058, %v10056
  %v10111 = vpack.c.b16 %v10059, %v10057
  %v10112 = vpack.c.b16 %v10062, %v10060
  %v10113 = vpack.c.b16 %v10063, %v10061
  %v10114 = vpack.c.b16 %v10066, %v10064
  %v10115 = vpack.c.b16 %v10067, %v10065
  %v10116 = vpack.c.b16 %v10070, %v10068
  %v10117 = vpack.c.b16 %v10071, %v10069
  %v10118 = vpack.c.b16 %v10074, %v10072
  %v10119 = vpack.c.b16 %v10075, %v10073
  %v10120 = vpack.c.b16 %v10078, %v10076
  %v10121 = vpack.c.b16 %v10079, %v10077
  %v10122 = vpack.c.b16 %v10082, %v10080
  %v10123 = vpack.c.b16 %v10083, %v10081
  %v10124 = vpack.c.b16 %v10086, %v10084
  %v10125 = vpack.c.b16 %v10087, %v10085
  %v10126 = vpack.c.b16 %v10090, %v10088
  %v10127 = vpack.c.b16 %v10091, %v10089
  %v10128 = vpack.c.b16 %v10094, %v10092
  %v10129 = vpack.c.b16 %v10095, %v10093
  %v10130 = vpack.c.b16 %v10098, %v10096
  %v10131 = vpack.c.b16 %v10099, %v10097
  %10164 = vmatprep.subr.bf16.mxu0 %v10101
  %10165 = vmatpush1.bf16.msra.mxu0 %v10100
  %10166 = vmatprep.subr.bf16.mxu0 %v10103
  %10167 = vmatpush1.bf16.msra.mxu0 %v10102
  %10168 = vmatprep.subr.bf16.mxu0 %v10105
  %10169 = vmatpush1.bf16.msra.mxu0 %v10104
  %10170 = vmatprep.subr.bf16.mxu0 %v10107
  %10171 = vmatpush1.bf16.msra.mxu0 %v10106
  %10172 = vmatprep.subr.bf16.mxu0 %v10109
  %10173 = vmatpush1.bf16.msra.mxu0 %v10108
  %10174 = vmatprep.subr.bf16.mxu0 %v10111
  %10175 = vmatpush1.bf16.msra.mxu0 %v10110
  %10176 = vmatprep.subr.bf16.mxu0 %v10113
  %10177 = vmatpush1.bf16.msra.mxu0 %v10112
  %10178 = vmatprep.subr.bf16.mxu0 %v10115
  %10179 = vmatpush1.bf16.msra.mxu0 %v10114
  %10180 = vmatprep.subr.bf16.mxu0 %v10117
  %10181 = vmatpush1.bf16.msra.mxu0 %v10116
  %10182 = vmatprep.subr.bf16.mxu0 %v10119
  %10183 = vmatpush1.bf16.msra.mxu0 %v10118
  %10184 = vmatprep.subr.bf16.mxu0 %v10121
  %10185 = vmatpush1.bf16.msra.mxu0 %v10120
  %10186 = vmatprep.subr.bf16.mxu0 %v10123
  %10187 = vmatpush1.bf16.msra.mxu0 %v10122
  %10188 = vmatprep.subr.bf16.mxu0 %v10125
  %10189 = vmatpush1.bf16.msra.mxu0 %v10124
  %10190 = vmatprep.subr.bf16.mxu0 %v10127
  %10191 = vmatpush1.bf16.msra.mxu0 %v10126
  %10192 = vmatprep.subr.bf16.mxu0 %v10129
  %10193 = vmatpush1.bf16.msra.mxu0 %v10128
  %10194 = vmatprep.subr.bf16.mxu0 %v10131
  %10195 = vmatpush1.bf16.msra.mxu0 %v10130
  %10196 = vmatprep.mubr.bf16.mxu0 %v9959
  %10197 = vmatmul.mubr.bf16.gmra.mrb[0].mxu0 %v9958
  %v10198 = vpop.f32.mrb[0].mxu0
  %v10199 = vadd.f32 %v9997, %v10198
  %v10200 = vpop.f32.mrb[0].mxu0
  %v10201 = vadd.f32 %v10001, %v10200
  %v10202 = vpop.f32.mrb[0].mxu0
  %v10203 = vpop.f32.mrb[0].mxu0
  %10204 = vdwg.mxu0
  %v10205 = vmul.f32 %v10199, 0.5
  %v10206 = vmul.f32 %v10201, 0.5
  %v10207 = vmul.f32 %v10199, 0.044715
  %v10208 = vmul.f32 %v10201, 0.044715
  %v10209 = vmul.f32 %v10207, %v10199
  %v10210 = vmul.f32 %v10208, %v10201
  %v10211 = vmul.f32 %v10209, %v10199
  %v10212 = vmul.f32 %v10210, %v10201
  %v10213 = vadd.f32 %v10199, %v10211
  %v10214 = vadd.f32 %v10201, %v10212
  %v10215 = vmul.f32 %v10213, 0.7978846
  %v10216 = vmul.f32 %v10214, 0.7978846
  %v10217 = vtanh.pop %v10215
  %v10218 = vtanh.pop %v10216
  %v10219 = vadd.f32 %v10217, 1.0
  %v10220 = vadd.f32 %v10218, 1.0
  %v10221 = vmul.f32 %v10205, %v10219
  %v10222 = vmul.f32 %v10206, %v10220
  %v10223 = vld [vmem:[%s11] sm:$0x3]
  %v10225 = vlaneseq
  %v10226 = vshrl.u32 %v10225, 7
  %v10227 = vsub.s32 0, %v10226
  %v10228 = vrot.slane %v10223, %v10227
  %v10229 = vlaneseq
  %v10230 = vshrl.u32 %v10229, 7
  %v10231 = vsub.s32 1, %v10230
  %v10232 = vrot.slane %v10223, %v10231
  %v10235 = vmul.f32 %v10221, %v10228
  %v10236 = vmul.f32 %v10222, %v10232
  %v10237 = vadd.f32 %v10235, %v10236
  %10238 = vadd.xlane.f32.xlu0 %v10237
  %v10239 = vpop.xlane.xlu0 %10238
  %v10240 = vld [vmem:[#allocation9] sm:$0x1]
  %v10242 = vlaneseq
  %v10243 = vshrl.u32 %v10242, 7
  %v10244 = vsub.s32 0, %v10243
  %v10245 = vrot.slane %v10240, %v10244
  %v10247 = vadd.f32 %v10239, %v10245
  %vm10248 = vcmask 7168
  %10249 = vst.msk [vmem:[%s13] sm:$0xff] %vm10248, %v10247
  // Predicated region
  $region54: #{_lambda_.1} parent=0 // pred_check
    _
  $region55: #{_lambda_.1} parent=0 // pred_check_branch
    %10251 = sbr.rel (0) target = $region57
  $region56: #{_lambda_.1} parent=0 // pred_region
    _
  $region57: #{_lambda_.1} parent=0 // pred_fallthru
    _
  // Predicated region
  $region58: #{_lambda_.1} parent=0 // pred_check
    _
  $region59: #{_lambda_.1} parent=0 // pred_check_branch
    %10253 = sbr.rel (0) target = $region61
  $region60: #{_lambda_.1} parent=0 // pred_region
    _
  $region61: #{_lambda_.1} parent=0 // pred_fallthru
    _

</llo_original>
